<compile_context>
chip_gen: v5e
topology: v5e:2x2
jax: 0.10.0
libtpu: 0.0.40
codegen_flags: <defaults>
</compile_context>

<pallas_src>
import functools

import jax
import jax.numpy as jnp
import numpy as np
from jax.experimental import pallas as pl
from jax.experimental.pallas import tpu as pltpu

EPS = 1e-5
NEG_LARGE = -1e30            # effective -inf for maxpool halo (every window has real pixels)
MATMUL_DTYPE = jnp.float32   # set to jnp.bfloat16 on v6e/v7x at real channel counts
VMEM_SPEC = pl.BlockSpec(memory_space=pltpu.MemorySpace.VMEM)


def _bn_train(y, gamma, beta):
    """Train-mode BatchNorm on (M, C): single-pass sum / sum-of-squares stats."""
    inv_m = 1.0 / y.shape[0]
    s1 = jnp.sum(y, axis=0, keepdims=True)
    s2 = jnp.sum(y * y, axis=0, keepdims=True)
    mu = s1 * inv_m
    var = jnp.maximum(s2 * inv_m - mu * mu, 0.0)   # guard E[x^2]-E[x]^2 < 0
    return (y - mu) * jax.lax.rsqrt(var + EPS) * gamma + beta


# ------------------------------- fused kernel --------------------------------

def _block_kernel(*refs, N, H, W, strides, stage_cfg, has_skip):
    """[ReLU -> (DW3x3 folded into PW1x1 on MXU) -> BN] x stages
       -> strided 3x3 maxpool -> (skip 1x1 conv -> BN) -> residual add."""
    n_stages = len(stage_cfg)
    cin0 = stage_cfg[0][0]
    cout = stage_cfg[-1][1]
    Ho = H // strides if strides != 1 else H
    Wo = W // strides if strides != 1 else W

    # ---- unpack refs: inputs, output, scratch ----
    p = 0
    x_ref = refs[p]; p += 1
    st_refs = []
    for _ in range(n_stages):
        st_refs.append(refs[p:p + 3]); p += 3          # (wcomb, gamma, beta)
    if has_skip:
        ws_ref, gs_ref, bs_ref = refs[p:p + 3]; p += 3
    o_ref = refs[p]; p += 1
    pad_ref, pool_ref, xs_ref = refs[p:p + 3]

    # zero the halo scratch once: the border stays 0 for every conv stage.
    pad_ref[...] = jnp.zeros_like(pad_ref)

    # ---- rep branch: fused ReLU -> separable conv -> BN per stage ----
    cur = x_ref[...]                                    # (N, H, W, cin0) f32
    for s_i, (cin, cst, relu) in enumerate(stage_cfg):
        w_ref, g_ref, b_ref = st_refs[s_i]
        if relu:
            cur = jnp.maximum(cur, 0.0)
        pad_ref[:, 1:H + 1, 1:W + 1, :cin] = cur        # interior write, zero halo
        # depthwise 3x3 + pointwise fused: 9 shifted-window MXU matmuls.
        acc = jnp.zeros((N * H * W, cst), jnp.float32)
        for k in range(9):
            dh, dw = k // 3, k % 3
            win = pad_ref[:, dh:dh + H, dw:dw + W, :cin]
            a = win.reshape(N * H * W, cin).astype(MATMUL_DTYPE)
            acc = acc + jnp.dot(a, w_ref[k], preferred_element_type=jnp.float32)
        acc = _bn_train(acc, g_ref[...], b_ref[...])
        cur = acc.reshape(N, H, W, cst)

    # ---- strided 3x3 maxpool (pad 1), output computed directly at (Ho, Wo) ----
    if strides != 1:
        pad_ref[...] = jnp.full(pad_ref.shape, NEG_LARGE, jnp.float32)
        pad_ref[:, 1:H + 1, 1:W + 1, :cout] = cur
        padm = pad_ref[:, :, :, :cout]                  # (N, H+2, W+2, cout)
        rows = []
        for ho in range(Ho):                            # H-direction window max (decimated)
            r = padm[:, strides * ho:strides * ho + 1, :, :]
            r = jnp.maximum(r, padm[:, strides * ho + 1:strides * ho + 2, :, :])
            r = jnp.maximum(r, padm[:, strides * ho + 2:strides * ho + 3, :, :])
            rows.append(r)
        hd = jnp.concatenate(rows, axis=1)              # (N, Ho, W+2, cout)
        for wo in range(Wo):                            # W-direction window max (decimated)
            c = hd[:, :, strides * wo:strides * wo + 1, :]
            c = jnp.maximum(c, hd[:, :, strides * wo + 1:strides * wo + 2, :])
            c = jnp.maximum(c, hd[:, :, strides * wo + 2:strides * wo + 3, :])
            pool_ref[:, :, wo:wo + 1, :] = c
        cur = pool_ref[...]                             # (N, Ho, Wo, cout)

    # ---- skip branch + residual add ----
    if has_skip:
        xv = x_ref[...]
        if strides != 1:
            # strided sampling of the input for the 1x1 stride-s skip conv
            xh = jnp.concatenate(
                [xv[:, strides * ho:strides * ho + 1, :, :] for ho in range(Ho)], axis=1)
            for wo in range(Wo):
                xs_ref[:, :, wo:wo + 1, :] = xh[:, :, strides * wo:strides * wo + 1, :]
            xs = xs_ref[...]                            # (N, Ho, Wo, cin0)
        else:
            xs = xv
        a = xs.reshape(N * Ho * Wo, cin0).astype(MATMUL_DTYPE)
        ys = jnp.dot(a, ws_ref[...], preferred_element_type=jnp.float32)
        ys = _bn_train(ys, gs_ref[...], bs_ref[...])
        o_ref[...] = (cur + ys.reshape(N, Ho, Wo, cout)).astype(o_ref.dtype)
    else:
        o_ref[...] = (cur + x_ref[...]).astype(o_ref.dtype)


# ------------------------------ Block wrapper --------------------------------

def init_block_params(key, in_filters, out_filters, reps, strides=1,
                      start_with_relu=True, grow_first=True):
    """Deterministic synthetic parameters mirroring Block.__init__ shapes."""
    stages_cfg = []
    filters = in_filters
    if grow_first:
        stages_cfg.append([in_filters, out_filters, True])
        filters = out_filters
    for _ in range(reps - 1):
        stages_cfg.append([filters, filters, True])
    if not grow_first:
        stages_cfg.append([in_filters, out_filters, True])
    if not start_with_relu:
        stages_cfg[0][2] = False  # rep = rep[1:] drops only the very first ReLU

    params = {"stages": [], "skip": None, "strides": strides}
    for (cin, cout, has_relu) in stages_cfg:
        key, k1, k2, k3, k4 = jax.random.split(key, 5)
        params["stages"].append(dict(
            relu=has_relu,
            wdw=jax.random.normal(k1, (9, cin), jnp.float32) * 0.2,
            wpw=jax.random.normal(k2, (cin, cout), jnp.float32) / np.sqrt(cin),
            gamma=1.0 + 0.1 * jax.random.normal(k3, (1, cout), jnp.float32),
            beta=0.1 * jax.random.normal(k4, (1, cout), jnp.float32),
        ))
    if out_filters != in_filters or strides != 1:
        key, k1, k2, k3 = jax.random.split(key, 4)
        params["skip"] = dict(
            w=jax.random.normal(k1, (in_filters, out_filters), jnp.float32)
              / np.sqrt(in_filters),
            gamma=1.0 + 0.1 * jax.random.normal(k2, (1, out_filters), jnp.float32),
            beta=0.1 * jax.random.normal(k3, (1, out_filters), jnp.float32),
        )
    return params


def block_forward(x_nchw, params):
    strides = int(params["strides"])
    x = jnp.transpose(x_nchw, (0, 2, 3, 1)).astype(jnp.float32)   # NCHW -> NHWC
    N, H, W, cin0 = x.shape
    if strides != 1:
        assert H % strides == 0 and W % strides == 0, \
            "strided Block assumes H, W divisible by strides"
    Ho = H // strides if strides != 1 else H
    Wo = W // strides if strides != 1 else W

    stage_cfg = []
    args = [x]
    for st in params["stages"]:
        cin, cst = st["wpw"].shape
        stage_cfg.append((int(cin), int(cst), bool(st["relu"])))
        # fold the depthwise 3x3 into the pointwise matmul: W_k = diag(wdw[k]) @ wpw
        wcomb = (st["wdw"][:, :, None] * st["wpw"][None, :, :]).astype(MATMUL_DTYPE)
        args += [wcomb, st["gamma"], st["beta"]]
    stage_cfg = tuple(stage_cfg)
    cout = stage_cfg[-1][1]
    cmax = max([cin0] + [c for _, c, _ in stage_cfg])

    has_skip = params["skip"] is not None
    if has_skip:
        sk = params["skip"]
        args += [sk["w"].astype(MATMUL_DTYPE), sk["gamma"], sk["beta"]]

    kernel = functools.partial(_block_kernel, N=N, H=H, W=W, strides=strides,
                               stage_cfg=stage_cfg, has_skip=has_skip)
    out = pl.pallas_call(
        kernel,
        out_shape=jax.ShapeDtypeStruct((N, Ho, Wo, cout), jnp.float32),
        in_specs=[VMEM_SPEC] * len(args),
        out_specs=VMEM_SPEC,
        scratch_shapes=[
            pltpu.VMEM((N, H + 2, W + 2, cmax), jnp.float32),   # shared halo scratch
            pltpu.VMEM((N, Ho, Wo, cout), jnp.float32),         # pooled main branch
            pltpu.VMEM((N, Ho, Wo, cin0), jnp.float32),         # strided skip input
        ],
        compiler_params=pltpu.CompilerParams(vmem_limit_bytes=32 * 1024 * 1024),
    )(*args)
    return jnp.transpose(out, (0, 3, 1, 2))                      # NHWC -> NCHW


# ----------------------------- pure-JAX reference ----------------------------

def _ref_block(x_nchw, params):
    strides = params["strides"]
    x = jnp.transpose(x_nchw, (0, 2, 3, 1)).astype(jnp.float32)

    def bn(t, g, b):
        mu = jnp.mean(t, axis=(0, 1, 2), keepdims=True)
        var = jnp.mean((t - mu) ** 2, axis=(0, 1, 2), keepdims=True)
        return (t - mu) * jax.lax.rsqrt(var + EPS) * g.reshape(1, 1, 1, -1) \
            + b.reshape(1, 1, 1, -1)

    y = x
    for st in params["stages"]:
        if st["relu"]:
            y = jnp.maximum(y, 0.0)
        cin = y.shape[-1]
        wdw = st["wdw"].reshape(3, 3, 1, cin)
        y = jax.lax.conv_general_dilated(
            y, wdw, (1, 1), ((1, 1), (1, 1)),
            dimension_numbers=("NHWC", "HWIO", "NHWC"),
            feature_group_count=cin)
        y = jnp.einsum("nhwc,cd->nhwd", y, st["wpw"])
        y = bn(y, st["gamma"], st["beta"])

    if strides != 1:
        y = jax.lax.reduce_window(
            y, -jnp.inf, jax.lax.max,
            (1, 3, 3, 1), (1, strides, strides, 1),
            ((0, 0), (1, 1), (1, 1), (0, 0)))

    if params["skip"] is not None:
        sk = params["skip"]
        s = jnp.einsum("nhwc,cd->nhwd", x[:, ::strides, ::strides, :], sk["w"])
        s = bn(s, sk["gamma"], sk["beta"])
    else:
        s = x
    return jnp.transpose(y + s, (0, 3, 1, 2))


# ---------------------------------- main --------------------------------------

if __name__ == "__main__":
    key = jax.random.PRNGKey(0)
    kx, kp = jax.random.split(key)

    # Block(in_filters=8, out_filters=16, reps=2, strides=2,
    #       start_with_relu=True, grow_first=True)
    N, Cin, H, W = 2, 8, 16, 16
    x = jax.random.normal(kx, (N, Cin, H, W), jnp.float32)   # NCHW input
    params = init_block_params(kp, in_filters=8, out_filters=16, reps=2,
                               strides=2, start_with_relu=True, grow_first=True)

    out = block_forward(x, params)
    out = jax.block_until_ready(out)

    ref = _ref_block(x, params)
    assert out.shape == (N, 16, H // 2, W // 2), out.shape
    np.testing.assert_allclose(np.asarray(out), np.asarray(ref),
                               atol=3e-2, rtol=3e-2)

    print("KERNEL_OK")
</pallas_src>

<mosaic_0001>
module attributes {stable_mosaic.version = 11 : i64} {
  func.func @_block_kernel(%arg0: memref<2x16x16x8xf32, #tpu.memory_space<vmem>>, %arg1: memref<9x8x16xf32, #tpu.memory_space<vmem>>, %arg2: memref<1x16xf32, #tpu.memory_space<vmem>>, %arg3: memref<1x16xf32, #tpu.memory_space<vmem>>, %arg4: memref<9x16x16xf32, #tpu.memory_space<vmem>>, %arg5: memref<1x16xf32, #tpu.memory_space<vmem>>, %arg6: memref<1x16xf32, #tpu.memory_space<vmem>>, %arg7: memref<8x16xf32, #tpu.memory_space<vmem>>, %arg8: memref<1x16xf32, #tpu.memory_space<vmem>>, %arg9: memref<1x16xf32, #tpu.memory_space<vmem>>, %arg10: memref<2x8x8x16xf32, #tpu.memory_space<vmem>>, %arg11: memref<2x18x18x16xf32, #tpu.memory_space<vmem>>, %arg12: memref<2x8x8x16xf32, #tpu.memory_space<vmem>>, %arg13: memref<2x8x8x8xf32, #tpu.memory_space<vmem>>) attributes {dimension_semantics = [], scalar_prefetch = 0 : i64, scratch_operands = 3 : i64, tpu.core_type = #tpu.core_type<tc>} {
    %cst = arith.constant 0.000000e+00 : f32
    %0 = vector.broadcast %cst : f32 to vector<2x18x18x16xf32>
    %c0 = arith.constant 0 : index
    %c0_0 = arith.constant 0 : index
    %c0_1 = arith.constant 0 : index
    %c0_2 = arith.constant 0 : index
    %1 = vector.load %arg11[%c0, %c0_0, %c0_1, %c0_2] : memref<2x18x18x16xf32, #tpu.memory_space<vmem>>, vector<2x18x18x16xf32>
    tpu.vector_store %arg11[%c0, %c0_0, %c0_1, %c0_2], %0 {strides = array<i32>} : memref<2x18x18x16xf32, #tpu.memory_space<vmem>>, vector<2x18x18x16xf32>,
    %c0_3 = arith.constant 0 : index
    %c0_4 = arith.constant 0 : index
    %c0_5 = arith.constant 0 : index
    %c0_6 = arith.constant 0 : index
    %2 = vector.load %arg0[%c0_3, %c0_4, %c0_5, %c0_6] : memref<2x16x16x8xf32, #tpu.memory_space<vmem>>, vector<2x16x16x8xf32>
    %cst_7 = arith.constant 0.000000e+00 : f32
    %3 = vector.broadcast %cst_7 : f32 to vector<2x16x16x8xf32>
    %4 = arith.maximumf %2, %3 : vector<2x16x16x8xf32>
    %c0_8 = arith.constant 0 : index
    %c1 = arith.constant 1 : index
    %c1_9 = arith.constant 1 : index
    %c0_10 = arith.constant 0 : index
    %5 = vector.load %arg11[%c0_8, %c1, %c1_9, %c0_10] : memref<2x18x18x16xf32, #tpu.memory_space<vmem>>, vector<2x16x16x8xf32>
    tpu.vector_store %arg11[%c0_8, %c1, %c1_9, %c0_10], %4 {strides = array<i32>} : memref<2x18x18x16xf32, #tpu.memory_space<vmem>>, vector<2x16x16x8xf32>,
    %cst_11 = arith.constant 0.000000e+00 : f32
    %6 = vector.broadcast %cst_11 : f32 to vector<512x16xf32>
    %c0_12 = arith.constant 0 : index
    %c0_13 = arith.constant 0 : index
    %c0_14 = arith.constant 0 : index
    %c0_15 = arith.constant 0 : index
    %7 = vector.load %arg11[%c0_12, %c0_13, %c0_14, %c0_15] : memref<2x18x18x16xf32, #tpu.memory_space<vmem>>, vector<2x16x16x8xf32>
    %8 = vector.shape_cast %7 : vector<2x16x16x8xf32> to vector<512x8xf32>
    %c0_16 = arith.constant 0 : index
    %c0_17 = arith.constant 0 : index
    %c0_18 = arith.constant 0 : index
    %9 = vector.load %arg1[%c0_16, %c0_17, %c0_18] : memref<9x8x16xf32, #tpu.memory_space<vmem>>, vector<1x8x16xf32>
    %10 = vector.shape_cast %9 : vector<1x8x16xf32> to vector<8x16xf32>
    %cst_19 = arith.constant dense<0.000000e+00> : vector<512x16xf32>
    %11 = tpu.matmul %8, %10, %cst_19 {dimension_numbers = #tpu.dot_dimension_numbers<[1], [0], [0], [1], [0, 0, 1, 1], [], []>} : vector<512x8xf32>, vector<8x16xf32>, vector<512x16xf32> -> vector<512x16xf32>
    %12 = arith.addf %6, %11 : vector<512x16xf32>
    %c0_20 = arith.constant 0 : index
    %c0_21 = arith.constant 0 : index
    %c1_22 = arith.constant 1 : index
    %c0_23 = arith.constant 0 : index
    %13 = vector.load %arg11[%c0_20, %c0_21, %c1_22, %c0_23] : memref<2x18x18x16xf32, #tpu.memory_space<vmem>>, vector<2x16x16x8xf32>
    %14 = vector.shape_cast %13 : vector<2x16x16x8xf32> to vector<512x8xf32>
    %c1_24 = arith.constant 1 : index
    %c0_25 = arith.constant 0 : index
    %c0_26 = arith.constant 0 : index
    %15 = vector.load %arg1[%c1_24, %c0_25, %c0_26] : memref<9x8x16xf32, #tpu.memory_space<vmem>>, vector<1x8x16xf32>
    %16 = vector.shape_cast %15 : vector<1x8x16xf32> to vector<8x16xf32>
    %cst_27 = arith.constant dense<0.000000e+00> : vector<512x16xf32>
    %17 = tpu.matmul %14, %16, %cst_27 {dimension_numbers = #tpu.dot_dimension_numbers<[1], [0], [0], [1], [0, 0, 1, 1], [], []>} : vector<512x8xf32>, vector<8x16xf32>, vector<512x16xf32> -> vector<512x16xf32>
    %18 = arith.addf %12, %17 : vector<512x16xf32>
    %c0_28 = arith.constant 0 : index
    %c0_29 = arith.constant 0 : index
    %c2 = arith.constant 2 : index
    %c0_30 = arith.constant 0 : index
    %19 = vector.load %arg11[%c0_28, %c0_29, %c2, %c0_30] : memref<2x18x18x16xf32, #tpu.memory_space<vmem>>, vector<2x16x16x8xf32>
    %20 = vector.shape_cast %19 : vector<2x16x16x8xf32> to vector<512x8xf32>
    %c2_31 = arith.constant 2 : index
    %c0_32 = arith.constant 0 : index
    %c0_33 = arith.constant 0 : index
    %21 = vector.load %arg1[%c2_31, %c0_32, %c0_33] : memref<9x8x16xf32, #tpu.memory_space<vmem>>, vector<1x8x16xf32>
    %22 = vector.shape_cast %21 : vector<1x8x16xf32> to vector<8x16xf32>
    %cst_34 = arith.constant dense<0.000000e+00> : vector<512x16xf32>
    %23 = tpu.matmul %20, %22, %cst_34 {dimension_numbers = #tpu.dot_dimension_numbers<[1], [0], [0], [1], [0, 0, 1, 1], [], []>} : vector<512x8xf32>, vector<8x16xf32>, vector<512x16xf32> -> vector<512x16xf32>
    %24 = arith.addf %18, %23 : vector<512x16xf32>
    %c0_35 = arith.constant 0 : index
    %c1_36 = arith.constant 1 : index
    %c0_37 = arith.constant 0 : index
    %c0_38 = arith.constant 0 : index
    %25 = vector.load %arg11[%c0_35, %c1_36, %c0_37, %c0_38] : memref<2x18x18x16xf32, #tpu.memory_space<vmem>>, vector<2x16x16x8xf32>
    %26 = vector.shape_cast %25 : vector<2x16x16x8xf32> to vector<512x8xf32>
    %c3 = arith.constant 3 : index
    %c0_39 = arith.constant 0 : index
    %c0_40 = arith.constant 0 : index
    %27 = vector.load %arg1[%c3, %c0_39, %c0_40] : memref<9x8x16xf32, #tpu.memory_space<vmem>>, vector<1x8x16xf32>
    %28 = vector.shape_cast %27 : vector<1x8x16xf32> to vector<8x16xf32>
    %cst_41 = arith.constant dense<0.000000e+00> : vector<512x16xf32>
    %29 = tpu.matmul %26, %28, %cst_41 {dimension_numbers = #tpu.dot_dimension_numbers<[1], [0], [0], [1], [0, 0, 1, 1], [], []>} : vector<512x8xf32>, vector<8x16xf32>, vector<512x16xf32> -> vector<512x16xf32>
    %30 = arith.addf %24, %29 : vector<512x16xf32>
    %c0_42 = arith.constant 0 : index
    %c1_43 = arith.constant 1 : index
    %c1_44 = arith.constant 1 : index
    %c0_45 = arith.constant 0 : index
    %31 = vector.load %arg11[%c0_42, %c1_43, %c1_44, %c0_45] : memref<2x18x18x16xf32, #tpu.memory_space<vmem>>, vector<2x16x16x8xf32>
    %32 = vector.shape_cast %31 : vector<2x16x16x8xf32> to vector<512x8xf32>
    %c4 = arith.constant 4 : index
    %c0_46 = arith.constant 0 : index
    %c0_47 = arith.constant 0 : index
    %33 = vector.load %arg1[%c4, %c0_46, %c0_47] : memref<9x8x16xf32, #tpu.memory_space<vmem>>, vector<1x8x16xf32>
    %34 = vector.shape_cast %33 : vector<1x8x16xf32> to vector<8x16xf32>
    %cst_48 = arith.constant dense<0.000000e+00> : vector<512x16xf32>
    %35 = tpu.matmul %32, %34, %cst_48 {dimension_numbers = #tpu.dot_dimension_numbers<[1], [0], [0], [1], [0, 0, 1, 1], [], []>} : vector<512x8xf32>, vector<8x16xf32>, vector<512x16xf32> -> vector<512x16xf32>
    %36 = arith.addf %30, %35 : vector<512x16xf32>
    %c0_49 = arith.constant 0 : index
    %c1_50 = arith.constant 1 : index
    %c2_51 = arith.constant 2 : index
    %c0_52 = arith.constant 0 : index
    %37 = vector.load %arg11[%c0_49, %c1_50, %c2_51, %c0_52] : memref<2x18x18x16xf32, #tpu.memory_space<vmem>>, vector<2x16x16x8xf32>
    %38 = vector.shape_cast %37 : vector<2x16x16x8xf32> to vector<512x8xf32>
    %c5 = arith.constant 5 : index
    %c0_53 = arith.constant 0 : index
    %c0_54 = arith.constant 0 : index
    %39 = vector.load %arg1[%c5, %c0_53, %c0_54] : memref<9x8x16xf32, #tpu.memory_space<vmem>>, vector<1x8x16xf32>
    %40 = vector.shape_cast %39 : vector<1x8x16xf32> to vector<8x16xf32>
    %cst_55 = arith.constant dense<0.000000e+00> : vector<512x16xf32>
    %41 = tpu.matmul %38, %40, %cst_55 {dimension_numbers = #tpu.dot_dimension_numbers<[1], [0], [0], [1], [0, 0, 1, 1], [], []>} : vector<512x8xf32>, vector<8x16xf32>, vector<512x16xf32> -> vector<512x16xf32>
    %42 = arith.addf %36, %41 : vector<512x16xf32>
    %c0_56 = arith.constant 0 : index
    %c2_57 = arith.constant 2 : index
    %c0_58 = arith.constant 0 : index
    %c0_59 = arith.constant 0 : index
    %43 = vector.load %arg11[%c0_56, %c2_57, %c0_58, %c0_59] : memref<2x18x18x16xf32, #tpu.memory_space<vmem>>, vector<2x16x16x8xf32>
    %44 = vector.shape_cast %43 : vector<2x16x16x8xf32> to vector<512x8xf32>
    %c6 = arith.constant 6 : index
    %c0_60 = arith.constant 0 : index
    %c0_61 = arith.constant 0 : index
    %45 = vector.load %arg1[%c6, %c0_60, %c0_61] : memref<9x8x16xf32, #tpu.memory_space<vmem>>, vector<1x8x16xf32>
    %46 = vector.shape_cast %45 : vector<1x8x16xf32> to vector<8x16xf32>
    %cst_62 = arith.constant dense<0.000000e+00> : vector<512x16xf32>
    %47 = tpu.matmul %44, %46, %cst_62 {dimension_numbers = #tpu.dot_dimension_numbers<[1], [0], [0], [1], [0, 0, 1, 1], [], []>} : vector<512x8xf32>, vector<8x16xf32>, vector<512x16xf32> -> vector<512x16xf32>
    %48 = arith.addf %42, %47 : vector<512x16xf32>
    %c0_63 = arith.constant 0 : index
    %c2_64 = arith.constant 2 : index
    %c1_65 = arith.constant 1 : index
    %c0_66 = arith.constant 0 : index
    %49 = vector.load %arg11[%c0_63, %c2_64, %c1_65, %c0_66] : memref<2x18x18x16xf32, #tpu.memory_space<vmem>>, vector<2x16x16x8xf32>
    %50 = vector.shape_cast %49 : vector<2x16x16x8xf32> to vector<512x8xf32>
    %c7 = arith.constant 7 : index
    %c0_67 = arith.constant 0 : index
    %c0_68 = arith.constant 0 : index
    %51 = vector.load %arg1[%c7, %c0_67, %c0_68] : memref<9x8x16xf32, #tpu.memory_space<vmem>>, vector<1x8x16xf32>
    %52 = vector.shape_cast %51 : vector<1x8x16xf32> to vector<8x16xf32>
    %cst_69 = arith.constant dense<0.000000e+00> : vector<512x16xf32>
    %53 = tpu.matmul %50, %52, %cst_69 {dimension_numbers = #tpu.dot_dimension_numbers<[1], [0], [0], [1], [0, 0, 1, 1], [], []>} : vector<512x8xf32>, vector<8x16xf32>, vector<512x16xf32> -> vector<512x16xf32>
    %54 = arith.addf %48, %53 : vector<512x16xf32>
    %c0_70 = arith.constant 0 : index
    %c2_71 = arith.constant 2 : index
    %c2_72 = arith.constant 2 : index
    %c0_73 = arith.constant 0 : index
    %55 = vector.load %arg11[%c0_70, %c2_71, %c2_72, %c0_73] : memref<2x18x18x16xf32, #tpu.memory_space<vmem>>, vector<2x16x16x8xf32>
    %56 = vector.shape_cast %55 : vector<2x16x16x8xf32> to vector<512x8xf32>
    %c8 = arith.constant 8 : index
    %c0_74 = arith.constant 0 : index
    %c0_75 = arith.constant 0 : index
    %57 = vector.load %arg1[%c8, %c0_74, %c0_75] : memref<9x8x16xf32, #tpu.memory_space<vmem>>, vector<1x8x16xf32>
    %58 = vector.shape_cast %57 : vector<1x8x16xf32> to vector<8x16xf32>
    %cst_76 = arith.constant dense<0.000000e+00> : vector<512x16xf32>
    %59 = tpu.matmul %56, %58, %cst_76 {dimension_numbers = #tpu.dot_dimension_numbers<[1], [0], [0], [1], [0, 0, 1, 1], [], []>} : vector<512x8xf32>, vector<8x16xf32>, vector<512x16xf32> -> vector<512x16xf32>
    %60 = arith.addf %54, %59 : vector<512x16xf32>
    %c0_77 = arith.constant 0 : index
    %c0_78 = arith.constant 0 : index
    %61 = vector.load %arg2[%c0_77, %c0_78] : memref<1x16xf32, #tpu.memory_space<vmem>>, vector<1x16xf32>
    %c0_79 = arith.constant 0 : index
    %c0_80 = arith.constant 0 : index
    %62 = vector.load %arg3[%c0_79, %c0_80] : memref<1x16xf32, #tpu.memory_space<vmem>>, vector<1x16xf32>
    %cst_81 = arith.constant dense<0.000000e+00> : vector<16xf32>
    %63 = vector.multi_reduction <add>, %60, %cst_81 [0] : vector<512x16xf32> to vector<16xf32>
    %64 = vector.shape_cast %63 : vector<16xf32> to vector<1x16xf32>
    %65 = arith.mulf %60, %60 : vector<512x16xf32>
    %cst_82 = arith.constant dense<0.000000e+00> : vector<16xf32>
    %66 = vector.multi_reduction <add>, %65, %cst_82 [0] : vector<512x16xf32> to vector<16xf32>
    %67 = vector.shape_cast %66 : vector<16xf32> to vector<1x16xf32>
    %cst_83 = arith.constant 0.001953125 : f32
    %68 = vector.broadcast %cst_83 : f32 to vector<1x16xf32>
    %69 = arith.mulf %64, %68 : vector<1x16xf32>
    %cst_84 = arith.constant 0.001953125 : f32
    %70 = vector.broadcast %cst_84 : f32 to vector<1x16xf32>
    %71 = arith.mulf %67, %70 : vector<1x16xf32>
    %72 = arith.mulf %69, %69 : vector<1x16xf32>
    %73 = arith.subf %71, %72 : vector<1x16xf32>
    %cst_85 = arith.constant 0.000000e+00 : f32
    %74 = vector.broadcast %cst_85 : f32 to vector<1x16xf32>
    %75 = arith.maximumf %73, %74 : vector<1x16xf32>
    %76 = vector.broadcast %69 : vector<1x16xf32> to vector<512x16xf32>
    %77 = arith.subf %60, %76 : vector<512x16xf32>
    %cst_86 = arith.constant 9.99999974E-6 : f32
    %78 = vector.broadcast %cst_86 : f32 to vector<1x16xf32>
    %79 = arith.addf %75, %78 : vector<1x16xf32>
    %80 = math.rsqrt %79 : vector<1x16xf32>
    %81 = vector.broadcast %80 : vector<1x16xf32> to vector<512x16xf32>
    %82 = arith.mulf %77, %81 : vector<512x16xf32>
    %83 = vector.broadcast %61 : vector<1x16xf32> to vector<512x16xf32>
    %84 = arith.mulf %82, %83 : vector<512x16xf32>
    %85 = vector.broadcast %62 : vector<1x16xf32> to vector<512x16xf32>
    %86 = arith.addf %84, %85 : vector<512x16xf32>
    %87 = vector.shape_cast %86 : vector<512x16xf32> to vector<2x16x16x16xf32>
    %cst_87 = arith.constant 0.000000e+00 : f32
    %88 = vector.broadcast %cst_87 : f32 to vector<2x16x16x16xf32>
    %89 = arith.maximumf %87, %88 : vector<2x16x16x16xf32>
    %c0_88 = arith.constant 0 : index
    %c1_89 = arith.constant 1 : index
    %c1_90 = arith.constant 1 : index
    %c0_91 = arith.constant 0 : index
    %90 = vector.load %arg11[%c0_88, %c1_89, %c1_90, %c0_91] : memref<2x18x18x16xf32, #tpu.memory_space<vmem>>, vector<2x16x16x16xf32>
    tpu.vector_store %arg11[%c0_88, %c1_89, %c1_90, %c0_91], %89 {strides = array<i32>} : memref<2x18x18x16xf32, #tpu.memory_space<vmem>>, vector<2x16x16x16xf32>,
    %cst_92 = arith.constant 0.000000e+00 : f32
    %91 = vector.broadcast %cst_92 : f32 to vector<512x16xf32>
    %c0_93 = arith.constant 0 : index
    %c0_94 = arith.constant 0 : index
    %c0_95 = arith.constant 0 : index
    %c0_96 = arith.constant 0 : index
    %92 = vector.load %arg11[%c0_93, %c0_94, %c0_95, %c0_96] : memref<2x18x18x16xf32, #tpu.memory_space<vmem>>, vector<2x16x16x16xf32>
    %93 = vector.shape_cast %92 : vector<2x16x16x16xf32> to vector<512x16xf32>
    %c0_97 = arith.constant 0 : index
    %c0_98 = arith.constant 0 : index
    %c0_99 = arith.constant 0 : index
    %94 = vector.load %arg4[%c0_97, %c0_98, %c0_99] : memref<9x16x16xf32, #tpu.memory_space<vmem>>, vector<1x16x16xf32>
    %95 = vector.shape_cast %94 : vector<1x16x16xf32> to vector<16x16xf32>
    %cst_100 = arith.constant dense<0.000000e+00> : vector<512x16xf32>
    %96 = tpu.matmul %93, %95, %cst_100 {dimension_numbers = #tpu.dot_dimension_numbers<[1], [0], [0], [1], [0, 0, 1, 1], [], []>} : vector<512x16xf32>, vector<16x16xf32>, vector<512x16xf32> -> vector<512x16xf32>
    %97 = arith.addf %91, %96 : vector<512x16xf32>
    %c0_101 = arith.constant 0 : index
    %c0_102 = arith.constant 0 : index
    %c1_103 = arith.constant 1 : index
    %c0_104 = arith.constant 0 : index
    %98 = vector.load %arg11[%c0_101, %c0_102, %c1_103, %c0_104] : memref<2x18x18x16xf32, #tpu.memory_space<vmem>>, vector<2x16x16x16xf32>
    %99 = vector.shape_cast %98 : vector<2x16x16x16xf32> to vector<512x16xf32>
    %c1_105 = arith.constant 1 : index
    %c0_106 = arith.constant 0 : index
    %c0_107 = arith.constant 0 : index
    %100 = vector.load %arg4[%c1_105, %c0_106, %c0_107] : memref<9x16x16xf32, #tpu.memory_space<vmem>>, vector<1x16x16xf32>
    %101 = vector.shape_cast %100 : vector<1x16x16xf32> to vector<16x16xf32>
    %cst_108 = arith.constant dense<0.000000e+00> : vector<512x16xf32>
    %102 = tpu.matmul %99, %101, %cst_108 {dimension_numbers = #tpu.dot_dimension_numbers<[1], [0], [0], [1], [0, 0, 1, 1], [], []>} : vector<512x16xf32>, vector<16x16xf32>, vector<512x16xf32> -> vector<512x16xf32>
    %103 = arith.addf %97, %102 : vector<512x16xf32>
    %c0_109 = arith.constant 0 : index
    %c0_110 = arith.constant 0 : index
    %c2_111 = arith.constant 2 : index
    %c0_112 = arith.constant 0 : index
    %104 = vector.load %arg11[%c0_109, %c0_110, %c2_111, %c0_112] : memref<2x18x18x16xf32, #tpu.memory_space<vmem>>, vector<2x16x16x16xf32>
    %105 = vector.shape_cast %104 : vector<2x16x16x16xf32> to vector<512x16xf32>
    %c2_113 = arith.constant 2 : index
    %c0_114 = arith.constant 0 : index
    %c0_115 = arith.constant 0 : index
    %106 = vector.load %arg4[%c2_113, %c0_114, %c0_115] : memref<9x16x16xf32, #tpu.memory_space<vmem>>, vector<1x16x16xf32>
    %107 = vector.shape_cast %106 : vector<1x16x16xf32> to vector<16x16xf32>
    %cst_116 = arith.constant dense<0.000000e+00> : vector<512x16xf32>
    %108 = tpu.matmul %105, %107, %cst_116 {dimension_numbers = #tpu.dot_dimension_numbers<[1], [0], [0], [1], [0, 0, 1, 1], [], []>} : vector<512x16xf32>, vector<16x16xf32>, vector<512x16xf32> -> vector<512x16xf32>
    %109 = arith.addf %103, %108 : vector<512x16xf32>
    %c0_117 = arith.constant 0 : index
    %c1_118 = arith.constant 1 : index
    %c0_119 = arith.constant 0 : index
    %c0_120 = arith.constant 0 : index
    %110 = vector.load %arg11[%c0_117, %c1_118, %c0_119, %c0_120] : memref<2x18x18x16xf32, #tpu.memory_space<vmem>>, vector<2x16x16x16xf32>
    %111 = vector.shape_cast %110 : vector<2x16x16x16xf32> to vector<512x16xf32>
    %c3_121 = arith.constant 3 : index
    %c0_122 = arith.constant 0 : index
    %c0_123 = arith.constant 0 : index
    %112 = vector.load %arg4[%c3_121, %c0_122, %c0_123] : memref<9x16x16xf32, #tpu.memory_space<vmem>>, vector<1x16x16xf32>
    %113 = vector.shape_cast %112 : vector<1x16x16xf32> to vector<16x16xf32>
    %cst_124 = arith.constant dense<0.000000e+00> : vector<512x16xf32>
    %114 = tpu.matmul %111, %113, %cst_124 {dimension_numbers = #tpu.dot_dimension_numbers<[1], [0], [0], [1], [0, 0, 1, 1], [], []>} : vector<512x16xf32>, vector<16x16xf32>, vector<512x16xf32> -> vector<512x16xf32>
    %115 = arith.addf %109, %114 : vector<512x16xf32>
    %c0_125 = arith.constant 0 : index
    %c1_126 = arith.constant 1 : index
    %c1_127 = arith.constant 1 : index
    %c0_128 = arith.constant 0 : index
    %116 = vector.load %arg11[%c0_125, %c1_126, %c1_127, %c0_128] : memref<2x18x18x16xf32, #tpu.memory_space<vmem>>, vector<2x16x16x16xf32>
    %117 = vector.shape_cast %116 : vector<2x16x16x16xf32> to vector<512x16xf32>
    %c4_129 = arith.constant 4 : index
    %c0_130 = arith.constant 0 : index
    %c0_131 = arith.constant 0 : index
    %118 = vector.load %arg4[%c4_129, %c0_130, %c0_131] : memref<9x16x16xf32, #tpu.memory_space<vmem>>, vector<1x16x16xf32>
    %119 = vector.shape_cast %118 : vector<1x16x16xf32> to vector<16x16xf32>
    %cst_132 = arith.constant dense<0.000000e+00> : vector<512x16xf32>
    %120 = tpu.matmul %117, %119, %cst_132 {dimension_numbers = #tpu.dot_dimension_numbers<[1], [0], [0], [1], [0, 0, 1, 1], [], []>} : vector<512x16xf32>, vector<16x16xf32>, vector<512x16xf32> -> vector<512x16xf32>
    %121 = arith.addf %115, %120 : vector<512x16xf32>
    %c0_133 = arith.constant 0 : index
    %c1_134 = arith.constant 1 : index
    %c2_135 = arith.constant 2 : index
    %c0_136 = arith.constant 0 : index
    %122 = vector.load %arg11[%c0_133, %c1_134, %c2_135, %c0_136] : memref<2x18x18x16xf32, #tpu.memory_space<vmem>>, vector<2x16x16x16xf32>
    %123 = vector.shape_cast %122 : vector<2x16x16x16xf32> to vector<512x16xf32>
    %c5_137 = arith.constant 5 : index
    %c0_138 = arith.constant 0 : index
    %c0_139 = arith.constant 0 : index
    %124 = vector.load %arg4[%c5_137, %c0_138, %c0_139] : memref<9x16x16xf32, #tpu.memory_space<vmem>>, vector<1x16x16xf32>
    %125 = vector.shape_cast %124 : vector<1x16x16xf32> to vector<16x16xf32>
    %cst_140 = arith.constant dense<0.000000e+00> : vector<512x16xf32>
    %126 = tpu.matmul %123, %125, %cst_140 {dimension_numbers = #tpu.dot_dimension_numbers<[1], [0], [0], [1], [0, 0, 1, 1], [], []>} : vector<512x16xf32>, vector<16x16xf32>, vector<512x16xf32> -> vector<512x16xf32>
    %127 = arith.addf %121, %126 : vector<512x16xf32>
    %c0_141 = arith.constant 0 : index
    %c2_142 = arith.constant 2 : index
    %c0_143 = arith.constant 0 : index
    %c0_144 = arith.constant 0 : index
    %128 = vector.load %arg11[%c0_141, %c2_142, %c0_143, %c0_144] : memref<2x18x18x16xf32, #tpu.memory_space<vmem>>, vector<2x16x16x16xf32>
    %129 = vector.shape_cast %128 : vector<2x16x16x16xf32> to vector<512x16xf32>
    %c6_145 = arith.constant 6 : index
    %c0_146 = arith.constant 0 : index
    %c0_147 = arith.constant 0 : index
    %130 = vector.load %arg4[%c6_145, %c0_146, %c0_147] : memref<9x16x16xf32, #tpu.memory_space<vmem>>, vector<1x16x16xf32>
    %131 = vector.shape_cast %130 : vector<1x16x16xf32> to vector<16x16xf32>
    %cst_148 = arith.constant dense<0.000000e+00> : vector<512x16xf32>
    %132 = tpu.matmul %129, %131, %cst_148 {dimension_numbers = #tpu.dot_dimension_numbers<[1], [0], [0], [1], [0, 0, 1, 1], [], []>} : vector<512x16xf32>, vector<16x16xf32>, vector<512x16xf32> -> vector<512x16xf32>
    %133 = arith.addf %127, %132 : vector<512x16xf32>
    %c0_149 = arith.constant 0 : index
    %c2_150 = arith.constant 2 : index
    %c1_151 = arith.constant 1 : index
    %c0_152 = arith.constant 0 : index
    %134 = vector.load %arg11[%c0_149, %c2_150, %c1_151, %c0_152] : memref<2x18x18x16xf32, #tpu.memory_space<vmem>>, vector<2x16x16x16xf32>
    %135 = vector.shape_cast %134 : vector<2x16x16x16xf32> to vector<512x16xf32>
    %c7_153 = arith.constant 7 : index
    %c0_154 = arith.constant 0 : index
    %c0_155 = arith.constant 0 : index
    %136 = vector.load %arg4[%c7_153, %c0_154, %c0_155] : memref<9x16x16xf32, #tpu.memory_space<vmem>>, vector<1x16x16xf32>
    %137 = vector.shape_cast %136 : vector<1x16x16xf32> to vector<16x16xf32>
    %cst_156 = arith.constant dense<0.000000e+00> : vector<512x16xf32>
    %138 = tpu.matmul %135, %137, %cst_156 {dimension_numbers = #tpu.dot_dimension_numbers<[1], [0], [0], [1], [0, 0, 1, 1], [], []>} : vector<512x16xf32>, vector<16x16xf32>, vector<512x16xf32> -> vector<512x16xf32>
    %139 = arith.addf %133, %138 : vector<512x16xf32>
    %c0_157 = arith.constant 0 : index
    %c2_158 = arith.constant 2 : index
    %c2_159 = arith.constant 2 : index
    %c0_160 = arith.constant 0 : index
    %140 = vector.load %arg11[%c0_157, %c2_158, %c2_159, %c0_160] : memref<2x18x18x16xf32, #tpu.memory_space<vmem>>, vector<2x16x16x16xf32>
    %141 = vector.shape_cast %140 : vector<2x16x16x16xf32> to vector<512x16xf32>
    %c8_161 = arith.constant 8 : index
    %c0_162 = arith.constant 0 : index
    %c0_163 = arith.constant 0 : index
    %142 = vector.load %arg4[%c8_161, %c0_162, %c0_163] : memref<9x16x16xf32, #tpu.memory_space<vmem>>, vector<1x16x16xf32>
    %143 = vector.shape_cast %142 : vector<1x16x16xf32> to vector<16x16xf32>
    %cst_164 = arith.constant dense<0.000000e+00> : vector<512x16xf32>
    %144 = tpu.matmul %141, %143, %cst_164 {dimension_numbers = #tpu.dot_dimension_numbers<[1], [0], [0], [1], [0, 0, 1, 1], [], []>} : vector<512x16xf32>, vector<16x16xf32>, vector<512x16xf32> -> vector<512x16xf32>
    %145 = arith.addf %139, %144 : vector<512x16xf32>
    %c0_165 = arith.constant 0 : index
    %c0_166 = arith.constant 0 : index
    %146 = vector.load %arg5[%c0_165, %c0_166] : memref<1x16xf32, #tpu.memory_space<vmem>>, vector<1x16xf32>
    %c0_167 = arith.constant 0 : index
    %c0_168 = arith.constant 0 : index
    %147 = vector.load %arg6[%c0_167, %c0_168] : memref<1x16xf32, #tpu.memory_space<vmem>>, vector<1x16xf32>
    %cst_169 = arith.constant dense<0.000000e+00> : vector<16xf32>
    %148 = vector.multi_reduction <add>, %145, %cst_169 [0] : vector<512x16xf32> to vector<16xf32>
    %149 = vector.shape_cast %148 : vector<16xf32> to vector<1x16xf32>
    %150 = arith.mulf %145, %145 : vector<512x16xf32>
    %cst_170 = arith.constant dense<0.000000e+00> : vector<16xf32>
    %151 = vector.multi_reduction <add>, %150, %cst_170 [0] : vector<512x16xf32> to vector<16xf32>
    %152 = vector.shape_cast %151 : vector<16xf32> to vector<1x16xf32>
    %cst_171 = arith.constant 0.001953125 : f32
    %153 = vector.broadcast %cst_171 : f32 to vector<1x16xf32>
    %154 = arith.mulf %149, %153 : vector<1x16xf32>
    %cst_172 = arith.constant 0.001953125 : f32
    %155 = vector.broadcast %cst_172 : f32 to vector<1x16xf32>
    %156 = arith.mulf %152, %155 : vector<1x16xf32>
    %157 = arith.mulf %154, %154 : vector<1x16xf32>
    %158 = arith.subf %156, %157 : vector<1x16xf32>
    %cst_173 = arith.constant 0.000000e+00 : f32
    %159 = vector.broadcast %cst_173 : f32 to vector<1x16xf32>
    %160 = arith.maximumf %158, %159 : vector<1x16xf32>
    %161 = vector.broadcast %154 : vector<1x16xf32> to vector<512x16xf32>
    %162 = arith.subf %145, %161 : vector<512x16xf32>
    %cst_174 = arith.constant 9.99999974E-6 : f32
    %163 = vector.broadcast %cst_174 : f32 to vector<1x16xf32>
    %164 = arith.addf %160, %163 : vector<1x16xf32>
    %165 = math.rsqrt %164 : vector<1x16xf32>
    %166 = vector.broadcast %165 : vector<1x16xf32> to vector<512x16xf32>
    %167 = arith.mulf %162, %166 : vector<512x16xf32>
    %168 = vector.broadcast %146 : vector<1x16xf32> to vector<512x16xf32>
    %169 = arith.mulf %167, %168 : vector<512x16xf32>
    %170 = vector.broadcast %147 : vector<1x16xf32> to vector<512x16xf32>
    %171 = arith.addf %169, %170 : vector<512x16xf32>
    %172 = vector.shape_cast %171 : vector<512x16xf32> to vector<2x16x16x16xf32>
    %cst_175 = arith.constant -1.000000e+30 : f32
    %173 = vector.broadcast %cst_175 : f32 to vector<2x18x18x16xf32>
    %c0_176 = arith.constant 0 : index
    %c0_177 = arith.constant 0 : index
    %c0_178 = arith.constant 0 : index
    %c0_179 = arith.constant 0 : index
    %174 = vector.load %arg11[%c0_176, %c0_177, %c0_178, %c0_179] : memref<2x18x18x16xf32, #tpu.memory_space<vmem>>, vector<2x18x18x16xf32>
    tpu.vector_store %arg11[%c0_176, %c0_177, %c0_178, %c0_179], %173 {strides = array<i32>} : memref<2x18x18x16xf32, #tpu.memory_space<vmem>>, vector<2x18x18x16xf32>,
    %c0_180 = arith.constant 0 : index
    %c1_181 = arith.constant 1 : index
    %c1_182 = arith.constant 1 : index
    %c0_183 = arith.constant 0 : index
    %175 = vector.load %arg11[%c0_180, %c1_181, %c1_182, %c0_183] : memref<2x18x18x16xf32, #tpu.memory_space<vmem>>, vector<2x16x16x16xf32>
    tpu.vector_store %arg11[%c0_180, %c1_181, %c1_182, %c0_183], %172 {strides = array<i32>} : memref<2x18x18x16xf32, #tpu.memory_space<vmem>>, vector<2x16x16x16xf32>,
    %c0_184 = arith.constant 0 : index
    %c0_185 = arith.constant 0 : index
    %c0_186 = arith.constant 0 : index
    %c0_187 = arith.constant 0 : index
    %176 = vector.load %arg11[%c0_184, %c0_185, %c0_186, %c0_187] : memref<2x18x18x16xf32, #tpu.memory_space<vmem>>, vector<2x18x18x16xf32>
    %177 = vector.extract_strided_slice %176 {offsets = [0, 0, 0, 0], sizes = [2, 1, 18, 16], strides = [1, 1, 1, 1]} : vector<2x18x18x16xf32> to vector<2x1x18x16xf32>
    %178 = vector.extract_strided_slice %176 {offsets = [0, 1, 0, 0], sizes = [2, 1, 18, 16], strides = [1, 1, 1, 1]} : vector<2x18x18x16xf32> to vector<2x1x18x16xf32>
    %179 = arith.maximumf %177, %178 : vector<2x1x18x16xf32>
    %180 = vector.extract_strided_slice %176 {offsets = [0, 2, 0, 0], sizes = [2, 1, 18, 16], strides = [1, 1, 1, 1]} : vector<2x18x18x16xf32> to vector<2x1x18x16xf32>
    %181 = arith.maximumf %179, %180 : vector<2x1x18x16xf32>
    %182 = vector.extract_strided_slice %176 {offsets = [0, 2, 0, 0], sizes = [2, 1, 18, 16], strides = [1, 1, 1, 1]} : vector<2x18x18x16xf32> to vector<2x1x18x16xf32>
    %183 = vector.extract_strided_slice %176 {offsets = [0, 3, 0, 0], sizes = [2, 1, 18, 16], strides = [1, 1, 1, 1]} : vector<2x18x18x16xf32> to vector<2x1x18x16xf32>
    %184 = arith.maximumf %182, %183 : vector<2x1x18x16xf32>
    %185 = vector.extract_strided_slice %176 {offsets = [0, 4, 0, 0], sizes = [2, 1, 18, 16], strides = [1, 1, 1, 1]} : vector<2x18x18x16xf32> to vector<2x1x18x16xf32>
    %186 = arith.maximumf %184, %185 : vector<2x1x18x16xf32>
    %187 = vector.extract_strided_slice %176 {offsets = [0, 4, 0, 0], sizes = [2, 1, 18, 16], strides = [1, 1, 1, 1]} : vector<2x18x18x16xf32> to vector<2x1x18x16xf32>
    %188 = vector.extract_strided_slice %176 {offsets = [0, 5, 0, 0], sizes = [2, 1, 18, 16], strides = [1, 1, 1, 1]} : vector<2x18x18x16xf32> to vector<2x1x18x16xf32>
    %189 = arith.maximumf %187, %188 : vector<2x1x18x16xf32>
    %190 = vector.extract_strided_slice %176 {offsets = [0, 6, 0, 0], sizes = [2, 1, 18, 16], strides = [1, 1, 1, 1]} : vector<2x18x18x16xf32> to vector<2x1x18x16xf32>
    %191 = arith.maximumf %189, %190 : vector<2x1x18x16xf32>
    %192 = vector.extract_strided_slice %176 {offsets = [0, 6, 0, 0], sizes = [2, 1, 18, 16], strides = [1, 1, 1, 1]} : vector<2x18x18x16xf32> to vector<2x1x18x16xf32>
    %193 = vector.extract_strided_slice %176 {offsets = [0, 7, 0, 0], sizes = [2, 1, 18, 16], strides = [1, 1, 1, 1]} : vector<2x18x18x16xf32> to vector<2x1x18x16xf32>
    %194 = arith.maximumf %192, %193 : vector<2x1x18x16xf32>
    %195 = vector.extract_strided_slice %176 {offsets = [0, 8, 0, 0], sizes = [2, 1, 18, 16], strides = [1, 1, 1, 1]} : vector<2x18x18x16xf32> to vector<2x1x18x16xf32>
    %196 = arith.maximumf %194, %195 : vector<2x1x18x16xf32>
    %197 = vector.extract_strided_slice %176 {offsets = [0, 8, 0, 0], sizes = [2, 1, 18, 16], strides = [1, 1, 1, 1]} : vector<2x18x18x16xf32> to vector<2x1x18x16xf32>
    %198 = vector.extract_strided_slice %176 {offsets = [0, 9, 0, 0], sizes = [2, 1, 18, 16], strides = [1, 1, 1, 1]} : vector<2x18x18x16xf32> to vector<2x1x18x16xf32>
    %199 = arith.maximumf %197, %198 : vector<2x1x18x16xf32>
    %200 = vector.extract_strided_slice %176 {offsets = [0, 10, 0, 0], sizes = [2, 1, 18, 16], strides = [1, 1, 1, 1]} : vector<2x18x18x16xf32> to vector<2x1x18x16xf32>
    %201 = arith.maximumf %199, %200 : vector<2x1x18x16xf32>
    %202 = vector.extract_strided_slice %176 {offsets = [0, 10, 0, 0], sizes = [2, 1, 18, 16], strides = [1, 1, 1, 1]} : vector<2x18x18x16xf32> to vector<2x1x18x16xf32>
    %203 = vector.extract_strided_slice %176 {offsets = [0, 11, 0, 0], sizes = [2, 1, 18, 16], strides = [1, 1, 1, 1]} : vector<2x18x18x16xf32> to vector<2x1x18x16xf32>
    %204 = arith.maximumf %202, %203 : vector<2x1x18x16xf32>
    %205 = vector.extract_strided_slice %176 {offsets = [0, 12, 0, 0], sizes = [2, 1, 18, 16], strides = [1, 1, 1, 1]} : vector<2x18x18x16xf32> to vector<2x1x18x16xf32>
    %206 = arith.maximumf %204, %205 : vector<2x1x18x16xf32>
    %207 = vector.extract_strided_slice %176 {offsets = [0, 12, 0, 0], sizes = [2, 1, 18, 16], strides = [1, 1, 1, 1]} : vector<2x18x18x16xf32> to vector<2x1x18x16xf32>
    %208 = vector.extract_strided_slice %176 {offsets = [0, 13, 0, 0], sizes = [2, 1, 18, 16], strides = [1, 1, 1, 1]} : vector<2x18x18x16xf32> to vector<2x1x18x16xf32>
    %209 = arith.maximumf %207, %208 : vector<2x1x18x16xf32>
    %210 = vector.extract_strided_slice %176 {offsets = [0, 14, 0, 0], sizes = [2, 1, 18, 16], strides = [1, 1, 1, 1]} : vector<2x18x18x16xf32> to vector<2x1x18x16xf32>
    %211 = arith.maximumf %209, %210 : vector<2x1x18x16xf32>
    %212 = vector.extract_strided_slice %176 {offsets = [0, 14, 0, 0], sizes = [2, 1, 18, 16], strides = [1, 1, 1, 1]} : vector<2x18x18x16xf32> to vector<2x1x18x16xf32>
    %213 = vector.extract_strided_slice %176 {offsets = [0, 15, 0, 0], sizes = [2, 1, 18, 16], strides = [1, 1, 1, 1]} : vector<2x18x18x16xf32> to vector<2x1x18x16xf32>
    %214 = arith.maximumf %212, %213 : vector<2x1x18x16xf32>
    %215 = vector.extract_strided_slice %176 {offsets = [0, 16, 0, 0], sizes = [2, 1, 18, 16], strides = [1, 1, 1, 1]} : vector<2x18x18x16xf32> to vector<2x1x18x16xf32>
    %216 = arith.maximumf %214, %215 : vector<2x1x18x16xf32>
    %217 = tpu.concatenate %181, %186, %191, %196, %201, %206, %211, %216 in 1 : vector<2x1x18x16xf32>, vector<2x1x18x16xf32>, vector<2x1x18x16xf32>, vector<2x1x18x16xf32>, vector<2x1x18x16xf32>, vector<2x1x18x16xf32>, vector<2x1x18x16xf32>, vector<2x1x18x16xf32> -> vector<2x8x18x16xf32>
    %218 = vector.extract_strided_slice %217 {offsets = [0, 0, 0, 0], sizes = [2, 8, 1, 16], strides = [1, 1, 1, 1]} : vector<2x8x18x16xf32> to vector<2x8x1x16xf32>
    %219 = vector.extract_strided_slice %217 {offsets = [0, 0, 1, 0], sizes = [2, 8, 1, 16], strides = [1, 1, 1, 1]} : vector<2x8x18x16xf32> to vector<2x8x1x16xf32>
    %220 = arith.maximumf %218, %219 : vector<2x8x1x16xf32>
    %221 = vector.extract_strided_slice %217 {offsets = [0, 0, 2, 0], sizes = [2, 8, 1, 16], strides = [1, 1, 1, 1]} : vector<2x8x18x16xf32> to vector<2x8x1x16xf32>
    %222 = arith.maximumf %220, %221 : vector<2x8x1x16xf32>
    %c0_188 = arith.constant 0 : index
    %c0_189 = arith.constant 0 : index
    %c0_190 = arith.constant 0 : index
    %c0_191 = arith.constant 0 : index
    %223 = vector.load %arg12[%c0_188, %c0_189, %c0_190, %c0_191] : memref<2x8x8x16xf32, #tpu.memory_space<vmem>>, vector<2x8x1x16xf32>
    tpu.vector_store %arg12[%c0_188, %c0_189, %c0_190, %c0_191], %222 {strides = array<i32>} : memref<2x8x8x16xf32, #tpu.memory_space<vmem>>, vector<2x8x1x16xf32>,
    %224 = vector.extract_strided_slice %217 {offsets = [0, 0, 2, 0], sizes = [2, 8, 1, 16], strides = [1, 1, 1, 1]} : vector<2x8x18x16xf32> to vector<2x8x1x16xf32>
    %225 = vector.extract_strided_slice %217 {offsets = [0, 0, 3, 0], sizes = [2, 8, 1, 16], strides = [1, 1, 1, 1]} : vector<2x8x18x16xf32> to vector<2x8x1x16xf32>
    %226 = arith.maximumf %224, %225 : vector<2x8x1x16xf32>
    %227 = vector.extract_strided_slice %217 {offsets = [0, 0, 4, 0], sizes = [2, 8, 1, 16], strides = [1, 1, 1, 1]} : vector<2x8x18x16xf32> to vector<2x8x1x16xf32>
    %228 = arith.maximumf %226, %227 : vector<2x8x1x16xf32>
    %c0_192 = arith.constant 0 : index
    %c0_193 = arith.constant 0 : index
    %c1_194 = arith.constant 1 : index
    %c0_195 = arith.constant 0 : index
    %229 = vector.load %arg12[%c0_192, %c0_193, %c1_194, %c0_195] : memref<2x8x8x16xf32, #tpu.memory_space<vmem>>, vector<2x8x1x16xf32>
    tpu.vector_store %arg12[%c0_192, %c0_193, %c1_194, %c0_195], %228 {strides = array<i32>} : memref<2x8x8x16xf32, #tpu.memory_space<vmem>>, vector<2x8x1x16xf32>,
    %230 = vector.extract_strided_slice %217 {offsets = [0, 0, 4, 0], sizes = [2, 8, 1, 16], strides = [1, 1, 1, 1]} : vector<2x8x18x16xf32> to vector<2x8x1x16xf32>
    %231 = vector.extract_strided_slice %217 {offsets = [0, 0, 5, 0], sizes = [2, 8, 1, 16], strides = [1, 1, 1, 1]} : vector<2x8x18x16xf32> to vector<2x8x1x16xf32>
    %232 = arith.maximumf %230, %231 : vector<2x8x1x16xf32>
    %233 = vector.extract_strided_slice %217 {offsets = [0, 0, 6, 0], sizes = [2, 8, 1, 16], strides = [1, 1, 1, 1]} : vector<2x8x18x16xf32> to vector<2x8x1x16xf32>
    %234 = arith.maximumf %232, %233 : vector<2x8x1x16xf32>
    %c0_196 = arith.constant 0 : index
    %c0_197 = arith.constant 0 : index
    %c2_198 = arith.constant 2 : index
    %c0_199 = arith.constant 0 : index
    %235 = vector.load %arg12[%c0_196, %c0_197, %c2_198, %c0_199] : memref<2x8x8x16xf32, #tpu.memory_space<vmem>>, vector<2x8x1x16xf32>
    tpu.vector_store %arg12[%c0_196, %c0_197, %c2_198, %c0_199], %234 {strides = array<i32>} : memref<2x8x8x16xf32, #tpu.memory_space<vmem>>, vector<2x8x1x16xf32>,
    %236 = vector.extract_strided_slice %217 {offsets = [0, 0, 6, 0], sizes = [2, 8, 1, 16], strides = [1, 1, 1, 1]} : vector<2x8x18x16xf32> to vector<2x8x1x16xf32>
    %237 = vector.extract_strided_slice %217 {offsets = [0, 0, 7, 0], sizes = [2, 8, 1, 16], strides = [1, 1, 1, 1]} : vector<2x8x18x16xf32> to vector<2x8x1x16xf32>
    %238 = arith.maximumf %236, %237 : vector<2x8x1x16xf32>
    %239 = vector.extract_strided_slice %217 {offsets = [0, 0, 8, 0], sizes = [2, 8, 1, 16], strides = [1, 1, 1, 1]} : vector<2x8x18x16xf32> to vector<2x8x1x16xf32>
    %240 = arith.maximumf %238, %239 : vector<2x8x1x16xf32>
    %c0_200 = arith.constant 0 : index
    %c0_201 = arith.constant 0 : index
    %c3_202 = arith.constant 3 : index
    %c0_203 = arith.constant 0 : index
    %241 = vector.load %arg12[%c0_200, %c0_201, %c3_202, %c0_203] : memref<2x8x8x16xf32, #tpu.memory_space<vmem>>, vector<2x8x1x16xf32>
    tpu.vector_store %arg12[%c0_200, %c0_201, %c3_202, %c0_203], %240 {strides = array<i32>} : memref<2x8x8x16xf32, #tpu.memory_space<vmem>>, vector<2x8x1x16xf32>,
    %242 = vector.extract_strided_slice %217 {offsets = [0, 0, 8, 0], sizes = [2, 8, 1, 16], strides = [1, 1, 1, 1]} : vector<2x8x18x16xf32> to vector<2x8x1x16xf32>
    %243 = vector.extract_strided_slice %217 {offsets = [0, 0, 9, 0], sizes = [2, 8, 1, 16], strides = [1, 1, 1, 1]} : vector<2x8x18x16xf32> to vector<2x8x1x16xf32>
    %244 = arith.maximumf %242, %243 : vector<2x8x1x16xf32>
    %245 = vector.extract_strided_slice %217 {offsets = [0, 0, 10, 0], sizes = [2, 8, 1, 16], strides = [1, 1, 1, 1]} : vector<2x8x18x16xf32> to vector<2x8x1x16xf32>
    %246 = arith.maximumf %244, %245 : vector<2x8x1x16xf32>
    %c0_204 = arith.constant 0 : index
    %c0_205 = arith.constant 0 : index
    %c4_206 = arith.constant 4 : index
    %c0_207 = arith.constant 0 : index
    %247 = vector.load %arg12[%c0_204, %c0_205, %c4_206, %c0_207] : memref<2x8x8x16xf32, #tpu.memory_space<vmem>>, vector<2x8x1x16xf32>
    tpu.vector_store %arg12[%c0_204, %c0_205, %c4_206, %c0_207], %246 {strides = array<i32>} : memref<2x8x8x16xf32, #tpu.memory_space<vmem>>, vector<2x8x1x16xf32>,
    %248 = vector.extract_strided_slice %217 {offsets = [0, 0, 10, 0], sizes = [2, 8, 1, 16], strides = [1, 1, 1, 1]} : vector<2x8x18x16xf32> to vector<2x8x1x16xf32>
    %249 = vector.extract_strided_slice %217 {offsets = [0, 0, 11, 0], sizes = [2, 8, 1, 16], strides = [1, 1, 1, 1]} : vector<2x8x18x16xf32> to vector<2x8x1x16xf32>
    %250 = arith.maximumf %248, %249 : vector<2x8x1x16xf32>
    %251 = vector.extract_strided_slice %217 {offsets = [0, 0, 12, 0], sizes = [2, 8, 1, 16], strides = [1, 1, 1, 1]} : vector<2x8x18x16xf32> to vector<2x8x1x16xf32>
    %252 = arith.maximumf %250, %251 : vector<2x8x1x16xf32>
    %c0_208 = arith.constant 0 : index
    %c0_209 = arith.constant 0 : index
    %c5_210 = arith.constant 5 : index
    %c0_211 = arith.constant 0 : index
    %253 = vector.load %arg12[%c0_208, %c0_209, %c5_210, %c0_211] : memref<2x8x8x16xf32, #tpu.memory_space<vmem>>, vector<2x8x1x16xf32>
    tpu.vector_store %arg12[%c0_208, %c0_209, %c5_210, %c0_211], %252 {strides = array<i32>} : memref<2x8x8x16xf32, #tpu.memory_space<vmem>>, vector<2x8x1x16xf32>,
    %254 = vector.extract_strided_slice %217 {offsets = [0, 0, 12, 0], sizes = [2, 8, 1, 16], strides = [1, 1, 1, 1]} : vector<2x8x18x16xf32> to vector<2x8x1x16xf32>
    %255 = vector.extract_strided_slice %217 {offsets = [0, 0, 13, 0], sizes = [2, 8, 1, 16], strides = [1, 1, 1, 1]} : vector<2x8x18x16xf32> to vector<2x8x1x16xf32>
    %256 = arith.maximumf %254, %255 : vector<2x8x1x16xf32>
    %257 = vector.extract_strided_slice %217 {offsets = [0, 0, 14, 0], sizes = [2, 8, 1, 16], strides = [1, 1, 1, 1]} : vector<2x8x18x16xf32> to vector<2x8x1x16xf32>
    %258 = arith.maximumf %256, %257 : vector<2x8x1x16xf32>
    %c0_212 = arith.constant 0 : index
    %c0_213 = arith.constant 0 : index
    %c6_214 = arith.constant 6 : index
    %c0_215 = arith.constant 0 : index
    %259 = vector.load %arg12[%c0_212, %c0_213, %c6_214, %c0_215] : memref<2x8x8x16xf32, #tpu.memory_space<vmem>>, vector<2x8x1x16xf32>
    tpu.vector_store %arg12[%c0_212, %c0_213, %c6_214, %c0_215], %258 {strides = array<i32>} : memref<2x8x8x16xf32, #tpu.memory_space<vmem>>, vector<2x8x1x16xf32>,
    %260 = vector.extract_strided_slice %217 {offsets = [0, 0, 14, 0], sizes = [2, 8, 1, 16], strides = [1, 1, 1, 1]} : vector<2x8x18x16xf32> to vector<2x8x1x16xf32>
    %261 = vector.extract_strided_slice %217 {offsets = [0, 0, 15, 0], sizes = [2, 8, 1, 16], strides = [1, 1, 1, 1]} : vector<2x8x18x16xf32> to vector<2x8x1x16xf32>
    %262 = arith.maximumf %260, %261 : vector<2x8x1x16xf32>
    %263 = vector.extract_strided_slice %217 {offsets = [0, 0, 16, 0], sizes = [2, 8, 1, 16], strides = [1, 1, 1, 1]} : vector<2x8x18x16xf32> to vector<2x8x1x16xf32>
    %264 = arith.maximumf %262, %263 : vector<2x8x1x16xf32>
    %c0_216 = arith.constant 0 : index
    %c0_217 = arith.constant 0 : index
    %c7_218 = arith.constant 7 : index
    %c0_219 = arith.constant 0 : index
    %265 = vector.load %arg12[%c0_216, %c0_217, %c7_218, %c0_219] : memref<2x8x8x16xf32, #tpu.memory_space<vmem>>, vector<2x8x1x16xf32>
    tpu.vector_store %arg12[%c0_216, %c0_217, %c7_218, %c0_219], %264 {strides = array<i32>} : memref<2x8x8x16xf32, #tpu.memory_space<vmem>>, vector<2x8x1x16xf32>,
    %c0_220 = arith.constant 0 : index
    %c0_221 = arith.constant 0 : index
    %c0_222 = arith.constant 0 : index
    %c0_223 = arith.constant 0 : index
    %266 = vector.load %arg12[%c0_220, %c0_221, %c0_222, %c0_223] : memref<2x8x8x16xf32, #tpu.memory_space<vmem>>, vector<2x8x8x16xf32>
    %c0_224 = arith.constant 0 : index
    %c0_225 = arith.constant 0 : index
    %c0_226 = arith.constant 0 : index
    %c0_227 = arith.constant 0 : index
    %267 = vector.load %arg0[%c0_224, %c0_225, %c0_226, %c0_227] : memref<2x16x16x8xf32, #tpu.memory_space<vmem>>, vector<2x16x16x8xf32>
    %268 = vector.extract_strided_slice %267 {offsets = [0, 0, 0, 0], sizes = [2, 1, 16, 8], strides = [1, 1, 1, 1]} : vector<2x16x16x8xf32> to vector<2x1x16x8xf32>
    %269 = vector.extract_strided_slice %267 {offsets = [0, 2, 0, 0], sizes = [2, 1, 16, 8], strides = [1, 1, 1, 1]} : vector<2x16x16x8xf32> to vector<2x1x16x8xf32>
    %270 = vector.extract_strided_slice %267 {offsets = [0, 4, 0, 0], sizes = [2, 1, 16, 8], strides = [1, 1, 1, 1]} : vector<2x16x16x8xf32> to vector<2x1x16x8xf32>
    %271 = vector.extract_strided_slice %267 {offsets = [0, 6, 0, 0], sizes = [2, 1, 16, 8], strides = [1, 1, 1, 1]} : vector<2x16x16x8xf32> to vector<2x1x16x8xf32>
    %272 = vector.extract_strided_slice %267 {offsets = [0, 8, 0, 0], sizes = [2, 1, 16, 8], strides = [1, 1, 1, 1]} : vector<2x16x16x8xf32> to vector<2x1x16x8xf32>
    %273 = vector.extract_strided_slice %267 {offsets = [0, 10, 0, 0], sizes = [2, 1, 16, 8], strides = [1, 1, 1, 1]} : vector<2x16x16x8xf32> to vector<2x1x16x8xf32>
    %274 = vector.extract_strided_slice %267 {offsets = [0, 12, 0, 0], sizes = [2, 1, 16, 8], strides = [1, 1, 1, 1]} : vector<2x16x16x8xf32> to vector<2x1x16x8xf32>
    %275 = vector.extract_strided_slice %267 {offsets = [0, 14, 0, 0], sizes = [2, 1, 16, 8], strides = [1, 1, 1, 1]} : vector<2x16x16x8xf32> to vector<2x1x16x8xf32>
    %276 = tpu.concatenate %268, %269, %270, %271, %272, %273, %274, %275 in 1 : vector<2x1x16x8xf32>, vector<2x1x16x8xf32>, vector<2x1x16x8xf32>, vector<2x1x16x8xf32>, vector<2x1x16x8xf32>, vector<2x1x16x8xf32>, vector<2x1x16x8xf32>, vector<2x1x16x8xf32> -> vector<2x8x16x8xf32>
    %277 = vector.extract_strided_slice %276 {offsets = [0, 0, 0, 0], sizes = [2, 8, 1, 8], strides = [1, 1, 1, 1]} : vector<2x8x16x8xf32> to vector<2x8x1x8xf32>
    %c0_228 = arith.constant 0 : index
    %c0_229 = arith.constant 0 : index
    %c0_230 = arith.constant 0 : index
    %c0_231 = arith.constant 0 : index
    %278 = vector.load %arg13[%c0_228, %c0_229, %c0_230, %c0_231] : memref<2x8x8x8xf32, #tpu.memory_space<vmem>>, vector<2x8x1x8xf32>
    tpu.vector_store %arg13[%c0_228, %c0_229, %c0_230, %c0_231], %277 {strides = array<i32>} : memref<2x8x8x8xf32, #tpu.memory_space<vmem>>, vector<2x8x1x8xf32>,
    %279 = vector.extract_strided_slice %276 {offsets = [0, 0, 2, 0], sizes = [2, 8, 1, 8], strides = [1, 1, 1, 1]} : vector<2x8x16x8xf32> to vector<2x8x1x8xf32>
    %c0_232 = arith.constant 0 : index
    %c0_233 = arith.constant 0 : index
    %c1_234 = arith.constant 1 : index
    %c0_235 = arith.constant 0 : index
    %280 = vector.load %arg13[%c0_232, %c0_233, %c1_234, %c0_235] : memref<2x8x8x8xf32, #tpu.memory_space<vmem>>, vector<2x8x1x8xf32>
    tpu.vector_store %arg13[%c0_232, %c0_233, %c1_234, %c0_235], %279 {strides = array<i32>} : memref<2x8x8x8xf32, #tpu.memory_space<vmem>>, vector<2x8x1x8xf32>,
    %281 = vector.extract_strided_slice %276 {offsets = [0, 0, 4, 0], sizes = [2, 8, 1, 8], strides = [1, 1, 1, 1]} : vector<2x8x16x8xf32> to vector<2x8x1x8xf32>
    %c0_236 = arith.constant 0 : index
    %c0_237 = arith.constant 0 : index
    %c2_238 = arith.constant 2 : index
    %c0_239 = arith.constant 0 : index
    %282 = vector.load %arg13[%c0_236, %c0_237, %c2_238, %c0_239] : memref<2x8x8x8xf32, #tpu.memory_space<vmem>>, vector<2x8x1x8xf32>
    tpu.vector_store %arg13[%c0_236, %c0_237, %c2_238, %c0_239], %281 {strides = array<i32>} : memref<2x8x8x8xf32, #tpu.memory_space<vmem>>, vector<2x8x1x8xf32>,
    %283 = vector.extract_strided_slice %276 {offsets = [0, 0, 6, 0], sizes = [2, 8, 1, 8], strides = [1, 1, 1, 1]} : vector<2x8x16x8xf32> to vector<2x8x1x8xf32>
    %c0_240 = arith.constant 0 : index
    %c0_241 = arith.constant 0 : index
    %c3_242 = arith.constant 3 : index
    %c0_243 = arith.constant 0 : index
    %284 = vector.load %arg13[%c0_240, %c0_241, %c3_242, %c0_243] : memref<2x8x8x8xf32, #tpu.memory_space<vmem>>, vector<2x8x1x8xf32>
    tpu.vector_store %arg13[%c0_240, %c0_241, %c3_242, %c0_243], %283 {strides = array<i32>} : memref<2x8x8x8xf32, #tpu.memory_space<vmem>>, vector<2x8x1x8xf32>,
    %285 = vector.extract_strided_slice %276 {offsets = [0, 0, 8, 0], sizes = [2, 8, 1, 8], strides = [1, 1, 1, 1]} : vector<2x8x16x8xf32> to vector<2x8x1x8xf32>
    %c0_244 = arith.constant 0 : index
    %c0_245 = arith.constant 0 : index
    %c4_246 = arith.constant 4 : index
    %c0_247 = arith.constant 0 : index
    %286 = vector.load %arg13[%c0_244, %c0_245, %c4_246, %c0_247] : memref<2x8x8x8xf32, #tpu.memory_space<vmem>>, vector<2x8x1x8xf32>
    tpu.vector_store %arg13[%c0_244, %c0_245, %c4_246, %c0_247], %285 {strides = array<i32>} : memref<2x8x8x8xf32, #tpu.memory_space<vmem>>, vector<2x8x1x8xf32>,
    %287 = vector.extract_strided_slice %276 {offsets = [0, 0, 10, 0], sizes = [2, 8, 1, 8], strides = [1, 1, 1, 1]} : vector<2x8x16x8xf32> to vector<2x8x1x8xf32>
    %c0_248 = arith.constant 0 : index
    %c0_249 = arith.constant 0 : index
    %c5_250 = arith.constant 5 : index
    %c0_251 = arith.constant 0 : index
    %288 = vector.load %arg13[%c0_248, %c0_249, %c5_250, %c0_251] : memref<2x8x8x8xf32, #tpu.memory_space<vmem>>, vector<2x8x1x8xf32>
    tpu.vector_store %arg13[%c0_248, %c0_249, %c5_250, %c0_251], %287 {strides = array<i32>} : memref<2x8x8x8xf32, #tpu.memory_space<vmem>>, vector<2x8x1x8xf32>,
    %289 = vector.extract_strided_slice %276 {offsets = [0, 0, 12, 0], sizes = [2, 8, 1, 8], strides = [1, 1, 1, 1]} : vector<2x8x16x8xf32> to vector<2x8x1x8xf32>
    %c0_252 = arith.constant 0 : index
    %c0_253 = arith.constant 0 : index
    %c6_254 = arith.constant 6 : index
    %c0_255 = arith.constant 0 : index
    %290 = vector.load %arg13[%c0_252, %c0_253, %c6_254, %c0_255] : memref<2x8x8x8xf32, #tpu.memory_space<vmem>>, vector<2x8x1x8xf32>
    tpu.vector_store %arg13[%c0_252, %c0_253, %c6_254, %c0_255], %289 {strides = array<i32>} : memref<2x8x8x8xf32, #tpu.memory_space<vmem>>, vector<2x8x1x8xf32>,
    %291 = vector.extract_strided_slice %276 {offsets = [0, 0, 14, 0], sizes = [2, 8, 1, 8], strides = [1, 1, 1, 1]} : vector<2x8x16x8xf32> to vector<2x8x1x8xf32>
    %c0_256 = arith.constant 0 : index
    %c0_257 = arith.constant 0 : index
    %c7_258 = arith.constant 7 : index
    %c0_259 = arith.constant 0 : index
    %292 = vector.load %arg13[%c0_256, %c0_257, %c7_258, %c0_259] : memref<2x8x8x8xf32, #tpu.memory_space<vmem>>, vector<2x8x1x8xf32>
    tpu.vector_store %arg13[%c0_256, %c0_257, %c7_258, %c0_259], %291 {strides = array<i32>} : memref<2x8x8x8xf32, #tpu.memory_space<vmem>>, vector<2x8x1x8xf32>,
    %c0_260 = arith.constant 0 : index
    %c0_261 = arith.constant 0 : index
    %c0_262 = arith.constant 0 : index
    %c0_263 = arith.constant 0 : index
    %293 = vector.load %arg13[%c0_260, %c0_261, %c0_262, %c0_263] : memref<2x8x8x8xf32, #tpu.memory_space<vmem>>, vector<2x8x8x8xf32>
    %294 = vector.shape_cast %293 : vector<2x8x8x8xf32> to vector<128x8xf32>
    %c0_264 = arith.constant 0 : index
    %c0_265 = arith.constant 0 : index
    %295 = vector.load %arg7[%c0_264, %c0_265] : memref<8x16xf32, #tpu.memory_space<vmem>>, vector<8x16xf32>
    %cst_266 = arith.constant dense<0.000000e+00> : vector<128x16xf32>
    %296 = tpu.matmul %294, %295, %cst_266 {dimension_numbers = #tpu.dot_dimension_numbers<[1], [0], [0], [1], [0, 0, 1, 1], [], []>} : vector<128x8xf32>, vector<8x16xf32>, vector<128x16xf32> -> vector<128x16xf32>
    %c0_267 = arith.constant 0 : index
    %c0_268 = arith.constant 0 : index
    %297 = vector.load %arg8[%c0_267, %c0_268] : memref<1x16xf32, #tpu.memory_space<vmem>>, vector<1x16xf32>
    %c0_269 = arith.constant 0 : index
    %c0_270 = arith.constant 0 : index
    %298 = vector.load %arg9[%c0_269, %c0_270] : memref<1x16xf32, #tpu.memory_space<vmem>>, vector<1x16xf32>
    %cst_271 = arith.constant dense<0.000000e+00> : vector<16xf32>
    %299 = vector.multi_reduction <add>, %296, %cst_271 [0] : vector<128x16xf32> to vector<16xf32>
    %300 = vector.shape_cast %299 : vector<16xf32> to vector<1x16xf32>
    %301 = arith.mulf %296, %296 : vector<128x16xf32>
    %cst_272 = arith.constant dense<0.000000e+00> : vector<16xf32>
    %302 = vector.multi_reduction <add>, %301, %cst_272 [0] : vector<128x16xf32> to vector<16xf32>
    %303 = vector.shape_cast %302 : vector<16xf32> to vector<1x16xf32>
    %cst_273 = arith.constant 7.812500e-03 : f32
    %304 = vector.broadcast %cst_273 : f32 to vector<1x16xf32>
    %305 = arith.mulf %300, %304 : vector<1x16xf32>
    %cst_274 = arith.constant 7.812500e-03 : f32
    %306 = vector.broadcast %cst_274 : f32 to vector<1x16xf32>
    %307 = arith.mulf %303, %306 : vector<1x16xf32>
    %308 = arith.mulf %305, %305 : vector<1x16xf32>
    %309 = arith.subf %307, %308 : vector<1x16xf32>
    %cst_275 = arith.constant 0.000000e+00 : f32
    %310 = vector.broadcast %cst_275 : f32 to vector<1x16xf32>
    %311 = arith.maximumf %309, %310 : vector<1x16xf32>
    %312 = vector.broadcast %305 : vector<1x16xf32> to vector<128x16xf32>
    %313 = arith.subf %296, %312 : vector<128x16xf32>
    %cst_276 = arith.constant 9.99999974E-6 : f32
    %314 = vector.broadcast %cst_276 : f32 to vector<1x16xf32>
    %315 = arith.addf %311, %314 : vector<1x16xf32>
    %316 = math.rsqrt %315 : vector<1x16xf32>
    %317 = vector.broadcast %316 : vector<1x16xf32> to vector<128x16xf32>
    %318 = arith.mulf %313, %317 : vector<128x16xf32>
    %319 = vector.broadcast %297 : vector<1x16xf32> to vector<128x16xf32>
    %320 = arith.mulf %318, %319 : vector<128x16xf32>
    %321 = vector.broadcast %298 : vector<1x16xf32> to vector<128x16xf32>
    %322 = arith.addf %320, %321 : vector<128x16xf32>
    %323 = vector.shape_cast %322 : vector<128x16xf32> to vector<2x8x8x16xf32>
    %324 = arith.addf %266, %323 : vector<2x8x8x16xf32>
    %c0_277 = arith.constant 0 : index
    %c0_278 = arith.constant 0 : index
    %c0_279 = arith.constant 0 : index
    %c0_280 = arith.constant 0 : index
    %325 = vector.load %arg10[%c0_277, %c0_278, %c0_279, %c0_280] : memref<2x8x8x16xf32, #tpu.memory_space<vmem>>, vector<2x8x8x16xf32>
    tpu.vector_store %arg10[%c0_277, %c0_278, %c0_279, %c0_280], %324 {strides = array<i32>} : memref<2x8x8x16xf32, #tpu.memory_space<vmem>>, vector<2x8x8x16xf32>,
    return
  }
}

</mosaic_0001>

<llo_original>
// kernel: tpu_custom_call.1
$region0: #{tpu_custom_call.1}
  #allocation0 [shape = 'u32[]', space=smem, size = 0x4, offset = 0x4, fixed_abs, tag = 'smem constant byte address 0x4 - core index']
  #allocation1 [shape = 'u32[72,128]{1,0:T(1,128)}', space=vmem, size = 0x9000, scoped, tag = 'internal scratch']
  #allocation2 [shape = 'f32[2,18,18,16]{3,2,1,0:T(8,128)}', space=vmem, size = 0x6c000, scoped, tag = 'scratch operand']
  #allocation3 [shape = 'f32[2,8,8,16]{3,2,1,0:T(8,128)}', space=vmem, size = 0x10000, scoped, tag = 'scratch operand']
  #allocation4 [shape = 'f32[2,8,8,8]{3,2,1,0:T(8,128)}', space=vmem, size = 0x10000, scoped, tag = 'scratch operand']
  %s0 = inlined_call_operand.vmem [shape: f32[2,16,16,8], index: 0, kind: input, shape index: {}]
  %s1 = inlined_call_operand.vmem [shape: f32[9,8,16], index: 1, kind: input, shape index: {}]
  %s2 = inlined_call_operand.vmem [shape: f32[1,16], index: 2, kind: input, shape index: {}]
  %s3 = inlined_call_operand.vmem [shape: f32[1,16], index: 3, kind: input, shape index: {}]
  %s4 = inlined_call_operand.vmem [shape: f32[9,16,16], index: 4, kind: input, shape index: {}]
  %s5 = inlined_call_operand.vmem [shape: f32[1,16], index: 5, kind: input, shape index: {}]
  %s6 = inlined_call_operand.vmem [shape: f32[1,16], index: 6, kind: input, shape index: {}]
  %s7 = inlined_call_operand.vmem [shape: f32[8,16], index: 7, kind: input, shape index: {}]
  %s8 = inlined_call_operand.vmem [shape: f32[1,16], index: 8, kind: input, shape index: {}]
  %s9 = inlined_call_operand.vmem [shape: f32[1,16], index: 9, kind: input, shape index: {}]
  %s10 = inlined_call_operand.hbm [shape: f32[2,8,8,16], index: 10, kind: output, shape index: {}]
  %s11 = sld [smem:[#allocation0]]
  $region50: #{tpu_custom_call.1} parent=0
    _
  %s13 = ssub.s32 1, %s11
  %s14 = scalar_select 0, %s13, %s11
  $region1: #{tpu_custom_call.1} parent=0
    #allocation5 [shape = 'u8[65536]{0}', space=vmem, size = 0x10000, scoped, tag = 'output window, operand 0, single buffered']
    #allocation6 [shape = 's32[1]{0}', space=sflag, size = 0x4, scoped, tag = 'scoped memory for tpu_custom_call.1']
    %15 = vsyncpa [#allocation6], 0
    // Predicated region
    $region2: #{tpu_custom_call.1} parent=1 // pred_check
      _
    $region3: #{tpu_custom_call.1} parent=1 // pred_check_branch
      %17 = sbr.rel (0) target = $region5
    $region4: #{tpu_custom_call.1} parent=1 // pred_region
      _
    $region5: #{tpu_custom_call.1} parent=1 // pred_fallthru
      _
    // Predicated region
    $region6: #{tpu_custom_call.1} parent=1 // pred_check
      _
    $region7: #{tpu_custom_call.1} parent=1 // pred_check_branch
      %19 = sbr.rel (0) target = $region9
    $region8: #{tpu_custom_call.1} parent=1 // pred_region
      _
    $region9: #{tpu_custom_call.1} parent=1 // pred_fallthru
      _
    // Predicated region
    $region10: #{tpu_custom_call.1} parent=1 // pred_check
      _
    $region11: #{tpu_custom_call.1} parent=1 // pred_check_branch
      %21 = sbr.rel (0) target = $region13
    $region12: #{tpu_custom_call.1} parent=1 // pred_region
      _
    $region13: #{tpu_custom_call.1} parent=1 // pred_fallthru
      _
    // Predicated region
    $region14: #{tpu_custom_call.1} parent=1 // pred_check
      _
    $region15: #{tpu_custom_call.1} parent=1 // pred_check_branch
      %23 = sbr.rel (0) target = $region17
    $region16: #{tpu_custom_call.1} parent=1 // pred_region
      _
    $region17: #{tpu_custom_call.1} parent=1 // pred_fallthru
      _
    // Predicated region
    $region18: #{tpu_custom_call.1} parent=1 // pred_check
      _
    $region19: #{tpu_custom_call.1} parent=1 // pred_check_branch
      %25 = sbr.rel (0) target = $region21
    $region20: #{tpu_custom_call.1} parent=1 // pred_region
      _
    $region21: #{tpu_custom_call.1} parent=1 // pred_fallthru
      _
    // Predicated region
    $region22: #{tpu_custom_call.1} parent=1 // pred_check
      _
    $region23: #{tpu_custom_call.1} parent=1 // pred_check_branch
      %27 = sbr.rel (0) target = $region25
    $region24: #{tpu_custom_call.1} parent=1 // pred_region
      _
    $region25: #{tpu_custom_call.1} parent=1 // pred_fallthru
      _
    // Predicated region
    $region26: #{tpu_custom_call.1} parent=1 // pred_check
      _
    $region27: #{tpu_custom_call.1} parent=1 // pred_check_branch
      %29 = sbr.rel (0) target = $region29
    $region28: #{tpu_custom_call.1} parent=1 // pred_region
      _
    $region29: #{tpu_custom_call.1} parent=1 // pred_fallthru
      _
    // Predicated region
    $region30: #{tpu_custom_call.1} parent=1 // pred_check
      _
    $region31: #{tpu_custom_call.1} parent=1 // pred_check_branch
      %31 = sbr.rel (0) target = $region33
    $region32: #{tpu_custom_call.1} parent=1 // pred_region
      _
    $region33: #{tpu_custom_call.1} parent=1 // pred_fallthru
      _
    // Predicated region
    $region34: #{tpu_custom_call.1} parent=1 // pred_check
      _
    $region35: #{tpu_custom_call.1} parent=1 // pred_check_branch
      %33 = sbr.rel (0) target = $region37
    $region36: #{tpu_custom_call.1} parent=1 // pred_region
      _
    $region37: #{tpu_custom_call.1} parent=1 // pred_fallthru
      _
    // Predicated region
    $region38: #{tpu_custom_call.1} parent=1 // pred_check
      _
    $region39: #{tpu_custom_call.1} parent=1 // pred_check_branch
      %35 = sbr.rel (0) target = $region41
    $region40: #{tpu_custom_call.1} parent=1 // pred_region
      _
    $region41: #{tpu_custom_call.1} parent=1 // pred_fallthru
      _
    %vm36 = vcmask 130048
    %37 = vst.msk [vmem:[#allocation2] sm:$0xff] %vm36, 0.0
    %38 = vst.msk [vmem:[#allocation2 + $0x8] sm:$0xff] %vm36, 0.0
    %vm39 = vcmask 123904
    %40 = vst.msk [vmem:[#allocation2 + $0x10] sm:$0x3] %vm39, 0.0
    %41 = vst.msk [vmem:[#allocation2 + $0x18] sm:$0xff] %vm36, 0.0
    %42 = vst.msk [vmem:[#allocation2 + $0x20] sm:$0xff] %vm36, 0.0
    %43 = vst.msk [vmem:[#allocation2 + $0x28] sm:$0x3] %vm39, 0.0
    %44 = vst.msk [vmem:[#allocation2 + $0x30] sm:$0xff] %vm36, 0.0
    %45 = vst.msk [vmem:[#allocation2 + $0x38] sm:$0xff] %vm36, 0.0
    %46 = vst.msk [vmem:[#allocation2 + $0x40] sm:$0x3] %vm39, 0.0
    %47 = vst.msk [vmem:[#allocation2 + $0x48] sm:$0xff] %vm36, 0.0
    %48 = vst.msk [vmem:[#allocation2 + $0x50] sm:$0xff] %vm36, 0.0
    %49 = vst.msk [vmem:[#allocation2 + $0x58] sm:$0x3] %vm39, 0.0
    %50 = vst.msk [vmem:[#allocation2 + $0x60] sm:$0xff] %vm36, 0.0
    %51 = vst.msk [vmem:[#allocation2 + $0x68] sm:$0xff] %vm36, 0.0
    %52 = vst.msk [vmem:[#allocation2 + $0x70] sm:$0x3] %vm39, 0.0
    %53 = vst.msk [vmem:[#allocation2 + $0x78] sm:$0xff] %vm36, 0.0
    %54 = vst.msk [vmem:[#allocation2 + $0x80] sm:$0xff] %vm36, 0.0
    %55 = vst.msk [vmem:[#allocation2 + $0x88] sm:$0x3] %vm39, 0.0
    %56 = vst.msk [vmem:[#allocation2 + $0x90] sm:$0xff] %vm36, 0.0
    %57 = vst.msk [vmem:[#allocation2 + $0x98] sm:$0xff] %vm36, 0.0
    %58 = vst.msk [vmem:[#allocation2 + $0xa0] sm:$0x3] %vm39, 0.0
    %59 = vst.msk [vmem:[#allocation2 + $0xa8] sm:$0xff] %vm36, 0.0
    %60 = vst.msk [vmem:[#allocation2 + $0xb0] sm:$0xff] %vm36, 0.0
    %61 = vst.msk [vmem:[#allocation2 + $0xb8] sm:$0x3] %vm39, 0.0
    %62 = vst.msk [vmem:[#allocation2 + $0xc0] sm:$0xff] %vm36, 0.0
    %63 = vst.msk [vmem:[#allocation2 + $0xc8] sm:$0xff] %vm36, 0.0
    %64 = vst.msk [vmem:[#allocation2 + $0xd0] sm:$0x3] %vm39, 0.0
    %65 = vst.msk [vmem:[#allocation2 + $0xd8] sm:$0xff] %vm36, 0.0
    %66 = vst.msk [vmem:[#allocation2 + $0xe0] sm:$0xff] %vm36, 0.0
    %67 = vst.msk [vmem:[#allocation2 + $0xe8] sm:$0x3] %vm39, 0.0
    %68 = vst.msk [vmem:[#allocation2 + $0xf0] sm:$0xff] %vm36, 0.0
    %69 = vst.msk [vmem:[#allocation2 + $0xf8] sm:$0xff] %vm36, 0.0
    %70 = vst.msk [vmem:[#allocation2 + $0x100] sm:$0x3] %vm39, 0.0
    %71 = vst.msk [vmem:[#allocation2 + $0x108] sm:$0xff] %vm36, 0.0
    %72 = vst.msk [vmem:[#allocation2 + $0x110] sm:$0xff] %vm36, 0.0
    %73 = vst.msk [vmem:[#allocation2 + $0x118] sm:$0x3] %vm39, 0.0
    %74 = vst.msk [vmem:[#allocation2 + $0x120] sm:$0xff] %vm36, 0.0
    %75 = vst.msk [vmem:[#allocation2 + $0x128] sm:$0xff] %vm36, 0.0
    %76 = vst.msk [vmem:[#allocation2 + $0x130] sm:$0x3] %vm39, 0.0
    %77 = vst.msk [vmem:[#allocation2 + $0x138] sm:$0xff] %vm36, 0.0
    %78 = vst.msk [vmem:[#allocation2 + $0x140] sm:$0xff] %vm36, 0.0
    %79 = vst.msk [vmem:[#allocation2 + $0x148] sm:$0x3] %vm39, 0.0
    %80 = vst.msk [vmem:[#allocation2 + $0x150] sm:$0xff] %vm36, 0.0
    %81 = vst.msk [vmem:[#allocation2 + $0x158] sm:$0xff] %vm36, 0.0
    %82 = vst.msk [vmem:[#allocation2 + $0x160] sm:$0x3] %vm39, 0.0
    %83 = vst.msk [vmem:[#allocation2 + $0x168] sm:$0xff] %vm36, 0.0
    %84 = vst.msk [vmem:[#allocation2 + $0x170] sm:$0xff] %vm36, 0.0
    %85 = vst.msk [vmem:[#allocation2 + $0x178] sm:$0x3] %vm39, 0.0
    %86 = vst.msk [vmem:[#allocation2 + $0x180] sm:$0xff] %vm36, 0.0
    %87 = vst.msk [vmem:[#allocation2 + $0x188] sm:$0xff] %vm36, 0.0
    %88 = vst.msk [vmem:[#allocation2 + $0x190] sm:$0x3] %vm39, 0.0
    %89 = vst.msk [vmem:[#allocation2 + $0x198] sm:$0xff] %vm36, 0.0
    %90 = vst.msk [vmem:[#allocation2 + $0x1a0] sm:$0xff] %vm36, 0.0
    %91 = vst.msk [vmem:[#allocation2 + $0x1a8] sm:$0x3] %vm39, 0.0
    %92 = vst.msk [vmem:[#allocation2 + $0x1b0] sm:$0xff] %vm36, 0.0
    %93 = vst.msk [vmem:[#allocation2 + $0x1b8] sm:$0xff] %vm36, 0.0
    %94 = vst.msk [vmem:[#allocation2 + $0x1c0] sm:$0x3] %vm39, 0.0
    %95 = vst.msk [vmem:[#allocation2 + $0x1c8] sm:$0xff] %vm36, 0.0
    %96 = vst.msk [vmem:[#allocation2 + $0x1d0] sm:$0xff] %vm36, 0.0
    %97 = vst.msk [vmem:[#allocation2 + $0x1d8] sm:$0x3] %vm39, 0.0
    %98 = vst.msk [vmem:[#allocation2 + $0x1e0] sm:$0xff] %vm36, 0.0
    %99 = vst.msk [vmem:[#allocation2 + $0x1e8] sm:$0xff] %vm36, 0.0
    %100 = vst.msk [vmem:[#allocation2 + $0x1f0] sm:$0x3] %vm39, 0.0
    %101 = vst.msk [vmem:[#allocation2 + $0x1f8] sm:$0xff] %vm36, 0.0
    %102 = vst.msk [vmem:[#allocation2 + $0x200] sm:$0xff] %vm36, 0.0
    %103 = vst.msk [vmem:[#allocation2 + $0x208] sm:$0x3] %vm39, 0.0
    %104 = vst.msk [vmem:[#allocation2 + $0x210] sm:$0xff] %vm36, 0.0
    %105 = vst.msk [vmem:[#allocation2 + $0x218] sm:$0xff] %vm36, 0.0
    %106 = vst.msk [vmem:[#allocation2 + $0x220] sm:$0x3] %vm39, 0.0
    %107 = vst.msk [vmem:[#allocation2 + $0x228] sm:$0xff] %vm36, 0.0
    %108 = vst.msk [vmem:[#allocation2 + $0x230] sm:$0xff] %vm36, 0.0
    %109 = vst.msk [vmem:[#allocation2 + $0x238] sm:$0x3] %vm39, 0.0
    %110 = vst.msk [vmem:[#allocation2 + $0x240] sm:$0xff] %vm36, 0.0
    %111 = vst.msk [vmem:[#allocation2 + $0x248] sm:$0xff] %vm36, 0.0
    %112 = vst.msk [vmem:[#allocation2 + $0x250] sm:$0x3] %vm39, 0.0
    %113 = vst.msk [vmem:[#allocation2 + $0x258] sm:$0xff] %vm36, 0.0
    %114 = vst.msk [vmem:[#allocation2 + $0x260] sm:$0xff] %vm36, 0.0
    %115 = vst.msk [vmem:[#allocation2 + $0x268] sm:$0x3] %vm39, 0.0
    %116 = vst.msk [vmem:[#allocation2 + $0x270] sm:$0xff] %vm36, 0.0
    %117 = vst.msk [vmem:[#allocation2 + $0x278] sm:$0xff] %vm36, 0.0
    %118 = vst.msk [vmem:[#allocation2 + $0x280] sm:$0x3] %vm39, 0.0
    %119 = vst.msk [vmem:[#allocation2 + $0x288] sm:$0xff] %vm36, 0.0
    %120 = vst.msk [vmem:[#allocation2 + $0x290] sm:$0xff] %vm36, 0.0
    %121 = vst.msk [vmem:[#allocation2 + $0x298] sm:$0x3] %vm39, 0.0
    %122 = vst.msk [vmem:[#allocation2 + $0x2a0] sm:$0xff] %vm36, 0.0
    %123 = vst.msk [vmem:[#allocation2 + $0x2a8] sm:$0xff] %vm36, 0.0
    %124 = vst.msk [vmem:[#allocation2 + $0x2b0] sm:$0x3] %vm39, 0.0
    %125 = vst.msk [vmem:[#allocation2 + $0x2b8] sm:$0xff] %vm36, 0.0
    %126 = vst.msk [vmem:[#allocation2 + $0x2c0] sm:$0xff] %vm36, 0.0
    %127 = vst.msk [vmem:[#allocation2 + $0x2c8] sm:$0x3] %vm39, 0.0
    %128 = vst.msk [vmem:[#allocation2 + $0x2d0] sm:$0xff] %vm36, 0.0
    %129 = vst.msk [vmem:[#allocation2 + $0x2d8] sm:$0xff] %vm36, 0.0
    %130 = vst.msk [vmem:[#allocation2 + $0x2e0] sm:$0x3] %vm39, 0.0
    %131 = vst.msk [vmem:[#allocation2 + $0x2e8] sm:$0xff] %vm36, 0.0
    %132 = vst.msk [vmem:[#allocation2 + $0x2f0] sm:$0xff] %vm36, 0.0
    %133 = vst.msk [vmem:[#allocation2 + $0x2f8] sm:$0x3] %vm39, 0.0
    %134 = vst.msk [vmem:[#allocation2 + $0x300] sm:$0xff] %vm36, 0.0
    %135 = vst.msk [vmem:[#allocation2 + $0x308] sm:$0xff] %vm36, 0.0
    %136 = vst.msk [vmem:[#allocation2 + $0x310] sm:$0x3] %vm39, 0.0
    %137 = vst.msk [vmem:[#allocation2 + $0x318] sm:$0xff] %vm36, 0.0
    %138 = vst.msk [vmem:[#allocation2 + $0x320] sm:$0xff] %vm36, 0.0
    %139 = vst.msk [vmem:[#allocation2 + $0x328] sm:$0x3] %vm39, 0.0
    %140 = vst.msk [vmem:[#allocation2 + $0x330] sm:$0xff] %vm36, 0.0
    %141 = vst.msk [vmem:[#allocation2 + $0x338] sm:$0xff] %vm36, 0.0
    %142 = vst.msk [vmem:[#allocation2 + $0x340] sm:$0x3] %vm39, 0.0
    %143 = vst.msk [vmem:[#allocation2 + $0x348] sm:$0xff] %vm36, 0.0
    %144 = vst.msk [vmem:[#allocation2 + $0x350] sm:$0xff] %vm36, 0.0
    %145 = vst.msk [vmem:[#allocation2 + $0x358] sm:$0x3] %vm39, 0.0
    %v146 = vld [vmem:[%s0] sm:$0xff]
    %v147 = vld [vmem:[%s0 + $0x8] sm:$0xff]
    %v148 = vld [vmem:[%s0 + $0x10] sm:$0xff]
    %v149 = vld [vmem:[%s0 + $0x18] sm:$0xff]
    %v150 = vld [vmem:[%s0 + $0x20] sm:$0xff]
    %v151 = vld [vmem:[%s0 + $0x28] sm:$0xff]
    %v152 = vld [vmem:[%s0 + $0x30] sm:$0xff]
    %v153 = vld [vmem:[%s0 + $0x38] sm:$0xff]
    %v154 = vld [vmem:[%s0 + $0x40] sm:$0xff]
    %v155 = vld [vmem:[%s0 + $0x48] sm:$0xff]
    %v156 = vld [vmem:[%s0 + $0x50] sm:$0xff]
    %v157 = vld [vmem:[%s0 + $0x58] sm:$0xff]
    %v158 = vld [vmem:[%s0 + $0x60] sm:$0xff]
    %v159 = vld [vmem:[%s0 + $0x68] sm:$0xff]
    %v160 = vld [vmem:[%s0 + $0x70] sm:$0xff]
    %v161 = vld [vmem:[%s0 + $0x78] sm:$0xff]
    %v162 = vld [vmem:[%s0 + $0x80] sm:$0xff]
    %v163 = vld [vmem:[%s0 + $0x88] sm:$0xff]
    %v164 = vld [vmem:[%s0 + $0x90] sm:$0xff]
    %v165 = vld [vmem:[%s0 + $0x98] sm:$0xff]
    %v166 = vld [vmem:[%s0 + $0xa0] sm:$0xff]
    %v167 = vld [vmem:[%s0 + $0xa8] sm:$0xff]
    %v168 = vld [vmem:[%s0 + $0xb0] sm:$0xff]
    %v169 = vld [vmem:[%s0 + $0xb8] sm:$0xff]
    %v170 = vld [vmem:[%s0 + $0xc0] sm:$0xff]
    %v171 = vld [vmem:[%s0 + $0xc8] sm:$0xff]
    %v172 = vld [vmem:[%s0 + $0xd0] sm:$0xff]
    %v173 = vld [vmem:[%s0 + $0xd8] sm:$0xff]
    %v174 = vld [vmem:[%s0 + $0xe0] sm:$0xff]
    %v175 = vld [vmem:[%s0 + $0xe8] sm:$0xff]
    %v176 = vld [vmem:[%s0 + $0xf0] sm:$0xff]
    %v177 = vld [vmem:[%s0 + $0xf8] sm:$0xff]
    %v178 = vld [vmem:[%s0 + $0x100] sm:$0xff]
    %v179 = vld [vmem:[%s0 + $0x108] sm:$0xff]
    %v180 = vld [vmem:[%s0 + $0x110] sm:$0xff]
    %v181 = vld [vmem:[%s0 + $0x118] sm:$0xff]
    %v182 = vld [vmem:[%s0 + $0x120] sm:$0xff]
    %v183 = vld [vmem:[%s0 + $0x128] sm:$0xff]
    %v184 = vld [vmem:[%s0 + $0x130] sm:$0xff]
    %v185 = vld [vmem:[%s0 + $0x138] sm:$0xff]
    %v186 = vld [vmem:[%s0 + $0x140] sm:$0xff]
    %v187 = vld [vmem:[%s0 + $0x148] sm:$0xff]
    %v188 = vld [vmem:[%s0 + $0x150] sm:$0xff]
    %v189 = vld [vmem:[%s0 + $0x158] sm:$0xff]
    %v190 = vld [vmem:[%s0 + $0x160] sm:$0xff]
    %v191 = vld [vmem:[%s0 + $0x168] sm:$0xff]
    %v192 = vld [vmem:[%s0 + $0x170] sm:$0xff]
    %v193 = vld [vmem:[%s0 + $0x178] sm:$0xff]
    %v194 = vld [vmem:[%s0 + $0x180] sm:$0xff]
    %v195 = vld [vmem:[%s0 + $0x188] sm:$0xff]
    %v196 = vld [vmem:[%s0 + $0x190] sm:$0xff]
    %v197 = vld [vmem:[%s0 + $0x198] sm:$0xff]
    %v198 = vld [vmem:[%s0 + $0x1a0] sm:$0xff]
    %v199 = vld [vmem:[%s0 + $0x1a8] sm:$0xff]
    %v200 = vld [vmem:[%s0 + $0x1b0] sm:$0xff]
    %v201 = vld [vmem:[%s0 + $0x1b8] sm:$0xff]
    %v202 = vld [vmem:[%s0 + $0x1c0] sm:$0xff]
    %v203 = vld [vmem:[%s0 + $0x1c8] sm:$0xff]
    %v204 = vld [vmem:[%s0 + $0x1d0] sm:$0xff]
    %v205 = vld [vmem:[%s0 + $0x1d8] sm:$0xff]
    %v206 = vld [vmem:[%s0 + $0x1e0] sm:$0xff]
    %v207 = vld [vmem:[%s0 + $0x1e8] sm:$0xff]
    %v208 = vld [vmem:[%s0 + $0x1f0] sm:$0xff]
    %v209 = vld [vmem:[%s0 + $0x1f8] sm:$0xff]
    %v210 = vmax.f32 %v146, 0.0
    %v211 = vmax.f32 %v147, 0.0
    %v212 = vmax.f32 %v148, 0.0
    %v213 = vmax.f32 %v149, 0.0
    %v214 = vmax.f32 %v150, 0.0
    %v215 = vmax.f32 %v151, 0.0
    %v216 = vmax.f32 %v152, 0.0
    %v217 = vmax.f32 %v153, 0.0
    %v218 = vmax.f32 %v154, 0.0
    %v219 = vmax.f32 %v155, 0.0
    %v220 = vmax.f32 %v156, 0.0
    %v221 = vmax.f32 %v157, 0.0
    %v222 = vmax.f32 %v158, 0.0
    %v223 = vmax.f32 %v159, 0.0
    %v224 = vmax.f32 %v160, 0.0
    %v225 = vmax.f32 %v161, 0.0
    %v226 = vmax.f32 %v162, 0.0
    %v227 = vmax.f32 %v163, 0.0
    %v228 = vmax.f32 %v164, 0.0
    %v229 = vmax.f32 %v165, 0.0
    %v230 = vmax.f32 %v166, 0.0
    %v231 = vmax.f32 %v167, 0.0
    %v232 = vmax.f32 %v168, 0.0
    %v233 = vmax.f32 %v169, 0.0
    %v234 = vmax.f32 %v170, 0.0
    %v235 = vmax.f32 %v171, 0.0
    %v236 = vmax.f32 %v172, 0.0
    %v237 = vmax.f32 %v173, 0.0
    %v238 = vmax.f32 %v174, 0.0
    %v239 = vmax.f32 %v175, 0.0
    %v240 = vmax.f32 %v176, 0.0
    %v241 = vmax.f32 %v177, 0.0
    %v242 = vmax.f32 %v178, 0.0
    %v243 = vmax.f32 %v179, 0.0
    %v244 = vmax.f32 %v180, 0.0
    %v245 = vmax.f32 %v181, 0.0
    %v246 = vmax.f32 %v182, 0.0
    %v247 = vmax.f32 %v183, 0.0
    %v248 = vmax.f32 %v184, 0.0
    %v249 = vmax.f32 %v185, 0.0
    %v250 = vmax.f32 %v186, 0.0
    %v251 = vmax.f32 %v187, 0.0
    %v252 = vmax.f32 %v188, 0.0
    %v253 = vmax.f32 %v189, 0.0
    %v254 = vmax.f32 %v190, 0.0
    %v255 = vmax.f32 %v191, 0.0
    %v256 = vmax.f32 %v192, 0.0
    %v257 = vmax.f32 %v193, 0.0
    %v258 = vmax.f32 %v194, 0.0
    %v259 = vmax.f32 %v195, 0.0
    %v260 = vmax.f32 %v196, 0.0
    %v261 = vmax.f32 %v197, 0.0
    %v262 = vmax.f32 %v198, 0.0
    %v263 = vmax.f32 %v199, 0.0
    %v264 = vmax.f32 %v200, 0.0
    %v265 = vmax.f32 %v201, 0.0
    %v266 = vmax.f32 %v202, 0.0
    %v267 = vmax.f32 %v203, 0.0
    %v268 = vmax.f32 %v204, 0.0
    %v269 = vmax.f32 %v205, 0.0
    %v270 = vmax.f32 %v206, 0.0
    %v271 = vmax.f32 %v207, 0.0
    %v272 = vmax.f32 %v208, 0.0
    %v273 = vmax.f32 %v209, 0.0
    %s274 = scalar_lea.vmem [#allocation2], 24
    %vm275 = vcmask 64512
    %276 = vst.msk [vmem:[%s274 + $0x1] sm:$0xff] %vm275, %v210
    %277 = vst.msk [vmem:[%s274 + $0x9] sm:$0xff] %vm275, %v211
    %278 = vst.msk [vmem:[%s274 + $0x19] sm:$0xff] %vm275, %v212
    %279 = vst.msk [vmem:[%s274 + $0x21] sm:$0xff] %vm275, %v213
    %280 = vst.msk [vmem:[%s274 + $0x31] sm:$0xff] %vm275, %v214
    %281 = vst.msk [vmem:[%s274 + $0x39] sm:$0xff] %vm275, %v215
    %282 = vst.msk [vmem:[%s274 + $0x49] sm:$0xff] %vm275, %v216
    %283 = vst.msk [vmem:[%s274 + $0x51] sm:$0xff] %vm275, %v217
    %284 = vst.msk [vmem:[%s274 + $0x61] sm:$0xff] %vm275, %v218
    %285 = vst.msk [vmem:[%s274 + $0x69] sm:$0xff] %vm275, %v219
    %286 = vst.msk [vmem:[%s274 + $0x79] sm:$0xff] %vm275, %v220
    %287 = vst.msk [vmem:[%s274 + $0x81] sm:$0xff] %vm275, %v221
    %288 = vst.msk [vmem:[%s274 + $0x91] sm:$0xff] %vm275, %v222
    %289 = vst.msk [vmem:[%s274 + $0x99] sm:$0xff] %vm275, %v223
    %290 = vst.msk [vmem:[%s274 + $0xa9] sm:$0xff] %vm275, %v224
    %291 = vst.msk [vmem:[%s274 + $0xb1] sm:$0xff] %vm275, %v225
    %292 = vst.msk [vmem:[%s274 + $0xc1] sm:$0xff] %vm275, %v226
    %293 = vst.msk [vmem:[%s274 + $0xc9] sm:$0xff] %vm275, %v227
    %294 = vst.msk [vmem:[%s274 + $0xd9] sm:$0xff] %vm275, %v228
    %295 = vst.msk [vmem:[%s274 + $0xe1] sm:$0xff] %vm275, %v229
    %296 = vst.msk [vmem:[%s274 + $0xf1] sm:$0xff] %vm275, %v230
    %297 = vst.msk [vmem:[%s274 + $0xf9] sm:$0xff] %vm275, %v231
    %298 = vst.msk [vmem:[%s274 + $0x109] sm:$0xff] %vm275, %v232
    %299 = vst.msk [vmem:[%s274 + $0x111] sm:$0xff] %vm275, %v233
    %300 = vst.msk [vmem:[%s274 + $0x121] sm:$0xff] %vm275, %v234
    %301 = vst.msk [vmem:[%s274 + $0x129] sm:$0xff] %vm275, %v235
    %302 = vst.msk [vmem:[%s274 + $0x139] sm:$0xff] %vm275, %v236
    %303 = vst.msk [vmem:[%s274 + $0x141] sm:$0xff] %vm275, %v237
    %304 = vst.msk [vmem:[%s274 + $0x151] sm:$0xff] %vm275, %v238
    %305 = vst.msk [vmem:[%s274 + $0x159] sm:$0xff] %vm275, %v239
    %306 = vst.msk [vmem:[%s274 + $0x169] sm:$0xff] %vm275, %v240
    %307 = vst.msk [vmem:[%s274 + $0x171] sm:$0xff] %vm275, %v241
    %308 = vst.msk [vmem:[%s274 + $0x1b1] sm:$0xff] %vm275, %v242
    %309 = vst.msk [vmem:[%s274 + $0x1b9] sm:$0xff] %vm275, %v243
    %310 = vst.msk [vmem:[%s274 + $0x1c9] sm:$0xff] %vm275, %v244
    %311 = vst.msk [vmem:[%s274 + $0x1d1] sm:$0xff] %vm275, %v245
    %312 = vst.msk [vmem:[%s274 + $0x1e1] sm:$0xff] %vm275, %v246
    %313 = vst.msk [vmem:[%s274 + $0x1e9] sm:$0xff] %vm275, %v247
    %314 = vst.msk [vmem:[%s274 + $0x1f9] sm:$0xff] %vm275, %v248
    %315 = vst.msk [vmem:[%s274 + $0x201] sm:$0xff] %vm275, %v249
    %316 = vst.msk [vmem:[%s274 + $0x211] sm:$0xff] %vm275, %v250
    %317 = vst.msk [vmem:[%s274 + $0x219] sm:$0xff] %vm275, %v251
    %318 = vst.msk [vmem:[%s274 + $0x229] sm:$0xff] %vm275, %v252
    %319 = vst.msk [vmem:[%s274 + $0x231] sm:$0xff] %vm275, %v253
    %320 = vst.msk [vmem:[%s274 + $0x241] sm:$0xff] %vm275, %v254
    %321 = vst.msk [vmem:[%s274 + $0x249] sm:$0xff] %vm275, %v255
    %322 = vst.msk [vmem:[%s274 + $0x259] sm:$0xff] %vm275, %v256
    %323 = vst.msk [vmem:[%s274 + $0x261] sm:$0xff] %vm275, %v257
    %324 = vst.msk [vmem:[%s274 + $0x271] sm:$0xff] %vm275, %v258
    %325 = vst.msk [vmem:[%s274 + $0x279] sm:$0xff] %vm275, %v259
    %326 = vst.msk [vmem:[%s274 + $0x289] sm:$0xff] %vm275, %v260
    %327 = vst.msk [vmem:[%s274 + $0x291] sm:$0xff] %vm275, %v261
    %328 = vst.msk [vmem:[%s274 + $0x2a1] sm:$0xff] %vm275, %v262
    %329 = vst.msk [vmem:[%s274 + $0x2a9] sm:$0xff] %vm275, %v263
    %330 = vst.msk [vmem:[%s274 + $0x2b9] sm:$0xff] %vm275, %v264
    %331 = vst.msk [vmem:[%s274 + $0x2c1] sm:$0xff] %vm275, %v265
    %332 = vst.msk [vmem:[%s274 + $0x2d1] sm:$0xff] %vm275, %v266
    %333 = vst.msk [vmem:[%s274 + $0x2d9] sm:$0xff] %vm275, %v267
    %334 = vst.msk [vmem:[%s274 + $0x2e9] sm:$0xff] %vm275, %v268
    %335 = vst.msk [vmem:[%s274 + $0x2f1] sm:$0xff] %vm275, %v269
    %336 = vst.msk [vmem:[%s274 + $0x301] sm:$0xff] %vm275, %v270
    %337 = vst.msk [vmem:[%s274 + $0x309] sm:$0xff] %vm275, %v271
    %338 = vst.msk [vmem:[%s274 + $0x319] sm:$0xff] %vm275, %v272
    %339 = vst.msk [vmem:[%s274 + $0x321] sm:$0xff] %vm275, %v273
    %v340 = vld [vmem:[#allocation2] sm:$0xff]
    %v341 = vld [vmem:[#allocation2 + $0x8] sm:$0xff]
    %v342 = vld [vmem:[#allocation2 + $0x18] sm:$0xff]
    %v343 = vld [vmem:[#allocation2 + $0x20] sm:$0xff]
    %v344 = vld [vmem:[#allocation2 + $0x30] sm:$0xff]
    %v345 = vld [vmem:[#allocation2 + $0x38] sm:$0xff]
    %v346 = vld [vmem:[#allocation2 + $0x48] sm:$0xff]
    %v347 = vld [vmem:[#allocation2 + $0x50] sm:$0xff]
    %v348 = vld [vmem:[#allocation2 + $0x60] sm:$0xff]
    %v349 = vld [vmem:[#allocation2 + $0x68] sm:$0xff]
    %v350 = vld [vmem:[#allocation2 + $0x78] sm:$0xff]
    %v351 = vld [vmem:[#allocation2 + $0x80] sm:$0xff]
    %v352 = vld [vmem:[#allocation2 + $0x90] sm:$0xff]
    %v353 = vld [vmem:[#allocation2 + $0x98] sm:$0xff]
    %v354 = vld [vmem:[#allocation2 + $0xa8] sm:$0xff]
    %v355 = vld [vmem:[#allocation2 + $0xb0] sm:$0xff]
    %v356 = vld [vmem:[#allocation2 + $0xc0] sm:$0xff]
    %v357 = vld [vmem:[#allocation2 + $0xc8] sm:$0xff]
    %v358 = vld [vmem:[#allocation2 + $0xd8] sm:$0xff]
    %v359 = vld [vmem:[#allocation2 + $0xe0] sm:$0xff]
    %v360 = vld [vmem:[#allocation2 + $0xf0] sm:$0xff]
    %v361 = vld [vmem:[#allocation2 + $0xf8] sm:$0xff]
    %v362 = vld [vmem:[#allocation2 + $0x108] sm:$0xff]
    %v363 = vld [vmem:[#allocation2 + $0x110] sm:$0xff]
    %v364 = vld [vmem:[#allocation2 + $0x120] sm:$0xff]
    %v365 = vld [vmem:[#allocation2 + $0x128] sm:$0xff]
    %v366 = vld [vmem:[#allocation2 + $0x138] sm:$0xff]
    %v367 = vld [vmem:[#allocation2 + $0x140] sm:$0xff]
    %v368 = vld [vmem:[#allocation2 + $0x150] sm:$0xff]
    %v369 = vld [vmem:[#allocation2 + $0x158] sm:$0xff]
    %v370 = vld [vmem:[#allocation2 + $0x168] sm:$0xff]
    %v371 = vld [vmem:[#allocation2 + $0x170] sm:$0xff]
    %v372 = vld [vmem:[#allocation2 + $0x1b0] sm:$0xff]
    %v373 = vld [vmem:[#allocation2 + $0x1b8] sm:$0xff]
    %v374 = vld [vmem:[#allocation2 + $0x1c8] sm:$0xff]
    %v375 = vld [vmem:[#allocation2 + $0x1d0] sm:$0xff]
    %v376 = vld [vmem:[#allocation2 + $0x1e0] sm:$0xff]
    %v377 = vld [vmem:[#allocation2 + $0x1e8] sm:$0xff]
    %v378 = vld [vmem:[#allocation2 + $0x1f8] sm:$0xff]
    %v379 = vld [vmem:[#allocation2 + $0x200] sm:$0xff]
    %v380 = vld [vmem:[#allocation2 + $0x210] sm:$0xff]
    %v381 = vld [vmem:[#allocation2 + $0x218] sm:$0xff]
    %v382 = vld [vmem:[#allocation2 + $0x228] sm:$0xff]
    %v383 = vld [vmem:[#allocation2 + $0x230] sm:$0xff]
    %v384 = vld [vmem:[#allocation2 + $0x240] sm:$0xff]
    %v385 = vld [vmem:[#allocation2 + $0x248] sm:$0xff]
    %v386 = vld [vmem:[#allocation2 + $0x258] sm:$0xff]
    %v387 = vld [vmem:[#allocation2 + $0x260] sm:$0xff]
    %v388 = vld [vmem:[#allocation2 + $0x270] sm:$0xff]
    %v389 = vld [vmem:[#allocation2 + $0x278] sm:$0xff]
    %v390 = vld [vmem:[#allocation2 + $0x288] sm:$0xff]
    %v391 = vld [vmem:[#allocation2 + $0x290] sm:$0xff]
    %v392 = vld [vmem:[#allocation2 + $0x2a0] sm:$0xff]
    %v393 = vld [vmem:[#allocation2 + $0x2a8] sm:$0xff]
    %v394 = vld [vmem:[#allocation2 + $0x2b8] sm:$0xff]
    %v395 = vld [vmem:[#allocation2 + $0x2c0] sm:$0xff]
    %v396 = vld [vmem:[#allocation2 + $0x2d0] sm:$0xff]
    %v397 = vld [vmem:[#allocation2 + $0x2d8] sm:$0xff]
    %v398 = vld [vmem:[#allocation2 + $0x2e8] sm:$0xff]
    %v399 = vld [vmem:[#allocation2 + $0x2f0] sm:$0xff]
    %v400 = vld [vmem:[#allocation2 + $0x300] sm:$0xff]
    %v401 = vld [vmem:[#allocation2 + $0x308] sm:$0xff]
    %v402 = vld [vmem:[#allocation2 + $0x318] sm:$0xff]
    %v403 = vld [vmem:[#allocation2 + $0x320] sm:$0xff]
    %v404 = vld [vmem:[%s1] sm:$0xff]
    %v405 = vld [vmem:[#allocation2 + $0x1] sm:$0xff]
    %v406 = vld [vmem:[#allocation2 + $0x9] sm:$0xff]
    %v407 = vld [vmem:[#allocation2 + $0x19] sm:$0xff]
    %v408 = vld [vmem:[#allocation2 + $0x21] sm:$0xff]
    %v409 = vld [vmem:[#allocation2 + $0x31] sm:$0xff]
    %v410 = vld [vmem:[#allocation2 + $0x39] sm:$0xff]
    %v411 = vld [vmem:[#allocation2 + $0x49] sm:$0xff]
    %v412 = vld [vmem:[#allocation2 + $0x51] sm:$0xff]
    %v413 = vld [vmem:[#allocation2 + $0x61] sm:$0xff]
    %v414 = vld [vmem:[#allocation2 + $0x69] sm:$0xff]
    %v415 = vld [vmem:[#allocation2 + $0x79] sm:$0xff]
    %v416 = vld [vmem:[#allocation2 + $0x81] sm:$0xff]
    %v417 = vld [vmem:[#allocation2 + $0x91] sm:$0xff]
    %v418 = vld [vmem:[#allocation2 + $0x99] sm:$0xff]
    %v419 = vld [vmem:[#allocation2 + $0xa9] sm:$0xff]
    %v420 = vld [vmem:[#allocation2 + $0xb1] sm:$0xff]
    %v421 = vld [vmem:[#allocation2 + $0xc1] sm:$0xff]
    %v422 = vld [vmem:[#allocation2 + $0xc9] sm:$0xff]
    %v423 = vld [vmem:[#allocation2 + $0xd9] sm:$0xff]
    %v424 = vld [vmem:[#allocation2 + $0xe1] sm:$0xff]
    %v425 = vld [vmem:[#allocation2 + $0xf1] sm:$0xff]
    %v426 = vld [vmem:[#allocation2 + $0xf9] sm:$0xff]
    %v427 = vld [vmem:[#allocation2 + $0x109] sm:$0xff]
    %v428 = vld [vmem:[#allocation2 + $0x111] sm:$0xff]
    %v429 = vld [vmem:[#allocation2 + $0x121] sm:$0xff]
    %v430 = vld [vmem:[#allocation2 + $0x129] sm:$0xff]
    %v431 = vld [vmem:[#allocation2 + $0x139] sm:$0xff]
    %v432 = vld [vmem:[#allocation2 + $0x141] sm:$0xff]
    %v433 = vld [vmem:[#allocation2 + $0x151] sm:$0xff]
    %v434 = vld [vmem:[#allocation2 + $0x159] sm:$0xff]
    %v435 = vld [vmem:[#allocation2 + $0x169] sm:$0xff]
    %v436 = vld [vmem:[#allocation2 + $0x171] sm:$0xff]
    %v437 = vld [vmem:[#allocation2 + $0x1b1] sm:$0xff]
    %v438 = vld [vmem:[#allocation2 + $0x1b9] sm:$0xff]
    %v439 = vld [vmem:[#allocation2 + $0x1c9] sm:$0xff]
    %v440 = vld [vmem:[#allocation2 + $0x1d1] sm:$0xff]
    %v441 = vld [vmem:[#allocation2 + $0x1e1] sm:$0xff]
    %v442 = vld [vmem:[#allocation2 + $0x1e9] sm:$0xff]
    %v443 = vld [vmem:[#allocation2 + $0x1f9] sm:$0xff]
    %v444 = vld [vmem:[#allocation2 + $0x201] sm:$0xff]
    %v445 = vld [vmem:[#allocation2 + $0x211] sm:$0xff]
    %v446 = vld [vmem:[#allocation2 + $0x219] sm:$0xff]
    %v447 = vld [vmem:[#allocation2 + $0x229] sm:$0xff]
    %v448 = vld [vmem:[#allocation2 + $0x231] sm:$0xff]
    %v449 = vld [vmem:[#allocation2 + $0x241] sm:$0xff]
    %v450 = vld [vmem:[#allocation2 + $0x249] sm:$0xff]
    %v451 = vld [vmem:[#allocation2 + $0x259] sm:$0xff]
    %v452 = vld [vmem:[#allocation2 + $0x261] sm:$0xff]
    %v453 = vld [vmem:[#allocation2 + $0x271] sm:$0xff]
    %v454 = vld [vmem:[#allocation2 + $0x279] sm:$0xff]
    %v455 = vld [vmem:[#allocation2 + $0x289] sm:$0xff]
    %v456 = vld [vmem:[#allocation2 + $0x291] sm:$0xff]
    %v457 = vld [vmem:[#allocation2 + $0x2a1] sm:$0xff]
    %v458 = vld [vmem:[#allocation2 + $0x2a9] sm:$0xff]
    %v459 = vld [vmem:[#allocation2 + $0x2b9] sm:$0xff]
    %v460 = vld [vmem:[#allocation2 + $0x2c1] sm:$0xff]
    %v461 = vld [vmem:[#allocation2 + $0x2d1] sm:$0xff]
    %v462 = vld [vmem:[#allocation2 + $0x2d9] sm:$0xff]
    %v463 = vld [vmem:[#allocation2 + $0x2e9] sm:$0xff]
    %v464 = vld [vmem:[#allocation2 + $0x2f1] sm:$0xff]
    %v465 = vld [vmem:[#allocation2 + $0x301] sm:$0xff]
    %v466 = vld [vmem:[#allocation2 + $0x309] sm:$0xff]
    %v467 = vld [vmem:[#allocation2 + $0x319] sm:$0xff]
    %v468 = vld [vmem:[#allocation2 + $0x321] sm:$0xff]
    %s469 = scalar_lea.vmem %s1, 8
    %v470 = vld [vmem:[%s469] sm:$0xff]
    %v472 = vsel %vm275, %v405, 0
    %v475 = vsel %vm275, %v406, 0
    %v478 = vsel %vm275, %v407, 0
    %v481 = vsel %vm275, %v408, 0
    %v484 = vsel %vm275, %v409, 0
    %v487 = vsel %vm275, %v410, 0
    %v490 = vsel %vm275, %v411, 0
    %v493 = vsel %vm275, %v412, 0
    %v496 = vsel %vm275, %v413, 0
    %v499 = vsel %vm275, %v414, 0
    %v502 = vsel %vm275, %v415, 0
    %v505 = vsel %vm275, %v416, 0
    %v508 = vsel %vm275, %v417, 0
    %v511 = vsel %vm275, %v418, 0
    %v514 = vsel %vm275, %v419, 0
    %v517 = vsel %vm275, %v420, 0
    %v520 = vsel %vm275, %v421, 0
    %v523 = vsel %vm275, %v422, 0
    %v526 = vsel %vm275, %v423, 0
    %v529 = vsel %vm275, %v424, 0
    %v532 = vsel %vm275, %v425, 0
    %v535 = vsel %vm275, %v426, 0
    %v538 = vsel %vm275, %v427, 0
    %v541 = vsel %vm275, %v428, 0
    %v544 = vsel %vm275, %v429, 0
    %v547 = vsel %vm275, %v430, 0
    %v550 = vsel %vm275, %v431, 0
    %v553 = vsel %vm275, %v432, 0
    %v556 = vsel %vm275, %v433, 0
    %v559 = vsel %vm275, %v434, 0
    %v562 = vsel %vm275, %v435, 0
    %v565 = vsel %vm275, %v436, 0
    %v568 = vsel %vm275, %v437, 0
    %v571 = vsel %vm275, %v438, 0
    %v574 = vsel %vm275, %v439, 0
    %v577 = vsel %vm275, %v440, 0
    %v580 = vsel %vm275, %v441, 0
    %v583 = vsel %vm275, %v442, 0
    %v586 = vsel %vm275, %v443, 0
    %v589 = vsel %vm275, %v444, 0
    %v592 = vsel %vm275, %v445, 0
    %v595 = vsel %vm275, %v446, 0
    %v598 = vsel %vm275, %v447, 0
    %v601 = vsel %vm275, %v448, 0
    %v604 = vsel %vm275, %v449, 0
    %v607 = vsel %vm275, %v450, 0
    %v610 = vsel %vm275, %v451, 0
    %v613 = vsel %vm275, %v452, 0
    %v616 = vsel %vm275, %v453, 0
    %v619 = vsel %vm275, %v454, 0
    %v622 = vsel %vm275, %v455, 0
    %v625 = vsel %vm275, %v456, 0
    %v628 = vsel %vm275, %v457, 0
    %v631 = vsel %vm275, %v458, 0
    %v634 = vsel %vm275, %v459, 0
    %v637 = vsel %vm275, %v460, 0
    %v640 = vsel %vm275, %v461, 0
    %v643 = vsel %vm275, %v462, 0
    %v646 = vsel %vm275, %v463, 0
    %v649 = vsel %vm275, %v464, 0
    %v652 = vsel %vm275, %v465, 0
    %v655 = vsel %vm275, %v466, 0
    %v658 = vsel %vm275, %v467, 0
    %v661 = vsel %vm275, %v468, 0
    %663 = vmatpush.msra.mxu0 0.0
    %664 = vmatpush.msra.mxu0 0.0
    %665 = vmatpush.msra.mxu0 0.0
    %666 = vmatpush.msra.mxu0 0.0
    %667 = vmatpush.msra.mxu0 0.0
    %668 = vmatpush.msra.mxu0 0.0
    %669 = vmatpush.msra.mxu0 0.0
    %670 = vmatpush.msra.mxu0 0.0
    %671 = vmatpush.msra.mxu0 0.0
    %672 = vmatpush.msra.mxu0 0.0
    %673 = vmatpush.msra.mxu0 0.0
    %674 = vmatpush.msra.mxu0 0.0
    %675 = vmatpush.msra.mxu0 0.0
    %676 = vmatpush.msra.mxu0 0.0
    %677 = vmatpush.msra.mxu0 0.0
    %678 = vmatpush.msra.mxu0 %v470
    %679 = vmatmul.f32.gmra.mxu0 %v472
    %v680 = vpop.f32.mrf.mxu0
    %v681 = vadd.f32 0.0, %v680
    %682 = vmatmul.f32.gmra.mxu0 %v475
    %v683 = vpop.f32.mrf.mxu0
    %v684 = vadd.f32 0.0, %v683
    %685 = vmatmul.f32.gmra.mxu0 %v478
    %v686 = vpop.f32.mrf.mxu0
    %v687 = vadd.f32 0.0, %v686
    %688 = vmatmul.f32.gmra.mxu0 %v481
    %v689 = vpop.f32.mrf.mxu0
    %v690 = vadd.f32 0.0, %v689
    %691 = vmatmul.f32.gmra.mxu0 %v484
    %v692 = vpop.f32.mrf.mxu0
    %v693 = vadd.f32 0.0, %v692
    %694 = vmatmul.f32.gmra.mxu0 %v487
    %v695 = vpop.f32.mrf.mxu0
    %v696 = vadd.f32 0.0, %v695
    %697 = vmatmul.f32.gmra.mxu0 %v490
    %v698 = vpop.f32.mrf.mxu0
    %v699 = vadd.f32 0.0, %v698
    %700 = vmatmul.f32.gmra.mxu0 %v493
    %v701 = vpop.f32.mrf.mxu0
    %v702 = vadd.f32 0.0, %v701
    %703 = vmatmul.f32.gmra.mxu0 %v496
    %v704 = vpop.f32.mrf.mxu0
    %v705 = vadd.f32 0.0, %v704
    %706 = vmatmul.f32.gmra.mxu0 %v499
    %v707 = vpop.f32.mrf.mxu0
    %v708 = vadd.f32 0.0, %v707
    %709 = vmatmul.f32.gmra.mxu0 %v502
    %v710 = vpop.f32.mrf.mxu0
    %v711 = vadd.f32 0.0, %v710
    %712 = vmatmul.f32.gmra.mxu0 %v505
    %v713 = vpop.f32.mrf.mxu0
    %v714 = vadd.f32 0.0, %v713
    %715 = vmatmul.f32.gmra.mxu0 %v508
    %v716 = vpop.f32.mrf.mxu0
    %v717 = vadd.f32 0.0, %v716
    %718 = vmatmul.f32.gmra.mxu0 %v511
    %v719 = vpop.f32.mrf.mxu0
    %v720 = vadd.f32 0.0, %v719
    %721 = vmatmul.f32.gmra.mxu0 %v514
    %v722 = vpop.f32.mrf.mxu0
    %v723 = vadd.f32 0.0, %v722
    %724 = vmatmul.f32.gmra.mxu0 %v517
    %v725 = vpop.f32.mrf.mxu0
    %v726 = vadd.f32 0.0, %v725
    %727 = vmatmul.f32.gmra.mxu0 %v520
    %v728 = vpop.f32.mrf.mxu0
    %v729 = vadd.f32 0.0, %v728
    %730 = vmatmul.f32.gmra.mxu0 %v523
    %v731 = vpop.f32.mrf.mxu0
    %v732 = vadd.f32 0.0, %v731
    %733 = vmatmul.f32.gmra.mxu0 %v526
    %v734 = vpop.f32.mrf.mxu0
    %v735 = vadd.f32 0.0, %v734
    %736 = vmatmul.f32.gmra.mxu0 %v529
    %v737 = vpop.f32.mrf.mxu0
    %v738 = vadd.f32 0.0, %v737
    %739 = vmatmul.f32.gmra.mxu0 %v532
    %v740 = vpop.f32.mrf.mxu0
    %v741 = vadd.f32 0.0, %v740
    %742 = vmatmul.f32.gmra.mxu0 %v535
    %v743 = vpop.f32.mrf.mxu0
    %v744 = vadd.f32 0.0, %v743
    %745 = vmatmul.f32.gmra.mxu0 %v538
    %v746 = vpop.f32.mrf.mxu0
    %v747 = vadd.f32 0.0, %v746
    %748 = vmatmul.f32.gmra.mxu0 %v541
    %v749 = vpop.f32.mrf.mxu0
    %v750 = vadd.f32 0.0, %v749
    %751 = vmatmul.f32.gmra.mxu0 %v544
    %v752 = vpop.f32.mrf.mxu0
    %v753 = vadd.f32 0.0, %v752
    %754 = vmatmul.f32.gmra.mxu0 %v547
    %v755 = vpop.f32.mrf.mxu0
    %v756 = vadd.f32 0.0, %v755
    %757 = vmatmul.f32.gmra.mxu0 %v550
    %v758 = vpop.f32.mrf.mxu0
    %v759 = vadd.f32 0.0, %v758
    %760 = vmatmul.f32.gmra.mxu0 %v553
    %v761 = vpop.f32.mrf.mxu0
    %v762 = vadd.f32 0.0, %v761
    %763 = vmatmul.f32.gmra.mxu0 %v556
    %v764 = vpop.f32.mrf.mxu0
    %v765 = vadd.f32 0.0, %v764
    %766 = vmatmul.f32.gmra.mxu0 %v559
    %v767 = vpop.f32.mrf.mxu0
    %v768 = vadd.f32 0.0, %v767
    %769 = vmatmul.f32.gmra.mxu0 %v562
    %v770 = vpop.f32.mrf.mxu0
    %v771 = vadd.f32 0.0, %v770
    %772 = vmatmul.f32.gmra.mxu0 %v565
    %v773 = vpop.f32.mrf.mxu0
    %v774 = vadd.f32 0.0, %v773
    %775 = vmatmul.f32.gmra.mxu0 %v568
    %v776 = vpop.f32.mrf.mxu0
    %v777 = vadd.f32 0.0, %v776
    %778 = vmatmul.f32.gmra.mxu0 %v571
    %v779 = vpop.f32.mrf.mxu0
    %v780 = vadd.f32 0.0, %v779
    %781 = vmatmul.f32.gmra.mxu0 %v574
    %v782 = vpop.f32.mrf.mxu0
    %v783 = vadd.f32 0.0, %v782
    %784 = vmatmul.f32.gmra.mxu0 %v577
    %v785 = vpop.f32.mrf.mxu0
    %v786 = vadd.f32 0.0, %v785
    %787 = vmatmul.f32.gmra.mxu0 %v580
    %v788 = vpop.f32.mrf.mxu0
    %v789 = vadd.f32 0.0, %v788
    %790 = vmatmul.f32.gmra.mxu0 %v583
    %v791 = vpop.f32.mrf.mxu0
    %v792 = vadd.f32 0.0, %v791
    %793 = vmatmul.f32.gmra.mxu0 %v586
    %v794 = vpop.f32.mrf.mxu0
    %v795 = vadd.f32 0.0, %v794
    %796 = vmatmul.f32.gmra.mxu0 %v589
    %v797 = vpop.f32.mrf.mxu0
    %v798 = vadd.f32 0.0, %v797
    %799 = vmatmul.f32.gmra.mxu0 %v592
    %v800 = vpop.f32.mrf.mxu0
    %v801 = vadd.f32 0.0, %v800
    %802 = vmatmul.f32.gmra.mxu0 %v595
    %v803 = vpop.f32.mrf.mxu0
    %v804 = vadd.f32 0.0, %v803
    %805 = vmatmul.f32.gmra.mxu0 %v598
    %v806 = vpop.f32.mrf.mxu0
    %v807 = vadd.f32 0.0, %v806
    %808 = vmatmul.f32.gmra.mxu0 %v601
    %v809 = vpop.f32.mrf.mxu0
    %v810 = vadd.f32 0.0, %v809
    %811 = vmatmul.f32.gmra.mxu0 %v604
    %v812 = vpop.f32.mrf.mxu0
    %v813 = vadd.f32 0.0, %v812
    %814 = vmatmul.f32.gmra.mxu0 %v607
    %v815 = vpop.f32.mrf.mxu0
    %v816 = vadd.f32 0.0, %v815
    %817 = vmatmul.f32.gmra.mxu0 %v610
    %v818 = vpop.f32.mrf.mxu0
    %v819 = vadd.f32 0.0, %v818
    %820 = vmatmul.f32.gmra.mxu0 %v613
    %v821 = vpop.f32.mrf.mxu0
    %v822 = vadd.f32 0.0, %v821
    %823 = vmatmul.f32.gmra.mxu0 %v616
    %v824 = vpop.f32.mrf.mxu0
    %v825 = vadd.f32 0.0, %v824
    %826 = vmatmul.f32.gmra.mxu0 %v619
    %v827 = vpop.f32.mrf.mxu0
    %v828 = vadd.f32 0.0, %v827
    %829 = vmatmul.f32.gmra.mxu0 %v622
    %v830 = vpop.f32.mrf.mxu0
    %v831 = vadd.f32 0.0, %v830
    %832 = vmatmul.f32.gmra.mxu0 %v625
    %v833 = vpop.f32.mrf.mxu0
    %v834 = vadd.f32 0.0, %v833
    %835 = vmatmul.f32.gmra.mxu0 %v628
    %v836 = vpop.f32.mrf.mxu0
    %v837 = vadd.f32 0.0, %v836
    %838 = vmatmul.f32.gmra.mxu0 %v631
    %v839 = vpop.f32.mrf.mxu0
    %v840 = vadd.f32 0.0, %v839
    %841 = vmatmul.f32.gmra.mxu0 %v634
    %v842 = vpop.f32.mrf.mxu0
    %v843 = vadd.f32 0.0, %v842
    %844 = vmatmul.f32.gmra.mxu0 %v637
    %v845 = vpop.f32.mrf.mxu0
    %v846 = vadd.f32 0.0, %v845
    %847 = vmatmul.f32.gmra.mxu0 %v640
    %v848 = vpop.f32.mrf.mxu0
    %v849 = vadd.f32 0.0, %v848
    %850 = vmatmul.f32.gmra.mxu0 %v643
    %v851 = vpop.f32.mrf.mxu0
    %v852 = vadd.f32 0.0, %v851
    %853 = vmatmul.f32.gmra.mxu0 %v646
    %v854 = vpop.f32.mrf.mxu0
    %v855 = vadd.f32 0.0, %v854
    %856 = vmatmul.f32.gmra.mxu0 %v649
    %v857 = vpop.f32.mrf.mxu0
    %v858 = vadd.f32 0.0, %v857
    %859 = vmatmul.f32.gmra.mxu0 %v652
    %v860 = vpop.f32.mrf.mxu0
    %v861 = vadd.f32 0.0, %v860
    %862 = vmatmul.f32.gmra.mxu0 %v655
    %v863 = vpop.f32.mrf.mxu0
    %v864 = vadd.f32 0.0, %v863
    %865 = vmatmul.f32.gmra.mxu0 %v658
    %v866 = vpop.f32.mrf.mxu0
    %v867 = vadd.f32 0.0, %v866
    %868 = vmatmul.f32.gmra.mxu0 %v661
    %v869 = vpop.f32.mrf.mxu0
    %v870 = vadd.f32 0.0, %v869
    %871 = vdwg.mxu0
    %v873 = vsel %vm275, %v340, 0
    %v876 = vsel %vm275, %v341, 0
    %v879 = vsel %vm275, %v342, 0
    %v882 = vsel %vm275, %v343, 0
    %v885 = vsel %vm275, %v344, 0
    %v888 = vsel %vm275, %v345, 0
    %v891 = vsel %vm275, %v346, 0
    %v894 = vsel %vm275, %v347, 0
    %v897 = vsel %vm275, %v348, 0
    %v900 = vsel %vm275, %v349, 0
    %v903 = vsel %vm275, %v350, 0
    %v906 = vsel %vm275, %v351, 0
    %v909 = vsel %vm275, %v352, 0
    %v912 = vsel %vm275, %v353, 0
    %v915 = vsel %vm275, %v354, 0
    %v918 = vsel %vm275, %v355, 0
    %v921 = vsel %vm275, %v356, 0
    %v924 = vsel %vm275, %v357, 0
    %v927 = vsel %vm275, %v358, 0
    %v930 = vsel %vm275, %v359, 0
    %v933 = vsel %vm275, %v360, 0
    %v936 = vsel %vm275, %v361, 0
    %v939 = vsel %vm275, %v362, 0
    %v942 = vsel %vm275, %v363, 0
    %v945 = vsel %vm275, %v364, 0
    %v948 = vsel %vm275, %v365, 0
    %v951 = vsel %vm275, %v366, 0
    %v954 = vsel %vm275, %v367, 0
    %v957 = vsel %vm275, %v368, 0
    %v960 = vsel %vm275, %v369, 0
    %v963 = vsel %vm275, %v370, 0
    %v966 = vsel %vm275, %v371, 0
    %v969 = vsel %vm275, %v372, 0
    %v972 = vsel %vm275, %v373, 0
    %v975 = vsel %vm275, %v374, 0
    %v978 = vsel %vm275, %v375, 0
    %v981 = vsel %vm275, %v376, 0
    %v984 = vsel %vm275, %v377, 0
    %v987 = vsel %vm275, %v378, 0
    %v990 = vsel %vm275, %v379, 0
    %v993 = vsel %vm275, %v380, 0
    %v996 = vsel %vm275, %v381, 0
    %v999 = vsel %vm275, %v382, 0
    %v1002 = vsel %vm275, %v383, 0
    %v1005 = vsel %vm275, %v384, 0
    %v1008 = vsel %vm275, %v385, 0
    %v1011 = vsel %vm275, %v386, 0
    %v1014 = vsel %vm275, %v387, 0
    %v1017 = vsel %vm275, %v388, 0
    %v1020 = vsel %vm275, %v389, 0
    %v1023 = vsel %vm275, %v390, 0
    %v1026 = vsel %vm275, %v391, 0
    %v1029 = vsel %vm275, %v392, 0
    %v1032 = vsel %vm275, %v393, 0
    %v1035 = vsel %vm275, %v394, 0
    %v1038 = vsel %vm275, %v395, 0
    %v1041 = vsel %vm275, %v396, 0
    %v1044 = vsel %vm275, %v397, 0
    %v1047 = vsel %vm275, %v398, 0
    %v1050 = vsel %vm275, %v399, 0
    %v1053 = vsel %vm275, %v400, 0
    %v1056 = vsel %vm275, %v401, 0
    %v1059 = vsel %vm275, %v402, 0
    %v1062 = vsel %vm275, %v403, 0
    %1064 = vmatpush.msra.mxu0 0.0
    %1065 = vmatpush.msra.mxu0 0.0
    %1066 = vmatpush.msra.mxu0 0.0
    %1067 = vmatpush.msra.mxu0 0.0
    %1068 = vmatpush.msra.mxu0 0.0
    %1069 = vmatpush.msra.mxu0 0.0
    %1070 = vmatpush.msra.mxu0 0.0
    %1071 = vmatpush.msra.mxu0 0.0
    %1072 = vmatpush.msra.mxu0 0.0
    %1073 = vmatpush.msra.mxu0 0.0
    %1074 = vmatpush.msra.mxu0 0.0
    %1075 = vmatpush.msra.mxu0 0.0
    %1076 = vmatpush.msra.mxu0 0.0
    %1077 = vmatpush.msra.mxu0 0.0
    %1078 = vmatpush.msra.mxu0 0.0
    %1079 = vmatpush.msra.mxu0 %v404
    %1080 = vmatmul.f32.gmra.mxu0 %v873
    %v1081 = vpop.f32.mrf.mxu0
    %v1082 = vadd.f32 %v681, %v1081
    %1083 = vmatmul.f32.gmra.mxu0 %v876
    %v1084 = vpop.f32.mrf.mxu0
    %v1085 = vadd.f32 %v684, %v1084
    %1086 = vmatmul.f32.gmra.mxu0 %v879
    %v1087 = vpop.f32.mrf.mxu0
    %v1088 = vadd.f32 %v687, %v1087
    %1089 = vmatmul.f32.gmra.mxu0 %v882
    %v1090 = vpop.f32.mrf.mxu0
    %v1091 = vadd.f32 %v690, %v1090
    %1092 = vmatmul.f32.gmra.mxu0 %v885
    %v1093 = vpop.f32.mrf.mxu0
    %v1094 = vadd.f32 %v693, %v1093
    %1095 = vmatmul.f32.gmra.mxu0 %v888
    %v1096 = vpop.f32.mrf.mxu0
    %v1097 = vadd.f32 %v696, %v1096
    %1098 = vmatmul.f32.gmra.mxu0 %v891
    %v1099 = vpop.f32.mrf.mxu0
    %v1100 = vadd.f32 %v699, %v1099
    %1101 = vmatmul.f32.gmra.mxu0 %v894
    %v1102 = vpop.f32.mrf.mxu0
    %v1103 = vadd.f32 %v702, %v1102
    %1104 = vmatmul.f32.gmra.mxu0 %v897
    %v1105 = vpop.f32.mrf.mxu0
    %v1106 = vadd.f32 %v705, %v1105
    %1107 = vmatmul.f32.gmra.mxu0 %v900
    %v1108 = vpop.f32.mrf.mxu0
    %v1109 = vadd.f32 %v708, %v1108
    %1110 = vmatmul.f32.gmra.mxu0 %v903
    %v1111 = vpop.f32.mrf.mxu0
    %v1112 = vadd.f32 %v711, %v1111
    %1113 = vmatmul.f32.gmra.mxu0 %v906
    %v1114 = vpop.f32.mrf.mxu0
    %v1115 = vadd.f32 %v714, %v1114
    %1116 = vmatmul.f32.gmra.mxu0 %v909
    %v1117 = vpop.f32.mrf.mxu0
    %v1118 = vadd.f32 %v717, %v1117
    %1119 = vmatmul.f32.gmra.mxu0 %v912
    %v1120 = vpop.f32.mrf.mxu0
    %v1121 = vadd.f32 %v720, %v1120
    %1122 = vmatmul.f32.gmra.mxu0 %v915
    %v1123 = vpop.f32.mrf.mxu0
    %v1124 = vadd.f32 %v723, %v1123
    %1125 = vmatmul.f32.gmra.mxu0 %v918
    %v1126 = vpop.f32.mrf.mxu0
    %v1127 = vadd.f32 %v726, %v1126
    %1128 = vmatmul.f32.gmra.mxu0 %v921
    %v1129 = vpop.f32.mrf.mxu0
    %v1130 = vadd.f32 %v729, %v1129
    %1131 = vmatmul.f32.gmra.mxu0 %v924
    %v1132 = vpop.f32.mrf.mxu0
    %v1133 = vadd.f32 %v732, %v1132
    %1134 = vmatmul.f32.gmra.mxu0 %v927
    %v1135 = vpop.f32.mrf.mxu0
    %v1136 = vadd.f32 %v735, %v1135
    %1137 = vmatmul.f32.gmra.mxu0 %v930
    %v1138 = vpop.f32.mrf.mxu0
    %v1139 = vadd.f32 %v738, %v1138
    %1140 = vmatmul.f32.gmra.mxu0 %v933
    %v1141 = vpop.f32.mrf.mxu0
    %v1142 = vadd.f32 %v741, %v1141
    %1143 = vmatmul.f32.gmra.mxu0 %v936
    %v1144 = vpop.f32.mrf.mxu0
    %v1145 = vadd.f32 %v744, %v1144
    %1146 = vmatmul.f32.gmra.mxu0 %v939
    %v1147 = vpop.f32.mrf.mxu0
    %v1148 = vadd.f32 %v747, %v1147
    %1149 = vmatmul.f32.gmra.mxu0 %v942
    %v1150 = vpop.f32.mrf.mxu0
    %v1151 = vadd.f32 %v750, %v1150
    %1152 = vmatmul.f32.gmra.mxu0 %v945
    %v1153 = vpop.f32.mrf.mxu0
    %v1154 = vadd.f32 %v753, %v1153
    %1155 = vmatmul.f32.gmra.mxu0 %v948
    %v1156 = vpop.f32.mrf.mxu0
    %v1157 = vadd.f32 %v756, %v1156
    %1158 = vmatmul.f32.gmra.mxu0 %v951
    %v1159 = vpop.f32.mrf.mxu0
    %v1160 = vadd.f32 %v759, %v1159
    %1161 = vmatmul.f32.gmra.mxu0 %v954
    %v1162 = vpop.f32.mrf.mxu0
    %v1163 = vadd.f32 %v762, %v1162
    %1164 = vmatmul.f32.gmra.mxu0 %v957
    %v1165 = vpop.f32.mrf.mxu0
    %v1166 = vadd.f32 %v765, %v1165
    %1167 = vmatmul.f32.gmra.mxu0 %v960
    %v1168 = vpop.f32.mrf.mxu0
    %v1169 = vadd.f32 %v768, %v1168
    %1170 = vmatmul.f32.gmra.mxu0 %v963
    %v1171 = vpop.f32.mrf.mxu0
    %v1172 = vadd.f32 %v771, %v1171
    %1173 = vmatmul.f32.gmra.mxu0 %v966
    %v1174 = vpop.f32.mrf.mxu0
    %v1175 = vadd.f32 %v774, %v1174
    %1176 = vmatmul.f32.gmra.mxu0 %v969
    %v1177 = vpop.f32.mrf.mxu0
    %v1178 = vadd.f32 %v777, %v1177
    %1179 = vmatmul.f32.gmra.mxu0 %v972
    %v1180 = vpop.f32.mrf.mxu0
    %v1181 = vadd.f32 %v780, %v1180
    %1182 = vmatmul.f32.gmra.mxu0 %v975
    %v1183 = vpop.f32.mrf.mxu0
    %v1184 = vadd.f32 %v783, %v1183
    %1185 = vmatmul.f32.gmra.mxu0 %v978
    %v1186 = vpop.f32.mrf.mxu0
    %v1187 = vadd.f32 %v786, %v1186
    %1188 = vmatmul.f32.gmra.mxu0 %v981
    %v1189 = vpop.f32.mrf.mxu0
    %v1190 = vadd.f32 %v789, %v1189
    %1191 = vmatmul.f32.gmra.mxu0 %v984
    %v1192 = vpop.f32.mrf.mxu0
    %v1193 = vadd.f32 %v792, %v1192
    %1194 = vmatmul.f32.gmra.mxu0 %v987
    %v1195 = vpop.f32.mrf.mxu0
    %v1196 = vadd.f32 %v795, %v1195
    %1197 = vmatmul.f32.gmra.mxu0 %v990
    %v1198 = vpop.f32.mrf.mxu0
    %v1199 = vadd.f32 %v798, %v1198
    %1200 = vmatmul.f32.gmra.mxu0 %v993
    %v1201 = vpop.f32.mrf.mxu0
    %v1202 = vadd.f32 %v801, %v1201
    %1203 = vmatmul.f32.gmra.mxu0 %v996
    %v1204 = vpop.f32.mrf.mxu0
    %v1205 = vadd.f32 %v804, %v1204
    %1206 = vmatmul.f32.gmra.mxu0 %v999
    %v1207 = vpop.f32.mrf.mxu0
    %v1208 = vadd.f32 %v807, %v1207
    %1209 = vmatmul.f32.gmra.mxu0 %v1002
    %v1210 = vpop.f32.mrf.mxu0
    %v1211 = vadd.f32 %v810, %v1210
    %1212 = vmatmul.f32.gmra.mxu0 %v1005
    %v1213 = vpop.f32.mrf.mxu0
    %v1214 = vadd.f32 %v813, %v1213
    %1215 = vmatmul.f32.gmra.mxu0 %v1008
    %v1216 = vpop.f32.mrf.mxu0
    %v1217 = vadd.f32 %v816, %v1216
    %1218 = vmatmul.f32.gmra.mxu0 %v1011
    %v1219 = vpop.f32.mrf.mxu0
    %v1220 = vadd.f32 %v819, %v1219
    %1221 = vmatmul.f32.gmra.mxu0 %v1014
    %v1222 = vpop.f32.mrf.mxu0
    %v1223 = vadd.f32 %v822, %v1222
    %1224 = vmatmul.f32.gmra.mxu0 %v1017
    %v1225 = vpop.f32.mrf.mxu0
    %v1226 = vadd.f32 %v825, %v1225
    %1227 = vmatmul.f32.gmra.mxu0 %v1020
    %v1228 = vpop.f32.mrf.mxu0
    %v1229 = vadd.f32 %v828, %v1228
    %1230 = vmatmul.f32.gmra.mxu0 %v1023
    %v1231 = vpop.f32.mrf.mxu0
    %v1232 = vadd.f32 %v831, %v1231
    %1233 = vmatmul.f32.gmra.mxu0 %v1026
    %v1234 = vpop.f32.mrf.mxu0
    %v1235 = vadd.f32 %v834, %v1234
    %1236 = vmatmul.f32.gmra.mxu0 %v1029
    %v1237 = vpop.f32.mrf.mxu0
    %v1238 = vadd.f32 %v837, %v1237
    %1239 = vmatmul.f32.gmra.mxu0 %v1032
    %v1240 = vpop.f32.mrf.mxu0
    %v1241 = vadd.f32 %v840, %v1240
    %1242 = vmatmul.f32.gmra.mxu0 %v1035
    %v1243 = vpop.f32.mrf.mxu0
    %v1244 = vadd.f32 %v843, %v1243
    %1245 = vmatmul.f32.gmra.mxu0 %v1038
    %v1246 = vpop.f32.mrf.mxu0
    %v1247 = vadd.f32 %v846, %v1246
    %1248 = vmatmul.f32.gmra.mxu0 %v1041
    %v1249 = vpop.f32.mrf.mxu0
    %v1250 = vadd.f32 %v849, %v1249
    %1251 = vmatmul.f32.gmra.mxu0 %v1044
    %v1252 = vpop.f32.mrf.mxu0
    %v1253 = vadd.f32 %v852, %v1252
    %1254 = vmatmul.f32.gmra.mxu0 %v1047
    %v1255 = vpop.f32.mrf.mxu0
    %v1256 = vadd.f32 %v855, %v1255
    %1257 = vmatmul.f32.gmra.mxu0 %v1050
    %v1258 = vpop.f32.mrf.mxu0
    %v1259 = vadd.f32 %v858, %v1258
    %1260 = vmatmul.f32.gmra.mxu0 %v1053
    %v1261 = vpop.f32.mrf.mxu0
    %v1262 = vadd.f32 %v861, %v1261
    %1263 = vmatmul.f32.gmra.mxu0 %v1056
    %v1264 = vpop.f32.mrf.mxu0
    %v1265 = vadd.f32 %v864, %v1264
    %1266 = vmatmul.f32.gmra.mxu0 %v1059
    %v1267 = vpop.f32.mrf.mxu0
    %v1268 = vadd.f32 %v867, %v1267
    %1269 = vmatmul.f32.gmra.mxu0 %v1062
    %v1270 = vpop.f32.mrf.mxu0
    %v1271 = vadd.f32 %v870, %v1270
    %1272 = vdwg.mxu0
    %v1273 = vld [vmem:[#allocation2 + $0x2] sm:$0xff]
    %v1274 = vld [vmem:[#allocation2 + $0xa] sm:$0xff]
    %v1275 = vld [vmem:[#allocation2 + $0x1a] sm:$0xff]
    %v1276 = vld [vmem:[#allocation2 + $0x22] sm:$0xff]
    %v1277 = vld [vmem:[#allocation2 + $0x32] sm:$0xff]
    %v1278 = vld [vmem:[#allocation2 + $0x3a] sm:$0xff]
    %v1279 = vld [vmem:[#allocation2 + $0x4a] sm:$0xff]
    %v1280 = vld [vmem:[#allocation2 + $0x52] sm:$0xff]
    %v1281 = vld [vmem:[#allocation2 + $0x62] sm:$0xff]
    %v1282 = vld [vmem:[#allocation2 + $0x6a] sm:$0xff]
    %v1283 = vld [vmem:[#allocation2 + $0x7a] sm:$0xff]
    %v1284 = vld [vmem:[#allocation2 + $0x82] sm:$0xff]
    %v1285 = vld [vmem:[#allocation2 + $0x92] sm:$0xff]
    %v1286 = vld [vmem:[#allocation2 + $0x9a] sm:$0xff]
    %v1287 = vld [vmem:[#allocation2 + $0xaa] sm:$0xff]
    %v1288 = vld [vmem:[#allocation2 + $0xb2] sm:$0xff]
    %v1289 = vld [vmem:[#allocation2 + $0xc2] sm:$0xff]
    %v1290 = vld [vmem:[#allocation2 + $0xca] sm:$0xff]
    %v1291 = vld [vmem:[#allocation2 + $0xda] sm:$0xff]
    %v1292 = vld [vmem:[#allocation2 + $0xe2] sm:$0xff]
    %v1293 = vld [vmem:[#allocation2 + $0xf2] sm:$0xff]
    %v1294 = vld [vmem:[#allocation2 + $0xfa] sm:$0xff]
    %v1295 = vld [vmem:[#allocation2 + $0x10a] sm:$0xff]
    %v1296 = vld [vmem:[#allocation2 + $0x112] sm:$0xff]
    %v1297 = vld [vmem:[#allocation2 + $0x122] sm:$0xff]
    %v1298 = vld [vmem:[#allocation2 + $0x12a] sm:$0xff]
    %v1299 = vld [vmem:[#allocation2 + $0x13a] sm:$0xff]
    %v1300 = vld [vmem:[#allocation2 + $0x142] sm:$0xff]
    %v1301 = vld [vmem:[#allocation2 + $0x152] sm:$0xff]
    %v1302 = vld [vmem:[#allocation2 + $0x15a] sm:$0xff]
    %v1303 = vld [vmem:[#allocation2 + $0x16a] sm:$0xff]
    %v1304 = vld [vmem:[#allocation2 + $0x172] sm:$0xff]
    %v1305 = vld [vmem:[#allocation2 + $0x1b2] sm:$0xff]
    %v1306 = vld [vmem:[#allocation2 + $0x1ba] sm:$0xff]
    %v1307 = vld [vmem:[#allocation2 + $0x1ca] sm:$0xff]
    %v1308 = vld [vmem:[#allocation2 + $0x1d2] sm:$0xff]
    %v1309 = vld [vmem:[#allocation2 + $0x1e2] sm:$0xff]
    %v1310 = vld [vmem:[#allocation2 + $0x1ea] sm:$0xff]
    %v1311 = vld [vmem:[#allocation2 + $0x1fa] sm:$0xff]
    %v1312 = vld [vmem:[#allocation2 + $0x202] sm:$0xff]
    %v1313 = vld [vmem:[#allocation2 + $0x212] sm:$0xff]
    %v1314 = vld [vmem:[#allocation2 + $0x21a] sm:$0xff]
    %v1315 = vld [vmem:[#allocation2 + $0x22a] sm:$0xff]
    %v1316 = vld [vmem:[#allocation2 + $0x232] sm:$0xff]
    %v1317 = vld [vmem:[#allocation2 + $0x242] sm:$0xff]
    %v1318 = vld [vmem:[#allocation2 + $0x24a] sm:$0xff]
    %v1319 = vld [vmem:[#allocation2 + $0x25a] sm:$0xff]
    %v1320 = vld [vmem:[#allocation2 + $0x262] sm:$0xff]
    %v1321 = vld [vmem:[#allocation2 + $0x272] sm:$0xff]
    %v1322 = vld [vmem:[#allocation2 + $0x27a] sm:$0xff]
    %v1323 = vld [vmem:[#allocation2 + $0x28a] sm:$0xff]
    %v1324 = vld [vmem:[#allocation2 + $0x292] sm:$0xff]
    %v1325 = vld [vmem:[#allocation2 + $0x2a2] sm:$0xff]
    %v1326 = vld [vmem:[#allocation2 + $0x2aa] sm:$0xff]
    %v1327 = vld [vmem:[#allocation2 + $0x2ba] sm:$0xff]
    %v1328 = vld [vmem:[#allocation2 + $0x2c2] sm:$0xff]
    %v1329 = vld [vmem:[#allocation2 + $0x2d2] sm:$0xff]
    %v1330 = vld [vmem:[#allocation2 + $0x2da] sm:$0xff]
    %v1331 = vld [vmem:[#allocation2 + $0x2ea] sm:$0xff]
    %v1332 = vld [vmem:[#allocation2 + $0x2f2] sm:$0xff]
    %v1333 = vld [vmem:[#allocation2 + $0x302] sm:$0xff]
    %v1334 = vld [vmem:[#allocation2 + $0x30a] sm:$0xff]
    %v1335 = vld [vmem:[#allocation2 + $0x31a] sm:$0xff]
    %v1336 = vld [vmem:[#allocation2 + $0x322] sm:$0xff]
    %s1337 = scalar_lea.vmem %s1, 16
    %v1338 = vld [vmem:[%s1337] sm:$0xff]
    %v1340 = vsel %vm275, %v1273, 0
    %v1343 = vsel %vm275, %v1274, 0
    %v1346 = vsel %vm275, %v1275, 0
    %v1349 = vsel %vm275, %v1276, 0
    %v1352 = vsel %vm275, %v1277, 0
    %v1355 = vsel %vm275, %v1278, 0
    %v1358 = vsel %vm275, %v1279, 0
    %v1361 = vsel %vm275, %v1280, 0
    %v1364 = vsel %vm275, %v1281, 0
    %v1367 = vsel %vm275, %v1282, 0
    %v1370 = vsel %vm275, %v1283, 0
    %v1373 = vsel %vm275, %v1284, 0
    %v1376 = vsel %vm275, %v1285, 0
    %v1379 = vsel %vm275, %v1286, 0
    %v1382 = vsel %vm275, %v1287, 0
    %v1385 = vsel %vm275, %v1288, 0
    %v1388 = vsel %vm275, %v1289, 0
    %v1391 = vsel %vm275, %v1290, 0
    %v1394 = vsel %vm275, %v1291, 0
    %v1397 = vsel %vm275, %v1292, 0
    %v1400 = vsel %vm275, %v1293, 0
    %v1403 = vsel %vm275, %v1294, 0
    %v1406 = vsel %vm275, %v1295, 0
    %v1409 = vsel %vm275, %v1296, 0
    %v1412 = vsel %vm275, %v1297, 0
    %v1415 = vsel %vm275, %v1298, 0
    %v1418 = vsel %vm275, %v1299, 0
    %v1421 = vsel %vm275, %v1300, 0
    %v1424 = vsel %vm275, %v1301, 0
    %v1427 = vsel %vm275, %v1302, 0
    %v1430 = vsel %vm275, %v1303, 0
    %v1433 = vsel %vm275, %v1304, 0
    %v1436 = vsel %vm275, %v1305, 0
    %v1439 = vsel %vm275, %v1306, 0
    %v1442 = vsel %vm275, %v1307, 0
    %v1445 = vsel %vm275, %v1308, 0
    %v1448 = vsel %vm275, %v1309, 0
    %v1451 = vsel %vm275, %v1310, 0
    %v1454 = vsel %vm275, %v1311, 0
    %v1457 = vsel %vm275, %v1312, 0
    %v1460 = vsel %vm275, %v1313, 0
    %v1463 = vsel %vm275, %v1314, 0
    %v1466 = vsel %vm275, %v1315, 0
    %v1469 = vsel %vm275, %v1316, 0
    %v1472 = vsel %vm275, %v1317, 0
    %v1475 = vsel %vm275, %v1318, 0
    %v1478 = vsel %vm275, %v1319, 0
    %v1481 = vsel %vm275, %v1320, 0
    %v1484 = vsel %vm275, %v1321, 0
    %v1487 = vsel %vm275, %v1322, 0
    %v1490 = vsel %vm275, %v1323, 0
    %v1493 = vsel %vm275, %v1324, 0
    %v1496 = vsel %vm275, %v1325, 0
    %v1499 = vsel %vm275, %v1326, 0
    %v1502 = vsel %vm275, %v1327, 0
    %v1505 = vsel %vm275, %v1328, 0
    %v1508 = vsel %vm275, %v1329, 0
    %v1511 = vsel %vm275, %v1330, 0
    %v1514 = vsel %vm275, %v1331, 0
    %v1517 = vsel %vm275, %v1332, 0
    %v1520 = vsel %vm275, %v1333, 0
    %v1523 = vsel %vm275, %v1334, 0
    %v1526 = vsel %vm275, %v1335, 0
    %v1529 = vsel %vm275, %v1336, 0
    %1531 = vmatpush.msra.mxu0 0.0
    %1532 = vmatpush.msra.mxu0 0.0
    %1533 = vmatpush.msra.mxu0 0.0
    %1534 = vmatpush.msra.mxu0 0.0
    %1535 = vmatpush.msra.mxu0 0.0
    %1536 = vmatpush.msra.mxu0 0.0
    %1537 = vmatpush.msra.mxu0 0.0
    %1538 = vmatpush.msra.mxu0 0.0
    %1539 = vmatpush.msra.mxu0 0.0
    %1540 = vmatpush.msra.mxu0 0.0
    %1541 = vmatpush.msra.mxu0 0.0
    %1542 = vmatpush.msra.mxu0 0.0
    %1543 = vmatpush.msra.mxu0 0.0
    %1544 = vmatpush.msra.mxu0 0.0
    %1545 = vmatpush.msra.mxu0 0.0
    %1546 = vmatpush.msra.mxu0 %v1338
    %1547 = vmatmul.f32.gmra.mxu0 %v1340
    %v1548 = vpop.f32.mrf.mxu0
    %v1549 = vadd.f32 0.0, %v1548
    %1550 = vmatmul.f32.gmra.mxu0 %v1343
    %v1551 = vpop.f32.mrf.mxu0
    %v1552 = vadd.f32 0.0, %v1551
    %1553 = vmatmul.f32.gmra.mxu0 %v1346
    %v1554 = vpop.f32.mrf.mxu0
    %v1555 = vadd.f32 0.0, %v1554
    %1556 = vmatmul.f32.gmra.mxu0 %v1349
    %v1557 = vpop.f32.mrf.mxu0
    %v1558 = vadd.f32 0.0, %v1557
    %1559 = vmatmul.f32.gmra.mxu0 %v1352
    %v1560 = vpop.f32.mrf.mxu0
    %v1561 = vadd.f32 0.0, %v1560
    %1562 = vmatmul.f32.gmra.mxu0 %v1355
    %v1563 = vpop.f32.mrf.mxu0
    %v1564 = vadd.f32 0.0, %v1563
    %1565 = vmatmul.f32.gmra.mxu0 %v1358
    %v1566 = vpop.f32.mrf.mxu0
    %v1567 = vadd.f32 0.0, %v1566
    %1568 = vmatmul.f32.gmra.mxu0 %v1361
    %v1569 = vpop.f32.mrf.mxu0
    %v1570 = vadd.f32 0.0, %v1569
    %1571 = vmatmul.f32.gmra.mxu0 %v1364
    %v1572 = vpop.f32.mrf.mxu0
    %v1573 = vadd.f32 0.0, %v1572
    %1574 = vmatmul.f32.gmra.mxu0 %v1367
    %v1575 = vpop.f32.mrf.mxu0
    %v1576 = vadd.f32 0.0, %v1575
    %1577 = vmatmul.f32.gmra.mxu0 %v1370
    %v1578 = vpop.f32.mrf.mxu0
    %v1579 = vadd.f32 0.0, %v1578
    %1580 = vmatmul.f32.gmra.mxu0 %v1373
    %v1581 = vpop.f32.mrf.mxu0
    %v1582 = vadd.f32 0.0, %v1581
    %1583 = vmatmul.f32.gmra.mxu0 %v1376
    %v1584 = vpop.f32.mrf.mxu0
    %v1585 = vadd.f32 0.0, %v1584
    %1586 = vmatmul.f32.gmra.mxu0 %v1379
    %v1587 = vpop.f32.mrf.mxu0
    %v1588 = vadd.f32 0.0, %v1587
    %1589 = vmatmul.f32.gmra.mxu0 %v1382
    %v1590 = vpop.f32.mrf.mxu0
    %v1591 = vadd.f32 0.0, %v1590
    %1592 = vmatmul.f32.gmra.mxu0 %v1385
    %v1593 = vpop.f32.mrf.mxu0
    %v1594 = vadd.f32 0.0, %v1593
    %1595 = vmatmul.f32.gmra.mxu0 %v1388
    %v1596 = vpop.f32.mrf.mxu0
    %v1597 = vadd.f32 0.0, %v1596
    %1598 = vmatmul.f32.gmra.mxu0 %v1391
    %v1599 = vpop.f32.mrf.mxu0
    %v1600 = vadd.f32 0.0, %v1599
    %1601 = vmatmul.f32.gmra.mxu0 %v1394
    %v1602 = vpop.f32.mrf.mxu0
    %v1603 = vadd.f32 0.0, %v1602
    %1604 = vmatmul.f32.gmra.mxu0 %v1397
    %v1605 = vpop.f32.mrf.mxu0
    %v1606 = vadd.f32 0.0, %v1605
    %1607 = vmatmul.f32.gmra.mxu0 %v1400
    %v1608 = vpop.f32.mrf.mxu0
    %v1609 = vadd.f32 0.0, %v1608
    %1610 = vmatmul.f32.gmra.mxu0 %v1403
    %v1611 = vpop.f32.mrf.mxu0
    %v1612 = vadd.f32 0.0, %v1611
    %1613 = vmatmul.f32.gmra.mxu0 %v1406
    %v1614 = vpop.f32.mrf.mxu0
    %v1615 = vadd.f32 0.0, %v1614
    %1616 = vmatmul.f32.gmra.mxu0 %v1409
    %v1617 = vpop.f32.mrf.mxu0
    %v1618 = vadd.f32 0.0, %v1617
    %1619 = vmatmul.f32.gmra.mxu0 %v1412
    %v1620 = vpop.f32.mrf.mxu0
    %v1621 = vadd.f32 0.0, %v1620
    %1622 = vmatmul.f32.gmra.mxu0 %v1415
    %v1623 = vpop.f32.mrf.mxu0
    %v1624 = vadd.f32 0.0, %v1623
    %1625 = vmatmul.f32.gmra.mxu0 %v1418
    %v1626 = vpop.f32.mrf.mxu0
    %v1627 = vadd.f32 0.0, %v1626
    %1628 = vmatmul.f32.gmra.mxu0 %v1421
    %v1629 = vpop.f32.mrf.mxu0
    %v1630 = vadd.f32 0.0, %v1629
    %1631 = vmatmul.f32.gmra.mxu0 %v1424
    %v1632 = vpop.f32.mrf.mxu0
    %v1633 = vadd.f32 0.0, %v1632
    %1634 = vmatmul.f32.gmra.mxu0 %v1427
    %v1635 = vpop.f32.mrf.mxu0
    %v1636 = vadd.f32 0.0, %v1635
    %1637 = vmatmul.f32.gmra.mxu0 %v1430
    %v1638 = vpop.f32.mrf.mxu0
    %v1639 = vadd.f32 0.0, %v1638
    %1640 = vmatmul.f32.gmra.mxu0 %v1433
    %v1641 = vpop.f32.mrf.mxu0
    %v1642 = vadd.f32 0.0, %v1641
    %1643 = vmatmul.f32.gmra.mxu0 %v1436
    %v1644 = vpop.f32.mrf.mxu0
    %v1645 = vadd.f32 0.0, %v1644
    %1646 = vmatmul.f32.gmra.mxu0 %v1439
    %v1647 = vpop.f32.mrf.mxu0
    %v1648 = vadd.f32 0.0, %v1647
    %1649 = vmatmul.f32.gmra.mxu0 %v1442
    %v1650 = vpop.f32.mrf.mxu0
    %v1651 = vadd.f32 0.0, %v1650
    %1652 = vmatmul.f32.gmra.mxu0 %v1445
    %v1653 = vpop.f32.mrf.mxu0
    %v1654 = vadd.f32 0.0, %v1653
    %1655 = vmatmul.f32.gmra.mxu0 %v1448
    %v1656 = vpop.f32.mrf.mxu0
    %v1657 = vadd.f32 0.0, %v1656
    %1658 = vmatmul.f32.gmra.mxu0 %v1451
    %v1659 = vpop.f32.mrf.mxu0
    %v1660 = vadd.f32 0.0, %v1659
    %1661 = vmatmul.f32.gmra.mxu0 %v1454
    %v1662 = vpop.f32.mrf.mxu0
    %v1663 = vadd.f32 0.0, %v1662
    %1664 = vmatmul.f32.gmra.mxu0 %v1457
    %v1665 = vpop.f32.mrf.mxu0
    %v1666 = vadd.f32 0.0, %v1665
    %1667 = vmatmul.f32.gmra.mxu0 %v1460
    %v1668 = vpop.f32.mrf.mxu0
    %v1669 = vadd.f32 0.0, %v1668
    %1670 = vmatmul.f32.gmra.mxu0 %v1463
    %v1671 = vpop.f32.mrf.mxu0
    %v1672 = vadd.f32 0.0, %v1671
    %1673 = vmatmul.f32.gmra.mxu0 %v1466
    %v1674 = vpop.f32.mrf.mxu0
    %v1675 = vadd.f32 0.0, %v1674
    %1676 = vmatmul.f32.gmra.mxu0 %v1469
    %v1677 = vpop.f32.mrf.mxu0
    %v1678 = vadd.f32 0.0, %v1677
    %1679 = vmatmul.f32.gmra.mxu0 %v1472
    %v1680 = vpop.f32.mrf.mxu0
    %v1681 = vadd.f32 0.0, %v1680
    %1682 = vmatmul.f32.gmra.mxu0 %v1475
    %v1683 = vpop.f32.mrf.mxu0
    %v1684 = vadd.f32 0.0, %v1683
    %1685 = vmatmul.f32.gmra.mxu0 %v1478
    %v1686 = vpop.f32.mrf.mxu0
    %v1687 = vadd.f32 0.0, %v1686
    %1688 = vmatmul.f32.gmra.mxu0 %v1481
    %v1689 = vpop.f32.mrf.mxu0
    %v1690 = vadd.f32 0.0, %v1689
    %1691 = vmatmul.f32.gmra.mxu0 %v1484
    %v1692 = vpop.f32.mrf.mxu0
    %v1693 = vadd.f32 0.0, %v1692
    %1694 = vmatmul.f32.gmra.mxu0 %v1487
    %v1695 = vpop.f32.mrf.mxu0
    %v1696 = vadd.f32 0.0, %v1695
    %1697 = vmatmul.f32.gmra.mxu0 %v1490
    %v1698 = vpop.f32.mrf.mxu0
    %v1699 = vadd.f32 0.0, %v1698
    %1700 = vmatmul.f32.gmra.mxu0 %v1493
    %v1701 = vpop.f32.mrf.mxu0
    %v1702 = vadd.f32 0.0, %v1701
    %1703 = vmatmul.f32.gmra.mxu0 %v1496
    %v1704 = vpop.f32.mrf.mxu0
    %v1705 = vadd.f32 0.0, %v1704
    %1706 = vmatmul.f32.gmra.mxu0 %v1499
    %v1707 = vpop.f32.mrf.mxu0
    %v1708 = vadd.f32 0.0, %v1707
    %1709 = vmatmul.f32.gmra.mxu0 %v1502
    %v1710 = vpop.f32.mrf.mxu0
    %v1711 = vadd.f32 0.0, %v1710
    %1712 = vmatmul.f32.gmra.mxu0 %v1505
    %v1713 = vpop.f32.mrf.mxu0
    %v1714 = vadd.f32 0.0, %v1713
    %1715 = vmatmul.f32.gmra.mxu0 %v1508
    %v1716 = vpop.f32.mrf.mxu0
    %v1717 = vadd.f32 0.0, %v1716
    %1718 = vmatmul.f32.gmra.mxu0 %v1511
    %v1719 = vpop.f32.mrf.mxu0
    %v1720 = vadd.f32 0.0, %v1719
    %1721 = vmatmul.f32.gmra.mxu0 %v1514
    %v1722 = vpop.f32.mrf.mxu0
    %v1723 = vadd.f32 0.0, %v1722
    %1724 = vmatmul.f32.gmra.mxu0 %v1517
    %v1725 = vpop.f32.mrf.mxu0
    %v1726 = vadd.f32 0.0, %v1725
    %1727 = vmatmul.f32.gmra.mxu0 %v1520
    %v1728 = vpop.f32.mrf.mxu0
    %v1729 = vadd.f32 0.0, %v1728
    %1730 = vmatmul.f32.gmra.mxu0 %v1523
    %v1731 = vpop.f32.mrf.mxu0
    %v1732 = vadd.f32 0.0, %v1731
    %1733 = vmatmul.f32.gmra.mxu0 %v1526
    %v1734 = vpop.f32.mrf.mxu0
    %v1735 = vadd.f32 0.0, %v1734
    %1736 = vmatmul.f32.gmra.mxu0 %v1529
    %v1737 = vpop.f32.mrf.mxu0
    %v1738 = vadd.f32 0.0, %v1737
    %1739 = vdwg.mxu0
    %v1740 = vadd.f32 %v1082, %v1549
    %v1741 = vadd.f32 %v1085, %v1552
    %v1742 = vadd.f32 %v1088, %v1555
    %v1743 = vadd.f32 %v1091, %v1558
    %v1744 = vadd.f32 %v1094, %v1561
    %v1745 = vadd.f32 %v1097, %v1564
    %v1746 = vadd.f32 %v1100, %v1567
    %v1747 = vadd.f32 %v1103, %v1570
    %v1748 = vadd.f32 %v1106, %v1573
    %v1749 = vadd.f32 %v1109, %v1576
    %v1750 = vadd.f32 %v1112, %v1579
    %v1751 = vadd.f32 %v1115, %v1582
    %v1752 = vadd.f32 %v1118, %v1585
    %v1753 = vadd.f32 %v1121, %v1588
    %v1754 = vadd.f32 %v1124, %v1591
    %v1755 = vadd.f32 %v1127, %v1594
    %v1756 = vadd.f32 %v1130, %v1597
    %v1757 = vadd.f32 %v1133, %v1600
    %v1758 = vadd.f32 %v1136, %v1603
    %v1759 = vadd.f32 %v1139, %v1606
    %v1760 = vadd.f32 %v1142, %v1609
    %v1761 = vadd.f32 %v1145, %v1612
    %v1762 = vadd.f32 %v1148, %v1615
    %v1763 = vadd.f32 %v1151, %v1618
    %v1764 = vadd.f32 %v1154, %v1621
    %v1765 = vadd.f32 %v1157, %v1624
    %v1766 = vadd.f32 %v1160, %v1627
    %v1767 = vadd.f32 %v1163, %v1630
    %v1768 = vadd.f32 %v1166, %v1633
    %v1769 = vadd.f32 %v1169, %v1636
    %v1770 = vadd.f32 %v1172, %v1639
    %v1771 = vadd.f32 %v1175, %v1642
    %v1772 = vadd.f32 %v1178, %v1645
    %v1773 = vadd.f32 %v1181, %v1648
    %v1774 = vadd.f32 %v1184, %v1651
    %v1775 = vadd.f32 %v1187, %v1654
    %v1776 = vadd.f32 %v1190, %v1657
    %v1777 = vadd.f32 %v1193, %v1660
    %v1778 = vadd.f32 %v1196, %v1663
    %v1779 = vadd.f32 %v1199, %v1666
    %v1780 = vadd.f32 %v1202, %v1669
    %v1781 = vadd.f32 %v1205, %v1672
    %v1782 = vadd.f32 %v1208, %v1675
    %v1783 = vadd.f32 %v1211, %v1678
    %v1784 = vadd.f32 %v1214, %v1681
    %v1785 = vadd.f32 %v1217, %v1684
    %v1786 = vadd.f32 %v1220, %v1687
    %v1787 = vadd.f32 %v1223, %v1690
    %v1788 = vadd.f32 %v1226, %v1693
    %v1789 = vadd.f32 %v1229, %v1696
    %v1790 = vadd.f32 %v1232, %v1699
    %v1791 = vadd.f32 %v1235, %v1702
    %v1792 = vadd.f32 %v1238, %v1705
    %v1793 = vadd.f32 %v1241, %v1708
    %v1794 = vadd.f32 %v1244, %v1711
    %v1795 = vadd.f32 %v1247, %v1714
    %v1796 = vadd.f32 %v1250, %v1717
    %v1797 = vadd.f32 %v1253, %v1720
    %v1798 = vadd.f32 %v1256, %v1723
    %v1799 = vadd.f32 %v1259, %v1726
    %v1800 = vadd.f32 %v1262, %v1729
    %v1801 = vadd.f32 %v1265, %v1732
    %v1802 = vadd.f32 %v1268, %v1735
    %v1803 = vadd.f32 %v1271, %v1738
    %v1804 = vld [vmem:[%s274] sm:$0xff]
    %v1805 = vld [vmem:[%s274 + $0x8] sm:$0xff]
    %v1806 = vld [vmem:[%s274 + $0x18] sm:$0xff]
    %v1807 = vld [vmem:[%s274 + $0x20] sm:$0xff]
    %v1808 = vld [vmem:[%s274 + $0x30] sm:$0xff]
    %v1809 = vld [vmem:[%s274 + $0x38] sm:$0xff]
    %v1810 = vld [vmem:[%s274 + $0x48] sm:$0xff]
    %v1811 = vld [vmem:[%s274 + $0x50] sm:$0xff]
    %v1812 = vld [vmem:[%s274 + $0x60] sm:$0xff]
    %v1813 = vld [vmem:[%s274 + $0x68] sm:$0xff]
    %v1814 = vld [vmem:[%s274 + $0x78] sm:$0xff]
    %v1815 = vld [vmem:[%s274 + $0x80] sm:$0xff]
    %v1816 = vld [vmem:[%s274 + $0x90] sm:$0xff]
    %v1817 = vld [vmem:[%s274 + $0x98] sm:$0xff]
    %v1818 = vld [vmem:[%s274 + $0xa8] sm:$0xff]
    %v1819 = vld [vmem:[%s274 + $0xb0] sm:$0xff]
    %v1820 = vld [vmem:[%s274 + $0xc0] sm:$0xff]
    %v1821 = vld [vmem:[%s274 + $0xc8] sm:$0xff]
    %v1822 = vld [vmem:[%s274 + $0xd8] sm:$0xff]
    %v1823 = vld [vmem:[%s274 + $0xe0] sm:$0xff]
    %v1824 = vld [vmem:[%s274 + $0xf0] sm:$0xff]
    %v1825 = vld [vmem:[%s274 + $0xf8] sm:$0xff]
    %v1826 = vld [vmem:[%s274 + $0x108] sm:$0xff]
    %v1827 = vld [vmem:[%s274 + $0x110] sm:$0xff]
    %v1828 = vld [vmem:[%s274 + $0x120] sm:$0xff]
    %v1829 = vld [vmem:[%s274 + $0x128] sm:$0xff]
    %v1830 = vld [vmem:[%s274 + $0x138] sm:$0xff]
    %v1831 = vld [vmem:[%s274 + $0x140] sm:$0xff]
    %v1832 = vld [vmem:[%s274 + $0x150] sm:$0xff]
    %v1833 = vld [vmem:[%s274 + $0x158] sm:$0xff]
    %v1834 = vld [vmem:[%s274 + $0x168] sm:$0xff]
    %v1835 = vld [vmem:[%s274 + $0x170] sm:$0xff]
    %v1836 = vld [vmem:[%s274 + $0x1b0] sm:$0xff]
    %v1837 = vld [vmem:[%s274 + $0x1b8] sm:$0xff]
    %v1838 = vld [vmem:[%s274 + $0x1c8] sm:$0xff]
    %v1839 = vld [vmem:[%s274 + $0x1d0] sm:$0xff]
    %v1840 = vld [vmem:[%s274 + $0x1e0] sm:$0xff]
    %v1841 = vld [vmem:[%s274 + $0x1e8] sm:$0xff]
    %v1842 = vld [vmem:[%s274 + $0x1f8] sm:$0xff]
    %v1843 = vld [vmem:[%s274 + $0x200] sm:$0xff]
    %v1844 = vld [vmem:[%s274 + $0x210] sm:$0xff]
    %v1845 = vld [vmem:[%s274 + $0x218] sm:$0xff]
    %v1846 = vld [vmem:[%s274 + $0x228] sm:$0xff]
    %v1847 = vld [vmem:[%s274 + $0x230] sm:$0xff]
    %v1848 = vld [vmem:[%s274 + $0x240] sm:$0xff]
    %v1849 = vld [vmem:[%s274 + $0x248] sm:$0xff]
    %v1850 = vld [vmem:[%s274 + $0x258] sm:$0xff]
    %v1851 = vld [vmem:[%s274 + $0x260] sm:$0xff]
    %v1852 = vld [vmem:[%s274 + $0x270] sm:$0xff]
    %v1853 = vld [vmem:[%s274 + $0x278] sm:$0xff]
    %v1854 = vld [vmem:[%s274 + $0x288] sm:$0xff]
    %v1855 = vld [vmem:[%s274 + $0x290] sm:$0xff]
    %v1856 = vld [vmem:[%s274 + $0x2a0] sm:$0xff]
    %v1857 = vld [vmem:[%s274 + $0x2a8] sm:$0xff]
    %v1858 = vld [vmem:[%s274 + $0x2b8] sm:$0xff]
    %v1859 = vld [vmem:[%s274 + $0x2c0] sm:$0xff]
    %v1860 = vld [vmem:[%s274 + $0x2d0] sm:$0xff]
    %v1861 = vld [vmem:[%s274 + $0x2d8] sm:$0xff]
    %v1862 = vld [vmem:[%s274 + $0x2e8] sm:$0xff]
    %v1863 = vld [vmem:[%s274 + $0x2f0] sm:$0xff]
    %v1864 = vld [vmem:[%s274 + $0x300] sm:$0xff]
    %v1865 = vld [vmem:[%s274 + $0x308] sm:$0xff]
    %v1866 = vld [vmem:[%s274 + $0x318] sm:$0xff]
    %v1867 = vld [vmem:[%s274 + $0x320] sm:$0xff]
    %s1868 = scalar_lea.vmem %s1, 24
    %v1869 = vld [vmem:[%s1868] sm:$0xff]
    %v1871 = vsel %vm275, %v1804, 0
    %v1874 = vsel %vm275, %v1805, 0
    %v1877 = vsel %vm275, %v1806, 0
    %v1880 = vsel %vm275, %v1807, 0
    %v1883 = vsel %vm275, %v1808, 0
    %v1886 = vsel %vm275, %v1809, 0
    %v1889 = vsel %vm275, %v1810, 0
    %v1892 = vsel %vm275, %v1811, 0
    %v1895 = vsel %vm275, %v1812, 0
    %v1898 = vsel %vm275, %v1813, 0
    %v1901 = vsel %vm275, %v1814, 0
    %v1904 = vsel %vm275, %v1815, 0
    %v1907 = vsel %vm275, %v1816, 0
    %v1910 = vsel %vm275, %v1817, 0
    %v1913 = vsel %vm275, %v1818, 0
    %v1916 = vsel %vm275, %v1819, 0
    %v1919 = vsel %vm275, %v1820, 0
    %v1922 = vsel %vm275, %v1821, 0
    %v1925 = vsel %vm275, %v1822, 0
    %v1928 = vsel %vm275, %v1823, 0
    %v1931 = vsel %vm275, %v1824, 0
    %v1934 = vsel %vm275, %v1825, 0
    %v1937 = vsel %vm275, %v1826, 0
    %v1940 = vsel %vm275, %v1827, 0
    %v1943 = vsel %vm275, %v1828, 0
    %v1946 = vsel %vm275, %v1829, 0
    %v1949 = vsel %vm275, %v1830, 0
    %v1952 = vsel %vm275, %v1831, 0
    %v1955 = vsel %vm275, %v1832, 0
    %v1958 = vsel %vm275, %v1833, 0
    %v1961 = vsel %vm275, %v1834, 0
    %v1964 = vsel %vm275, %v1835, 0
    %v1967 = vsel %vm275, %v1836, 0
    %v1970 = vsel %vm275, %v1837, 0
    %v1973 = vsel %vm275, %v1838, 0
    %v1976 = vsel %vm275, %v1839, 0
    %v1979 = vsel %vm275, %v1840, 0
    %v1982 = vsel %vm275, %v1841, 0
    %v1985 = vsel %vm275, %v1842, 0
    %v1988 = vsel %vm275, %v1843, 0
    %v1991 = vsel %vm275, %v1844, 0
    %v1994 = vsel %vm275, %v1845, 0
    %v1997 = vsel %vm275, %v1846, 0
    %v2000 = vsel %vm275, %v1847, 0
    %v2003 = vsel %vm275, %v1848, 0
    %v2006 = vsel %vm275, %v1849, 0
    %v2009 = vsel %vm275, %v1850, 0
    %v2012 = vsel %vm275, %v1851, 0
    %v2015 = vsel %vm275, %v1852, 0
    %v2018 = vsel %vm275, %v1853, 0
    %v2021 = vsel %vm275, %v1854, 0
    %v2024 = vsel %vm275, %v1855, 0
    %v2027 = vsel %vm275, %v1856, 0
    %v2030 = vsel %vm275, %v1857, 0
    %v2033 = vsel %vm275, %v1858, 0
    %v2036 = vsel %vm275, %v1859, 0
    %v2039 = vsel %vm275, %v1860, 0
    %v2042 = vsel %vm275, %v1861, 0
    %v2045 = vsel %vm275, %v1862, 0
    %v2048 = vsel %vm275, %v1863, 0
    %v2051 = vsel %vm275, %v1864, 0
    %v2054 = vsel %vm275, %v1865, 0
    %v2057 = vsel %vm275, %v1866, 0
    %v2060 = vsel %vm275, %v1867, 0
    %2062 = vmatpush.msra.mxu0 0.0
    %2063 = vmatpush.msra.mxu0 0.0
    %2064 = vmatpush.msra.mxu0 0.0
    %2065 = vmatpush.msra.mxu0 0.0
    %2066 = vmatpush.msra.mxu0 0.0
    %2067 = vmatpush.msra.mxu0 0.0
    %2068 = vmatpush.msra.mxu0 0.0
    %2069 = vmatpush.msra.mxu0 0.0
    %2070 = vmatpush.msra.mxu0 0.0
    %2071 = vmatpush.msra.mxu0 0.0
    %2072 = vmatpush.msra.mxu0 0.0
    %2073 = vmatpush.msra.mxu0 0.0
    %2074 = vmatpush.msra.mxu0 0.0
    %2075 = vmatpush.msra.mxu0 0.0
    %2076 = vmatpush.msra.mxu0 0.0
    %2077 = vmatpush.msra.mxu0 %v1869
    %2078 = vmatmul.f32.gmra.mxu0 %v1871
    %v2079 = vpop.f32.mrf.mxu0
    %v2080 = vadd.f32 0.0, %v2079
    %2081 = vmatmul.f32.gmra.mxu0 %v1874
    %v2082 = vpop.f32.mrf.mxu0
    %v2083 = vadd.f32 0.0, %v2082
    %2084 = vmatmul.f32.gmra.mxu0 %v1877
    %v2085 = vpop.f32.mrf.mxu0
    %v2086 = vadd.f32 0.0, %v2085
    %2087 = vmatmul.f32.gmra.mxu0 %v1880
    %v2088 = vpop.f32.mrf.mxu0
    %v2089 = vadd.f32 0.0, %v2088
    %2090 = vmatmul.f32.gmra.mxu0 %v1883
    %v2091 = vpop.f32.mrf.mxu0
    %v2092 = vadd.f32 0.0, %v2091
    %2093 = vmatmul.f32.gmra.mxu0 %v1886
    %v2094 = vpop.f32.mrf.mxu0
    %v2095 = vadd.f32 0.0, %v2094
    %2096 = vmatmul.f32.gmra.mxu0 %v1889
    %v2097 = vpop.f32.mrf.mxu0
    %v2098 = vadd.f32 0.0, %v2097
    %2099 = vmatmul.f32.gmra.mxu0 %v1892
    %v2100 = vpop.f32.mrf.mxu0
    %v2101 = vadd.f32 0.0, %v2100
    %2102 = vmatmul.f32.gmra.mxu0 %v1895
    %v2103 = vpop.f32.mrf.mxu0
    %v2104 = vadd.f32 0.0, %v2103
    %2105 = vmatmul.f32.gmra.mxu0 %v1898
    %v2106 = vpop.f32.mrf.mxu0
    %v2107 = vadd.f32 0.0, %v2106
    %2108 = vmatmul.f32.gmra.mxu0 %v1901
    %v2109 = vpop.f32.mrf.mxu0
    %v2110 = vadd.f32 0.0, %v2109
    %2111 = vmatmul.f32.gmra.mxu0 %v1904
    %v2112 = vpop.f32.mrf.mxu0
    %v2113 = vadd.f32 0.0, %v2112
    %2114 = vmatmul.f32.gmra.mxu0 %v1907
    %v2115 = vpop.f32.mrf.mxu0
    %v2116 = vadd.f32 0.0, %v2115
    %2117 = vmatmul.f32.gmra.mxu0 %v1910
    %v2118 = vpop.f32.mrf.mxu0
    %v2119 = vadd.f32 0.0, %v2118
    %2120 = vmatmul.f32.gmra.mxu0 %v1913
    %v2121 = vpop.f32.mrf.mxu0
    %v2122 = vadd.f32 0.0, %v2121
    %2123 = vmatmul.f32.gmra.mxu0 %v1916
    %v2124 = vpop.f32.mrf.mxu0
    %v2125 = vadd.f32 0.0, %v2124
    %2126 = vmatmul.f32.gmra.mxu0 %v1919
    %v2127 = vpop.f32.mrf.mxu0
    %v2128 = vadd.f32 0.0, %v2127
    %2129 = vmatmul.f32.gmra.mxu0 %v1922
    %v2130 = vpop.f32.mrf.mxu0
    %v2131 = vadd.f32 0.0, %v2130
    %2132 = vmatmul.f32.gmra.mxu0 %v1925
    %v2133 = vpop.f32.mrf.mxu0
    %v2134 = vadd.f32 0.0, %v2133
    %2135 = vmatmul.f32.gmra.mxu0 %v1928
    %v2136 = vpop.f32.mrf.mxu0
    %v2137 = vadd.f32 0.0, %v2136
    %2138 = vmatmul.f32.gmra.mxu0 %v1931
    %v2139 = vpop.f32.mrf.mxu0
    %v2140 = vadd.f32 0.0, %v2139
    %2141 = vmatmul.f32.gmra.mxu0 %v1934
    %v2142 = vpop.f32.mrf.mxu0
    %v2143 = vadd.f32 0.0, %v2142
    %2144 = vmatmul.f32.gmra.mxu0 %v1937
    %v2145 = vpop.f32.mrf.mxu0
    %v2146 = vadd.f32 0.0, %v2145
    %2147 = vmatmul.f32.gmra.mxu0 %v1940
    %v2148 = vpop.f32.mrf.mxu0
    %v2149 = vadd.f32 0.0, %v2148
    %2150 = vmatmul.f32.gmra.mxu0 %v1943
    %v2151 = vpop.f32.mrf.mxu0
    %v2152 = vadd.f32 0.0, %v2151
    %2153 = vmatmul.f32.gmra.mxu0 %v1946
    %v2154 = vpop.f32.mrf.mxu0
    %v2155 = vadd.f32 0.0, %v2154
    %2156 = vmatmul.f32.gmra.mxu0 %v1949
    %v2157 = vpop.f32.mrf.mxu0
    %v2158 = vadd.f32 0.0, %v2157
    %2159 = vmatmul.f32.gmra.mxu0 %v1952
    %v2160 = vpop.f32.mrf.mxu0
    %v2161 = vadd.f32 0.0, %v2160
    %2162 = vmatmul.f32.gmra.mxu0 %v1955
    %v2163 = vpop.f32.mrf.mxu0
    %v2164 = vadd.f32 0.0, %v2163
    %2165 = vmatmul.f32.gmra.mxu0 %v1958
    %v2166 = vpop.f32.mrf.mxu0
    %v2167 = vadd.f32 0.0, %v2166
    %2168 = vmatmul.f32.gmra.mxu0 %v1961
    %v2169 = vpop.f32.mrf.mxu0
    %v2170 = vadd.f32 0.0, %v2169
    %2171 = vmatmul.f32.gmra.mxu0 %v1964
    %v2172 = vpop.f32.mrf.mxu0
    %v2173 = vadd.f32 0.0, %v2172
    %2174 = vmatmul.f32.gmra.mxu0 %v1967
    %v2175 = vpop.f32.mrf.mxu0
    %v2176 = vadd.f32 0.0, %v2175
    %2177 = vmatmul.f32.gmra.mxu0 %v1970
    %v2178 = vpop.f32.mrf.mxu0
    %v2179 = vadd.f32 0.0, %v2178
    %2180 = vmatmul.f32.gmra.mxu0 %v1973
    %v2181 = vpop.f32.mrf.mxu0
    %v2182 = vadd.f32 0.0, %v2181
    %2183 = vmatmul.f32.gmra.mxu0 %v1976
    %v2184 = vpop.f32.mrf.mxu0
    %v2185 = vadd.f32 0.0, %v2184
    %2186 = vmatmul.f32.gmra.mxu0 %v1979
    %v2187 = vpop.f32.mrf.mxu0
    %v2188 = vadd.f32 0.0, %v2187
    %2189 = vmatmul.f32.gmra.mxu0 %v1982
    %v2190 = vpop.f32.mrf.mxu0
    %v2191 = vadd.f32 0.0, %v2190
    %2192 = vmatmul.f32.gmra.mxu0 %v1985
    %v2193 = vpop.f32.mrf.mxu0
    %v2194 = vadd.f32 0.0, %v2193
    %2195 = vmatmul.f32.gmra.mxu0 %v1988
    %v2196 = vpop.f32.mrf.mxu0
    %v2197 = vadd.f32 0.0, %v2196
    %2198 = vmatmul.f32.gmra.mxu0 %v1991
    %v2199 = vpop.f32.mrf.mxu0
    %v2200 = vadd.f32 0.0, %v2199
    %2201 = vmatmul.f32.gmra.mxu0 %v1994
    %v2202 = vpop.f32.mrf.mxu0
    %v2203 = vadd.f32 0.0, %v2202
    %2204 = vmatmul.f32.gmra.mxu0 %v1997
    %v2205 = vpop.f32.mrf.mxu0
    %v2206 = vadd.f32 0.0, %v2205
    %2207 = vmatmul.f32.gmra.mxu0 %v2000
    %v2208 = vpop.f32.mrf.mxu0
    %v2209 = vadd.f32 0.0, %v2208
    %2210 = vmatmul.f32.gmra.mxu0 %v2003
    %v2211 = vpop.f32.mrf.mxu0
    %v2212 = vadd.f32 0.0, %v2211
    %2213 = vmatmul.f32.gmra.mxu0 %v2006
    %v2214 = vpop.f32.mrf.mxu0
    %v2215 = vadd.f32 0.0, %v2214
    %2216 = vmatmul.f32.gmra.mxu0 %v2009
    %v2217 = vpop.f32.mrf.mxu0
    %v2218 = vadd.f32 0.0, %v2217
    %2219 = vmatmul.f32.gmra.mxu0 %v2012
    %v2220 = vpop.f32.mrf.mxu0
    %v2221 = vadd.f32 0.0, %v2220
    %2222 = vmatmul.f32.gmra.mxu0 %v2015
    %v2223 = vpop.f32.mrf.mxu0
    %v2224 = vadd.f32 0.0, %v2223
    %2225 = vmatmul.f32.gmra.mxu0 %v2018
    %v2226 = vpop.f32.mrf.mxu0
    %v2227 = vadd.f32 0.0, %v2226
    %2228 = vmatmul.f32.gmra.mxu0 %v2021
    %v2229 = vpop.f32.mrf.mxu0
    %v2230 = vadd.f32 0.0, %v2229
    %2231 = vmatmul.f32.gmra.mxu0 %v2024
    %v2232 = vpop.f32.mrf.mxu0
    %v2233 = vadd.f32 0.0, %v2232
    %2234 = vmatmul.f32.gmra.mxu0 %v2027
    %v2235 = vpop.f32.mrf.mxu0
    %v2236 = vadd.f32 0.0, %v2235
    %2237 = vmatmul.f32.gmra.mxu0 %v2030
    %v2238 = vpop.f32.mrf.mxu0
    %v2239 = vadd.f32 0.0, %v2238
    %2240 = vmatmul.f32.gmra.mxu0 %v2033
    %v2241 = vpop.f32.mrf.mxu0
    %v2242 = vadd.f32 0.0, %v2241
    %2243 = vmatmul.f32.gmra.mxu0 %v2036
    %v2244 = vpop.f32.mrf.mxu0
    %v2245 = vadd.f32 0.0, %v2244
    %2246 = vmatmul.f32.gmra.mxu0 %v2039
    %v2247 = vpop.f32.mrf.mxu0
    %v2248 = vadd.f32 0.0, %v2247
    %2249 = vmatmul.f32.gmra.mxu0 %v2042
    %v2250 = vpop.f32.mrf.mxu0
    %v2251 = vadd.f32 0.0, %v2250
    %2252 = vmatmul.f32.gmra.mxu0 %v2045
    %v2253 = vpop.f32.mrf.mxu0
    %v2254 = vadd.f32 0.0, %v2253
    %2255 = vmatmul.f32.gmra.mxu0 %v2048
    %v2256 = vpop.f32.mrf.mxu0
    %v2257 = vadd.f32 0.0, %v2256
    %2258 = vmatmul.f32.gmra.mxu0 %v2051
    %v2259 = vpop.f32.mrf.mxu0
    %v2260 = vadd.f32 0.0, %v2259
    %2261 = vmatmul.f32.gmra.mxu0 %v2054
    %v2262 = vpop.f32.mrf.mxu0
    %v2263 = vadd.f32 0.0, %v2262
    %2264 = vmatmul.f32.gmra.mxu0 %v2057
    %v2265 = vpop.f32.mrf.mxu0
    %v2266 = vadd.f32 0.0, %v2265
    %2267 = vmatmul.f32.gmra.mxu0 %v2060
    %v2268 = vpop.f32.mrf.mxu0
    %v2269 = vadd.f32 0.0, %v2268
    %2270 = vdwg.mxu0
    %v2271 = vadd.f32 %v1740, %v2080
    %v2272 = vadd.f32 %v1741, %v2083
    %v2273 = vadd.f32 %v1742, %v2086
    %v2274 = vadd.f32 %v1743, %v2089
    %v2275 = vadd.f32 %v1744, %v2092
    %v2276 = vadd.f32 %v1745, %v2095
    %v2277 = vadd.f32 %v1746, %v2098
    %v2278 = vadd.f32 %v1747, %v2101
    %v2279 = vadd.f32 %v1748, %v2104
    %v2280 = vadd.f32 %v1749, %v2107
    %v2281 = vadd.f32 %v1750, %v2110
    %v2282 = vadd.f32 %v1751, %v2113
    %v2283 = vadd.f32 %v1752, %v2116
    %v2284 = vadd.f32 %v1753, %v2119
    %v2285 = vadd.f32 %v1754, %v2122
    %v2286 = vadd.f32 %v1755, %v2125
    %v2287 = vadd.f32 %v1756, %v2128
    %v2288 = vadd.f32 %v1757, %v2131
    %v2289 = vadd.f32 %v1758, %v2134
    %v2290 = vadd.f32 %v1759, %v2137
    %v2291 = vadd.f32 %v1760, %v2140
    %v2292 = vadd.f32 %v1761, %v2143
    %v2293 = vadd.f32 %v1762, %v2146
    %v2294 = vadd.f32 %v1763, %v2149
    %v2295 = vadd.f32 %v1764, %v2152
    %v2296 = vadd.f32 %v1765, %v2155
    %v2297 = vadd.f32 %v1766, %v2158
    %v2298 = vadd.f32 %v1767, %v2161
    %v2299 = vadd.f32 %v1768, %v2164
    %v2300 = vadd.f32 %v1769, %v2167
    %v2301 = vadd.f32 %v1770, %v2170
    %v2302 = vadd.f32 %v1771, %v2173
    %v2303 = vadd.f32 %v1772, %v2176
    %v2304 = vadd.f32 %v1773, %v2179
    %v2305 = vadd.f32 %v1774, %v2182
    %v2306 = vadd.f32 %v1775, %v2185
    %v2307 = vadd.f32 %v1776, %v2188
    %v2308 = vadd.f32 %v1777, %v2191
    %v2309 = vadd.f32 %v1778, %v2194
    %v2310 = vadd.f32 %v1779, %v2197
    %v2311 = vadd.f32 %v1780, %v2200
    %v2312 = vadd.f32 %v1781, %v2203
    %v2313 = vadd.f32 %v1782, %v2206
    %v2314 = vadd.f32 %v1783, %v2209
    %v2315 = vadd.f32 %v1784, %v2212
    %v2316 = vadd.f32 %v1785, %v2215
    %v2317 = vadd.f32 %v1786, %v2218
    %v2318 = vadd.f32 %v1787, %v2221
    %v2319 = vadd.f32 %v1788, %v2224
    %v2320 = vadd.f32 %v1789, %v2227
    %v2321 = vadd.f32 %v1790, %v2230
    %v2322 = vadd.f32 %v1791, %v2233
    %v2323 = vadd.f32 %v1792, %v2236
    %v2324 = vadd.f32 %v1793, %v2239
    %v2325 = vadd.f32 %v1794, %v2242
    %v2326 = vadd.f32 %v1795, %v2245
    %v2327 = vadd.f32 %v1796, %v2248
    %v2328 = vadd.f32 %v1797, %v2251
    %v2329 = vadd.f32 %v1798, %v2254
    %v2330 = vadd.f32 %v1799, %v2257
    %v2331 = vadd.f32 %v1800, %v2260
    %v2332 = vadd.f32 %v1801, %v2263
    %v2333 = vadd.f32 %v1802, %v2266
    %v2334 = vadd.f32 %v1803, %v2269
    %v2335 = vld [vmem:[%s274 + $0x1] sm:$0xff]
    %v2336 = vld [vmem:[%s274 + $0x9] sm:$0xff]
    %v2337 = vld [vmem:[%s274 + $0x19] sm:$0xff]
    %v2338 = vld [vmem:[%s274 + $0x21] sm:$0xff]
    %v2339 = vld [vmem:[%s274 + $0x31] sm:$0xff]
    %v2340 = vld [vmem:[%s274 + $0x39] sm:$0xff]
    %v2341 = vld [vmem:[%s274 + $0x49] sm:$0xff]
    %v2342 = vld [vmem:[%s274 + $0x51] sm:$0xff]
    %v2343 = vld [vmem:[%s274 + $0x61] sm:$0xff]
    %v2344 = vld [vmem:[%s274 + $0x69] sm:$0xff]
    %v2345 = vld [vmem:[%s274 + $0x79] sm:$0xff]
    %v2346 = vld [vmem:[%s274 + $0x81] sm:$0xff]
    %v2347 = vld [vmem:[%s274 + $0x91] sm:$0xff]
    %v2348 = vld [vmem:[%s274 + $0x99] sm:$0xff]
    %v2349 = vld [vmem:[%s274 + $0xa9] sm:$0xff]
    %v2350 = vld [vmem:[%s274 + $0xb1] sm:$0xff]
    %v2351 = vld [vmem:[%s274 + $0xc1] sm:$0xff]
    %v2352 = vld [vmem:[%s274 + $0xc9] sm:$0xff]
    %v2353 = vld [vmem:[%s274 + $0xd9] sm:$0xff]
    %v2354 = vld [vmem:[%s274 + $0xe1] sm:$0xff]
    %v2355 = vld [vmem:[%s274 + $0xf1] sm:$0xff]
    %v2356 = vld [vmem:[%s274 + $0xf9] sm:$0xff]
    %v2357 = vld [vmem:[%s274 + $0x109] sm:$0xff]
    %v2358 = vld [vmem:[%s274 + $0x111] sm:$0xff]
    %v2359 = vld [vmem:[%s274 + $0x121] sm:$0xff]
    %v2360 = vld [vmem:[%s274 + $0x129] sm:$0xff]
    %v2361 = vld [vmem:[%s274 + $0x139] sm:$0xff]
    %v2362 = vld [vmem:[%s274 + $0x141] sm:$0xff]
    %v2363 = vld [vmem:[%s274 + $0x151] sm:$0xff]
    %v2364 = vld [vmem:[%s274 + $0x159] sm:$0xff]
    %v2365 = vld [vmem:[%s274 + $0x169] sm:$0xff]
    %v2366 = vld [vmem:[%s274 + $0x171] sm:$0xff]
    %v2367 = vld [vmem:[%s274 + $0x1b1] sm:$0xff]
    %v2368 = vld [vmem:[%s274 + $0x1b9] sm:$0xff]
    %v2369 = vld [vmem:[%s274 + $0x1c9] sm:$0xff]
    %v2370 = vld [vmem:[%s274 + $0x1d1] sm:$0xff]
    %v2371 = vld [vmem:[%s274 + $0x1e1] sm:$0xff]
    %v2372 = vld [vmem:[%s274 + $0x1e9] sm:$0xff]
    %v2373 = vld [vmem:[%s274 + $0x1f9] sm:$0xff]
    %v2374 = vld [vmem:[%s274 + $0x201] sm:$0xff]
    %v2375 = vld [vmem:[%s274 + $0x211] sm:$0xff]
    %v2376 = vld [vmem:[%s274 + $0x219] sm:$0xff]
    %v2377 = vld [vmem:[%s274 + $0x229] sm:$0xff]
    %v2378 = vld [vmem:[%s274 + $0x231] sm:$0xff]
    %v2379 = vld [vmem:[%s274 + $0x241] sm:$0xff]
    %v2380 = vld [vmem:[%s274 + $0x249] sm:$0xff]
    %v2381 = vld [vmem:[%s274 + $0x259] sm:$0xff]
    %v2382 = vld [vmem:[%s274 + $0x261] sm:$0xff]
    %v2383 = vld [vmem:[%s274 + $0x271] sm:$0xff]
    %v2384 = vld [vmem:[%s274 + $0x279] sm:$0xff]
    %v2385 = vld [vmem:[%s274 + $0x289] sm:$0xff]
    %v2386 = vld [vmem:[%s274 + $0x291] sm:$0xff]
    %v2387 = vld [vmem:[%s274 + $0x2a1] sm:$0xff]
    %v2388 = vld [vmem:[%s274 + $0x2a9] sm:$0xff]
    %v2389 = vld [vmem:[%s274 + $0x2b9] sm:$0xff]
    %v2390 = vld [vmem:[%s274 + $0x2c1] sm:$0xff]
    %v2391 = vld [vmem:[%s274 + $0x2d1] sm:$0xff]
    %v2392 = vld [vmem:[%s274 + $0x2d9] sm:$0xff]
    %v2393 = vld [vmem:[%s274 + $0x2e9] sm:$0xff]
    %v2394 = vld [vmem:[%s274 + $0x2f1] sm:$0xff]
    %v2395 = vld [vmem:[%s274 + $0x301] sm:$0xff]
    %v2396 = vld [vmem:[%s274 + $0x309] sm:$0xff]
    %v2397 = vld [vmem:[%s274 + $0x319] sm:$0xff]
    %v2398 = vld [vmem:[%s274 + $0x321] sm:$0xff]
    %s2399 = scalar_lea.vmem %s1, 32
    %v2400 = vld [vmem:[%s2399] sm:$0xff]
    %v2402 = vsel %vm275, %v2335, 0
    %v2405 = vsel %vm275, %v2336, 0
    %v2408 = vsel %vm275, %v2337, 0
    %v2411 = vsel %vm275, %v2338, 0
    %v2414 = vsel %vm275, %v2339, 0
    %v2417 = vsel %vm275, %v2340, 0
    %v2420 = vsel %vm275, %v2341, 0
    %v2423 = vsel %vm275, %v2342, 0
    %v2426 = vsel %vm275, %v2343, 0
    %v2429 = vsel %vm275, %v2344, 0
    %v2432 = vsel %vm275, %v2345, 0
    %v2435 = vsel %vm275, %v2346, 0
    %v2438 = vsel %vm275, %v2347, 0
    %v2441 = vsel %vm275, %v2348, 0
    %v2444 = vsel %vm275, %v2349, 0
    %v2447 = vsel %vm275, %v2350, 0
    %v2450 = vsel %vm275, %v2351, 0
    %v2453 = vsel %vm275, %v2352, 0
    %v2456 = vsel %vm275, %v2353, 0
    %v2459 = vsel %vm275, %v2354, 0
    %v2462 = vsel %vm275, %v2355, 0
    %v2465 = vsel %vm275, %v2356, 0
    %v2468 = vsel %vm275, %v2357, 0
    %v2471 = vsel %vm275, %v2358, 0
    %v2474 = vsel %vm275, %v2359, 0
    %v2477 = vsel %vm275, %v2360, 0
    %v2480 = vsel %vm275, %v2361, 0
    %v2483 = vsel %vm275, %v2362, 0
    %v2486 = vsel %vm275, %v2363, 0
    %v2489 = vsel %vm275, %v2364, 0
    %v2492 = vsel %vm275, %v2365, 0
    %v2495 = vsel %vm275, %v2366, 0
    %v2498 = vsel %vm275, %v2367, 0
    %v2501 = vsel %vm275, %v2368, 0
    %v2504 = vsel %vm275, %v2369, 0
    %v2507 = vsel %vm275, %v2370, 0
    %v2510 = vsel %vm275, %v2371, 0
    %v2513 = vsel %vm275, %v2372, 0
    %v2516 = vsel %vm275, %v2373, 0
    %v2519 = vsel %vm275, %v2374, 0
    %v2522 = vsel %vm275, %v2375, 0
    %v2525 = vsel %vm275, %v2376, 0
    %v2528 = vsel %vm275, %v2377, 0
    %v2531 = vsel %vm275, %v2378, 0
    %v2534 = vsel %vm275, %v2379, 0
    %v2537 = vsel %vm275, %v2380, 0
    %v2540 = vsel %vm275, %v2381, 0
    %v2543 = vsel %vm275, %v2382, 0
    %v2546 = vsel %vm275, %v2383, 0
    %v2549 = vsel %vm275, %v2384, 0
    %v2552 = vsel %vm275, %v2385, 0
    %v2555 = vsel %vm275, %v2386, 0
    %v2558 = vsel %vm275, %v2387, 0
    %v2561 = vsel %vm275, %v2388, 0
    %v2564 = vsel %vm275, %v2389, 0
    %v2567 = vsel %vm275, %v2390, 0
    %v2570 = vsel %vm275, %v2391, 0
    %v2573 = vsel %vm275, %v2392, 0
    %v2576 = vsel %vm275, %v2393, 0
    %v2579 = vsel %vm275, %v2394, 0
    %v2582 = vsel %vm275, %v2395, 0
    %v2585 = vsel %vm275, %v2396, 0
    %v2588 = vsel %vm275, %v2397, 0
    %v2591 = vsel %vm275, %v2398, 0
    %2593 = vmatpush.msra.mxu0 0.0
    %2594 = vmatpush.msra.mxu0 0.0
    %2595 = vmatpush.msra.mxu0 0.0
    %2596 = vmatpush.msra.mxu0 0.0
    %2597 = vmatpush.msra.mxu0 0.0
    %2598 = vmatpush.msra.mxu0 0.0
    %2599 = vmatpush.msra.mxu0 0.0
    %2600 = vmatpush.msra.mxu0 0.0
    %2601 = vmatpush.msra.mxu0 0.0
    %2602 = vmatpush.msra.mxu0 0.0
    %2603 = vmatpush.msra.mxu0 0.0
    %2604 = vmatpush.msra.mxu0 0.0
    %2605 = vmatpush.msra.mxu0 0.0
    %2606 = vmatpush.msra.mxu0 0.0
    %2607 = vmatpush.msra.mxu0 0.0
    %2608 = vmatpush.msra.mxu0 %v2400
    %2609 = vmatmul.f32.gmra.mxu0 %v2402
    %v2610 = vpop.f32.mrf.mxu0
    %v2611 = vadd.f32 0.0, %v2610
    %2612 = vmatmul.f32.gmra.mxu0 %v2405
    %v2613 = vpop.f32.mrf.mxu0
    %v2614 = vadd.f32 0.0, %v2613
    %2615 = vmatmul.f32.gmra.mxu0 %v2408
    %v2616 = vpop.f32.mrf.mxu0
    %v2617 = vadd.f32 0.0, %v2616
    %2618 = vmatmul.f32.gmra.mxu0 %v2411
    %v2619 = vpop.f32.mrf.mxu0
    %v2620 = vadd.f32 0.0, %v2619
    %2621 = vmatmul.f32.gmra.mxu0 %v2414
    %v2622 = vpop.f32.mrf.mxu0
    %v2623 = vadd.f32 0.0, %v2622
    %2624 = vmatmul.f32.gmra.mxu0 %v2417
    %v2625 = vpop.f32.mrf.mxu0
    %v2626 = vadd.f32 0.0, %v2625
    %2627 = vmatmul.f32.gmra.mxu0 %v2420
    %v2628 = vpop.f32.mrf.mxu0
    %v2629 = vadd.f32 0.0, %v2628
    %2630 = vmatmul.f32.gmra.mxu0 %v2423
    %v2631 = vpop.f32.mrf.mxu0
    %v2632 = vadd.f32 0.0, %v2631
    %2633 = vmatmul.f32.gmra.mxu0 %v2426
    %v2634 = vpop.f32.mrf.mxu0
    %v2635 = vadd.f32 0.0, %v2634
    %2636 = vmatmul.f32.gmra.mxu0 %v2429
    %v2637 = vpop.f32.mrf.mxu0
    %v2638 = vadd.f32 0.0, %v2637
    %2639 = vmatmul.f32.gmra.mxu0 %v2432
    %v2640 = vpop.f32.mrf.mxu0
    %v2641 = vadd.f32 0.0, %v2640
    %2642 = vmatmul.f32.gmra.mxu0 %v2435
    %v2643 = vpop.f32.mrf.mxu0
    %v2644 = vadd.f32 0.0, %v2643
    %2645 = vmatmul.f32.gmra.mxu0 %v2438
    %v2646 = vpop.f32.mrf.mxu0
    %v2647 = vadd.f32 0.0, %v2646
    %2648 = vmatmul.f32.gmra.mxu0 %v2441
    %v2649 = vpop.f32.mrf.mxu0
    %v2650 = vadd.f32 0.0, %v2649
    %2651 = vmatmul.f32.gmra.mxu0 %v2444
    %v2652 = vpop.f32.mrf.mxu0
    %v2653 = vadd.f32 0.0, %v2652
    %2654 = vmatmul.f32.gmra.mxu0 %v2447
    %v2655 = vpop.f32.mrf.mxu0
    %v2656 = vadd.f32 0.0, %v2655
    %2657 = vmatmul.f32.gmra.mxu0 %v2450
    %v2658 = vpop.f32.mrf.mxu0
    %v2659 = vadd.f32 0.0, %v2658
    %2660 = vmatmul.f32.gmra.mxu0 %v2453
    %v2661 = vpop.f32.mrf.mxu0
    %v2662 = vadd.f32 0.0, %v2661
    %2663 = vmatmul.f32.gmra.mxu0 %v2456
    %v2664 = vpop.f32.mrf.mxu0
    %v2665 = vadd.f32 0.0, %v2664
    %2666 = vmatmul.f32.gmra.mxu0 %v2459
    %v2667 = vpop.f32.mrf.mxu0
    %v2668 = vadd.f32 0.0, %v2667
    %2669 = vmatmul.f32.gmra.mxu0 %v2462
    %v2670 = vpop.f32.mrf.mxu0
    %v2671 = vadd.f32 0.0, %v2670
    %2672 = vmatmul.f32.gmra.mxu0 %v2465
    %v2673 = vpop.f32.mrf.mxu0
    %v2674 = vadd.f32 0.0, %v2673
    %2675 = vmatmul.f32.gmra.mxu0 %v2468
    %v2676 = vpop.f32.mrf.mxu0
    %v2677 = vadd.f32 0.0, %v2676
    %2678 = vmatmul.f32.gmra.mxu0 %v2471
    %v2679 = vpop.f32.mrf.mxu0
    %v2680 = vadd.f32 0.0, %v2679
    %2681 = vmatmul.f32.gmra.mxu0 %v2474
    %v2682 = vpop.f32.mrf.mxu0
    %v2683 = vadd.f32 0.0, %v2682
    %2684 = vmatmul.f32.gmra.mxu0 %v2477
    %v2685 = vpop.f32.mrf.mxu0
    %v2686 = vadd.f32 0.0, %v2685
    %2687 = vmatmul.f32.gmra.mxu0 %v2480
    %v2688 = vpop.f32.mrf.mxu0
    %v2689 = vadd.f32 0.0, %v2688
    %2690 = vmatmul.f32.gmra.mxu0 %v2483
    %v2691 = vpop.f32.mrf.mxu0
    %v2692 = vadd.f32 0.0, %v2691
    %2693 = vmatmul.f32.gmra.mxu0 %v2486
    %v2694 = vpop.f32.mrf.mxu0
    %v2695 = vadd.f32 0.0, %v2694
    %2696 = vmatmul.f32.gmra.mxu0 %v2489
    %v2697 = vpop.f32.mrf.mxu0
    %v2698 = vadd.f32 0.0, %v2697
    %2699 = vmatmul.f32.gmra.mxu0 %v2492
    %v2700 = vpop.f32.mrf.mxu0
    %v2701 = vadd.f32 0.0, %v2700
    %2702 = vmatmul.f32.gmra.mxu0 %v2495
    %v2703 = vpop.f32.mrf.mxu0
    %v2704 = vadd.f32 0.0, %v2703
    %2705 = vmatmul.f32.gmra.mxu0 %v2498
    %v2706 = vpop.f32.mrf.mxu0
    %v2707 = vadd.f32 0.0, %v2706
    %2708 = vmatmul.f32.gmra.mxu0 %v2501
    %v2709 = vpop.f32.mrf.mxu0
    %v2710 = vadd.f32 0.0, %v2709
    %2711 = vmatmul.f32.gmra.mxu0 %v2504
    %v2712 = vpop.f32.mrf.mxu0
    %v2713 = vadd.f32 0.0, %v2712
    %2714 = vmatmul.f32.gmra.mxu0 %v2507
    %v2715 = vpop.f32.mrf.mxu0
    %v2716 = vadd.f32 0.0, %v2715
    %2717 = vmatmul.f32.gmra.mxu0 %v2510
    %v2718 = vpop.f32.mrf.mxu0
    %v2719 = vadd.f32 0.0, %v2718
    %2720 = vmatmul.f32.gmra.mxu0 %v2513
    %v2721 = vpop.f32.mrf.mxu0
    %v2722 = vadd.f32 0.0, %v2721
    %2723 = vmatmul.f32.gmra.mxu0 %v2516
    %v2724 = vpop.f32.mrf.mxu0
    %v2725 = vadd.f32 0.0, %v2724
    %2726 = vmatmul.f32.gmra.mxu0 %v2519
    %v2727 = vpop.f32.mrf.mxu0
    %v2728 = vadd.f32 0.0, %v2727
    %2729 = vmatmul.f32.gmra.mxu0 %v2522
    %v2730 = vpop.f32.mrf.mxu0
    %v2731 = vadd.f32 0.0, %v2730
    %2732 = vmatmul.f32.gmra.mxu0 %v2525
    %v2733 = vpop.f32.mrf.mxu0
    %v2734 = vadd.f32 0.0, %v2733
    %2735 = vmatmul.f32.gmra.mxu0 %v2528
    %v2736 = vpop.f32.mrf.mxu0
    %v2737 = vadd.f32 0.0, %v2736
    %2738 = vmatmul.f32.gmra.mxu0 %v2531
    %v2739 = vpop.f32.mrf.mxu0
    %v2740 = vadd.f32 0.0, %v2739
    %2741 = vmatmul.f32.gmra.mxu0 %v2534
    %v2742 = vpop.f32.mrf.mxu0
    %v2743 = vadd.f32 0.0, %v2742
    %2744 = vmatmul.f32.gmra.mxu0 %v2537
    %v2745 = vpop.f32.mrf.mxu0
    %v2746 = vadd.f32 0.0, %v2745
    %2747 = vmatmul.f32.gmra.mxu0 %v2540
    %v2748 = vpop.f32.mrf.mxu0
    %v2749 = vadd.f32 0.0, %v2748
    %2750 = vmatmul.f32.gmra.mxu0 %v2543
    %v2751 = vpop.f32.mrf.mxu0
    %v2752 = vadd.f32 0.0, %v2751
    %2753 = vmatmul.f32.gmra.mxu0 %v2546
    %v2754 = vpop.f32.mrf.mxu0
    %v2755 = vadd.f32 0.0, %v2754
    %2756 = vmatmul.f32.gmra.mxu0 %v2549
    %v2757 = vpop.f32.mrf.mxu0
    %v2758 = vadd.f32 0.0, %v2757
    %2759 = vmatmul.f32.gmra.mxu0 %v2552
    %v2760 = vpop.f32.mrf.mxu0
    %v2761 = vadd.f32 0.0, %v2760
    %2762 = vmatmul.f32.gmra.mxu0 %v2555
    %v2763 = vpop.f32.mrf.mxu0
    %v2764 = vadd.f32 0.0, %v2763
    %2765 = vmatmul.f32.gmra.mxu0 %v2558
    %v2766 = vpop.f32.mrf.mxu0
    %v2767 = vadd.f32 0.0, %v2766
    %2768 = vmatmul.f32.gmra.mxu0 %v2561
    %v2769 = vpop.f32.mrf.mxu0
    %v2770 = vadd.f32 0.0, %v2769
    %2771 = vmatmul.f32.gmra.mxu0 %v2564
    %v2772 = vpop.f32.mrf.mxu0
    %v2773 = vadd.f32 0.0, %v2772
    %2774 = vmatmul.f32.gmra.mxu0 %v2567
    %v2775 = vpop.f32.mrf.mxu0
    %v2776 = vadd.f32 0.0, %v2775
    %2777 = vmatmul.f32.gmra.mxu0 %v2570
    %v2778 = vpop.f32.mrf.mxu0
    %v2779 = vadd.f32 0.0, %v2778
    %2780 = vmatmul.f32.gmra.mxu0 %v2573
    %v2781 = vpop.f32.mrf.mxu0
    %v2782 = vadd.f32 0.0, %v2781
    %2783 = vmatmul.f32.gmra.mxu0 %v2576
    %v2784 = vpop.f32.mrf.mxu0
    %v2785 = vadd.f32 0.0, %v2784
    %2786 = vmatmul.f32.gmra.mxu0 %v2579
    %v2787 = vpop.f32.mrf.mxu0
    %v2788 = vadd.f32 0.0, %v2787
    %2789 = vmatmul.f32.gmra.mxu0 %v2582
    %v2790 = vpop.f32.mrf.mxu0
    %v2791 = vadd.f32 0.0, %v2790
    %2792 = vmatmul.f32.gmra.mxu0 %v2585
    %v2793 = vpop.f32.mrf.mxu0
    %v2794 = vadd.f32 0.0, %v2793
    %2795 = vmatmul.f32.gmra.mxu0 %v2588
    %v2796 = vpop.f32.mrf.mxu0
    %v2797 = vadd.f32 0.0, %v2796
    %2798 = vmatmul.f32.gmra.mxu0 %v2591
    %v2799 = vpop.f32.mrf.mxu0
    %v2800 = vadd.f32 0.0, %v2799
    %2801 = vdwg.mxu0
    %v2802 = vadd.f32 %v2271, %v2611
    %v2803 = vadd.f32 %v2272, %v2614
    %v2804 = vadd.f32 %v2273, %v2617
    %v2805 = vadd.f32 %v2274, %v2620
    %v2806 = vadd.f32 %v2275, %v2623
    %v2807 = vadd.f32 %v2276, %v2626
    %v2808 = vadd.f32 %v2277, %v2629
    %v2809 = vadd.f32 %v2278, %v2632
    %v2810 = vadd.f32 %v2279, %v2635
    %v2811 = vadd.f32 %v2280, %v2638
    %v2812 = vadd.f32 %v2281, %v2641
    %v2813 = vadd.f32 %v2282, %v2644
    %v2814 = vadd.f32 %v2283, %v2647
    %v2815 = vadd.f32 %v2284, %v2650
    %v2816 = vadd.f32 %v2285, %v2653
    %v2817 = vadd.f32 %v2286, %v2656
    %v2818 = vadd.f32 %v2287, %v2659
    %v2819 = vadd.f32 %v2288, %v2662
    %v2820 = vadd.f32 %v2289, %v2665
    %v2821 = vadd.f32 %v2290, %v2668
    %v2822 = vadd.f32 %v2291, %v2671
    %v2823 = vadd.f32 %v2292, %v2674
    %v2824 = vadd.f32 %v2293, %v2677
    %v2825 = vadd.f32 %v2294, %v2680
    %v2826 = vadd.f32 %v2295, %v2683
    %v2827 = vadd.f32 %v2296, %v2686
    %v2828 = vadd.f32 %v2297, %v2689
    %v2829 = vadd.f32 %v2298, %v2692
    %v2830 = vadd.f32 %v2299, %v2695
    %v2831 = vadd.f32 %v2300, %v2698
    %v2832 = vadd.f32 %v2301, %v2701
    %v2833 = vadd.f32 %v2302, %v2704
    %v2834 = vadd.f32 %v2303, %v2707
    %v2835 = vadd.f32 %v2304, %v2710
    %v2836 = vadd.f32 %v2305, %v2713
    %v2837 = vadd.f32 %v2306, %v2716
    %v2838 = vadd.f32 %v2307, %v2719
    %v2839 = vadd.f32 %v2308, %v2722
    %v2840 = vadd.f32 %v2309, %v2725
    %v2841 = vadd.f32 %v2310, %v2728
    %v2842 = vadd.f32 %v2311, %v2731
    %v2843 = vadd.f32 %v2312, %v2734
    %v2844 = vadd.f32 %v2313, %v2737
    %v2845 = vadd.f32 %v2314, %v2740
    %v2846 = vadd.f32 %v2315, %v2743
    %v2847 = vadd.f32 %v2316, %v2746
    %v2848 = vadd.f32 %v2317, %v2749
    %v2849 = vadd.f32 %v2318, %v2752
    %v2850 = vadd.f32 %v2319, %v2755
    %v2851 = vadd.f32 %v2320, %v2758
    %v2852 = vadd.f32 %v2321, %v2761
    %v2853 = vadd.f32 %v2322, %v2764
    %v2854 = vadd.f32 %v2323, %v2767
    %v2855 = vadd.f32 %v2324, %v2770
    %v2856 = vadd.f32 %v2325, %v2773
    %v2857 = vadd.f32 %v2326, %v2776
    %v2858 = vadd.f32 %v2327, %v2779
    %v2859 = vadd.f32 %v2328, %v2782
    %v2860 = vadd.f32 %v2329, %v2785
    %v2861 = vadd.f32 %v2330, %v2788
    %v2862 = vadd.f32 %v2331, %v2791
    %v2863 = vadd.f32 %v2332, %v2794
    %v2864 = vadd.f32 %v2333, %v2797
    %v2865 = vadd.f32 %v2334, %v2800
    %v2866 = vld [vmem:[%s274 + $0x2] sm:$0xff]
    %v2867 = vld [vmem:[%s274 + $0xa] sm:$0xff]
    %v2868 = vld [vmem:[%s274 + $0x1a] sm:$0xff]
    %v2869 = vld [vmem:[%s274 + $0x22] sm:$0xff]
    %v2870 = vld [vmem:[%s274 + $0x32] sm:$0xff]
    %v2871 = vld [vmem:[%s274 + $0x3a] sm:$0xff]
    %v2872 = vld [vmem:[%s274 + $0x4a] sm:$0xff]
    %v2873 = vld [vmem:[%s274 + $0x52] sm:$0xff]
    %v2874 = vld [vmem:[%s274 + $0x62] sm:$0xff]
    %v2875 = vld [vmem:[%s274 + $0x6a] sm:$0xff]
    %v2876 = vld [vmem:[%s274 + $0x7a] sm:$0xff]
    %v2877 = vld [vmem:[%s274 + $0x82] sm:$0xff]
    %v2878 = vld [vmem:[%s274 + $0x92] sm:$0xff]
    %v2879 = vld [vmem:[%s274 + $0x9a] sm:$0xff]
    %v2880 = vld [vmem:[%s274 + $0xaa] sm:$0xff]
    %v2881 = vld [vmem:[%s274 + $0xb2] sm:$0xff]
    %v2882 = vld [vmem:[%s274 + $0xc2] sm:$0xff]
    %v2883 = vld [vmem:[%s274 + $0xca] sm:$0xff]
    %v2884 = vld [vmem:[%s274 + $0xda] sm:$0xff]
    %v2885 = vld [vmem:[%s274 + $0xe2] sm:$0xff]
    %v2886 = vld [vmem:[%s274 + $0xf2] sm:$0xff]
    %v2887 = vld [vmem:[%s274 + $0xfa] sm:$0xff]
    %v2888 = vld [vmem:[%s274 + $0x10a] sm:$0xff]
    %v2889 = vld [vmem:[%s274 + $0x112] sm:$0xff]
    %v2890 = vld [vmem:[%s274 + $0x122] sm:$0xff]
    %v2891 = vld [vmem:[%s274 + $0x12a] sm:$0xff]
    %v2892 = vld [vmem:[%s274 + $0x13a] sm:$0xff]
    %v2893 = vld [vmem:[%s274 + $0x142] sm:$0xff]
    %v2894 = vld [vmem:[%s274 + $0x152] sm:$0xff]
    %v2895 = vld [vmem:[%s274 + $0x15a] sm:$0xff]
    %v2896 = vld [vmem:[%s274 + $0x16a] sm:$0xff]
    %v2897 = vld [vmem:[%s274 + $0x172] sm:$0xff]
    %v2898 = vld [vmem:[%s274 + $0x1b2] sm:$0xff]
    %v2899 = vld [vmem:[%s274 + $0x1ba] sm:$0xff]
    %v2900 = vld [vmem:[%s274 + $0x1ca] sm:$0xff]
    %v2901 = vld [vmem:[%s274 + $0x1d2] sm:$0xff]
    %v2902 = vld [vmem:[%s274 + $0x1e2] sm:$0xff]
    %v2903 = vld [vmem:[%s274 + $0x1ea] sm:$0xff]
    %v2904 = vld [vmem:[%s274 + $0x1fa] sm:$0xff]
    %v2905 = vld [vmem:[%s274 + $0x202] sm:$0xff]
    %v2906 = vld [vmem:[%s274 + $0x212] sm:$0xff]
    %v2907 = vld [vmem:[%s274 + $0x21a] sm:$0xff]
    %v2908 = vld [vmem:[%s274 + $0x22a] sm:$0xff]
    %v2909 = vld [vmem:[%s274 + $0x232] sm:$0xff]
    %v2910 = vld [vmem:[%s274 + $0x242] sm:$0xff]
    %v2911 = vld [vmem:[%s274 + $0x24a] sm:$0xff]
    %v2912 = vld [vmem:[%s274 + $0x25a] sm:$0xff]
    %v2913 = vld [vmem:[%s274 + $0x262] sm:$0xff]
    %v2914 = vld [vmem:[%s274 + $0x272] sm:$0xff]
    %v2915 = vld [vmem:[%s274 + $0x27a] sm:$0xff]
    %v2916 = vld [vmem:[%s274 + $0x28a] sm:$0xff]
    %v2917 = vld [vmem:[%s274 + $0x292] sm:$0xff]
    %v2918 = vld [vmem:[%s274 + $0x2a2] sm:$0xff]
    %v2919 = vld [vmem:[%s274 + $0x2aa] sm:$0xff]
    %v2920 = vld [vmem:[%s274 + $0x2ba] sm:$0xff]
    %v2921 = vld [vmem:[%s274 + $0x2c2] sm:$0xff]
    %v2922 = vld [vmem:[%s274 + $0x2d2] sm:$0xff]
    %v2923 = vld [vmem:[%s274 + $0x2da] sm:$0xff]
    %v2924 = vld [vmem:[%s274 + $0x2ea] sm:$0xff]
    %v2925 = vld [vmem:[%s274 + $0x2f2] sm:$0xff]
    %v2926 = vld [vmem:[%s274 + $0x302] sm:$0xff]
    %v2927 = vld [vmem:[%s274 + $0x30a] sm:$0xff]
    %v2928 = vld [vmem:[%s274 + $0x31a] sm:$0xff]
    %v2929 = vld [vmem:[%s274 + $0x322] sm:$0xff]
    %s2930 = scalar_lea.vmem %s1, 40
    %v2931 = vld [vmem:[%s2930] sm:$0xff]
    %v2933 = vsel %vm275, %v2866, 0
    %v2936 = vsel %vm275, %v2867, 0
    %v2939 = vsel %vm275, %v2868, 0
    %v2942 = vsel %vm275, %v2869, 0
    %v2945 = vsel %vm275, %v2870, 0
    %v2948 = vsel %vm275, %v2871, 0
    %v2951 = vsel %vm275, %v2872, 0
    %v2954 = vsel %vm275, %v2873, 0
    %v2957 = vsel %vm275, %v2874, 0
    %v2960 = vsel %vm275, %v2875, 0
    %v2963 = vsel %vm275, %v2876, 0
    %v2966 = vsel %vm275, %v2877, 0
    %v2969 = vsel %vm275, %v2878, 0
    %v2972 = vsel %vm275, %v2879, 0
    %v2975 = vsel %vm275, %v2880, 0
    %v2978 = vsel %vm275, %v2881, 0
    %v2981 = vsel %vm275, %v2882, 0
    %v2984 = vsel %vm275, %v2883, 0
    %v2987 = vsel %vm275, %v2884, 0
    %v2990 = vsel %vm275, %v2885, 0
    %v2993 = vsel %vm275, %v2886, 0
    %v2996 = vsel %vm275, %v2887, 0
    %v2999 = vsel %vm275, %v2888, 0
    %v3002 = vsel %vm275, %v2889, 0
    %v3005 = vsel %vm275, %v2890, 0
    %v3008 = vsel %vm275, %v2891, 0
    %v3011 = vsel %vm275, %v2892, 0
    %v3014 = vsel %vm275, %v2893, 0
    %v3017 = vsel %vm275, %v2894, 0
    %v3020 = vsel %vm275, %v2895, 0
    %v3023 = vsel %vm275, %v2896, 0
    %v3026 = vsel %vm275, %v2897, 0
    %v3029 = vsel %vm275, %v2898, 0
    %v3032 = vsel %vm275, %v2899, 0
    %v3035 = vsel %vm275, %v2900, 0
    %v3038 = vsel %vm275, %v2901, 0
    %v3041 = vsel %vm275, %v2902, 0
    %v3044 = vsel %vm275, %v2903, 0
    %v3047 = vsel %vm275, %v2904, 0
    %v3050 = vsel %vm275, %v2905, 0
    %v3053 = vsel %vm275, %v2906, 0
    %v3056 = vsel %vm275, %v2907, 0
    %v3059 = vsel %vm275, %v2908, 0
    %v3062 = vsel %vm275, %v2909, 0
    %v3065 = vsel %vm275, %v2910, 0
    %v3068 = vsel %vm275, %v2911, 0
    %v3071 = vsel %vm275, %v2912, 0
    %v3074 = vsel %vm275, %v2913, 0
    %v3077 = vsel %vm275, %v2914, 0
    %v3080 = vsel %vm275, %v2915, 0
    %v3083 = vsel %vm275, %v2916, 0
    %v3086 = vsel %vm275, %v2917, 0
    %v3089 = vsel %vm275, %v2918, 0
    %v3092 = vsel %vm275, %v2919, 0
    %v3095 = vsel %vm275, %v2920, 0
    %v3098 = vsel %vm275, %v2921, 0
    %v3101 = vsel %vm275, %v2922, 0
    %v3104 = vsel %vm275, %v2923, 0
    %v3107 = vsel %vm275, %v2924, 0
    %v3110 = vsel %vm275, %v2925, 0
    %v3113 = vsel %vm275, %v2926, 0
    %v3116 = vsel %vm275, %v2927, 0
    %v3119 = vsel %vm275, %v2928, 0
    %v3122 = vsel %vm275, %v2929, 0
    %3124 = vmatpush.msra.mxu0 0.0
    %3125 = vmatpush.msra.mxu0 0.0
    %3126 = vmatpush.msra.mxu0 0.0
    %3127 = vmatpush.msra.mxu0 0.0
    %3128 = vmatpush.msra.mxu0 0.0
    %3129 = vmatpush.msra.mxu0 0.0
    %3130 = vmatpush.msra.mxu0 0.0
    %3131 = vmatpush.msra.mxu0 0.0
    %3132 = vmatpush.msra.mxu0 0.0
    %3133 = vmatpush.msra.mxu0 0.0
    %3134 = vmatpush.msra.mxu0 0.0
    %3135 = vmatpush.msra.mxu0 0.0
    %3136 = vmatpush.msra.mxu0 0.0
    %3137 = vmatpush.msra.mxu0 0.0
    %3138 = vmatpush.msra.mxu0 0.0
    %3139 = vmatpush.msra.mxu0 %v2931
    %3140 = vmatmul.f32.gmra.mxu0 %v2933
    %v3141 = vpop.f32.mrf.mxu0
    %v3142 = vadd.f32 0.0, %v3141
    %3143 = vmatmul.f32.gmra.mxu0 %v2936
    %v3144 = vpop.f32.mrf.mxu0
    %v3145 = vadd.f32 0.0, %v3144
    %3146 = vmatmul.f32.gmra.mxu0 %v2939
    %v3147 = vpop.f32.mrf.mxu0
    %v3148 = vadd.f32 0.0, %v3147
    %3149 = vmatmul.f32.gmra.mxu0 %v2942
    %v3150 = vpop.f32.mrf.mxu0
    %v3151 = vadd.f32 0.0, %v3150
    %3152 = vmatmul.f32.gmra.mxu0 %v2945
    %v3153 = vpop.f32.mrf.mxu0
    %v3154 = vadd.f32 0.0, %v3153
    %3155 = vmatmul.f32.gmra.mxu0 %v2948
    %v3156 = vpop.f32.mrf.mxu0
    %v3157 = vadd.f32 0.0, %v3156
    %3158 = vmatmul.f32.gmra.mxu0 %v2951
    %v3159 = vpop.f32.mrf.mxu0
    %v3160 = vadd.f32 0.0, %v3159
    %3161 = vmatmul.f32.gmra.mxu0 %v2954
    %v3162 = vpop.f32.mrf.mxu0
    %v3163 = vadd.f32 0.0, %v3162
    %3164 = vmatmul.f32.gmra.mxu0 %v2957
    %v3165 = vpop.f32.mrf.mxu0
    %v3166 = vadd.f32 0.0, %v3165
    %3167 = vmatmul.f32.gmra.mxu0 %v2960
    %v3168 = vpop.f32.mrf.mxu0
    %v3169 = vadd.f32 0.0, %v3168
    %3170 = vmatmul.f32.gmra.mxu0 %v2963
    %v3171 = vpop.f32.mrf.mxu0
    %v3172 = vadd.f32 0.0, %v3171
    %3173 = vmatmul.f32.gmra.mxu0 %v2966
    %v3174 = vpop.f32.mrf.mxu0
    %v3175 = vadd.f32 0.0, %v3174
    %3176 = vmatmul.f32.gmra.mxu0 %v2969
    %v3177 = vpop.f32.mrf.mxu0
    %v3178 = vadd.f32 0.0, %v3177
    %3179 = vmatmul.f32.gmra.mxu0 %v2972
    %v3180 = vpop.f32.mrf.mxu0
    %v3181 = vadd.f32 0.0, %v3180
    %3182 = vmatmul.f32.gmra.mxu0 %v2975
    %v3183 = vpop.f32.mrf.mxu0
    %v3184 = vadd.f32 0.0, %v3183
    %3185 = vmatmul.f32.gmra.mxu0 %v2978
    %v3186 = vpop.f32.mrf.mxu0
    %v3187 = vadd.f32 0.0, %v3186
    %3188 = vmatmul.f32.gmra.mxu0 %v2981
    %v3189 = vpop.f32.mrf.mxu0
    %v3190 = vadd.f32 0.0, %v3189
    %3191 = vmatmul.f32.gmra.mxu0 %v2984
    %v3192 = vpop.f32.mrf.mxu0
    %v3193 = vadd.f32 0.0, %v3192
    %3194 = vmatmul.f32.gmra.mxu0 %v2987
    %v3195 = vpop.f32.mrf.mxu0
    %v3196 = vadd.f32 0.0, %v3195
    %3197 = vmatmul.f32.gmra.mxu0 %v2990
    %v3198 = vpop.f32.mrf.mxu0
    %v3199 = vadd.f32 0.0, %v3198
    %3200 = vmatmul.f32.gmra.mxu0 %v2993
    %v3201 = vpop.f32.mrf.mxu0
    %v3202 = vadd.f32 0.0, %v3201
    %3203 = vmatmul.f32.gmra.mxu0 %v2996
    %v3204 = vpop.f32.mrf.mxu0
    %v3205 = vadd.f32 0.0, %v3204
    %3206 = vmatmul.f32.gmra.mxu0 %v2999
    %v3207 = vpop.f32.mrf.mxu0
    %v3208 = vadd.f32 0.0, %v3207
    %3209 = vmatmul.f32.gmra.mxu0 %v3002
    %v3210 = vpop.f32.mrf.mxu0
    %v3211 = vadd.f32 0.0, %v3210
    %3212 = vmatmul.f32.gmra.mxu0 %v3005
    %v3213 = vpop.f32.mrf.mxu0
    %v3214 = vadd.f32 0.0, %v3213
    %3215 = vmatmul.f32.gmra.mxu0 %v3008
    %v3216 = vpop.f32.mrf.mxu0
    %v3217 = vadd.f32 0.0, %v3216
    %3218 = vmatmul.f32.gmra.mxu0 %v3011
    %v3219 = vpop.f32.mrf.mxu0
    %v3220 = vadd.f32 0.0, %v3219
    %3221 = vmatmul.f32.gmra.mxu0 %v3014
    %v3222 = vpop.f32.mrf.mxu0
    %v3223 = vadd.f32 0.0, %v3222
    %3224 = vmatmul.f32.gmra.mxu0 %v3017
    %v3225 = vpop.f32.mrf.mxu0
    %v3226 = vadd.f32 0.0, %v3225
    %3227 = vmatmul.f32.gmra.mxu0 %v3020
    %v3228 = vpop.f32.mrf.mxu0
    %v3229 = vadd.f32 0.0, %v3228
    %3230 = vmatmul.f32.gmra.mxu0 %v3023
    %v3231 = vpop.f32.mrf.mxu0
    %v3232 = vadd.f32 0.0, %v3231
    %3233 = vmatmul.f32.gmra.mxu0 %v3026
    %v3234 = vpop.f32.mrf.mxu0
    %v3235 = vadd.f32 0.0, %v3234
    %3236 = vmatmul.f32.gmra.mxu0 %v3029
    %v3237 = vpop.f32.mrf.mxu0
    %v3238 = vadd.f32 0.0, %v3237
    %3239 = vmatmul.f32.gmra.mxu0 %v3032
    %v3240 = vpop.f32.mrf.mxu0
    %v3241 = vadd.f32 0.0, %v3240
    %3242 = vmatmul.f32.gmra.mxu0 %v3035
    %v3243 = vpop.f32.mrf.mxu0
    %v3244 = vadd.f32 0.0, %v3243
    %3245 = vmatmul.f32.gmra.mxu0 %v3038
    %v3246 = vpop.f32.mrf.mxu0
    %v3247 = vadd.f32 0.0, %v3246
    %3248 = vmatmul.f32.gmra.mxu0 %v3041
    %v3249 = vpop.f32.mrf.mxu0
    %v3250 = vadd.f32 0.0, %v3249
    %3251 = vmatmul.f32.gmra.mxu0 %v3044
    %v3252 = vpop.f32.mrf.mxu0
    %v3253 = vadd.f32 0.0, %v3252
    %3254 = vmatmul.f32.gmra.mxu0 %v3047
    %v3255 = vpop.f32.mrf.mxu0
    %v3256 = vadd.f32 0.0, %v3255
    %3257 = vmatmul.f32.gmra.mxu0 %v3050
    %v3258 = vpop.f32.mrf.mxu0
    %v3259 = vadd.f32 0.0, %v3258
    %3260 = vmatmul.f32.gmra.mxu0 %v3053
    %v3261 = vpop.f32.mrf.mxu0
    %v3262 = vadd.f32 0.0, %v3261
    %3263 = vmatmul.f32.gmra.mxu0 %v3056
    %v3264 = vpop.f32.mrf.mxu0
    %v3265 = vadd.f32 0.0, %v3264
    %3266 = vmatmul.f32.gmra.mxu0 %v3059
    %v3267 = vpop.f32.mrf.mxu0
    %v3268 = vadd.f32 0.0, %v3267
    %3269 = vmatmul.f32.gmra.mxu0 %v3062
    %v3270 = vpop.f32.mrf.mxu0
    %v3271 = vadd.f32 0.0, %v3270
    %3272 = vmatmul.f32.gmra.mxu0 %v3065
    %v3273 = vpop.f32.mrf.mxu0
    %v3274 = vadd.f32 0.0, %v3273
    %3275 = vmatmul.f32.gmra.mxu0 %v3068
    %v3276 = vpop.f32.mrf.mxu0
    %v3277 = vadd.f32 0.0, %v3276
    %3278 = vmatmul.f32.gmra.mxu0 %v3071
    %v3279 = vpop.f32.mrf.mxu0
    %v3280 = vadd.f32 0.0, %v3279
    %3281 = vmatmul.f32.gmra.mxu0 %v3074
    %v3282 = vpop.f32.mrf.mxu0
    %v3283 = vadd.f32 0.0, %v3282
    %3284 = vmatmul.f32.gmra.mxu0 %v3077
    %v3285 = vpop.f32.mrf.mxu0
    %v3286 = vadd.f32 0.0, %v3285
    %3287 = vmatmul.f32.gmra.mxu0 %v3080
    %v3288 = vpop.f32.mrf.mxu0
    %v3289 = vadd.f32 0.0, %v3288
    %3290 = vmatmul.f32.gmra.mxu0 %v3083
    %v3291 = vpop.f32.mrf.mxu0
    %v3292 = vadd.f32 0.0, %v3291
    %3293 = vmatmul.f32.gmra.mxu0 %v3086
    %v3294 = vpop.f32.mrf.mxu0
    %v3295 = vadd.f32 0.0, %v3294
    %3296 = vmatmul.f32.gmra.mxu0 %v3089
    %v3297 = vpop.f32.mrf.mxu0
    %v3298 = vadd.f32 0.0, %v3297
    %3299 = vmatmul.f32.gmra.mxu0 %v3092
    %v3300 = vpop.f32.mrf.mxu0
    %v3301 = vadd.f32 0.0, %v3300
    %3302 = vmatmul.f32.gmra.mxu0 %v3095
    %v3303 = vpop.f32.mrf.mxu0
    %v3304 = vadd.f32 0.0, %v3303
    %3305 = vmatmul.f32.gmra.mxu0 %v3098
    %v3306 = vpop.f32.mrf.mxu0
    %v3307 = vadd.f32 0.0, %v3306
    %3308 = vmatmul.f32.gmra.mxu0 %v3101
    %v3309 = vpop.f32.mrf.mxu0
    %v3310 = vadd.f32 0.0, %v3309
    %3311 = vmatmul.f32.gmra.mxu0 %v3104
    %v3312 = vpop.f32.mrf.mxu0
    %v3313 = vadd.f32 0.0, %v3312
    %3314 = vmatmul.f32.gmra.mxu0 %v3107
    %v3315 = vpop.f32.mrf.mxu0
    %v3316 = vadd.f32 0.0, %v3315
    %3317 = vmatmul.f32.gmra.mxu0 %v3110
    %v3318 = vpop.f32.mrf.mxu0
    %v3319 = vadd.f32 0.0, %v3318
    %3320 = vmatmul.f32.gmra.mxu0 %v3113
    %v3321 = vpop.f32.mrf.mxu0
    %v3322 = vadd.f32 0.0, %v3321
    %3323 = vmatmul.f32.gmra.mxu0 %v3116
    %v3324 = vpop.f32.mrf.mxu0
    %v3325 = vadd.f32 0.0, %v3324
    %3326 = vmatmul.f32.gmra.mxu0 %v3119
    %v3327 = vpop.f32.mrf.mxu0
    %v3328 = vadd.f32 0.0, %v3327
    %3329 = vmatmul.f32.gmra.mxu0 %v3122
    %v3330 = vpop.f32.mrf.mxu0
    %v3331 = vadd.f32 0.0, %v3330
    %3332 = vdwg.mxu0
    %v3333 = vadd.f32 %v2802, %v3142
    %v3334 = vadd.f32 %v2803, %v3145
    %v3335 = vadd.f32 %v2804, %v3148
    %v3336 = vadd.f32 %v2805, %v3151
    %v3337 = vadd.f32 %v2806, %v3154
    %v3338 = vadd.f32 %v2807, %v3157
    %v3339 = vadd.f32 %v2808, %v3160
    %v3340 = vadd.f32 %v2809, %v3163
    %v3341 = vadd.f32 %v2810, %v3166
    %v3342 = vadd.f32 %v2811, %v3169
    %v3343 = vadd.f32 %v2812, %v3172
    %v3344 = vadd.f32 %v2813, %v3175
    %v3345 = vadd.f32 %v2814, %v3178
    %v3346 = vadd.f32 %v2815, %v3181
    %v3347 = vadd.f32 %v2816, %v3184
    %v3348 = vadd.f32 %v2817, %v3187
    %v3349 = vadd.f32 %v2818, %v3190
    %v3350 = vadd.f32 %v2819, %v3193
    %v3351 = vadd.f32 %v2820, %v3196
    %v3352 = vadd.f32 %v2821, %v3199
    %v3353 = vadd.f32 %v2822, %v3202
    %v3354 = vadd.f32 %v2823, %v3205
    %v3355 = vadd.f32 %v2824, %v3208
    %v3356 = vadd.f32 %v2825, %v3211
    %v3357 = vadd.f32 %v2826, %v3214
    %v3358 = vadd.f32 %v2827, %v3217
    %v3359 = vadd.f32 %v2828, %v3220
    %v3360 = vadd.f32 %v2829, %v3223
    %v3361 = vadd.f32 %v2830, %v3226
    %v3362 = vadd.f32 %v2831, %v3229
    %v3363 = vadd.f32 %v2832, %v3232
    %v3364 = vadd.f32 %v2833, %v3235
    %v3365 = vadd.f32 %v2834, %v3238
    %v3366 = vadd.f32 %v2835, %v3241
    %v3367 = vadd.f32 %v2836, %v3244
    %v3368 = vadd.f32 %v2837, %v3247
    %v3369 = vadd.f32 %v2838, %v3250
    %v3370 = vadd.f32 %v2839, %v3253
    %v3371 = vadd.f32 %v2840, %v3256
    %v3372 = vadd.f32 %v2841, %v3259
    %v3373 = vadd.f32 %v2842, %v3262
    %v3374 = vadd.f32 %v2843, %v3265
    %v3375 = vadd.f32 %v2844, %v3268
    %v3376 = vadd.f32 %v2845, %v3271
    %v3377 = vadd.f32 %v2846, %v3274
    %v3378 = vadd.f32 %v2847, %v3277
    %v3379 = vadd.f32 %v2848, %v3280
    %v3380 = vadd.f32 %v2849, %v3283
    %v3381 = vadd.f32 %v2850, %v3286
    %v3382 = vadd.f32 %v2851, %v3289
    %v3383 = vadd.f32 %v2852, %v3292
    %v3384 = vadd.f32 %v2853, %v3295
    %v3385 = vadd.f32 %v2854, %v3298
    %v3386 = vadd.f32 %v2855, %v3301
    %v3387 = vadd.f32 %v2856, %v3304
    %v3388 = vadd.f32 %v2857, %v3307
    %v3389 = vadd.f32 %v2858, %v3310
    %v3390 = vadd.f32 %v2859, %v3313
    %v3391 = vadd.f32 %v2860, %v3316
    %v3392 = vadd.f32 %v2861, %v3319
    %v3393 = vadd.f32 %v2862, %v3322
    %v3394 = vadd.f32 %v2863, %v3325
    %v3395 = vadd.f32 %v2864, %v3328
    %v3396 = vadd.f32 %v2865, %v3331
    %s3397 = scalar_lea.vmem [#allocation2], 48
    %v3398 = vld [vmem:[%s3397] sm:$0xff]
    %v3399 = vld [vmem:[%s3397 + $0x8] sm:$0xff]
    %v3400 = vld [vmem:[%s3397 + $0x18] sm:$0xff]
    %v3401 = vld [vmem:[%s3397 + $0x20] sm:$0xff]
    %v3402 = vld [vmem:[%s3397 + $0x30] sm:$0xff]
    %v3403 = vld [vmem:[%s3397 + $0x38] sm:$0xff]
    %v3404 = vld [vmem:[%s3397 + $0x48] sm:$0xff]
    %v3405 = vld [vmem:[%s3397 + $0x50] sm:$0xff]
    %v3406 = vld [vmem:[%s3397 + $0x60] sm:$0xff]
    %v3407 = vld [vmem:[%s3397 + $0x68] sm:$0xff]
    %v3408 = vld [vmem:[%s3397 + $0x78] sm:$0xff]
    %v3409 = vld [vmem:[%s3397 + $0x80] sm:$0xff]
    %v3410 = vld [vmem:[%s3397 + $0x90] sm:$0xff]
    %v3411 = vld [vmem:[%s3397 + $0x98] sm:$0xff]
    %v3412 = vld [vmem:[%s3397 + $0xa8] sm:$0xff]
    %v3413 = vld [vmem:[%s3397 + $0xb0] sm:$0xff]
    %v3414 = vld [vmem:[%s3397 + $0xc0] sm:$0xff]
    %v3415 = vld [vmem:[%s3397 + $0xc8] sm:$0xff]
    %v3416 = vld [vmem:[%s3397 + $0xd8] sm:$0xff]
    %v3417 = vld [vmem:[%s3397 + $0xe0] sm:$0xff]
    %v3418 = vld [vmem:[%s3397 + $0xf0] sm:$0xff]
    %v3419 = vld [vmem:[%s3397 + $0xf8] sm:$0xff]
    %v3420 = vld [vmem:[%s3397 + $0x108] sm:$0xff]
    %v3421 = vld [vmem:[%s3397 + $0x110] sm:$0xff]
    %v3422 = vld [vmem:[%s3397 + $0x120] sm:$0xff]
    %v3423 = vld [vmem:[%s3397 + $0x128] sm:$0xff]
    %v3424 = vld [vmem:[%s3397 + $0x138] sm:$0xff]
    %v3425 = vld [vmem:[%s3397 + $0x140] sm:$0xff]
    %v3426 = vld [vmem:[%s3397 + $0x150] sm:$0xff]
    %v3427 = vld [vmem:[%s3397 + $0x158] sm:$0xff]
    %v3428 = vld [vmem:[%s3397 + $0x168] sm:$0xff]
    %v3429 = vld [vmem:[%s3397 + $0x170] sm:$0xff]
    %v3430 = vld [vmem:[%s3397 + $0x1b0] sm:$0xff]
    %v3431 = vld [vmem:[%s3397 + $0x1b8] sm:$0xff]
    %v3432 = vld [vmem:[%s3397 + $0x1c8] sm:$0xff]
    %v3433 = vld [vmem:[%s3397 + $0x1d0] sm:$0xff]
    %v3434 = vld [vmem:[%s3397 + $0x1e0] sm:$0xff]
    %v3435 = vld [vmem:[%s3397 + $0x1e8] sm:$0xff]
    %v3436 = vld [vmem:[%s3397 + $0x1f8] sm:$0xff]
    %v3437 = vld [vmem:[%s3397 + $0x200] sm:$0xff]
    %v3438 = vld [vmem:[%s3397 + $0x210] sm:$0xff]
    %v3439 = vld [vmem:[%s3397 + $0x218] sm:$0xff]
    %v3440 = vld [vmem:[%s3397 + $0x228] sm:$0xff]
    %v3441 = vld [vmem:[%s3397 + $0x230] sm:$0xff]
    %v3442 = vld [vmem:[%s3397 + $0x240] sm:$0xff]
    %v3443 = vld [vmem:[%s3397 + $0x248] sm:$0xff]
    %v3444 = vld [vmem:[%s3397 + $0x258] sm:$0xff]
    %v3445 = vld [vmem:[%s3397 + $0x260] sm:$0xff]
    %v3446 = vld [vmem:[%s3397 + $0x270] sm:$0xff]
    %v3447 = vld [vmem:[%s3397 + $0x278] sm:$0xff]
    %v3448 = vld [vmem:[%s3397 + $0x288] sm:$0xff]
    %v3449 = vld [vmem:[%s3397 + $0x290] sm:$0xff]
    %v3450 = vld [vmem:[%s3397 + $0x2a0] sm:$0xff]
    %v3451 = vld [vmem:[%s3397 + $0x2a8] sm:$0xff]
    %v3452 = vld [vmem:[%s3397 + $0x2b8] sm:$0xff]
    %v3453 = vld [vmem:[%s3397 + $0x2c0] sm:$0xff]
    %v3454 = vld [vmem:[%s3397 + $0x2d0] sm:$0xff]
    %v3455 = vld [vmem:[%s3397 + $0x2d8] sm:$0xff]
    %v3456 = vld [vmem:[%s3397 + $0x2e8] sm:$0xff]
    %v3457 = vld [vmem:[%s3397 + $0x2f0] sm:$0xff]
    %v3458 = vld [vmem:[%s3397 + $0x300] sm:$0xff]
    %v3459 = vld [vmem:[%s3397 + $0x308] sm:$0xff]
    %v3460 = vld [vmem:[%s3397 + $0x318] sm:$0xff]
    %v3461 = vld [vmem:[%s3397 + $0x320] sm:$0xff]
    %s3462 = scalar_lea.vmem %s1, 48
    %v3463 = vld [vmem:[%s3462] sm:$0xff]
    %v3465 = vsel %vm275, %v3398, 0
    %v3468 = vsel %vm275, %v3399, 0
    %v3471 = vsel %vm275, %v3400, 0
    %v3474 = vsel %vm275, %v3401, 0
    %v3477 = vsel %vm275, %v3402, 0
    %v3480 = vsel %vm275, %v3403, 0
    %v3483 = vsel %vm275, %v3404, 0
    %v3486 = vsel %vm275, %v3405, 0
    %v3489 = vsel %vm275, %v3406, 0
    %v3492 = vsel %vm275, %v3407, 0
    %v3495 = vsel %vm275, %v3408, 0
    %v3498 = vsel %vm275, %v3409, 0
    %v3501 = vsel %vm275, %v3410, 0
    %v3504 = vsel %vm275, %v3411, 0
    %v3507 = vsel %vm275, %v3412, 0
    %v3510 = vsel %vm275, %v3413, 0
    %v3513 = vsel %vm275, %v3414, 0
    %v3516 = vsel %vm275, %v3415, 0
    %v3519 = vsel %vm275, %v3416, 0
    %v3522 = vsel %vm275, %v3417, 0
    %v3525 = vsel %vm275, %v3418, 0
    %v3528 = vsel %vm275, %v3419, 0
    %v3531 = vsel %vm275, %v3420, 0
    %v3534 = vsel %vm275, %v3421, 0
    %v3537 = vsel %vm275, %v3422, 0
    %v3540 = vsel %vm275, %v3423, 0
    %v3543 = vsel %vm275, %v3424, 0
    %v3546 = vsel %vm275, %v3425, 0
    %v3549 = vsel %vm275, %v3426, 0
    %v3552 = vsel %vm275, %v3427, 0
    %v3555 = vsel %vm275, %v3428, 0
    %v3558 = vsel %vm275, %v3429, 0
    %v3561 = vsel %vm275, %v3430, 0
    %v3564 = vsel %vm275, %v3431, 0
    %v3567 = vsel %vm275, %v3432, 0
    %v3570 = vsel %vm275, %v3433, 0
    %v3573 = vsel %vm275, %v3434, 0
    %v3576 = vsel %vm275, %v3435, 0
    %v3579 = vsel %vm275, %v3436, 0
    %v3582 = vsel %vm275, %v3437, 0
    %v3585 = vsel %vm275, %v3438, 0
    %v3588 = vsel %vm275, %v3439, 0
    %v3591 = vsel %vm275, %v3440, 0
    %v3594 = vsel %vm275, %v3441, 0
    %v3597 = vsel %vm275, %v3442, 0
    %v3600 = vsel %vm275, %v3443, 0
    %v3603 = vsel %vm275, %v3444, 0
    %v3606 = vsel %vm275, %v3445, 0
    %v3609 = vsel %vm275, %v3446, 0
    %v3612 = vsel %vm275, %v3447, 0
    %v3615 = vsel %vm275, %v3448, 0
    %v3618 = vsel %vm275, %v3449, 0
    %v3621 = vsel %vm275, %v3450, 0
    %v3624 = vsel %vm275, %v3451, 0
    %v3627 = vsel %vm275, %v3452, 0
    %v3630 = vsel %vm275, %v3453, 0
    %v3633 = vsel %vm275, %v3454, 0
    %v3636 = vsel %vm275, %v3455, 0
    %v3639 = vsel %vm275, %v3456, 0
    %v3642 = vsel %vm275, %v3457, 0
    %v3645 = vsel %vm275, %v3458, 0
    %v3648 = vsel %vm275, %v3459, 0
    %v3651 = vsel %vm275, %v3460, 0
    %v3654 = vsel %vm275, %v3461, 0
    %3656 = vmatpush.msra.mxu0 0.0
    %3657 = vmatpush.msra.mxu0 0.0
    %3658 = vmatpush.msra.mxu0 0.0
    %3659 = vmatpush.msra.mxu0 0.0
    %3660 = vmatpush.msra.mxu0 0.0
    %3661 = vmatpush.msra.mxu0 0.0
    %3662 = vmatpush.msra.mxu0 0.0
    %3663 = vmatpush.msra.mxu0 0.0
    %3664 = vmatpush.msra.mxu0 0.0
    %3665 = vmatpush.msra.mxu0 0.0
    %3666 = vmatpush.msra.mxu0 0.0
    %3667 = vmatpush.msra.mxu0 0.0
    %3668 = vmatpush.msra.mxu0 0.0
    %3669 = vmatpush.msra.mxu0 0.0
    %3670 = vmatpush.msra.mxu0 0.0
    %3671 = vmatpush.msra.mxu0 %v3463
    %3672 = vmatmul.f32.gmra.mxu0 %v3465
    %v3673 = vpop.f32.mrf.mxu0
    %v3674 = vadd.f32 0.0, %v3673
    %3675 = vmatmul.f32.gmra.mxu0 %v3468
    %v3676 = vpop.f32.mrf.mxu0
    %v3677 = vadd.f32 0.0, %v3676
    %3678 = vmatmul.f32.gmra.mxu0 %v3471
    %v3679 = vpop.f32.mrf.mxu0
    %v3680 = vadd.f32 0.0, %v3679
    %3681 = vmatmul.f32.gmra.mxu0 %v3474
    %v3682 = vpop.f32.mrf.mxu0
    %v3683 = vadd.f32 0.0, %v3682
    %3684 = vmatmul.f32.gmra.mxu0 %v3477
    %v3685 = vpop.f32.mrf.mxu0
    %v3686 = vadd.f32 0.0, %v3685
    %3687 = vmatmul.f32.gmra.mxu0 %v3480
    %v3688 = vpop.f32.mrf.mxu0
    %v3689 = vadd.f32 0.0, %v3688
    %3690 = vmatmul.f32.gmra.mxu0 %v3483
    %v3691 = vpop.f32.mrf.mxu0
    %v3692 = vadd.f32 0.0, %v3691
    %3693 = vmatmul.f32.gmra.mxu0 %v3486
    %v3694 = vpop.f32.mrf.mxu0
    %v3695 = vadd.f32 0.0, %v3694
    %3696 = vmatmul.f32.gmra.mxu0 %v3489
    %v3697 = vpop.f32.mrf.mxu0
    %v3698 = vadd.f32 0.0, %v3697
    %3699 = vmatmul.f32.gmra.mxu0 %v3492
    %v3700 = vpop.f32.mrf.mxu0
    %v3701 = vadd.f32 0.0, %v3700
    %3702 = vmatmul.f32.gmra.mxu0 %v3495
    %v3703 = vpop.f32.mrf.mxu0
    %v3704 = vadd.f32 0.0, %v3703
    %3705 = vmatmul.f32.gmra.mxu0 %v3498
    %v3706 = vpop.f32.mrf.mxu0
    %v3707 = vadd.f32 0.0, %v3706
    %3708 = vmatmul.f32.gmra.mxu0 %v3501
    %v3709 = vpop.f32.mrf.mxu0
    %v3710 = vadd.f32 0.0, %v3709
    %3711 = vmatmul.f32.gmra.mxu0 %v3504
    %v3712 = vpop.f32.mrf.mxu0
    %v3713 = vadd.f32 0.0, %v3712
    %3714 = vmatmul.f32.gmra.mxu0 %v3507
    %v3715 = vpop.f32.mrf.mxu0
    %v3716 = vadd.f32 0.0, %v3715
    %3717 = vmatmul.f32.gmra.mxu0 %v3510
    %v3718 = vpop.f32.mrf.mxu0
    %v3719 = vadd.f32 0.0, %v3718
    %3720 = vmatmul.f32.gmra.mxu0 %v3513
    %v3721 = vpop.f32.mrf.mxu0
    %v3722 = vadd.f32 0.0, %v3721
    %3723 = vmatmul.f32.gmra.mxu0 %v3516
    %v3724 = vpop.f32.mrf.mxu0
    %v3725 = vadd.f32 0.0, %v3724
    %3726 = vmatmul.f32.gmra.mxu0 %v3519
    %v3727 = vpop.f32.mrf.mxu0
    %v3728 = vadd.f32 0.0, %v3727
    %3729 = vmatmul.f32.gmra.mxu0 %v3522
    %v3730 = vpop.f32.mrf.mxu0
    %v3731 = vadd.f32 0.0, %v3730
    %3732 = vmatmul.f32.gmra.mxu0 %v3525
    %v3733 = vpop.f32.mrf.mxu0
    %v3734 = vadd.f32 0.0, %v3733
    %3735 = vmatmul.f32.gmra.mxu0 %v3528
    %v3736 = vpop.f32.mrf.mxu0
    %v3737 = vadd.f32 0.0, %v3736
    %3738 = vmatmul.f32.gmra.mxu0 %v3531
    %v3739 = vpop.f32.mrf.mxu0
    %v3740 = vadd.f32 0.0, %v3739
    %3741 = vmatmul.f32.gmra.mxu0 %v3534
    %v3742 = vpop.f32.mrf.mxu0
    %v3743 = vadd.f32 0.0, %v3742
    %3744 = vmatmul.f32.gmra.mxu0 %v3537
    %v3745 = vpop.f32.mrf.mxu0
    %v3746 = vadd.f32 0.0, %v3745
    %3747 = vmatmul.f32.gmra.mxu0 %v3540
    %v3748 = vpop.f32.mrf.mxu0
    %v3749 = vadd.f32 0.0, %v3748
    %3750 = vmatmul.f32.gmra.mxu0 %v3543
    %v3751 = vpop.f32.mrf.mxu0
    %v3752 = vadd.f32 0.0, %v3751
    %3753 = vmatmul.f32.gmra.mxu0 %v3546
    %v3754 = vpop.f32.mrf.mxu0
    %v3755 = vadd.f32 0.0, %v3754
    %3756 = vmatmul.f32.gmra.mxu0 %v3549
    %v3757 = vpop.f32.mrf.mxu0
    %v3758 = vadd.f32 0.0, %v3757
    %3759 = vmatmul.f32.gmra.mxu0 %v3552
    %v3760 = vpop.f32.mrf.mxu0
    %v3761 = vadd.f32 0.0, %v3760
    %3762 = vmatmul.f32.gmra.mxu0 %v3555
    %v3763 = vpop.f32.mrf.mxu0
    %v3764 = vadd.f32 0.0, %v3763
    %3765 = vmatmul.f32.gmra.mxu0 %v3558
    %v3766 = vpop.f32.mrf.mxu0
    %v3767 = vadd.f32 0.0, %v3766
    %3768 = vmatmul.f32.gmra.mxu0 %v3561
    %v3769 = vpop.f32.mrf.mxu0
    %v3770 = vadd.f32 0.0, %v3769
    %3771 = vmatmul.f32.gmra.mxu0 %v3564
    %v3772 = vpop.f32.mrf.mxu0
    %v3773 = vadd.f32 0.0, %v3772
    %3774 = vmatmul.f32.gmra.mxu0 %v3567
    %v3775 = vpop.f32.mrf.mxu0
    %v3776 = vadd.f32 0.0, %v3775
    %3777 = vmatmul.f32.gmra.mxu0 %v3570
    %v3778 = vpop.f32.mrf.mxu0
    %v3779 = vadd.f32 0.0, %v3778
    %3780 = vmatmul.f32.gmra.mxu0 %v3573
    %v3781 = vpop.f32.mrf.mxu0
    %v3782 = vadd.f32 0.0, %v3781
    %3783 = vmatmul.f32.gmra.mxu0 %v3576
    %v3784 = vpop.f32.mrf.mxu0
    %v3785 = vadd.f32 0.0, %v3784
    %3786 = vmatmul.f32.gmra.mxu0 %v3579
    %v3787 = vpop.f32.mrf.mxu0
    %v3788 = vadd.f32 0.0, %v3787
    %3789 = vmatmul.f32.gmra.mxu0 %v3582
    %v3790 = vpop.f32.mrf.mxu0
    %v3791 = vadd.f32 0.0, %v3790
    %3792 = vmatmul.f32.gmra.mxu0 %v3585
    %v3793 = vpop.f32.mrf.mxu0
    %v3794 = vadd.f32 0.0, %v3793
    %3795 = vmatmul.f32.gmra.mxu0 %v3588
    %v3796 = vpop.f32.mrf.mxu0
    %v3797 = vadd.f32 0.0, %v3796
    %3798 = vmatmul.f32.gmra.mxu0 %v3591
    %v3799 = vpop.f32.mrf.mxu0
    %v3800 = vadd.f32 0.0, %v3799
    %3801 = vmatmul.f32.gmra.mxu0 %v3594
    %v3802 = vpop.f32.mrf.mxu0
    %v3803 = vadd.f32 0.0, %v3802
    %3804 = vmatmul.f32.gmra.mxu0 %v3597
    %v3805 = vpop.f32.mrf.mxu0
    %v3806 = vadd.f32 0.0, %v3805
    %3807 = vmatmul.f32.gmra.mxu0 %v3600
    %v3808 = vpop.f32.mrf.mxu0
    %v3809 = vadd.f32 0.0, %v3808
    %3810 = vmatmul.f32.gmra.mxu0 %v3603
    %v3811 = vpop.f32.mrf.mxu0
    %v3812 = vadd.f32 0.0, %v3811
    %3813 = vmatmul.f32.gmra.mxu0 %v3606
    %v3814 = vpop.f32.mrf.mxu0
    %v3815 = vadd.f32 0.0, %v3814
    %3816 = vmatmul.f32.gmra.mxu0 %v3609
    %v3817 = vpop.f32.mrf.mxu0
    %v3818 = vadd.f32 0.0, %v3817
    %3819 = vmatmul.f32.gmra.mxu0 %v3612
    %v3820 = vpop.f32.mrf.mxu0
    %v3821 = vadd.f32 0.0, %v3820
    %3822 = vmatmul.f32.gmra.mxu0 %v3615
    %v3823 = vpop.f32.mrf.mxu0
    %v3824 = vadd.f32 0.0, %v3823
    %3825 = vmatmul.f32.gmra.mxu0 %v3618
    %v3826 = vpop.f32.mrf.mxu0
    %v3827 = vadd.f32 0.0, %v3826
    %3828 = vmatmul.f32.gmra.mxu0 %v3621
    %v3829 = vpop.f32.mrf.mxu0
    %v3830 = vadd.f32 0.0, %v3829
    %3831 = vmatmul.f32.gmra.mxu0 %v3624
    %v3832 = vpop.f32.mrf.mxu0
    %v3833 = vadd.f32 0.0, %v3832
    %3834 = vmatmul.f32.gmra.mxu0 %v3627
    %v3835 = vpop.f32.mrf.mxu0
    %v3836 = vadd.f32 0.0, %v3835
    %3837 = vmatmul.f32.gmra.mxu0 %v3630
    %v3838 = vpop.f32.mrf.mxu0
    %v3839 = vadd.f32 0.0, %v3838
    %3840 = vmatmul.f32.gmra.mxu0 %v3633
    %v3841 = vpop.f32.mrf.mxu0
    %v3842 = vadd.f32 0.0, %v3841
    %3843 = vmatmul.f32.gmra.mxu0 %v3636
    %v3844 = vpop.f32.mrf.mxu0
    %v3845 = vadd.f32 0.0, %v3844
    %3846 = vmatmul.f32.gmra.mxu0 %v3639
    %v3847 = vpop.f32.mrf.mxu0
    %v3848 = vadd.f32 0.0, %v3847
    %3849 = vmatmul.f32.gmra.mxu0 %v3642
    %v3850 = vpop.f32.mrf.mxu0
    %v3851 = vadd.f32 0.0, %v3850
    %3852 = vmatmul.f32.gmra.mxu0 %v3645
    %v3853 = vpop.f32.mrf.mxu0
    %v3854 = vadd.f32 0.0, %v3853
    %3855 = vmatmul.f32.gmra.mxu0 %v3648
    %v3856 = vpop.f32.mrf.mxu0
    %v3857 = vadd.f32 0.0, %v3856
    %3858 = vmatmul.f32.gmra.mxu0 %v3651
    %v3859 = vpop.f32.mrf.mxu0
    %v3860 = vadd.f32 0.0, %v3859
    %3861 = vmatmul.f32.gmra.mxu0 %v3654
    %v3862 = vpop.f32.mrf.mxu0
    %v3863 = vadd.f32 0.0, %v3862
    %3864 = vdwg.mxu0
    %v3865 = vadd.f32 %v3333, %v3674
    %v3866 = vadd.f32 %v3334, %v3677
    %v3867 = vadd.f32 %v3335, %v3680
    %v3868 = vadd.f32 %v3336, %v3683
    %v3869 = vadd.f32 %v3337, %v3686
    %v3870 = vadd.f32 %v3338, %v3689
    %v3871 = vadd.f32 %v3339, %v3692
    %v3872 = vadd.f32 %v3340, %v3695
    %v3873 = vadd.f32 %v3341, %v3698
    %v3874 = vadd.f32 %v3342, %v3701
    %v3875 = vadd.f32 %v3343, %v3704
    %v3876 = vadd.f32 %v3344, %v3707
    %v3877 = vadd.f32 %v3345, %v3710
    %v3878 = vadd.f32 %v3346, %v3713
    %v3879 = vadd.f32 %v3347, %v3716
    %v3880 = vadd.f32 %v3348, %v3719
    %v3881 = vadd.f32 %v3349, %v3722
    %v3882 = vadd.f32 %v3350, %v3725
    %v3883 = vadd.f32 %v3351, %v3728
    %v3884 = vadd.f32 %v3352, %v3731
    %v3885 = vadd.f32 %v3353, %v3734
    %v3886 = vadd.f32 %v3354, %v3737
    %v3887 = vadd.f32 %v3355, %v3740
    %v3888 = vadd.f32 %v3356, %v3743
    %v3889 = vadd.f32 %v3357, %v3746
    %v3890 = vadd.f32 %v3358, %v3749
    %v3891 = vadd.f32 %v3359, %v3752
    %v3892 = vadd.f32 %v3360, %v3755
    %v3893 = vadd.f32 %v3361, %v3758
    %v3894 = vadd.f32 %v3362, %v3761
    %v3895 = vadd.f32 %v3363, %v3764
    %v3896 = vadd.f32 %v3364, %v3767
    %v3897 = vadd.f32 %v3365, %v3770
    %v3898 = vadd.f32 %v3366, %v3773
    %v3899 = vadd.f32 %v3367, %v3776
    %v3900 = vadd.f32 %v3368, %v3779
    %v3901 = vadd.f32 %v3369, %v3782
    %v3902 = vadd.f32 %v3370, %v3785
    %v3903 = vadd.f32 %v3371, %v3788
    %v3904 = vadd.f32 %v3372, %v3791
    %v3905 = vadd.f32 %v3373, %v3794
    %v3906 = vadd.f32 %v3374, %v3797
    %v3907 = vadd.f32 %v3375, %v3800
    %v3908 = vadd.f32 %v3376, %v3803
    %v3909 = vadd.f32 %v3377, %v3806
    %v3910 = vadd.f32 %v3378, %v3809
    %v3911 = vadd.f32 %v3379, %v3812
    %v3912 = vadd.f32 %v3380, %v3815
    %v3913 = vadd.f32 %v3381, %v3818
    %v3914 = vadd.f32 %v3382, %v3821
    %v3915 = vadd.f32 %v3383, %v3824
    %v3916 = vadd.f32 %v3384, %v3827
    %v3917 = vadd.f32 %v3385, %v3830
    %v3918 = vadd.f32 %v3386, %v3833
    %v3919 = vadd.f32 %v3387, %v3836
    %v3920 = vadd.f32 %v3388, %v3839
    %v3921 = vadd.f32 %v3389, %v3842
    %v3922 = vadd.f32 %v3390, %v3845
    %v3923 = vadd.f32 %v3391, %v3848
    %v3924 = vadd.f32 %v3392, %v3851
    %v3925 = vadd.f32 %v3393, %v3854
    %v3926 = vadd.f32 %v3394, %v3857
    %v3927 = vadd.f32 %v3395, %v3860
    %v3928 = vadd.f32 %v3396, %v3863
    %v3929 = vld [vmem:[%s3397 + $0x1] sm:$0xff]
    %v3930 = vld [vmem:[%s3397 + $0x9] sm:$0xff]
    %v3931 = vld [vmem:[%s3397 + $0x19] sm:$0xff]
    %v3932 = vld [vmem:[%s3397 + $0x21] sm:$0xff]
    %v3933 = vld [vmem:[%s3397 + $0x31] sm:$0xff]
    %v3934 = vld [vmem:[%s3397 + $0x39] sm:$0xff]
    %v3935 = vld [vmem:[%s3397 + $0x49] sm:$0xff]
    %v3936 = vld [vmem:[%s3397 + $0x51] sm:$0xff]
    %v3937 = vld [vmem:[%s3397 + $0x61] sm:$0xff]
    %v3938 = vld [vmem:[%s3397 + $0x69] sm:$0xff]
    %v3939 = vld [vmem:[%s3397 + $0x79] sm:$0xff]
    %v3940 = vld [vmem:[%s3397 + $0x81] sm:$0xff]
    %v3941 = vld [vmem:[%s3397 + $0x91] sm:$0xff]
    %v3942 = vld [vmem:[%s3397 + $0x99] sm:$0xff]
    %v3943 = vld [vmem:[%s3397 + $0xa9] sm:$0xff]
    %v3944 = vld [vmem:[%s3397 + $0xb1] sm:$0xff]
    %v3945 = vld [vmem:[%s3397 + $0xc1] sm:$0xff]
    %v3946 = vld [vmem:[%s3397 + $0xc9] sm:$0xff]
    %v3947 = vld [vmem:[%s3397 + $0xd9] sm:$0xff]
    %v3948 = vld [vmem:[%s3397 + $0xe1] sm:$0xff]
    %v3949 = vld [vmem:[%s3397 + $0xf1] sm:$0xff]
    %v3950 = vld [vmem:[%s3397 + $0xf9] sm:$0xff]
    %v3951 = vld [vmem:[%s3397 + $0x109] sm:$0xff]
    %v3952 = vld [vmem:[%s3397 + $0x111] sm:$0xff]
    %v3953 = vld [vmem:[%s3397 + $0x121] sm:$0xff]
    %v3954 = vld [vmem:[%s3397 + $0x129] sm:$0xff]
    %v3955 = vld [vmem:[%s3397 + $0x139] sm:$0xff]
    %v3956 = vld [vmem:[%s3397 + $0x141] sm:$0xff]
    %v3957 = vld [vmem:[%s3397 + $0x151] sm:$0xff]
    %v3958 = vld [vmem:[%s3397 + $0x159] sm:$0xff]
    %v3959 = vld [vmem:[%s3397 + $0x169] sm:$0xff]
    %v3960 = vld [vmem:[%s3397 + $0x171] sm:$0xff]
    %v3961 = vld [vmem:[%s3397 + $0x1b1] sm:$0xff]
    %v3962 = vld [vmem:[%s3397 + $0x1b9] sm:$0xff]
    %v3963 = vld [vmem:[%s3397 + $0x1c9] sm:$0xff]
    %v3964 = vld [vmem:[%s3397 + $0x1d1] sm:$0xff]
    %v3965 = vld [vmem:[%s3397 + $0x1e1] sm:$0xff]
    %v3966 = vld [vmem:[%s3397 + $0x1e9] sm:$0xff]
    %v3967 = vld [vmem:[%s3397 + $0x1f9] sm:$0xff]
    %v3968 = vld [vmem:[%s3397 + $0x201] sm:$0xff]
    %v3969 = vld [vmem:[%s3397 + $0x211] sm:$0xff]
    %v3970 = vld [vmem:[%s3397 + $0x219] sm:$0xff]
    %v3971 = vld [vmem:[%s3397 + $0x229] sm:$0xff]
    %v3972 = vld [vmem:[%s3397 + $0x231] sm:$0xff]
    %v3973 = vld [vmem:[%s3397 + $0x241] sm:$0xff]
    %v3974 = vld [vmem:[%s3397 + $0x249] sm:$0xff]
    %v3975 = vld [vmem:[%s3397 + $0x259] sm:$0xff]
    %v3976 = vld [vmem:[%s3397 + $0x261] sm:$0xff]
    %v3977 = vld [vmem:[%s3397 + $0x271] sm:$0xff]
    %v3978 = vld [vmem:[%s3397 + $0x279] sm:$0xff]
    %v3979 = vld [vmem:[%s3397 + $0x289] sm:$0xff]
    %v3980 = vld [vmem:[%s3397 + $0x291] sm:$0xff]
    %v3981 = vld [vmem:[%s3397 + $0x2a1] sm:$0xff]
    %v3982 = vld [vmem:[%s3397 + $0x2a9] sm:$0xff]
    %v3983 = vld [vmem:[%s3397 + $0x2b9] sm:$0xff]
    %v3984 = vld [vmem:[%s3397 + $0x2c1] sm:$0xff]
    %v3985 = vld [vmem:[%s3397 + $0x2d1] sm:$0xff]
    %v3986 = vld [vmem:[%s3397 + $0x2d9] sm:$0xff]
    %v3987 = vld [vmem:[%s3397 + $0x2e9] sm:$0xff]
    %v3988 = vld [vmem:[%s3397 + $0x2f1] sm:$0xff]
    %v3989 = vld [vmem:[%s3397 + $0x301] sm:$0xff]
    %v3990 = vld [vmem:[%s3397 + $0x309] sm:$0xff]
    %v3991 = vld [vmem:[%s3397 + $0x319] sm:$0xff]
    %v3992 = vld [vmem:[%s3397 + $0x321] sm:$0xff]
    %s3993 = scalar_lea.vmem %s1, 56
    %v3994 = vld [vmem:[%s3993] sm:$0xff]
    %v3996 = vsel %vm275, %v3929, 0
    %v3999 = vsel %vm275, %v3930, 0
    %v4002 = vsel %vm275, %v3931, 0
    %v4005 = vsel %vm275, %v3932, 0
    %v4008 = vsel %vm275, %v3933, 0
    %v4011 = vsel %vm275, %v3934, 0
    %v4014 = vsel %vm275, %v3935, 0
    %v4017 = vsel %vm275, %v3936, 0
    %v4020 = vsel %vm275, %v3937, 0
    %v4023 = vsel %vm275, %v3938, 0
    %v4026 = vsel %vm275, %v3939, 0
    %v4029 = vsel %vm275, %v3940, 0
    %v4032 = vsel %vm275, %v3941, 0
    %v4035 = vsel %vm275, %v3942, 0
    %v4038 = vsel %vm275, %v3943, 0
    %v4041 = vsel %vm275, %v3944, 0
    %v4044 = vsel %vm275, %v3945, 0
    %v4047 = vsel %vm275, %v3946, 0
    %v4050 = vsel %vm275, %v3947, 0
    %v4053 = vsel %vm275, %v3948, 0
    %v4056 = vsel %vm275, %v3949, 0
    %v4059 = vsel %vm275, %v3950, 0
    %v4062 = vsel %vm275, %v3951, 0
    %v4065 = vsel %vm275, %v3952, 0
    %v4068 = vsel %vm275, %v3953, 0
    %v4071 = vsel %vm275, %v3954, 0
    %v4074 = vsel %vm275, %v3955, 0
    %v4077 = vsel %vm275, %v3956, 0
    %v4080 = vsel %vm275, %v3957, 0
    %v4083 = vsel %vm275, %v3958, 0
    %v4086 = vsel %vm275, %v3959, 0
    %v4089 = vsel %vm275, %v3960, 0
    %v4092 = vsel %vm275, %v3961, 0
    %v4095 = vsel %vm275, %v3962, 0
    %v4098 = vsel %vm275, %v3963, 0
    %v4101 = vsel %vm275, %v3964, 0
    %v4104 = vsel %vm275, %v3965, 0
    %v4107 = vsel %vm275, %v3966, 0
    %v4110 = vsel %vm275, %v3967, 0
    %v4113 = vsel %vm275, %v3968, 0
    %v4116 = vsel %vm275, %v3969, 0
    %v4119 = vsel %vm275, %v3970, 0
    %v4122 = vsel %vm275, %v3971, 0
    %v4125 = vsel %vm275, %v3972, 0
    %v4128 = vsel %vm275, %v3973, 0
    %v4131 = vsel %vm275, %v3974, 0
    %v4134 = vsel %vm275, %v3975, 0
    %v4137 = vsel %vm275, %v3976, 0
    %v4140 = vsel %vm275, %v3977, 0
    %v4143 = vsel %vm275, %v3978, 0
    %v4146 = vsel %vm275, %v3979, 0
    %v4149 = vsel %vm275, %v3980, 0
    %v4152 = vsel %vm275, %v3981, 0
    %v4155 = vsel %vm275, %v3982, 0
    %v4158 = vsel %vm275, %v3983, 0
    %v4161 = vsel %vm275, %v3984, 0
    %v4164 = vsel %vm275, %v3985, 0
    %v4167 = vsel %vm275, %v3986, 0
    %v4170 = vsel %vm275, %v3987, 0
    %v4173 = vsel %vm275, %v3988, 0
    %v4176 = vsel %vm275, %v3989, 0
    %v4179 = vsel %vm275, %v3990, 0
    %v4182 = vsel %vm275, %v3991, 0
    %v4185 = vsel %vm275, %v3992, 0
    %4187 = vmatpush.msra.mxu0 0.0
    %4188 = vmatpush.msra.mxu0 0.0
    %4189 = vmatpush.msra.mxu0 0.0
    %4190 = vmatpush.msra.mxu0 0.0
    %4191 = vmatpush.msra.mxu0 0.0
    %4192 = vmatpush.msra.mxu0 0.0
    %4193 = vmatpush.msra.mxu0 0.0
    %4194 = vmatpush.msra.mxu0 0.0
    %4195 = vmatpush.msra.mxu0 0.0
    %4196 = vmatpush.msra.mxu0 0.0
    %4197 = vmatpush.msra.mxu0 0.0
    %4198 = vmatpush.msra.mxu0 0.0
    %4199 = vmatpush.msra.mxu0 0.0
    %4200 = vmatpush.msra.mxu0 0.0
    %4201 = vmatpush.msra.mxu0 0.0
    %4202 = vmatpush.msra.mxu0 %v3994
    %4203 = vmatmul.f32.gmra.mxu0 %v3996
    %v4204 = vpop.f32.mrf.mxu0
    %v4205 = vadd.f32 0.0, %v4204
    %4206 = vmatmul.f32.gmra.mxu0 %v3999
    %v4207 = vpop.f32.mrf.mxu0
    %v4208 = vadd.f32 0.0, %v4207
    %4209 = vmatmul.f32.gmra.mxu0 %v4002
    %v4210 = vpop.f32.mrf.mxu0
    %v4211 = vadd.f32 0.0, %v4210
    %4212 = vmatmul.f32.gmra.mxu0 %v4005
    %v4213 = vpop.f32.mrf.mxu0
    %v4214 = vadd.f32 0.0, %v4213
    %4215 = vmatmul.f32.gmra.mxu0 %v4008
    %v4216 = vpop.f32.mrf.mxu0
    %v4217 = vadd.f32 0.0, %v4216
    %4218 = vmatmul.f32.gmra.mxu0 %v4011
    %v4219 = vpop.f32.mrf.mxu0
    %v4220 = vadd.f32 0.0, %v4219
    %4221 = vmatmul.f32.gmra.mxu0 %v4014
    %v4222 = vpop.f32.mrf.mxu0
    %v4223 = vadd.f32 0.0, %v4222
    %4224 = vmatmul.f32.gmra.mxu0 %v4017
    %v4225 = vpop.f32.mrf.mxu0
    %v4226 = vadd.f32 0.0, %v4225
    %4227 = vmatmul.f32.gmra.mxu0 %v4020
    %v4228 = vpop.f32.mrf.mxu0
    %v4229 = vadd.f32 0.0, %v4228
    %4230 = vmatmul.f32.gmra.mxu0 %v4023
    %v4231 = vpop.f32.mrf.mxu0
    %v4232 = vadd.f32 0.0, %v4231
    %4233 = vmatmul.f32.gmra.mxu0 %v4026
    %v4234 = vpop.f32.mrf.mxu0
    %v4235 = vadd.f32 0.0, %v4234
    %4236 = vmatmul.f32.gmra.mxu0 %v4029
    %v4237 = vpop.f32.mrf.mxu0
    %v4238 = vadd.f32 0.0, %v4237
    %4239 = vmatmul.f32.gmra.mxu0 %v4032
    %v4240 = vpop.f32.mrf.mxu0
    %v4241 = vadd.f32 0.0, %v4240
    %4242 = vmatmul.f32.gmra.mxu0 %v4035
    %v4243 = vpop.f32.mrf.mxu0
    %v4244 = vadd.f32 0.0, %v4243
    %4245 = vmatmul.f32.gmra.mxu0 %v4038
    %v4246 = vpop.f32.mrf.mxu0
    %v4247 = vadd.f32 0.0, %v4246
    %4248 = vmatmul.f32.gmra.mxu0 %v4041
    %v4249 = vpop.f32.mrf.mxu0
    %v4250 = vadd.f32 0.0, %v4249
    %4251 = vmatmul.f32.gmra.mxu0 %v4044
    %v4252 = vpop.f32.mrf.mxu0
    %v4253 = vadd.f32 0.0, %v4252
    %4254 = vmatmul.f32.gmra.mxu0 %v4047
    %v4255 = vpop.f32.mrf.mxu0
    %v4256 = vadd.f32 0.0, %v4255
    %4257 = vmatmul.f32.gmra.mxu0 %v4050
    %v4258 = vpop.f32.mrf.mxu0
    %v4259 = vadd.f32 0.0, %v4258
    %4260 = vmatmul.f32.gmra.mxu0 %v4053
    %v4261 = vpop.f32.mrf.mxu0
    %v4262 = vadd.f32 0.0, %v4261
    %4263 = vmatmul.f32.gmra.mxu0 %v4056
    %v4264 = vpop.f32.mrf.mxu0
    %v4265 = vadd.f32 0.0, %v4264
    %4266 = vmatmul.f32.gmra.mxu0 %v4059
    %v4267 = vpop.f32.mrf.mxu0
    %v4268 = vadd.f32 0.0, %v4267
    %4269 = vmatmul.f32.gmra.mxu0 %v4062
    %v4270 = vpop.f32.mrf.mxu0
    %v4271 = vadd.f32 0.0, %v4270
    %4272 = vmatmul.f32.gmra.mxu0 %v4065
    %v4273 = vpop.f32.mrf.mxu0
    %v4274 = vadd.f32 0.0, %v4273
    %4275 = vmatmul.f32.gmra.mxu0 %v4068
    %v4276 = vpop.f32.mrf.mxu0
    %v4277 = vadd.f32 0.0, %v4276
    %4278 = vmatmul.f32.gmra.mxu0 %v4071
    %v4279 = vpop.f32.mrf.mxu0
    %v4280 = vadd.f32 0.0, %v4279
    %4281 = vmatmul.f32.gmra.mxu0 %v4074
    %v4282 = vpop.f32.mrf.mxu0
    %v4283 = vadd.f32 0.0, %v4282
    %4284 = vmatmul.f32.gmra.mxu0 %v4077
    %v4285 = vpop.f32.mrf.mxu0
    %v4286 = vadd.f32 0.0, %v4285
    %4287 = vmatmul.f32.gmra.mxu0 %v4080
    %v4288 = vpop.f32.mrf.mxu0
    %v4289 = vadd.f32 0.0, %v4288
    %4290 = vmatmul.f32.gmra.mxu0 %v4083
    %v4291 = vpop.f32.mrf.mxu0
    %v4292 = vadd.f32 0.0, %v4291
    %4293 = vmatmul.f32.gmra.mxu0 %v4086
    %v4294 = vpop.f32.mrf.mxu0
    %v4295 = vadd.f32 0.0, %v4294
    %4296 = vmatmul.f32.gmra.mxu0 %v4089
    %v4297 = vpop.f32.mrf.mxu0
    %v4298 = vadd.f32 0.0, %v4297
    %4299 = vmatmul.f32.gmra.mxu0 %v4092
    %v4300 = vpop.f32.mrf.mxu0
    %v4301 = vadd.f32 0.0, %v4300
    %4302 = vmatmul.f32.gmra.mxu0 %v4095
    %v4303 = vpop.f32.mrf.mxu0
    %v4304 = vadd.f32 0.0, %v4303
    %4305 = vmatmul.f32.gmra.mxu0 %v4098
    %v4306 = vpop.f32.mrf.mxu0
    %v4307 = vadd.f32 0.0, %v4306
    %4308 = vmatmul.f32.gmra.mxu0 %v4101
    %v4309 = vpop.f32.mrf.mxu0
    %v4310 = vadd.f32 0.0, %v4309
    %4311 = vmatmul.f32.gmra.mxu0 %v4104
    %v4312 = vpop.f32.mrf.mxu0
    %v4313 = vadd.f32 0.0, %v4312
    %4314 = vmatmul.f32.gmra.mxu0 %v4107
    %v4315 = vpop.f32.mrf.mxu0
    %v4316 = vadd.f32 0.0, %v4315
    %4317 = vmatmul.f32.gmra.mxu0 %v4110
    %v4318 = vpop.f32.mrf.mxu0
    %v4319 = vadd.f32 0.0, %v4318
    %4320 = vmatmul.f32.gmra.mxu0 %v4113
    %v4321 = vpop.f32.mrf.mxu0
    %v4322 = vadd.f32 0.0, %v4321
    %4323 = vmatmul.f32.gmra.mxu0 %v4116
    %v4324 = vpop.f32.mrf.mxu0
    %v4325 = vadd.f32 0.0, %v4324
    %4326 = vmatmul.f32.gmra.mxu0 %v4119
    %v4327 = vpop.f32.mrf.mxu0
    %v4328 = vadd.f32 0.0, %v4327
    %4329 = vmatmul.f32.gmra.mxu0 %v4122
    %v4330 = vpop.f32.mrf.mxu0
    %v4331 = vadd.f32 0.0, %v4330
    %4332 = vmatmul.f32.gmra.mxu0 %v4125
    %v4333 = vpop.f32.mrf.mxu0
    %v4334 = vadd.f32 0.0, %v4333
    %4335 = vmatmul.f32.gmra.mxu0 %v4128
    %v4336 = vpop.f32.mrf.mxu0
    %v4337 = vadd.f32 0.0, %v4336
    %4338 = vmatmul.f32.gmra.mxu0 %v4131
    %v4339 = vpop.f32.mrf.mxu0
    %v4340 = vadd.f32 0.0, %v4339
    %4341 = vmatmul.f32.gmra.mxu0 %v4134
    %v4342 = vpop.f32.mrf.mxu0
    %v4343 = vadd.f32 0.0, %v4342
    %4344 = vmatmul.f32.gmra.mxu0 %v4137
    %v4345 = vpop.f32.mrf.mxu0
    %v4346 = vadd.f32 0.0, %v4345
    %4347 = vmatmul.f32.gmra.mxu0 %v4140
    %v4348 = vpop.f32.mrf.mxu0
    %v4349 = vadd.f32 0.0, %v4348
    %4350 = vmatmul.f32.gmra.mxu0 %v4143
    %v4351 = vpop.f32.mrf.mxu0
    %v4352 = vadd.f32 0.0, %v4351
    %4353 = vmatmul.f32.gmra.mxu0 %v4146
    %v4354 = vpop.f32.mrf.mxu0
    %v4355 = vadd.f32 0.0, %v4354
    %4356 = vmatmul.f32.gmra.mxu0 %v4149
    %v4357 = vpop.f32.mrf.mxu0
    %v4358 = vadd.f32 0.0, %v4357
    %4359 = vmatmul.f32.gmra.mxu0 %v4152
    %v4360 = vpop.f32.mrf.mxu0
    %v4361 = vadd.f32 0.0, %v4360
    %4362 = vmatmul.f32.gmra.mxu0 %v4155
    %v4363 = vpop.f32.mrf.mxu0
    %v4364 = vadd.f32 0.0, %v4363
    %4365 = vmatmul.f32.gmra.mxu0 %v4158
    %v4366 = vpop.f32.mrf.mxu0
    %v4367 = vadd.f32 0.0, %v4366
    %4368 = vmatmul.f32.gmra.mxu0 %v4161
    %v4369 = vpop.f32.mrf.mxu0
    %v4370 = vadd.f32 0.0, %v4369
    %4371 = vmatmul.f32.gmra.mxu0 %v4164
    %v4372 = vpop.f32.mrf.mxu0
    %v4373 = vadd.f32 0.0, %v4372
    %4374 = vmatmul.f32.gmra.mxu0 %v4167
    %v4375 = vpop.f32.mrf.mxu0
    %v4376 = vadd.f32 0.0, %v4375
    %4377 = vmatmul.f32.gmra.mxu0 %v4170
    %v4378 = vpop.f32.mrf.mxu0
    %v4379 = vadd.f32 0.0, %v4378
    %4380 = vmatmul.f32.gmra.mxu0 %v4173
    %v4381 = vpop.f32.mrf.mxu0
    %v4382 = vadd.f32 0.0, %v4381
    %4383 = vmatmul.f32.gmra.mxu0 %v4176
    %v4384 = vpop.f32.mrf.mxu0
    %v4385 = vadd.f32 0.0, %v4384
    %4386 = vmatmul.f32.gmra.mxu0 %v4179
    %v4387 = vpop.f32.mrf.mxu0
    %v4388 = vadd.f32 0.0, %v4387
    %4389 = vmatmul.f32.gmra.mxu0 %v4182
    %v4390 = vpop.f32.mrf.mxu0
    %v4391 = vadd.f32 0.0, %v4390
    %4392 = vmatmul.f32.gmra.mxu0 %v4185
    %v4393 = vpop.f32.mrf.mxu0
    %v4394 = vadd.f32 0.0, %v4393
    %4395 = vdwg.mxu0
    %v4396 = vadd.f32 %v3865, %v4205
    %v4397 = vadd.f32 %v3866, %v4208
    %v4398 = vadd.f32 %v3867, %v4211
    %v4399 = vadd.f32 %v3868, %v4214
    %v4400 = vadd.f32 %v3869, %v4217
    %v4401 = vadd.f32 %v3870, %v4220
    %v4402 = vadd.f32 %v3871, %v4223
    %v4403 = vadd.f32 %v3872, %v4226
    %v4404 = vadd.f32 %v3873, %v4229
    %v4405 = vadd.f32 %v3874, %v4232
    %v4406 = vadd.f32 %v3875, %v4235
    %v4407 = vadd.f32 %v3876, %v4238
    %v4408 = vadd.f32 %v3877, %v4241
    %v4409 = vadd.f32 %v3878, %v4244
    %v4410 = vadd.f32 %v3879, %v4247
    %v4411 = vadd.f32 %v3880, %v4250
    %v4412 = vadd.f32 %v3881, %v4253
    %v4413 = vadd.f32 %v3882, %v4256
    %v4414 = vadd.f32 %v3883, %v4259
    %v4415 = vadd.f32 %v3884, %v4262
    %v4416 = vadd.f32 %v3885, %v4265
    %v4417 = vadd.f32 %v3886, %v4268
    %v4418 = vadd.f32 %v3887, %v4271
    %v4419 = vadd.f32 %v3888, %v4274
    %v4420 = vadd.f32 %v3889, %v4277
    %v4421 = vadd.f32 %v3890, %v4280
    %v4422 = vadd.f32 %v3891, %v4283
    %v4423 = vadd.f32 %v3892, %v4286
    %v4424 = vadd.f32 %v3893, %v4289
    %v4425 = vadd.f32 %v3894, %v4292
    %v4426 = vadd.f32 %v3895, %v4295
    %v4427 = vadd.f32 %v3896, %v4298
    %v4428 = vadd.f32 %v3897, %v4301
    %v4429 = vadd.f32 %v3898, %v4304
    %v4430 = vadd.f32 %v3899, %v4307
    %v4431 = vadd.f32 %v3900, %v4310
    %v4432 = vadd.f32 %v3901, %v4313
    %v4433 = vadd.f32 %v3902, %v4316
    %v4434 = vadd.f32 %v3903, %v4319
    %v4435 = vadd.f32 %v3904, %v4322
    %v4436 = vadd.f32 %v3905, %v4325
    %v4437 = vadd.f32 %v3906, %v4328
    %v4438 = vadd.f32 %v3907, %v4331
    %v4439 = vadd.f32 %v3908, %v4334
    %v4440 = vadd.f32 %v3909, %v4337
    %v4441 = vadd.f32 %v3910, %v4340
    %v4442 = vadd.f32 %v3911, %v4343
    %v4443 = vadd.f32 %v3912, %v4346
    %v4444 = vadd.f32 %v3913, %v4349
    %v4445 = vadd.f32 %v3914, %v4352
    %v4446 = vadd.f32 %v3915, %v4355
    %v4447 = vadd.f32 %v3916, %v4358
    %v4448 = vadd.f32 %v3917, %v4361
    %v4449 = vadd.f32 %v3918, %v4364
    %v4450 = vadd.f32 %v3919, %v4367
    %v4451 = vadd.f32 %v3920, %v4370
    %v4452 = vadd.f32 %v3921, %v4373
    %v4453 = vadd.f32 %v3922, %v4376
    %v4454 = vadd.f32 %v3923, %v4379
    %v4455 = vadd.f32 %v3924, %v4382
    %v4456 = vadd.f32 %v3925, %v4385
    %v4457 = vadd.f32 %v3926, %v4388
    %v4458 = vadd.f32 %v3927, %v4391
    %v4459 = vadd.f32 %v3928, %v4394
    %v4460 = vld [vmem:[%s3397 + $0x2] sm:$0xff]
    %v4461 = vld [vmem:[%s3397 + $0xa] sm:$0xff]
    %v4462 = vld [vmem:[%s3397 + $0x1a] sm:$0xff]
    %v4463 = vld [vmem:[%s3397 + $0x22] sm:$0xff]
    %v4464 = vld [vmem:[%s3397 + $0x32] sm:$0xff]
    %v4465 = vld [vmem:[%s3397 + $0x3a] sm:$0xff]
    %v4466 = vld [vmem:[%s3397 + $0x4a] sm:$0xff]
    %v4467 = vld [vmem:[%s3397 + $0x52] sm:$0xff]
    %v4468 = vld [vmem:[%s3397 + $0x62] sm:$0xff]
    %v4469 = vld [vmem:[%s3397 + $0x6a] sm:$0xff]
    %v4470 = vld [vmem:[%s3397 + $0x7a] sm:$0xff]
    %v4471 = vld [vmem:[%s3397 + $0x82] sm:$0xff]
    %v4472 = vld [vmem:[%s3397 + $0x92] sm:$0xff]
    %v4473 = vld [vmem:[%s3397 + $0x9a] sm:$0xff]
    %v4474 = vld [vmem:[%s3397 + $0xaa] sm:$0xff]
    %v4475 = vld [vmem:[%s3397 + $0xb2] sm:$0xff]
    %v4476 = vld [vmem:[%s3397 + $0xc2] sm:$0xff]
    %v4477 = vld [vmem:[%s3397 + $0xca] sm:$0xff]
    %v4478 = vld [vmem:[%s3397 + $0xda] sm:$0xff]
    %v4479 = vld [vmem:[%s3397 + $0xe2] sm:$0xff]
    %v4480 = vld [vmem:[%s3397 + $0xf2] sm:$0xff]
    %v4481 = vld [vmem:[%s3397 + $0xfa] sm:$0xff]
    %v4482 = vld [vmem:[%s3397 + $0x10a] sm:$0xff]
    %v4483 = vld [vmem:[%s3397 + $0x112] sm:$0xff]
    %v4484 = vld [vmem:[%s3397 + $0x122] sm:$0xff]
    %v4485 = vld [vmem:[%s3397 + $0x12a] sm:$0xff]
    %v4486 = vld [vmem:[%s3397 + $0x13a] sm:$0xff]
    %v4487 = vld [vmem:[%s3397 + $0x142] sm:$0xff]
    %v4488 = vld [vmem:[%s3397 + $0x152] sm:$0xff]
    %v4489 = vld [vmem:[%s3397 + $0x15a] sm:$0xff]
    %v4490 = vld [vmem:[%s3397 + $0x16a] sm:$0xff]
    %v4491 = vld [vmem:[%s3397 + $0x172] sm:$0xff]
    %v4492 = vld [vmem:[%s3397 + $0x1b2] sm:$0xff]
    %v4493 = vld [vmem:[%s3397 + $0x1ba] sm:$0xff]
    %v4494 = vld [vmem:[%s3397 + $0x1ca] sm:$0xff]
    %v4495 = vld [vmem:[%s3397 + $0x1d2] sm:$0xff]
    %v4496 = vld [vmem:[%s3397 + $0x1e2] sm:$0xff]
    %v4497 = vld [vmem:[%s3397 + $0x1ea] sm:$0xff]
    %v4498 = vld [vmem:[%s3397 + $0x1fa] sm:$0xff]
    %v4499 = vld [vmem:[%s3397 + $0x202] sm:$0xff]
    %v4500 = vld [vmem:[%s3397 + $0x212] sm:$0xff]
    %v4501 = vld [vmem:[%s3397 + $0x21a] sm:$0xff]
    %v4502 = vld [vmem:[%s3397 + $0x22a] sm:$0xff]
    %v4503 = vld [vmem:[%s3397 + $0x232] sm:$0xff]
    %v4504 = vld [vmem:[%s3397 + $0x242] sm:$0xff]
    %v4505 = vld [vmem:[%s3397 + $0x24a] sm:$0xff]
    %v4506 = vld [vmem:[%s3397 + $0x25a] sm:$0xff]
    %v4507 = vld [vmem:[%s3397 + $0x262] sm:$0xff]
    %v4508 = vld [vmem:[%s3397 + $0x272] sm:$0xff]
    %v4509 = vld [vmem:[%s3397 + $0x27a] sm:$0xff]
    %v4510 = vld [vmem:[%s3397 + $0x28a] sm:$0xff]
    %v4511 = vld [vmem:[%s3397 + $0x292] sm:$0xff]
    %v4512 = vld [vmem:[%s3397 + $0x2a2] sm:$0xff]
    %v4513 = vld [vmem:[%s3397 + $0x2aa] sm:$0xff]
    %v4514 = vld [vmem:[%s3397 + $0x2ba] sm:$0xff]
    %v4515 = vld [vmem:[%s3397 + $0x2c2] sm:$0xff]
    %v4516 = vld [vmem:[%s3397 + $0x2d2] sm:$0xff]
    %v4517 = vld [vmem:[%s3397 + $0x2da] sm:$0xff]
    %v4518 = vld [vmem:[%s3397 + $0x2ea] sm:$0xff]
    %v4519 = vld [vmem:[%s3397 + $0x2f2] sm:$0xff]
    %v4520 = vld [vmem:[%s3397 + $0x302] sm:$0xff]
    %v4521 = vld [vmem:[%s3397 + $0x30a] sm:$0xff]
    %v4522 = vld [vmem:[%s3397 + $0x31a] sm:$0xff]
    %v4523 = vld [vmem:[%s3397 + $0x322] sm:$0xff]
    %s4524 = scalar_lea.vmem %s1, 64
    %v4525 = vld [vmem:[%s4524] sm:$0xff]
    %v4527 = vsel %vm275, %v4460, 0
    %v4530 = vsel %vm275, %v4461, 0
    %v4533 = vsel %vm275, %v4462, 0
    %v4536 = vsel %vm275, %v4463, 0
    %v4539 = vsel %vm275, %v4464, 0
    %v4542 = vsel %vm275, %v4465, 0
    %v4545 = vsel %vm275, %v4466, 0
    %v4548 = vsel %vm275, %v4467, 0
    %v4551 = vsel %vm275, %v4468, 0
    %v4554 = vsel %vm275, %v4469, 0
    %v4557 = vsel %vm275, %v4470, 0
    %v4560 = vsel %vm275, %v4471, 0
    %v4563 = vsel %vm275, %v4472, 0
    %v4566 = vsel %vm275, %v4473, 0
    %v4569 = vsel %vm275, %v4474, 0
    %v4572 = vsel %vm275, %v4475, 0
    %v4575 = vsel %vm275, %v4476, 0
    %v4578 = vsel %vm275, %v4477, 0
    %v4581 = vsel %vm275, %v4478, 0
    %v4584 = vsel %vm275, %v4479, 0
    %v4587 = vsel %vm275, %v4480, 0
    %v4590 = vsel %vm275, %v4481, 0
    %v4593 = vsel %vm275, %v4482, 0
    %v4596 = vsel %vm275, %v4483, 0
    %v4599 = vsel %vm275, %v4484, 0
    %v4602 = vsel %vm275, %v4485, 0
    %v4605 = vsel %vm275, %v4486, 0
    %v4608 = vsel %vm275, %v4487, 0
    %v4611 = vsel %vm275, %v4488, 0
    %v4614 = vsel %vm275, %v4489, 0
    %v4617 = vsel %vm275, %v4490, 0
    %v4620 = vsel %vm275, %v4491, 0
    %v4623 = vsel %vm275, %v4492, 0
    %v4626 = vsel %vm275, %v4493, 0
    %v4629 = vsel %vm275, %v4494, 0
    %v4632 = vsel %vm275, %v4495, 0
    %v4635 = vsel %vm275, %v4496, 0
    %v4638 = vsel %vm275, %v4497, 0
    %v4641 = vsel %vm275, %v4498, 0
    %v4644 = vsel %vm275, %v4499, 0
    %v4647 = vsel %vm275, %v4500, 0
    %v4650 = vsel %vm275, %v4501, 0
    %v4653 = vsel %vm275, %v4502, 0
    %v4656 = vsel %vm275, %v4503, 0
    %v4659 = vsel %vm275, %v4504, 0
    %v4662 = vsel %vm275, %v4505, 0
    %v4665 = vsel %vm275, %v4506, 0
    %v4668 = vsel %vm275, %v4507, 0
    %v4671 = vsel %vm275, %v4508, 0
    %v4674 = vsel %vm275, %v4509, 0
    %v4677 = vsel %vm275, %v4510, 0
    %v4680 = vsel %vm275, %v4511, 0
    %v4683 = vsel %vm275, %v4512, 0
    %v4686 = vsel %vm275, %v4513, 0
    %v4689 = vsel %vm275, %v4514, 0
    %v4692 = vsel %vm275, %v4515, 0
    %v4695 = vsel %vm275, %v4516, 0
    %v4698 = vsel %vm275, %v4517, 0
    %v4701 = vsel %vm275, %v4518, 0
    %v4704 = vsel %vm275, %v4519, 0
    %v4707 = vsel %vm275, %v4520, 0
    %v4710 = vsel %vm275, %v4521, 0
    %v4713 = vsel %vm275, %v4522, 0
    %v4716 = vsel %vm275, %v4523, 0
    %4718 = vmatpush.msra.mxu0 0.0
    %4719 = vmatpush.msra.mxu0 0.0
    %4720 = vmatpush.msra.mxu0 0.0
    %4721 = vmatpush.msra.mxu0 0.0
    %4722 = vmatpush.msra.mxu0 0.0
    %4723 = vmatpush.msra.mxu0 0.0
    %4724 = vmatpush.msra.mxu0 0.0
    %4725 = vmatpush.msra.mxu0 0.0
    %4726 = vmatpush.msra.mxu0 0.0
    %4727 = vmatpush.msra.mxu0 0.0
    %4728 = vmatpush.msra.mxu0 0.0
    %4729 = vmatpush.msra.mxu0 0.0
    %4730 = vmatpush.msra.mxu0 0.0
    %4731 = vmatpush.msra.mxu0 0.0
    %4732 = vmatpush.msra.mxu0 0.0
    %4733 = vmatpush.msra.mxu0 %v4525
    %4734 = vmatmul.f32.gmra.mxu0 %v4527
    %v4735 = vpop.f32.mrf.mxu0
    %v4736 = vadd.f32 0.0, %v4735
    %4737 = vmatmul.f32.gmra.mxu0 %v4530
    %v4738 = vpop.f32.mrf.mxu0
    %v4739 = vadd.f32 0.0, %v4738
    %4740 = vmatmul.f32.gmra.mxu0 %v4533
    %v4741 = vpop.f32.mrf.mxu0
    %v4742 = vadd.f32 0.0, %v4741
    %4743 = vmatmul.f32.gmra.mxu0 %v4536
    %v4744 = vpop.f32.mrf.mxu0
    %v4745 = vadd.f32 0.0, %v4744
    %4746 = vmatmul.f32.gmra.mxu0 %v4539
    %v4747 = vpop.f32.mrf.mxu0
    %v4748 = vadd.f32 0.0, %v4747
    %4749 = vmatmul.f32.gmra.mxu0 %v4542
    %v4750 = vpop.f32.mrf.mxu0
    %v4751 = vadd.f32 0.0, %v4750
    %4752 = vmatmul.f32.gmra.mxu0 %v4545
    %v4753 = vpop.f32.mrf.mxu0
    %v4754 = vadd.f32 0.0, %v4753
    %4755 = vmatmul.f32.gmra.mxu0 %v4548
    %v4756 = vpop.f32.mrf.mxu0
    %v4757 = vadd.f32 0.0, %v4756
    %4758 = vmatmul.f32.gmra.mxu0 %v4551
    %v4759 = vpop.f32.mrf.mxu0
    %v4760 = vadd.f32 0.0, %v4759
    %4761 = vmatmul.f32.gmra.mxu0 %v4554
    %v4762 = vpop.f32.mrf.mxu0
    %v4763 = vadd.f32 0.0, %v4762
    %4764 = vmatmul.f32.gmra.mxu0 %v4557
    %v4765 = vpop.f32.mrf.mxu0
    %v4766 = vadd.f32 0.0, %v4765
    %4767 = vmatmul.f32.gmra.mxu0 %v4560
    %v4768 = vpop.f32.mrf.mxu0
    %v4769 = vadd.f32 0.0, %v4768
    %4770 = vmatmul.f32.gmra.mxu0 %v4563
    %v4771 = vpop.f32.mrf.mxu0
    %v4772 = vadd.f32 0.0, %v4771
    %4773 = vmatmul.f32.gmra.mxu0 %v4566
    %v4774 = vpop.f32.mrf.mxu0
    %v4775 = vadd.f32 0.0, %v4774
    %4776 = vmatmul.f32.gmra.mxu0 %v4569
    %v4777 = vpop.f32.mrf.mxu0
    %v4778 = vadd.f32 0.0, %v4777
    %4779 = vmatmul.f32.gmra.mxu0 %v4572
    %v4780 = vpop.f32.mrf.mxu0
    %v4781 = vadd.f32 0.0, %v4780
    %4782 = vmatmul.f32.gmra.mxu0 %v4575
    %v4783 = vpop.f32.mrf.mxu0
    %v4784 = vadd.f32 0.0, %v4783
    %4785 = vmatmul.f32.gmra.mxu0 %v4578
    %v4786 = vpop.f32.mrf.mxu0
    %v4787 = vadd.f32 0.0, %v4786
    %4788 = vmatmul.f32.gmra.mxu0 %v4581
    %v4789 = vpop.f32.mrf.mxu0
    %v4790 = vadd.f32 0.0, %v4789
    %4791 = vmatmul.f32.gmra.mxu0 %v4584
    %v4792 = vpop.f32.mrf.mxu0
    %v4793 = vadd.f32 0.0, %v4792
    %4794 = vmatmul.f32.gmra.mxu0 %v4587
    %v4795 = vpop.f32.mrf.mxu0
    %v4796 = vadd.f32 0.0, %v4795
    %4797 = vmatmul.f32.gmra.mxu0 %v4590
    %v4798 = vpop.f32.mrf.mxu0
    %v4799 = vadd.f32 0.0, %v4798
    %4800 = vmatmul.f32.gmra.mxu0 %v4593
    %v4801 = vpop.f32.mrf.mxu0
    %v4802 = vadd.f32 0.0, %v4801
    %4803 = vmatmul.f32.gmra.mxu0 %v4596
    %v4804 = vpop.f32.mrf.mxu0
    %v4805 = vadd.f32 0.0, %v4804
    %4806 = vmatmul.f32.gmra.mxu0 %v4599
    %v4807 = vpop.f32.mrf.mxu0
    %v4808 = vadd.f32 0.0, %v4807
    %4809 = vmatmul.f32.gmra.mxu0 %v4602
    %v4810 = vpop.f32.mrf.mxu0
    %v4811 = vadd.f32 0.0, %v4810
    %4812 = vmatmul.f32.gmra.mxu0 %v4605
    %v4813 = vpop.f32.mrf.mxu0
    %v4814 = vadd.f32 0.0, %v4813
    %4815 = vmatmul.f32.gmra.mxu0 %v4608
    %v4816 = vpop.f32.mrf.mxu0
    %v4817 = vadd.f32 0.0, %v4816
    %4818 = vmatmul.f32.gmra.mxu0 %v4611
    %v4819 = vpop.f32.mrf.mxu0
    %v4820 = vadd.f32 0.0, %v4819
    %4821 = vmatmul.f32.gmra.mxu0 %v4614
    %v4822 = vpop.f32.mrf.mxu0
    %v4823 = vadd.f32 0.0, %v4822
    %4824 = vmatmul.f32.gmra.mxu0 %v4617
    %v4825 = vpop.f32.mrf.mxu0
    %v4826 = vadd.f32 0.0, %v4825
    %4827 = vmatmul.f32.gmra.mxu0 %v4620
    %v4828 = vpop.f32.mrf.mxu0
    %v4829 = vadd.f32 0.0, %v4828
    %4830 = vmatmul.f32.gmra.mxu0 %v4623
    %v4831 = vpop.f32.mrf.mxu0
    %v4832 = vadd.f32 0.0, %v4831
    %4833 = vmatmul.f32.gmra.mxu0 %v4626
    %v4834 = vpop.f32.mrf.mxu0
    %v4835 = vadd.f32 0.0, %v4834
    %4836 = vmatmul.f32.gmra.mxu0 %v4629
    %v4837 = vpop.f32.mrf.mxu0
    %v4838 = vadd.f32 0.0, %v4837
    %4839 = vmatmul.f32.gmra.mxu0 %v4632
    %v4840 = vpop.f32.mrf.mxu0
    %v4841 = vadd.f32 0.0, %v4840
    %4842 = vmatmul.f32.gmra.mxu0 %v4635
    %v4843 = vpop.f32.mrf.mxu0
    %v4844 = vadd.f32 0.0, %v4843
    %4845 = vmatmul.f32.gmra.mxu0 %v4638
    %v4846 = vpop.f32.mrf.mxu0
    %v4847 = vadd.f32 0.0, %v4846
    %4848 = vmatmul.f32.gmra.mxu0 %v4641
    %v4849 = vpop.f32.mrf.mxu0
    %v4850 = vadd.f32 0.0, %v4849
    %4851 = vmatmul.f32.gmra.mxu0 %v4644
    %v4852 = vpop.f32.mrf.mxu0
    %v4853 = vadd.f32 0.0, %v4852
    %4854 = vmatmul.f32.gmra.mxu0 %v4647
    %v4855 = vpop.f32.mrf.mxu0
    %v4856 = vadd.f32 0.0, %v4855
    %4857 = vmatmul.f32.gmra.mxu0 %v4650
    %v4858 = vpop.f32.mrf.mxu0
    %v4859 = vadd.f32 0.0, %v4858
    %4860 = vmatmul.f32.gmra.mxu0 %v4653
    %v4861 = vpop.f32.mrf.mxu0
    %v4862 = vadd.f32 0.0, %v4861
    %4863 = vmatmul.f32.gmra.mxu0 %v4656
    %v4864 = vpop.f32.mrf.mxu0
    %v4865 = vadd.f32 0.0, %v4864
    %4866 = vmatmul.f32.gmra.mxu0 %v4659
    %v4867 = vpop.f32.mrf.mxu0
    %v4868 = vadd.f32 0.0, %v4867
    %4869 = vmatmul.f32.gmra.mxu0 %v4662
    %v4870 = vpop.f32.mrf.mxu0
    %v4871 = vadd.f32 0.0, %v4870
    %4872 = vmatmul.f32.gmra.mxu0 %v4665
    %v4873 = vpop.f32.mrf.mxu0
    %v4874 = vadd.f32 0.0, %v4873
    %4875 = vmatmul.f32.gmra.mxu0 %v4668
    %v4876 = vpop.f32.mrf.mxu0
    %v4877 = vadd.f32 0.0, %v4876
    %4878 = vmatmul.f32.gmra.mxu0 %v4671
    %v4879 = vpop.f32.mrf.mxu0
    %v4880 = vadd.f32 0.0, %v4879
    %4881 = vmatmul.f32.gmra.mxu0 %v4674
    %v4882 = vpop.f32.mrf.mxu0
    %v4883 = vadd.f32 0.0, %v4882
    %4884 = vmatmul.f32.gmra.mxu0 %v4677
    %v4885 = vpop.f32.mrf.mxu0
    %v4886 = vadd.f32 0.0, %v4885
    %4887 = vmatmul.f32.gmra.mxu0 %v4680
    %v4888 = vpop.f32.mrf.mxu0
    %v4889 = vadd.f32 0.0, %v4888
    %4890 = vmatmul.f32.gmra.mxu0 %v4683
    %v4891 = vpop.f32.mrf.mxu0
    %v4892 = vadd.f32 0.0, %v4891
    %4893 = vmatmul.f32.gmra.mxu0 %v4686
    %v4894 = vpop.f32.mrf.mxu0
    %v4895 = vadd.f32 0.0, %v4894
    %4896 = vmatmul.f32.gmra.mxu0 %v4689
    %v4897 = vpop.f32.mrf.mxu0
    %v4898 = vadd.f32 0.0, %v4897
    %4899 = vmatmul.f32.gmra.mxu0 %v4692
    %v4900 = vpop.f32.mrf.mxu0
    %v4901 = vadd.f32 0.0, %v4900
    %4902 = vmatmul.f32.gmra.mxu0 %v4695
    %v4903 = vpop.f32.mrf.mxu0
    %v4904 = vadd.f32 0.0, %v4903
    %4905 = vmatmul.f32.gmra.mxu0 %v4698
    %v4906 = vpop.f32.mrf.mxu0
    %v4907 = vadd.f32 0.0, %v4906
    %4908 = vmatmul.f32.gmra.mxu0 %v4701
    %v4909 = vpop.f32.mrf.mxu0
    %v4910 = vadd.f32 0.0, %v4909
    %4911 = vmatmul.f32.gmra.mxu0 %v4704
    %v4912 = vpop.f32.mrf.mxu0
    %v4913 = vadd.f32 0.0, %v4912
    %4914 = vmatmul.f32.gmra.mxu0 %v4707
    %v4915 = vpop.f32.mrf.mxu0
    %v4916 = vadd.f32 0.0, %v4915
    %4917 = vmatmul.f32.gmra.mxu0 %v4710
    %v4918 = vpop.f32.mrf.mxu0
    %v4919 = vadd.f32 0.0, %v4918
    %4920 = vmatmul.f32.gmra.mxu0 %v4713
    %v4921 = vpop.f32.mrf.mxu0
    %v4922 = vadd.f32 0.0, %v4921
    %4923 = vmatmul.f32.gmra.mxu0 %v4716
    %v4924 = vpop.f32.mrf.mxu0
    %v4925 = vadd.f32 0.0, %v4924
    %4926 = vdwg.mxu0
    %v4927 = vadd.f32 %v4396, %v4736
    %v4928 = vadd.f32 %v4397, %v4739
    %v4929 = vadd.f32 %v4398, %v4742
    %v4930 = vadd.f32 %v4399, %v4745
    %v4931 = vadd.f32 %v4400, %v4748
    %v4932 = vadd.f32 %v4401, %v4751
    %v4933 = vadd.f32 %v4402, %v4754
    %v4934 = vadd.f32 %v4403, %v4757
    %v4935 = vadd.f32 %v4404, %v4760
    %v4936 = vadd.f32 %v4405, %v4763
    %v4937 = vadd.f32 %v4406, %v4766
    %v4938 = vadd.f32 %v4407, %v4769
    %v4939 = vadd.f32 %v4408, %v4772
    %v4940 = vadd.f32 %v4409, %v4775
    %v4941 = vadd.f32 %v4410, %v4778
    %v4942 = vadd.f32 %v4411, %v4781
    %v4943 = vadd.f32 %v4412, %v4784
    %v4944 = vadd.f32 %v4413, %v4787
    %v4945 = vadd.f32 %v4414, %v4790
    %v4946 = vadd.f32 %v4415, %v4793
    %v4947 = vadd.f32 %v4416, %v4796
    %v4948 = vadd.f32 %v4417, %v4799
    %v4949 = vadd.f32 %v4418, %v4802
    %v4950 = vadd.f32 %v4419, %v4805
    %v4951 = vadd.f32 %v4420, %v4808
    %v4952 = vadd.f32 %v4421, %v4811
    %v4953 = vadd.f32 %v4422, %v4814
    %v4954 = vadd.f32 %v4423, %v4817
    %v4955 = vadd.f32 %v4424, %v4820
    %v4956 = vadd.f32 %v4425, %v4823
    %v4957 = vadd.f32 %v4426, %v4826
    %v4958 = vadd.f32 %v4427, %v4829
    %v4959 = vadd.f32 %v4428, %v4832
    %v4960 = vadd.f32 %v4429, %v4835
    %v4961 = vadd.f32 %v4430, %v4838
    %v4962 = vadd.f32 %v4431, %v4841
    %v4963 = vadd.f32 %v4432, %v4844
    %v4964 = vadd.f32 %v4433, %v4847
    %v4965 = vadd.f32 %v4434, %v4850
    %v4966 = vadd.f32 %v4435, %v4853
    %v4967 = vadd.f32 %v4436, %v4856
    %v4968 = vadd.f32 %v4437, %v4859
    %v4969 = vadd.f32 %v4438, %v4862
    %v4970 = vadd.f32 %v4439, %v4865
    %v4971 = vadd.f32 %v4440, %v4868
    %v4972 = vadd.f32 %v4441, %v4871
    %v4973 = vadd.f32 %v4442, %v4874
    %v4974 = vadd.f32 %v4443, %v4877
    %v4975 = vadd.f32 %v4444, %v4880
    %v4976 = vadd.f32 %v4445, %v4883
    %v4977 = vadd.f32 %v4446, %v4886
    %v4978 = vadd.f32 %v4447, %v4889
    %v4979 = vadd.f32 %v4448, %v4892
    %v4980 = vadd.f32 %v4449, %v4895
    %v4981 = vadd.f32 %v4450, %v4898
    %v4982 = vadd.f32 %v4451, %v4901
    %v4983 = vadd.f32 %v4452, %v4904
    %v4984 = vadd.f32 %v4453, %v4907
    %v4985 = vadd.f32 %v4454, %v4910
    %v4986 = vadd.f32 %v4455, %v4913
    %v4987 = vadd.f32 %v4456, %v4916
    %v4988 = vadd.f32 %v4457, %v4919
    %v4989 = vadd.f32 %v4458, %v4922
    %v4990 = vadd.f32 %v4459, %v4925
    %v4991 = vld [vmem:[%s2] sm:$0x1]
    %v4992 = vld [vmem:[%s3] sm:$0x1]
    %v4993 = vsel %vm36, %v4927, 0.0
    %v4994 = vsel %vm36, %v4928, 0.0
    %v4995 = vadd.f32 %v4993, %v4994
    %v4996 = vsel %vm36, %v4929, 0.0
    %v4997 = vadd.f32 %v4995, %v4996
    %v4998 = vsel %vm36, %v4930, 0.0
    %v4999 = vadd.f32 %v4997, %v4998
    %v5000 = vsel %vm36, %v4931, 0.0
    %v5001 = vadd.f32 %v4999, %v5000
    %v5002 = vsel %vm36, %v4932, 0.0
    %v5003 = vadd.f32 %v5001, %v5002
    %v5004 = vsel %vm36, %v4933, 0.0
    %v5005 = vadd.f32 %v5003, %v5004
    %v5006 = vsel %vm36, %v4934, 0.0
    %v5007 = vadd.f32 %v5005, %v5006
    %v5008 = vsel %vm36, %v4935, 0.0
    %v5009 = vadd.f32 %v5007, %v5008
    %v5010 = vsel %vm36, %v4936, 0.0
    %v5011 = vadd.f32 %v5009, %v5010
    %v5012 = vsel %vm36, %v4937, 0.0
    %v5013 = vadd.f32 %v5011, %v5012
    %v5014 = vsel %vm36, %v4938, 0.0
    %v5015 = vadd.f32 %v5013, %v5014
    %v5016 = vsel %vm36, %v4939, 0.0
    %v5017 = vadd.f32 %v5015, %v5016
    %v5018 = vsel %vm36, %v4940, 0.0
    %v5019 = vadd.f32 %v5017, %v5018
    %v5020 = vsel %vm36, %v4941, 0.0
    %v5021 = vadd.f32 %v5019, %v5020
    %v5022 = vsel %vm36, %v4942, 0.0
    %v5023 = vadd.f32 %v5021, %v5022
    %v5024 = vsel %vm36, %v4943, 0.0
    %v5025 = vadd.f32 %v5023, %v5024
    %v5026 = vsel %vm36, %v4944, 0.0
    %v5027 = vadd.f32 %v5025, %v5026
    %v5028 = vsel %vm36, %v4945, 0.0
    %v5029 = vadd.f32 %v5027, %v5028
    %v5030 = vsel %vm36, %v4946, 0.0
    %v5031 = vadd.f32 %v5029, %v5030
    %v5032 = vsel %vm36, %v4947, 0.0
    %v5033 = vadd.f32 %v5031, %v5032
    %v5034 = vsel %vm36, %v4948, 0.0
    %v5035 = vadd.f32 %v5033, %v5034
    %v5036 = vsel %vm36, %v4949, 0.0
    %v5037 = vadd.f32 %v5035, %v5036
    %v5038 = vsel %vm36, %v4950, 0.0
    %v5039 = vadd.f32 %v5037, %v5038
    %v5040 = vsel %vm36, %v4951, 0.0
    %v5041 = vadd.f32 %v5039, %v5040
    %v5042 = vsel %vm36, %v4952, 0.0
    %v5043 = vadd.f32 %v5041, %v5042
    %v5044 = vsel %vm36, %v4953, 0.0
    %v5045 = vadd.f32 %v5043, %v5044
    %v5046 = vsel %vm36, %v4954, 0.0
    %v5047 = vadd.f32 %v5045, %v5046
    %v5048 = vsel %vm36, %v4955, 0.0
    %v5049 = vadd.f32 %v5047, %v5048
    %v5050 = vsel %vm36, %v4956, 0.0
    %v5051 = vadd.f32 %v5049, %v5050
    %v5052 = vsel %vm36, %v4957, 0.0
    %v5053 = vadd.f32 %v5051, %v5052
    %v5054 = vsel %vm36, %v4958, 0.0
    %v5055 = vadd.f32 %v5053, %v5054
    %v5056 = vsel %vm36, %v4959, 0.0
    %v5057 = vadd.f32 %v5055, %v5056
    %v5058 = vsel %vm36, %v4960, 0.0
    %v5059 = vadd.f32 %v5057, %v5058
    %v5060 = vsel %vm36, %v4961, 0.0
    %v5061 = vadd.f32 %v5059, %v5060
    %v5062 = vsel %vm36, %v4962, 0.0
    %v5063 = vadd.f32 %v5061, %v5062
    %v5064 = vsel %vm36, %v4963, 0.0
    %v5065 = vadd.f32 %v5063, %v5064
    %v5066 = vsel %vm36, %v4964, 0.0
    %v5067 = vadd.f32 %v5065, %v5066
    %v5068 = vsel %vm36, %v4965, 0.0
    %v5069 = vadd.f32 %v5067, %v5068
    %v5070 = vsel %vm36, %v4966, 0.0
    %v5071 = vadd.f32 %v5069, %v5070
    %v5072 = vsel %vm36, %v4967, 0.0
    %v5073 = vadd.f32 %v5071, %v5072
    %v5074 = vsel %vm36, %v4968, 0.0
    %v5075 = vadd.f32 %v5073, %v5074
    %v5076 = vsel %vm36, %v4969, 0.0
    %v5077 = vadd.f32 %v5075, %v5076
    %v5078 = vsel %vm36, %v4970, 0.0
    %v5079 = vadd.f32 %v5077, %v5078
    %v5080 = vsel %vm36, %v4971, 0.0
    %v5081 = vadd.f32 %v5079, %v5080
    %v5082 = vsel %vm36, %v4972, 0.0
    %v5083 = vadd.f32 %v5081, %v5082
    %v5084 = vsel %vm36, %v4973, 0.0
    %v5085 = vadd.f32 %v5083, %v5084
    %v5086 = vsel %vm36, %v4974, 0.0
    %v5087 = vadd.f32 %v5085, %v5086
    %v5088 = vsel %vm36, %v4975, 0.0
    %v5089 = vadd.f32 %v5087, %v5088
    %v5090 = vsel %vm36, %v4976, 0.0
    %v5091 = vadd.f32 %v5089, %v5090
    %v5092 = vsel %vm36, %v4977, 0.0
    %v5093 = vadd.f32 %v5091, %v5092
    %v5094 = vsel %vm36, %v4978, 0.0
    %v5095 = vadd.f32 %v5093, %v5094
    %v5096 = vsel %vm36, %v4979, 0.0
    %v5097 = vadd.f32 %v5095, %v5096
    %v5098 = vsel %vm36, %v4980, 0.0
    %v5099 = vadd.f32 %v5097, %v5098
    %v5100 = vsel %vm36, %v4981, 0.0
    %v5101 = vadd.f32 %v5099, %v5100
    %v5102 = vsel %vm36, %v4982, 0.0
    %v5103 = vadd.f32 %v5101, %v5102
    %v5104 = vsel %vm36, %v4983, 0.0
    %v5105 = vadd.f32 %v5103, %v5104
    %v5106 = vsel %vm36, %v4984, 0.0
    %v5107 = vadd.f32 %v5105, %v5106
    %v5108 = vsel %vm36, %v4985, 0.0
    %v5109 = vadd.f32 %v5107, %v5108
    %v5110 = vsel %vm36, %v4986, 0.0
    %v5111 = vadd.f32 %v5109, %v5110
    %v5112 = vsel %vm36, %v4987, 0.0
    %v5113 = vadd.f32 %v5111, %v5112
    %v5114 = vsel %vm36, %v4988, 0.0
    %v5115 = vadd.f32 %v5113, %v5114
    %v5116 = vsel %vm36, %v4989, 0.0
    %v5117 = vadd.f32 %v5115, %v5116
    %v5118 = vsel %vm36, %v4990, 0.0
    %v5119 = vadd.f32 %v5117, %v5118
    %v5120 = vrot.slane %v5119, 4
    %v5121 = vadd.f32 %v5119, %v5120
    %v5122 = vrot.slane %v5121, 2
    %v5123 = vadd.f32 %v5121, %v5122
    %v5124 = vrot.slane %v5123, 1
    %v5125 = vadd.f32 %v5123, %v5124
    %v5126 = vmul.f32 %v4927, %v4927
    %v5127 = vmul.f32 %v4928, %v4928
    %v5128 = vmul.f32 %v4929, %v4929
    %v5129 = vmul.f32 %v4930, %v4930
    %v5130 = vmul.f32 %v4931, %v4931
    %v5131 = vmul.f32 %v4932, %v4932
    %v5132 = vmul.f32 %v4933, %v4933
    %v5133 = vmul.f32 %v4934, %v4934
    %v5134 = vmul.f32 %v4935, %v4935
    %v5135 = vmul.f32 %v4936, %v4936
    %v5136 = vmul.f32 %v4937, %v4937
    %v5137 = vmul.f32 %v4938, %v4938
    %v5138 = vmul.f32 %v4939, %v4939
    %v5139 = vmul.f32 %v4940, %v4940
    %v5140 = vmul.f32 %v4941, %v4941
    %v5141 = vmul.f32 %v4942, %v4942
    %v5142 = vmul.f32 %v4943, %v4943
    %v5143 = vmul.f32 %v4944, %v4944
    %v5144 = vmul.f32 %v4945, %v4945
    %v5145 = vmul.f32 %v4946, %v4946
    %v5146 = vmul.f32 %v4947, %v4947
    %v5147 = vmul.f32 %v4948, %v4948
    %v5148 = vmul.f32 %v4949, %v4949
    %v5149 = vmul.f32 %v4950, %v4950
    %v5150 = vmul.f32 %v4951, %v4951
    %v5151 = vmul.f32 %v4952, %v4952
    %v5152 = vmul.f32 %v4953, %v4953
    %v5153 = vmul.f32 %v4954, %v4954
    %v5154 = vmul.f32 %v4955, %v4955
    %v5155 = vmul.f32 %v4956, %v4956
    %v5156 = vmul.f32 %v4957, %v4957
    %v5157 = vmul.f32 %v4958, %v4958
    %v5158 = vmul.f32 %v4959, %v4959
    %v5159 = vmul.f32 %v4960, %v4960
    %v5160 = vmul.f32 %v4961, %v4961
    %v5161 = vmul.f32 %v4962, %v4962
    %v5162 = vmul.f32 %v4963, %v4963
    %v5163 = vmul.f32 %v4964, %v4964
    %v5164 = vmul.f32 %v4965, %v4965
    %v5165 = vmul.f32 %v4966, %v4966
    %v5166 = vmul.f32 %v4967, %v4967
    %v5167 = vmul.f32 %v4968, %v4968
    %v5168 = vmul.f32 %v4969, %v4969
    %v5169 = vmul.f32 %v4970, %v4970
    %v5170 = vmul.f32 %v4971, %v4971
    %v5171 = vmul.f32 %v4972, %v4972
    %v5172 = vmul.f32 %v4973, %v4973
    %v5173 = vmul.f32 %v4974, %v4974
    %v5174 = vmul.f32 %v4975, %v4975
    %v5175 = vmul.f32 %v4976, %v4976
    %v5176 = vmul.f32 %v4977, %v4977
    %v5177 = vmul.f32 %v4978, %v4978
    %v5178 = vmul.f32 %v4979, %v4979
    %v5179 = vmul.f32 %v4980, %v4980
    %v5180 = vmul.f32 %v4981, %v4981
    %v5181 = vmul.f32 %v4982, %v4982
    %v5182 = vmul.f32 %v4983, %v4983
    %v5183 = vmul.f32 %v4984, %v4984
    %v5184 = vmul.f32 %v4985, %v4985
    %v5185 = vmul.f32 %v4986, %v4986
    %v5186 = vmul.f32 %v4987, %v4987
    %v5187 = vmul.f32 %v4988, %v4988
    %v5188 = vmul.f32 %v4989, %v4989
    %v5189 = vmul.f32 %v4990, %v4990
    %v5190 = vsel %vm36, %v5126, 0.0
    %v5191 = vsel %vm36, %v5127, 0.0
    %v5192 = vadd.f32 %v5190, %v5191
    %v5193 = vsel %vm36, %v5128, 0.0
    %v5194 = vadd.f32 %v5192, %v5193
    %v5195 = vsel %vm36, %v5129, 0.0
    %v5196 = vadd.f32 %v5194, %v5195
    %v5197 = vsel %vm36, %v5130, 0.0
    %v5198 = vadd.f32 %v5196, %v5197
    %v5199 = vsel %vm36, %v5131, 0.0
    %v5200 = vadd.f32 %v5198, %v5199
    %v5201 = vsel %vm36, %v5132, 0.0
    %v5202 = vadd.f32 %v5200, %v5201
    %v5203 = vsel %vm36, %v5133, 0.0
    %v5204 = vadd.f32 %v5202, %v5203
    %v5205 = vsel %vm36, %v5134, 0.0
    %v5206 = vadd.f32 %v5204, %v5205
    %v5207 = vsel %vm36, %v5135, 0.0
    %v5208 = vadd.f32 %v5206, %v5207
    %v5209 = vsel %vm36, %v5136, 0.0
    %v5210 = vadd.f32 %v5208, %v5209
    %v5211 = vsel %vm36, %v5137, 0.0
    %v5212 = vadd.f32 %v5210, %v5211
    %v5213 = vsel %vm36, %v5138, 0.0
    %v5214 = vadd.f32 %v5212, %v5213
    %v5215 = vsel %vm36, %v5139, 0.0
    %v5216 = vadd.f32 %v5214, %v5215
    %v5217 = vsel %vm36, %v5140, 0.0
    %v5218 = vadd.f32 %v5216, %v5217
    %v5219 = vsel %vm36, %v5141, 0.0
    %v5220 = vadd.f32 %v5218, %v5219
    %v5221 = vsel %vm36, %v5142, 0.0
    %v5222 = vadd.f32 %v5220, %v5221
    %v5223 = vsel %vm36, %v5143, 0.0
    %v5224 = vadd.f32 %v5222, %v5223
    %v5225 = vsel %vm36, %v5144, 0.0
    %v5226 = vadd.f32 %v5224, %v5225
    %v5227 = vsel %vm36, %v5145, 0.0
    %v5228 = vadd.f32 %v5226, %v5227
    %v5229 = vsel %vm36, %v5146, 0.0
    %v5230 = vadd.f32 %v5228, %v5229
    %v5231 = vsel %vm36, %v5147, 0.0
    %v5232 = vadd.f32 %v5230, %v5231
    %v5233 = vsel %vm36, %v5148, 0.0
    %v5234 = vadd.f32 %v5232, %v5233
    %v5235 = vsel %vm36, %v5149, 0.0
    %v5236 = vadd.f32 %v5234, %v5235
    %v5237 = vsel %vm36, %v5150, 0.0
    %v5238 = vadd.f32 %v5236, %v5237
    %v5239 = vsel %vm36, %v5151, 0.0
    %v5240 = vadd.f32 %v5238, %v5239
    %v5241 = vsel %vm36, %v5152, 0.0
    %v5242 = vadd.f32 %v5240, %v5241
    %v5243 = vsel %vm36, %v5153, 0.0
    %v5244 = vadd.f32 %v5242, %v5243
    %v5245 = vsel %vm36, %v5154, 0.0
    %v5246 = vadd.f32 %v5244, %v5245
    %v5247 = vsel %vm36, %v5155, 0.0
    %v5248 = vadd.f32 %v5246, %v5247
    %v5249 = vsel %vm36, %v5156, 0.0
    %v5250 = vadd.f32 %v5248, %v5249
    %v5251 = vsel %vm36, %v5157, 0.0
    %v5252 = vadd.f32 %v5250, %v5251
    %v5253 = vsel %vm36, %v5158, 0.0
    %v5254 = vadd.f32 %v5252, %v5253
    %v5255 = vsel %vm36, %v5159, 0.0
    %v5256 = vadd.f32 %v5254, %v5255
    %v5257 = vsel %vm36, %v5160, 0.0
    %v5258 = vadd.f32 %v5256, %v5257
    %v5259 = vsel %vm36, %v5161, 0.0
    %v5260 = vadd.f32 %v5258, %v5259
    %v5261 = vsel %vm36, %v5162, 0.0
    %v5262 = vadd.f32 %v5260, %v5261
    %v5263 = vsel %vm36, %v5163, 0.0
    %v5264 = vadd.f32 %v5262, %v5263
    %v5265 = vsel %vm36, %v5164, 0.0
    %v5266 = vadd.f32 %v5264, %v5265
    %v5267 = vsel %vm36, %v5165, 0.0
    %v5268 = vadd.f32 %v5266, %v5267
    %v5269 = vsel %vm36, %v5166, 0.0
    %v5270 = vadd.f32 %v5268, %v5269
    %v5271 = vsel %vm36, %v5167, 0.0
    %v5272 = vadd.f32 %v5270, %v5271
    %v5273 = vsel %vm36, %v5168, 0.0
    %v5274 = vadd.f32 %v5272, %v5273
    %v5275 = vsel %vm36, %v5169, 0.0
    %v5276 = vadd.f32 %v5274, %v5275
    %v5277 = vsel %vm36, %v5170, 0.0
    %v5278 = vadd.f32 %v5276, %v5277
    %v5279 = vsel %vm36, %v5171, 0.0
    %v5280 = vadd.f32 %v5278, %v5279
    %v5281 = vsel %vm36, %v5172, 0.0
    %v5282 = vadd.f32 %v5280, %v5281
    %v5283 = vsel %vm36, %v5173, 0.0
    %v5284 = vadd.f32 %v5282, %v5283
    %v5285 = vsel %vm36, %v5174, 0.0
    %v5286 = vadd.f32 %v5284, %v5285
    %v5287 = vsel %vm36, %v5175, 0.0
    %v5288 = vadd.f32 %v5286, %v5287
    %v5289 = vsel %vm36, %v5176, 0.0
    %v5290 = vadd.f32 %v5288, %v5289
    %v5291 = vsel %vm36, %v5177, 0.0
    %v5292 = vadd.f32 %v5290, %v5291
    %v5293 = vsel %vm36, %v5178, 0.0
    %v5294 = vadd.f32 %v5292, %v5293
    %v5295 = vsel %vm36, %v5179, 0.0
    %v5296 = vadd.f32 %v5294, %v5295
    %v5297 = vsel %vm36, %v5180, 0.0
    %v5298 = vadd.f32 %v5296, %v5297
    %v5299 = vsel %vm36, %v5181, 0.0
    %v5300 = vadd.f32 %v5298, %v5299
    %v5301 = vsel %vm36, %v5182, 0.0
    %v5302 = vadd.f32 %v5300, %v5301
    %v5303 = vsel %vm36, %v5183, 0.0
    %v5304 = vadd.f32 %v5302, %v5303
    %v5305 = vsel %vm36, %v5184, 0.0
    %v5306 = vadd.f32 %v5304, %v5305
    %v5307 = vsel %vm36, %v5185, 0.0
    %v5308 = vadd.f32 %v5306, %v5307
    %v5309 = vsel %vm36, %v5186, 0.0
    %v5310 = vadd.f32 %v5308, %v5309
    %v5311 = vsel %vm36, %v5187, 0.0
    %v5312 = vadd.f32 %v5310, %v5311
    %v5313 = vsel %vm36, %v5188, 0.0
    %v5314 = vadd.f32 %v5312, %v5313
    %v5315 = vsel %vm36, %v5189, 0.0
    %v5316 = vadd.f32 %v5314, %v5315
    %v5317 = vrot.slane %v5316, 4
    %v5318 = vadd.f32 %v5316, %v5317
    %v5319 = vrot.slane %v5318, 2
    %v5320 = vadd.f32 %v5318, %v5319
    %v5321 = vrot.slane %v5320, 1
    %v5322 = vadd.f32 %v5320, %v5321
    %v5323 = vmul.f32 %v5125, 0.001953125
    %v5324 = vmul.f32 %v5322, 0.001953125
    %v5325 = vmul.f32 %v5323, %v5323
    %v5326 = vsub.f32 %v5324, %v5325
    %v5327 = vmax.f32 %v5326, 0.0
    %v5328 = vsub.f32 %v4927, %v5323
    %v5329 = vsub.f32 %v4928, %v5323
    %v5330 = vsub.f32 %v4929, %v5323
    %v5331 = vsub.f32 %v4930, %v5323
    %v5332 = vsub.f32 %v4931, %v5323
    %v5333 = vsub.f32 %v4932, %v5323
    %v5334 = vsub.f32 %v4933, %v5323
    %v5335 = vsub.f32 %v4934, %v5323
    %v5336 = vsub.f32 %v4935, %v5323
    %v5337 = vsub.f32 %v4936, %v5323
    %v5338 = vsub.f32 %v4937, %v5323
    %v5339 = vsub.f32 %v4938, %v5323
    %v5340 = vsub.f32 %v4939, %v5323
    %v5341 = vsub.f32 %v4940, %v5323
    %v5342 = vsub.f32 %v4941, %v5323
    %v5343 = vsub.f32 %v4942, %v5323
    %v5344 = vsub.f32 %v4943, %v5323
    %v5345 = vsub.f32 %v4944, %v5323
    %v5346 = vsub.f32 %v4945, %v5323
    %v5347 = vsub.f32 %v4946, %v5323
    %v5348 = vsub.f32 %v4947, %v5323
    %v5349 = vsub.f32 %v4948, %v5323
    %v5350 = vsub.f32 %v4949, %v5323
    %v5351 = vsub.f32 %v4950, %v5323
    %v5352 = vsub.f32 %v4951, %v5323
    %v5353 = vsub.f32 %v4952, %v5323
    %v5354 = vsub.f32 %v4953, %v5323
    %v5355 = vsub.f32 %v4954, %v5323
    %v5356 = vsub.f32 %v4955, %v5323
    %v5357 = vsub.f32 %v4956, %v5323
    %v5358 = vsub.f32 %v4957, %v5323
    %v5359 = vsub.f32 %v4958, %v5323
    %v5360 = vsub.f32 %v4959, %v5323
    %v5361 = vsub.f32 %v4960, %v5323
    %v5362 = vsub.f32 %v4961, %v5323
    %v5363 = vsub.f32 %v4962, %v5323
    %v5364 = vsub.f32 %v4963, %v5323
    %v5365 = vsub.f32 %v4964, %v5323
    %v5366 = vsub.f32 %v4965, %v5323
    %v5367 = vsub.f32 %v4966, %v5323
    %v5368 = vsub.f32 %v4967, %v5323
    %v5369 = vsub.f32 %v4968, %v5323
    %v5370 = vsub.f32 %v4969, %v5323
    %v5371 = vsub.f32 %v4970, %v5323
    %v5372 = vsub.f32 %v4971, %v5323
    %v5373 = vsub.f32 %v4972, %v5323
    %v5374 = vsub.f32 %v4973, %v5323
    %v5375 = vsub.f32 %v4974, %v5323
    %v5376 = vsub.f32 %v4975, %v5323
    %v5377 = vsub.f32 %v4976, %v5323
    %v5378 = vsub.f32 %v4977, %v5323
    %v5379 = vsub.f32 %v4978, %v5323
    %v5380 = vsub.f32 %v4979, %v5323
    %v5381 = vsub.f32 %v4980, %v5323
    %v5382 = vsub.f32 %v4981, %v5323
    %v5383 = vsub.f32 %v4982, %v5323
    %v5384 = vsub.f32 %v4983, %v5323
    %v5385 = vsub.f32 %v4984, %v5323
    %v5386 = vsub.f32 %v4985, %v5323
    %v5387 = vsub.f32 %v4986, %v5323
    %v5388 = vsub.f32 %v4987, %v5323
    %v5389 = vsub.f32 %v4988, %v5323
    %v5390 = vsub.f32 %v4989, %v5323
    %v5391 = vsub.f32 %v4990, %v5323
    %v5392 = vadd.f32 %v5327, 1e-05
    %v5393 = vrsqrt.pop %v5392
    %v5394 = vmul.f32 %v5393, %v5392
    %v5395 = vmul.f32 %v5394, %v5393
    %v5396 = vmul.f32 0.5, %v5395
    %v5397 = vsub.f32 1.5, %v5396
    %v5398 = vmul.f32 %v5393, %v5397
    %vm5399 = vweird.f32 %v5392
    %vm5400 = vweird.f32 %v5393
    %vm5401 = vmor %vm5399, %vm5400
    %v5402 = vsel %vm5401, %v5393, %v5398
    %v5403 = vmul.f32 %v5328, %v5402
    %v5404 = vmul.f32 %v5329, %v5402
    %v5405 = vmul.f32 %v5330, %v5402
    %v5406 = vmul.f32 %v5331, %v5402
    %v5407 = vmul.f32 %v5332, %v5402
    %v5408 = vmul.f32 %v5333, %v5402
    %v5409 = vmul.f32 %v5334, %v5402
    %v5410 = vmul.f32 %v5335, %v5402
    %v5411 = vmul.f32 %v5336, %v5402
    %v5412 = vmul.f32 %v5337, %v5402
    %v5413 = vmul.f32 %v5338, %v5402
    %v5414 = vmul.f32 %v5339, %v5402
    %v5415 = vmul.f32 %v5340, %v5402
    %v5416 = vmul.f32 %v5341, %v5402
    %v5417 = vmul.f32 %v5342, %v5402
    %v5418 = vmul.f32 %v5343, %v5402
    %v5419 = vmul.f32 %v5344, %v5402
    %v5420 = vmul.f32 %v5345, %v5402
    %v5421 = vmul.f32 %v5346, %v5402
    %v5422 = vmul.f32 %v5347, %v5402
    %v5423 = vmul.f32 %v5348, %v5402
    %v5424 = vmul.f32 %v5349, %v5402
    %v5425 = vmul.f32 %v5350, %v5402
    %v5426 = vmul.f32 %v5351, %v5402
    %v5427 = vmul.f32 %v5352, %v5402
    %v5428 = vmul.f32 %v5353, %v5402
    %v5429 = vmul.f32 %v5354, %v5402
    %v5430 = vmul.f32 %v5355, %v5402
    %v5431 = vmul.f32 %v5356, %v5402
    %v5432 = vmul.f32 %v5357, %v5402
    %v5433 = vmul.f32 %v5358, %v5402
    %v5434 = vmul.f32 %v5359, %v5402
    %v5435 = vmul.f32 %v5360, %v5402
    %v5436 = vmul.f32 %v5361, %v5402
    %v5437 = vmul.f32 %v5362, %v5402
    %v5438 = vmul.f32 %v5363, %v5402
    %v5439 = vmul.f32 %v5364, %v5402
    %v5440 = vmul.f32 %v5365, %v5402
    %v5441 = vmul.f32 %v5366, %v5402
    %v5442 = vmul.f32 %v5367, %v5402
    %v5443 = vmul.f32 %v5368, %v5402
    %v5444 = vmul.f32 %v5369, %v5402
    %v5445 = vmul.f32 %v5370, %v5402
    %v5446 = vmul.f32 %v5371, %v5402
    %v5447 = vmul.f32 %v5372, %v5402
    %v5448 = vmul.f32 %v5373, %v5402
    %v5449 = vmul.f32 %v5374, %v5402
    %v5450 = vmul.f32 %v5375, %v5402
    %v5451 = vmul.f32 %v5376, %v5402
    %v5452 = vmul.f32 %v5377, %v5402
    %v5453 = vmul.f32 %v5378, %v5402
    %v5454 = vmul.f32 %v5379, %v5402
    %v5455 = vmul.f32 %v5380, %v5402
    %v5456 = vmul.f32 %v5381, %v5402
    %v5457 = vmul.f32 %v5382, %v5402
    %v5458 = vmul.f32 %v5383, %v5402
    %v5459 = vmul.f32 %v5384, %v5402
    %v5460 = vmul.f32 %v5385, %v5402
    %v5461 = vmul.f32 %v5386, %v5402
    %v5462 = vmul.f32 %v5387, %v5402
    %v5463 = vmul.f32 %v5388, %v5402
    %v5464 = vmul.f32 %v5389, %v5402
    %v5465 = vmul.f32 %v5390, %v5402
    %v5466 = vmul.f32 %v5391, %v5402
    %v5468 = vperm.slane %v4991, 0
    %v5470 = vmul.f32 %v5403, %v5468
    %v5471 = vmul.f32 %v5404, %v5468
    %v5472 = vmul.f32 %v5405, %v5468
    %v5473 = vmul.f32 %v5406, %v5468
    %v5474 = vmul.f32 %v5407, %v5468
    %v5475 = vmul.f32 %v5408, %v5468
    %v5476 = vmul.f32 %v5409, %v5468
    %v5477 = vmul.f32 %v5410, %v5468
    %v5478 = vmul.f32 %v5411, %v5468
    %v5479 = vmul.f32 %v5412, %v5468
    %v5480 = vmul.f32 %v5413, %v5468
    %v5481 = vmul.f32 %v5414, %v5468
    %v5482 = vmul.f32 %v5415, %v5468
    %v5483 = vmul.f32 %v5416, %v5468
    %v5484 = vmul.f32 %v5417, %v5468
    %v5485 = vmul.f32 %v5418, %v5468
    %v5486 = vmul.f32 %v5419, %v5468
    %v5487 = vmul.f32 %v5420, %v5468
    %v5488 = vmul.f32 %v5421, %v5468
    %v5489 = vmul.f32 %v5422, %v5468
    %v5490 = vmul.f32 %v5423, %v5468
    %v5491 = vmul.f32 %v5424, %v5468
    %v5492 = vmul.f32 %v5425, %v5468
    %v5493 = vmul.f32 %v5426, %v5468
    %v5494 = vmul.f32 %v5427, %v5468
    %v5495 = vmul.f32 %v5428, %v5468
    %v5496 = vmul.f32 %v5429, %v5468
    %v5497 = vmul.f32 %v5430, %v5468
    %v5498 = vmul.f32 %v5431, %v5468
    %v5499 = vmul.f32 %v5432, %v5468
    %v5500 = vmul.f32 %v5433, %v5468
    %v5501 = vmul.f32 %v5434, %v5468
    %v5502 = vmul.f32 %v5435, %v5468
    %v5503 = vmul.f32 %v5436, %v5468
    %v5504 = vmul.f32 %v5437, %v5468
    %v5505 = vmul.f32 %v5438, %v5468
    %v5506 = vmul.f32 %v5439, %v5468
    %v5507 = vmul.f32 %v5440, %v5468
    %v5508 = vmul.f32 %v5441, %v5468
    %v5509 = vmul.f32 %v5442, %v5468
    %v5510 = vmul.f32 %v5443, %v5468
    %v5511 = vmul.f32 %v5444, %v5468
    %v5512 = vmul.f32 %v5445, %v5468
    %v5513 = vmul.f32 %v5446, %v5468
    %v5514 = vmul.f32 %v5447, %v5468
    %v5515 = vmul.f32 %v5448, %v5468
    %v5516 = vmul.f32 %v5449, %v5468
    %v5517 = vmul.f32 %v5450, %v5468
    %v5518 = vmul.f32 %v5451, %v5468
    %v5519 = vmul.f32 %v5452, %v5468
    %v5520 = vmul.f32 %v5453, %v5468
    %v5521 = vmul.f32 %v5454, %v5468
    %v5522 = vmul.f32 %v5455, %v5468
    %v5523 = vmul.f32 %v5456, %v5468
    %v5524 = vmul.f32 %v5457, %v5468
    %v5525 = vmul.f32 %v5458, %v5468
    %v5526 = vmul.f32 %v5459, %v5468
    %v5527 = vmul.f32 %v5460, %v5468
    %v5528 = vmul.f32 %v5461, %v5468
    %v5529 = vmul.f32 %v5462, %v5468
    %v5530 = vmul.f32 %v5463, %v5468
    %v5531 = vmul.f32 %v5464, %v5468
    %v5532 = vmul.f32 %v5465, %v5468
    %v5533 = vmul.f32 %v5466, %v5468
    %v5535 = vperm.slane %v4992, 0
    %v5537 = vadd.f32 %v5470, %v5535
    %v5538 = vadd.f32 %v5471, %v5535
    %v5539 = vadd.f32 %v5472, %v5535
    %v5540 = vadd.f32 %v5473, %v5535
    %v5541 = vadd.f32 %v5474, %v5535
    %v5542 = vadd.f32 %v5475, %v5535
    %v5543 = vadd.f32 %v5476, %v5535
    %v5544 = vadd.f32 %v5477, %v5535
    %v5545 = vadd.f32 %v5478, %v5535
    %v5546 = vadd.f32 %v5479, %v5535
    %v5547 = vadd.f32 %v5480, %v5535
    %v5548 = vadd.f32 %v5481, %v5535
    %v5549 = vadd.f32 %v5482, %v5535
    %v5550 = vadd.f32 %v5483, %v5535
    %v5551 = vadd.f32 %v5484, %v5535
    %v5552 = vadd.f32 %v5485, %v5535
    %v5553 = vadd.f32 %v5486, %v5535
    %v5554 = vadd.f32 %v5487, %v5535
    %v5555 = vadd.f32 %v5488, %v5535
    %v5556 = vadd.f32 %v5489, %v5535
    %v5557 = vadd.f32 %v5490, %v5535
    %v5558 = vadd.f32 %v5491, %v5535
    %v5559 = vadd.f32 %v5492, %v5535
    %v5560 = vadd.f32 %v5493, %v5535
    %v5561 = vadd.f32 %v5494, %v5535
    %v5562 = vadd.f32 %v5495, %v5535
    %v5563 = vadd.f32 %v5496, %v5535
    %v5564 = vadd.f32 %v5497, %v5535
    %v5565 = vadd.f32 %v5498, %v5535
    %v5566 = vadd.f32 %v5499, %v5535
    %v5567 = vadd.f32 %v5500, %v5535
    %v5568 = vadd.f32 %v5501, %v5535
    %v5569 = vadd.f32 %v5502, %v5535
    %v5570 = vadd.f32 %v5503, %v5535
    %v5571 = vadd.f32 %v5504, %v5535
    %v5572 = vadd.f32 %v5505, %v5535
    %v5573 = vadd.f32 %v5506, %v5535
    %v5574 = vadd.f32 %v5507, %v5535
    %v5575 = vadd.f32 %v5508, %v5535
    %v5576 = vadd.f32 %v5509, %v5535
    %v5577 = vadd.f32 %v5510, %v5535
    %v5578 = vadd.f32 %v5511, %v5535
    %v5579 = vadd.f32 %v5512, %v5535
    %v5580 = vadd.f32 %v5513, %v5535
    %v5581 = vadd.f32 %v5514, %v5535
    %v5582 = vadd.f32 %v5515, %v5535
    %v5583 = vadd.f32 %v5516, %v5535
    %v5584 = vadd.f32 %v5517, %v5535
    %v5585 = vadd.f32 %v5518, %v5535
    %v5586 = vadd.f32 %v5519, %v5535
    %v5587 = vadd.f32 %v5520, %v5535
    %v5588 = vadd.f32 %v5521, %v5535
    %v5589 = vadd.f32 %v5522, %v5535
    %v5590 = vadd.f32 %v5523, %v5535
    %v5591 = vadd.f32 %v5524, %v5535
    %v5592 = vadd.f32 %v5525, %v5535
    %v5593 = vadd.f32 %v5526, %v5535
    %v5594 = vadd.f32 %v5527, %v5535
    %v5595 = vadd.f32 %v5528, %v5535
    %v5596 = vadd.f32 %v5529, %v5535
    %v5597 = vadd.f32 %v5530, %v5535
    %v5598 = vadd.f32 %v5531, %v5535
    %v5599 = vadd.f32 %v5532, %v5535
    %v5600 = vadd.f32 %v5533, %v5535
    %v5601 = vmax.f32 %v5537, 0.0
    %v5602 = vmax.f32 %v5538, 0.0
    %v5603 = vmax.f32 %v5539, 0.0
    %v5604 = vmax.f32 %v5540, 0.0
    %v5605 = vmax.f32 %v5541, 0.0
    %v5606 = vmax.f32 %v5542, 0.0
    %v5607 = vmax.f32 %v5543, 0.0
    %v5608 = vmax.f32 %v5544, 0.0
    %v5609 = vmax.f32 %v5545, 0.0
    %v5610 = vmax.f32 %v5546, 0.0
    %v5611 = vmax.f32 %v5547, 0.0
    %v5612 = vmax.f32 %v5548, 0.0
    %v5613 = vmax.f32 %v5549, 0.0
    %v5614 = vmax.f32 %v5550, 0.0
    %v5615 = vmax.f32 %v5551, 0.0
    %v5616 = vmax.f32 %v5552, 0.0
    %v5617 = vmax.f32 %v5553, 0.0
    %v5618 = vmax.f32 %v5554, 0.0
    %v5619 = vmax.f32 %v5555, 0.0
    %v5620 = vmax.f32 %v5556, 0.0
    %v5621 = vmax.f32 %v5557, 0.0
    %v5622 = vmax.f32 %v5558, 0.0
    %v5623 = vmax.f32 %v5559, 0.0
    %v5624 = vmax.f32 %v5560, 0.0
    %v5625 = vmax.f32 %v5561, 0.0
    %v5626 = vmax.f32 %v5562, 0.0
    %v5627 = vmax.f32 %v5563, 0.0
    %v5628 = vmax.f32 %v5564, 0.0
    %v5629 = vmax.f32 %v5565, 0.0
    %v5630 = vmax.f32 %v5566, 0.0
    %v5631 = vmax.f32 %v5567, 0.0
    %v5632 = vmax.f32 %v5568, 0.0
    %v5633 = vmax.f32 %v5569, 0.0
    %v5634 = vmax.f32 %v5570, 0.0
    %v5635 = vmax.f32 %v5571, 0.0
    %v5636 = vmax.f32 %v5572, 0.0
    %v5637 = vmax.f32 %v5573, 0.0
    %v5638 = vmax.f32 %v5574, 0.0
    %v5639 = vmax.f32 %v5575, 0.0
    %v5640 = vmax.f32 %v5576, 0.0
    %v5641 = vmax.f32 %v5577, 0.0
    %v5642 = vmax.f32 %v5578, 0.0
    %v5643 = vmax.f32 %v5579, 0.0
    %v5644 = vmax.f32 %v5580, 0.0
    %v5645 = vmax.f32 %v5581, 0.0
    %v5646 = vmax.f32 %v5582, 0.0
    %v5647 = vmax.f32 %v5583, 0.0
    %v5648 = vmax.f32 %v5584, 0.0
    %v5649 = vmax.f32 %v5585, 0.0
    %v5650 = vmax.f32 %v5586, 0.0
    %v5651 = vmax.f32 %v5587, 0.0
    %v5652 = vmax.f32 %v5588, 0.0
    %v5653 = vmax.f32 %v5589, 0.0
    %v5654 = vmax.f32 %v5590, 0.0
    %v5655 = vmax.f32 %v5591, 0.0
    %v5656 = vmax.f32 %v5592, 0.0
    %v5657 = vmax.f32 %v5593, 0.0
    %v5658 = vmax.f32 %v5594, 0.0
    %v5659 = vmax.f32 %v5595, 0.0
    %v5660 = vmax.f32 %v5596, 0.0
    %v5661 = vmax.f32 %v5597, 0.0
    %v5662 = vmax.f32 %v5598, 0.0
    %v5663 = vmax.f32 %v5599, 0.0
    %v5664 = vmax.f32 %v5600, 0.0
    %5665 = vst.msk [vmem:[%s274 + $0x1] sm:$0xff] %vm36, %v5601
    %5666 = vst.msk [vmem:[%s274 + $0x9] sm:$0xff] %vm36, %v5602
    %5667 = vst.msk [vmem:[%s274 + $0x19] sm:$0xff] %vm36, %v5603
    %5668 = vst.msk [vmem:[%s274 + $0x21] sm:$0xff] %vm36, %v5604
    %5669 = vst.msk [vmem:[%s274 + $0x31] sm:$0xff] %vm36, %v5605
    %5670 = vst.msk [vmem:[%s274 + $0x39] sm:$0xff] %vm36, %v5606
    %5671 = vst.msk [vmem:[%s274 + $0x49] sm:$0xff] %vm36, %v5607
    %5672 = vst.msk [vmem:[%s274 + $0x51] sm:$0xff] %vm36, %v5608
    %5673 = vst.msk [vmem:[%s274 + $0x61] sm:$0xff] %vm36, %v5609
    %5674 = vst.msk [vmem:[%s274 + $0x69] sm:$0xff] %vm36, %v5610
    %5675 = vst.msk [vmem:[%s274 + $0x79] sm:$0xff] %vm36, %v5611
    %5676 = vst.msk [vmem:[%s274 + $0x81] sm:$0xff] %vm36, %v5612
    %5677 = vst.msk [vmem:[%s274 + $0x91] sm:$0xff] %vm36, %v5613
    %5678 = vst.msk [vmem:[%s274 + $0x99] sm:$0xff] %vm36, %v5614
    %5679 = vst.msk [vmem:[%s274 + $0xa9] sm:$0xff] %vm36, %v5615
    %5680 = vst.msk [vmem:[%s274 + $0xb1] sm:$0xff] %vm36, %v5616
    %5681 = vst.msk [vmem:[%s274 + $0xc1] sm:$0xff] %vm36, %v5617
    %5682 = vst.msk [vmem:[%s274 + $0xc9] sm:$0xff] %vm36, %v5618
    %5683 = vst.msk [vmem:[%s274 + $0xd9] sm:$0xff] %vm36, %v5619
    %5684 = vst.msk [vmem:[%s274 + $0xe1] sm:$0xff] %vm36, %v5620
    %5685 = vst.msk [vmem:[%s274 + $0xf1] sm:$0xff] %vm36, %v5621
    %5686 = vst.msk [vmem:[%s274 + $0xf9] sm:$0xff] %vm36, %v5622
    %5687 = vst.msk [vmem:[%s274 + $0x109] sm:$0xff] %vm36, %v5623
    %5688 = vst.msk [vmem:[%s274 + $0x111] sm:$0xff] %vm36, %v5624
    %5689 = vst.msk [vmem:[%s274 + $0x121] sm:$0xff] %vm36, %v5625
    %5690 = vst.msk [vmem:[%s274 + $0x129] sm:$0xff] %vm36, %v5626
    %5691 = vst.msk [vmem:[%s274 + $0x139] sm:$0xff] %vm36, %v5627
    %5692 = vst.msk [vmem:[%s274 + $0x141] sm:$0xff] %vm36, %v5628
    %5693 = vst.msk [vmem:[%s274 + $0x151] sm:$0xff] %vm36, %v5629
    %5694 = vst.msk [vmem:[%s274 + $0x159] sm:$0xff] %vm36, %v5630
    %5695 = vst.msk [vmem:[%s274 + $0x169] sm:$0xff] %vm36, %v5631
    %5696 = vst.msk [vmem:[%s274 + $0x171] sm:$0xff] %vm36, %v5632
    %5697 = vst.msk [vmem:[%s274 + $0x1b1] sm:$0xff] %vm36, %v5633
    %5698 = vst.msk [vmem:[%s274 + $0x1b9] sm:$0xff] %vm36, %v5634
    %5699 = vst.msk [vmem:[%s274 + $0x1c9] sm:$0xff] %vm36, %v5635
    %5700 = vst.msk [vmem:[%s274 + $0x1d1] sm:$0xff] %vm36, %v5636
    %5701 = vst.msk [vmem:[%s274 + $0x1e1] sm:$0xff] %vm36, %v5637
    %5702 = vst.msk [vmem:[%s274 + $0x1e9] sm:$0xff] %vm36, %v5638
    %5703 = vst.msk [vmem:[%s274 + $0x1f9] sm:$0xff] %vm36, %v5639
    %5704 = vst.msk [vmem:[%s274 + $0x201] sm:$0xff] %vm36, %v5640
    %5705 = vst.msk [vmem:[%s274 + $0x211] sm:$0xff] %vm36, %v5641
    %5706 = vst.msk [vmem:[%s274 + $0x219] sm:$0xff] %vm36, %v5642
    %5707 = vst.msk [vmem:[%s274 + $0x229] sm:$0xff] %vm36, %v5643
    %5708 = vst.msk [vmem:[%s274 + $0x231] sm:$0xff] %vm36, %v5644
    %5709 = vst.msk [vmem:[%s274 + $0x241] sm:$0xff] %vm36, %v5645
    %5710 = vst.msk [vmem:[%s274 + $0x249] sm:$0xff] %vm36, %v5646
    %5711 = vst.msk [vmem:[%s274 + $0x259] sm:$0xff] %vm36, %v5647
    %5712 = vst.msk [vmem:[%s274 + $0x261] sm:$0xff] %vm36, %v5648
    %5713 = vst.msk [vmem:[%s274 + $0x271] sm:$0xff] %vm36, %v5649
    %5714 = vst.msk [vmem:[%s274 + $0x279] sm:$0xff] %vm36, %v5650
    %5715 = vst.msk [vmem:[%s274 + $0x289] sm:$0xff] %vm36, %v5651
    %5716 = vst.msk [vmem:[%s274 + $0x291] sm:$0xff] %vm36, %v5652
    %5717 = vst.msk [vmem:[%s274 + $0x2a1] sm:$0xff] %vm36, %v5653
    %5718 = vst.msk [vmem:[%s274 + $0x2a9] sm:$0xff] %vm36, %v5654
    %5719 = vst.msk [vmem:[%s274 + $0x2b9] sm:$0xff] %vm36, %v5655
    %5720 = vst.msk [vmem:[%s274 + $0x2c1] sm:$0xff] %vm36, %v5656
    %5721 = vst.msk [vmem:[%s274 + $0x2d1] sm:$0xff] %vm36, %v5657
    %5722 = vst.msk [vmem:[%s274 + $0x2d9] sm:$0xff] %vm36, %v5658
    %5723 = vst.msk [vmem:[%s274 + $0x2e9] sm:$0xff] %vm36, %v5659
    %5724 = vst.msk [vmem:[%s274 + $0x2f1] sm:$0xff] %vm36, %v5660
    %5725 = vst.msk [vmem:[%s274 + $0x301] sm:$0xff] %vm36, %v5661
    %5726 = vst.msk [vmem:[%s274 + $0x309] sm:$0xff] %vm36, %v5662
    %5727 = vst.msk [vmem:[%s274 + $0x319] sm:$0xff] %vm36, %v5663
    %5728 = vst.msk [vmem:[%s274 + $0x321] sm:$0xff] %vm36, %v5664
    %v5729 = vld [vmem:[#allocation2] sm:$0xff]
    %v5730 = vld [vmem:[#allocation2 + $0x8] sm:$0xff]
    %v5731 = vld [vmem:[#allocation2 + $0x18] sm:$0xff]
    %v5732 = vld [vmem:[#allocation2 + $0x20] sm:$0xff]
    %v5733 = vld [vmem:[#allocation2 + $0x30] sm:$0xff]
    %v5734 = vld [vmem:[#allocation2 + $0x38] sm:$0xff]
    %v5735 = vld [vmem:[#allocation2 + $0x48] sm:$0xff]
    %v5736 = vld [vmem:[#allocation2 + $0x50] sm:$0xff]
    %v5737 = vld [vmem:[#allocation2 + $0x60] sm:$0xff]
    %v5738 = vld [vmem:[#allocation2 + $0x68] sm:$0xff]
    %v5739 = vld [vmem:[#allocation2 + $0x78] sm:$0xff]
    %v5740 = vld [vmem:[#allocation2 + $0x80] sm:$0xff]
    %v5741 = vld [vmem:[#allocation2 + $0x90] sm:$0xff]
    %v5742 = vld [vmem:[#allocation2 + $0x98] sm:$0xff]
    %v5743 = vld [vmem:[#allocation2 + $0xa8] sm:$0xff]
    %v5744 = vld [vmem:[#allocation2 + $0xb0] sm:$0xff]
    %v5745 = vld [vmem:[#allocation2 + $0xc0] sm:$0xff]
    %v5746 = vld [vmem:[#allocation2 + $0xc8] sm:$0xff]
    %v5747 = vld [vmem:[#allocation2 + $0xd8] sm:$0xff]
    %v5748 = vld [vmem:[#allocation2 + $0xe0] sm:$0xff]
    %v5749 = vld [vmem:[#allocation2 + $0xf0] sm:$0xff]
    %v5750 = vld [vmem:[#allocation2 + $0xf8] sm:$0xff]
    %v5751 = vld [vmem:[#allocation2 + $0x108] sm:$0xff]
    %v5752 = vld [vmem:[#allocation2 + $0x110] sm:$0xff]
    %v5753 = vld [vmem:[#allocation2 + $0x120] sm:$0xff]
    %v5754 = vld [vmem:[#allocation2 + $0x128] sm:$0xff]
    %v5755 = vld [vmem:[#allocation2 + $0x138] sm:$0xff]
    %v5756 = vld [vmem:[#allocation2 + $0x140] sm:$0xff]
    %v5757 = vld [vmem:[#allocation2 + $0x150] sm:$0xff]
    %v5758 = vld [vmem:[#allocation2 + $0x158] sm:$0xff]
    %v5759 = vld [vmem:[#allocation2 + $0x168] sm:$0xff]
    %v5760 = vld [vmem:[#allocation2 + $0x170] sm:$0xff]
    %v5761 = vld [vmem:[#allocation2 + $0x1b0] sm:$0xff]
    %v5762 = vld [vmem:[#allocation2 + $0x1b8] sm:$0xff]
    %v5763 = vld [vmem:[#allocation2 + $0x1c8] sm:$0xff]
    %v5764 = vld [vmem:[#allocation2 + $0x1d0] sm:$0xff]
    %v5765 = vld [vmem:[#allocation2 + $0x1e0] sm:$0xff]
    %v5766 = vld [vmem:[#allocation2 + $0x1e8] sm:$0xff]
    %v5767 = vld [vmem:[#allocation2 + $0x1f8] sm:$0xff]
    %v5768 = vld [vmem:[#allocation2 + $0x200] sm:$0xff]
    %v5769 = vld [vmem:[#allocation2 + $0x210] sm:$0xff]
    %v5770 = vld [vmem:[#allocation2 + $0x218] sm:$0xff]
    %v5771 = vld [vmem:[#allocation2 + $0x228] sm:$0xff]
    %v5772 = vld [vmem:[#allocation2 + $0x230] sm:$0xff]
    %v5773 = vld [vmem:[#allocation2 + $0x240] sm:$0xff]
    %v5774 = vld [vmem:[#allocation2 + $0x248] sm:$0xff]
    %v5775 = vld [vmem:[#allocation2 + $0x258] sm:$0xff]
    %v5776 = vld [vmem:[#allocation2 + $0x260] sm:$0xff]
    %v5777 = vld [vmem:[#allocation2 + $0x270] sm:$0xff]
    %v5778 = vld [vmem:[#allocation2 + $0x278] sm:$0xff]
    %v5779 = vld [vmem:[#allocation2 + $0x288] sm:$0xff]
    %v5780 = vld [vmem:[#allocation2 + $0x290] sm:$0xff]
    %v5781 = vld [vmem:[#allocation2 + $0x2a0] sm:$0xff]
    %v5782 = vld [vmem:[#allocation2 + $0x2a8] sm:$0xff]
    %v5783 = vld [vmem:[#allocation2 + $0x2b8] sm:$0xff]
    %v5784 = vld [vmem:[#allocation2 + $0x2c0] sm:$0xff]
    %v5785 = vld [vmem:[#allocation2 + $0x2d0] sm:$0xff]
    %v5786 = vld [vmem:[#allocation2 + $0x2d8] sm:$0xff]
    %v5787 = vld [vmem:[#allocation2 + $0x2e8] sm:$0xff]
    %v5788 = vld [vmem:[#allocation2 + $0x2f0] sm:$0xff]
    %v5789 = vld [vmem:[#allocation2 + $0x300] sm:$0xff]
    %v5790 = vld [vmem:[#allocation2 + $0x308] sm:$0xff]
    %v5791 = vld [vmem:[#allocation2 + $0x318] sm:$0xff]
    %v5792 = vld [vmem:[#allocation2 + $0x320] sm:$0xff]
    %v5793 = vld [vmem:[%s4] sm:$0xff]
    %v5794 = vld [vmem:[%s4 + $0x8] sm:$0xff]
    %v5795 = vld [vmem:[#allocation2 + $0x1] sm:$0xff]
    %v5796 = vld [vmem:[#allocation2 + $0x9] sm:$0xff]
    %v5797 = vld [vmem:[#allocation2 + $0x19] sm:$0xff]
    %v5798 = vld [vmem:[#allocation2 + $0x21] sm:$0xff]
    %v5799 = vld [vmem:[#allocation2 + $0x31] sm:$0xff]
    %v5800 = vld [vmem:[#allocation2 + $0x39] sm:$0xff]
    %v5801 = vld [vmem:[#allocation2 + $0x49] sm:$0xff]
    %v5802 = vld [vmem:[#allocation2 + $0x51] sm:$0xff]
    %v5803 = vld [vmem:[#allocation2 + $0x61] sm:$0xff]
    %v5804 = vld [vmem:[#allocation2 + $0x69] sm:$0xff]
    %v5805 = vld [vmem:[#allocation2 + $0x79] sm:$0xff]
    %v5806 = vld [vmem:[#allocation2 + $0x81] sm:$0xff]
    %v5807 = vld [vmem:[#allocation2 + $0x91] sm:$0xff]
    %v5808 = vld [vmem:[#allocation2 + $0x99] sm:$0xff]
    %v5809 = vld [vmem:[#allocation2 + $0xa9] sm:$0xff]
    %v5810 = vld [vmem:[#allocation2 + $0xb1] sm:$0xff]
    %v5811 = vld [vmem:[#allocation2 + $0xc1] sm:$0xff]
    %v5812 = vld [vmem:[#allocation2 + $0xc9] sm:$0xff]
    %v5813 = vld [vmem:[#allocation2 + $0xd9] sm:$0xff]
    %v5814 = vld [vmem:[#allocation2 + $0xe1] sm:$0xff]
    %v5815 = vld [vmem:[#allocation2 + $0xf1] sm:$0xff]
    %v5816 = vld [vmem:[#allocation2 + $0xf9] sm:$0xff]
    %v5817 = vld [vmem:[#allocation2 + $0x109] sm:$0xff]
    %v5818 = vld [vmem:[#allocation2 + $0x111] sm:$0xff]
    %v5819 = vld [vmem:[#allocation2 + $0x121] sm:$0xff]
    %v5820 = vld [vmem:[#allocation2 + $0x129] sm:$0xff]
    %v5821 = vld [vmem:[#allocation2 + $0x139] sm:$0xff]
    %v5822 = vld [vmem:[#allocation2 + $0x141] sm:$0xff]
    %v5823 = vld [vmem:[#allocation2 + $0x151] sm:$0xff]
    %v5824 = vld [vmem:[#allocation2 + $0x159] sm:$0xff]
    %v5825 = vld [vmem:[#allocation2 + $0x169] sm:$0xff]
    %v5826 = vld [vmem:[#allocation2 + $0x171] sm:$0xff]
    %v5827 = vld [vmem:[#allocation2 + $0x1b1] sm:$0xff]
    %v5828 = vld [vmem:[#allocation2 + $0x1b9] sm:$0xff]
    %v5829 = vld [vmem:[#allocation2 + $0x1c9] sm:$0xff]
    %v5830 = vld [vmem:[#allocation2 + $0x1d1] sm:$0xff]
    %v5831 = vld [vmem:[#allocation2 + $0x1e1] sm:$0xff]
    %v5832 = vld [vmem:[#allocation2 + $0x1e9] sm:$0xff]
    %v5833 = vld [vmem:[#allocation2 + $0x1f9] sm:$0xff]
    %v5834 = vld [vmem:[#allocation2 + $0x201] sm:$0xff]
    %v5835 = vld [vmem:[#allocation2 + $0x211] sm:$0xff]
    %v5836 = vld [vmem:[#allocation2 + $0x219] sm:$0xff]
    %v5837 = vld [vmem:[#allocation2 + $0x229] sm:$0xff]
    %v5838 = vld [vmem:[#allocation2 + $0x231] sm:$0xff]
    %v5839 = vld [vmem:[#allocation2 + $0x241] sm:$0xff]
    %v5840 = vld [vmem:[#allocation2 + $0x249] sm:$0xff]
    %v5841 = vld [vmem:[#allocation2 + $0x259] sm:$0xff]
    %v5842 = vld [vmem:[#allocation2 + $0x261] sm:$0xff]
    %v5843 = vld [vmem:[#allocation2 + $0x271] sm:$0xff]
    %v5844 = vld [vmem:[#allocation2 + $0x279] sm:$0xff]
    %v5845 = vld [vmem:[#allocation2 + $0x289] sm:$0xff]
    %v5846 = vld [vmem:[#allocation2 + $0x291] sm:$0xff]
    %v5847 = vld [vmem:[#allocation2 + $0x2a1] sm:$0xff]
    %v5848 = vld [vmem:[#allocation2 + $0x2a9] sm:$0xff]
    %v5849 = vld [vmem:[#allocation2 + $0x2b9] sm:$0xff]
    %v5850 = vld [vmem:[#allocation2 + $0x2c1] sm:$0xff]
    %v5851 = vld [vmem:[#allocation2 + $0x2d1] sm:$0xff]
    %v5852 = vld [vmem:[#allocation2 + $0x2d9] sm:$0xff]
    %v5853 = vld [vmem:[#allocation2 + $0x2e9] sm:$0xff]
    %v5854 = vld [vmem:[#allocation2 + $0x2f1] sm:$0xff]
    %v5855 = vld [vmem:[#allocation2 + $0x301] sm:$0xff]
    %v5856 = vld [vmem:[#allocation2 + $0x309] sm:$0xff]
    %v5857 = vld [vmem:[#allocation2 + $0x319] sm:$0xff]
    %v5858 = vld [vmem:[#allocation2 + $0x321] sm:$0xff]
    %s5859 = scalar_lea.vmem %s4, 16
    %v5860 = vld [vmem:[%s5859] sm:$0xff]
    %v5861 = vld [vmem:[%s5859 + $0x8] sm:$0xff]
    %v5863 = vsel %vm36, %v5795, 0
    %v5866 = vsel %vm36, %v5796, 0
    %v5869 = vsel %vm36, %v5797, 0
    %v5872 = vsel %vm36, %v5798, 0
    %v5875 = vsel %vm36, %v5799, 0
    %v5878 = vsel %vm36, %v5800, 0
    %v5881 = vsel %vm36, %v5801, 0
    %v5884 = vsel %vm36, %v5802, 0
    %v5887 = vsel %vm36, %v5803, 0
    %v5890 = vsel %vm36, %v5804, 0
    %v5893 = vsel %vm36, %v5805, 0
    %v5896 = vsel %vm36, %v5806, 0
    %v5899 = vsel %vm36, %v5807, 0
    %v5902 = vsel %vm36, %v5808, 0
    %v5905 = vsel %vm36, %v5809, 0
    %v5908 = vsel %vm36, %v5810, 0
    %v5911 = vsel %vm36, %v5811, 0
    %v5914 = vsel %vm36, %v5812, 0
    %v5917 = vsel %vm36, %v5813, 0
    %v5920 = vsel %vm36, %v5814, 0
    %v5923 = vsel %vm36, %v5815, 0
    %v5926 = vsel %vm36, %v5816, 0
    %v5929 = vsel %vm36, %v5817, 0
    %v5932 = vsel %vm36, %v5818, 0
    %v5935 = vsel %vm36, %v5819, 0
    %v5938 = vsel %vm36, %v5820, 0
    %v5941 = vsel %vm36, %v5821, 0
    %v5944 = vsel %vm36, %v5822, 0
    %v5947 = vsel %vm36, %v5823, 0
    %v5950 = vsel %vm36, %v5824, 0
    %v5953 = vsel %vm36, %v5825, 0
    %v5956 = vsel %vm36, %v5826, 0
    %v5959 = vsel %vm36, %v5827, 0
    %v5962 = vsel %vm36, %v5828, 0
    %v5965 = vsel %vm36, %v5829, 0
    %v5968 = vsel %vm36, %v5830, 0
    %v5971 = vsel %vm36, %v5831, 0
    %v5974 = vsel %vm36, %v5832, 0
    %v5977 = vsel %vm36, %v5833, 0
    %v5980 = vsel %vm36, %v5834, 0
    %v5983 = vsel %vm36, %v5835, 0
    %v5986 = vsel %vm36, %v5836, 0
    %v5989 = vsel %vm36, %v5837, 0
    %v5992 = vsel %vm36, %v5838, 0
    %v5995 = vsel %vm36, %v5839, 0
    %v5998 = vsel %vm36, %v5840, 0
    %v6001 = vsel %vm36, %v5841, 0
    %v6004 = vsel %vm36, %v5842, 0
    %v6007 = vsel %vm36, %v5843, 0
    %v6010 = vsel %vm36, %v5844, 0
    %v6013 = vsel %vm36, %v5845, 0
    %v6016 = vsel %vm36, %v5846, 0
    %v6019 = vsel %vm36, %v5847, 0
    %v6022 = vsel %vm36, %v5848, 0
    %v6025 = vsel %vm36, %v5849, 0
    %v6028 = vsel %vm36, %v5850, 0
    %v6031 = vsel %vm36, %v5851, 0
    %v6034 = vsel %vm36, %v5852, 0
    %v6037 = vsel %vm36, %v5853, 0
    %v6040 = vsel %vm36, %v5854, 0
    %v6043 = vsel %vm36, %v5855, 0
    %v6046 = vsel %vm36, %v5856, 0
    %v6049 = vsel %vm36, %v5857, 0
    %v6052 = vsel %vm36, %v5858, 0
    %6054 = vmatpush.msra.mxu0 0.0
    %6055 = vmatpush.msra.mxu0 0.0
    %6056 = vmatpush.msra.mxu0 0.0
    %6057 = vmatpush.msra.mxu0 0.0
    %6058 = vmatpush.msra.mxu0 0.0
    %6059 = vmatpush.msra.mxu0 0.0
    %6060 = vmatpush.msra.mxu0 0.0
    %6061 = vmatpush.msra.mxu0 0.0
    %6062 = vmatpush.msra.mxu0 0.0
    %6063 = vmatpush.msra.mxu0 0.0
    %6064 = vmatpush.msra.mxu0 0.0
    %6065 = vmatpush.msra.mxu0 0.0
    %6066 = vmatpush.msra.mxu0 0.0
    %6067 = vmatpush.msra.mxu0 0.0
    %6068 = vmatpush.msra.mxu0 %v5861
    %6069 = vmatpush.msra.mxu0 %v5860
    %6070 = vmatmul.f32.gmra.mxu0 %v5863
    %v6071 = vpop.f32.mrf.mxu0
    %v6072 = vadd.f32 0.0, %v6071
    %6073 = vmatmul.f32.gmra.mxu0 %v5866
    %v6074 = vpop.f32.mrf.mxu0
    %v6075 = vadd.f32 0.0, %v6074
    %6076 = vmatmul.f32.gmra.mxu0 %v5869
    %v6077 = vpop.f32.mrf.mxu0
    %v6078 = vadd.f32 0.0, %v6077
    %6079 = vmatmul.f32.gmra.mxu0 %v5872
    %v6080 = vpop.f32.mrf.mxu0
    %v6081 = vadd.f32 0.0, %v6080
    %6082 = vmatmul.f32.gmra.mxu0 %v5875
    %v6083 = vpop.f32.mrf.mxu0
    %v6084 = vadd.f32 0.0, %v6083
    %6085 = vmatmul.f32.gmra.mxu0 %v5878
    %v6086 = vpop.f32.mrf.mxu0
    %v6087 = vadd.f32 0.0, %v6086
    %6088 = vmatmul.f32.gmra.mxu0 %v5881
    %v6089 = vpop.f32.mrf.mxu0
    %v6090 = vadd.f32 0.0, %v6089
    %6091 = vmatmul.f32.gmra.mxu0 %v5884
    %v6092 = vpop.f32.mrf.mxu0
    %v6093 = vadd.f32 0.0, %v6092
    %6094 = vmatmul.f32.gmra.mxu0 %v5887
    %v6095 = vpop.f32.mrf.mxu0
    %v6096 = vadd.f32 0.0, %v6095
    %6097 = vmatmul.f32.gmra.mxu0 %v5890
    %v6098 = vpop.f32.mrf.mxu0
    %v6099 = vadd.f32 0.0, %v6098
    %6100 = vmatmul.f32.gmra.mxu0 %v5893
    %v6101 = vpop.f32.mrf.mxu0
    %v6102 = vadd.f32 0.0, %v6101
    %6103 = vmatmul.f32.gmra.mxu0 %v5896
    %v6104 = vpop.f32.mrf.mxu0
    %v6105 = vadd.f32 0.0, %v6104
    %6106 = vmatmul.f32.gmra.mxu0 %v5899
    %v6107 = vpop.f32.mrf.mxu0
    %v6108 = vadd.f32 0.0, %v6107
    %6109 = vmatmul.f32.gmra.mxu0 %v5902
    %v6110 = vpop.f32.mrf.mxu0
    %v6111 = vadd.f32 0.0, %v6110
    %6112 = vmatmul.f32.gmra.mxu0 %v5905
    %v6113 = vpop.f32.mrf.mxu0
    %v6114 = vadd.f32 0.0, %v6113
    %6115 = vmatmul.f32.gmra.mxu0 %v5908
    %v6116 = vpop.f32.mrf.mxu0
    %v6117 = vadd.f32 0.0, %v6116
    %6118 = vmatmul.f32.gmra.mxu0 %v5911
    %v6119 = vpop.f32.mrf.mxu0
    %v6120 = vadd.f32 0.0, %v6119
    %6121 = vmatmul.f32.gmra.mxu0 %v5914
    %v6122 = vpop.f32.mrf.mxu0
    %v6123 = vadd.f32 0.0, %v6122
    %6124 = vmatmul.f32.gmra.mxu0 %v5917
    %v6125 = vpop.f32.mrf.mxu0
    %v6126 = vadd.f32 0.0, %v6125
    %6127 = vmatmul.f32.gmra.mxu0 %v5920
    %v6128 = vpop.f32.mrf.mxu0
    %v6129 = vadd.f32 0.0, %v6128
    %6130 = vmatmul.f32.gmra.mxu0 %v5923
    %v6131 = vpop.f32.mrf.mxu0
    %v6132 = vadd.f32 0.0, %v6131
    %6133 = vmatmul.f32.gmra.mxu0 %v5926
    %v6134 = vpop.f32.mrf.mxu0
    %v6135 = vadd.f32 0.0, %v6134
    %6136 = vmatmul.f32.gmra.mxu0 %v5929
    %v6137 = vpop.f32.mrf.mxu0
    %v6138 = vadd.f32 0.0, %v6137
    %6139 = vmatmul.f32.gmra.mxu0 %v5932
    %v6140 = vpop.f32.mrf.mxu0
    %v6141 = vadd.f32 0.0, %v6140
    %6142 = vmatmul.f32.gmra.mxu0 %v5935
    %v6143 = vpop.f32.mrf.mxu0
    %v6144 = vadd.f32 0.0, %v6143
    %6145 = vmatmul.f32.gmra.mxu0 %v5938
    %v6146 = vpop.f32.mrf.mxu0
    %v6147 = vadd.f32 0.0, %v6146
    %6148 = vmatmul.f32.gmra.mxu0 %v5941
    %v6149 = vpop.f32.mrf.mxu0
    %v6150 = vadd.f32 0.0, %v6149
    %6151 = vmatmul.f32.gmra.mxu0 %v5944
    %v6152 = vpop.f32.mrf.mxu0
    %v6153 = vadd.f32 0.0, %v6152
    %6154 = vmatmul.f32.gmra.mxu0 %v5947
    %v6155 = vpop.f32.mrf.mxu0
    %v6156 = vadd.f32 0.0, %v6155
    %6157 = vmatmul.f32.gmra.mxu0 %v5950
    %v6158 = vpop.f32.mrf.mxu0
    %v6159 = vadd.f32 0.0, %v6158
    %6160 = vmatmul.f32.gmra.mxu0 %v5953
    %v6161 = vpop.f32.mrf.mxu0
    %v6162 = vadd.f32 0.0, %v6161
    %6163 = vmatmul.f32.gmra.mxu0 %v5956
    %v6164 = vpop.f32.mrf.mxu0
    %v6165 = vadd.f32 0.0, %v6164
    %6166 = vmatmul.f32.gmra.mxu0 %v5959
    %v6167 = vpop.f32.mrf.mxu0
    %v6168 = vadd.f32 0.0, %v6167
    %6169 = vmatmul.f32.gmra.mxu0 %v5962
    %v6170 = vpop.f32.mrf.mxu0
    %v6171 = vadd.f32 0.0, %v6170
    %6172 = vmatmul.f32.gmra.mxu0 %v5965
    %v6173 = vpop.f32.mrf.mxu0
    %v6174 = vadd.f32 0.0, %v6173
    %6175 = vmatmul.f32.gmra.mxu0 %v5968
    %v6176 = vpop.f32.mrf.mxu0
    %v6177 = vadd.f32 0.0, %v6176
    %6178 = vmatmul.f32.gmra.mxu0 %v5971
    %v6179 = vpop.f32.mrf.mxu0
    %v6180 = vadd.f32 0.0, %v6179
    %6181 = vmatmul.f32.gmra.mxu0 %v5974
    %v6182 = vpop.f32.mrf.mxu0
    %v6183 = vadd.f32 0.0, %v6182
    %6184 = vmatmul.f32.gmra.mxu0 %v5977
    %v6185 = vpop.f32.mrf.mxu0
    %v6186 = vadd.f32 0.0, %v6185
    %6187 = vmatmul.f32.gmra.mxu0 %v5980
    %v6188 = vpop.f32.mrf.mxu0
    %v6189 = vadd.f32 0.0, %v6188
    %6190 = vmatmul.f32.gmra.mxu0 %v5983
    %v6191 = vpop.f32.mrf.mxu0
    %v6192 = vadd.f32 0.0, %v6191
    %6193 = vmatmul.f32.gmra.mxu0 %v5986
    %v6194 = vpop.f32.mrf.mxu0
    %v6195 = vadd.f32 0.0, %v6194
    %6196 = vmatmul.f32.gmra.mxu0 %v5989
    %v6197 = vpop.f32.mrf.mxu0
    %v6198 = vadd.f32 0.0, %v6197
    %6199 = vmatmul.f32.gmra.mxu0 %v5992
    %v6200 = vpop.f32.mrf.mxu0
    %v6201 = vadd.f32 0.0, %v6200
    %6202 = vmatmul.f32.gmra.mxu0 %v5995
    %v6203 = vpop.f32.mrf.mxu0
    %v6204 = vadd.f32 0.0, %v6203
    %6205 = vmatmul.f32.gmra.mxu0 %v5998
    %v6206 = vpop.f32.mrf.mxu0
    %v6207 = vadd.f32 0.0, %v6206
    %6208 = vmatmul.f32.gmra.mxu0 %v6001
    %v6209 = vpop.f32.mrf.mxu0
    %v6210 = vadd.f32 0.0, %v6209
    %6211 = vmatmul.f32.gmra.mxu0 %v6004
    %v6212 = vpop.f32.mrf.mxu0
    %v6213 = vadd.f32 0.0, %v6212
    %6214 = vmatmul.f32.gmra.mxu0 %v6007
    %v6215 = vpop.f32.mrf.mxu0
    %v6216 = vadd.f32 0.0, %v6215
    %6217 = vmatmul.f32.gmra.mxu0 %v6010
    %v6218 = vpop.f32.mrf.mxu0
    %v6219 = vadd.f32 0.0, %v6218
    %6220 = vmatmul.f32.gmra.mxu0 %v6013
    %v6221 = vpop.f32.mrf.mxu0
    %v6222 = vadd.f32 0.0, %v6221
    %6223 = vmatmul.f32.gmra.mxu0 %v6016
    %v6224 = vpop.f32.mrf.mxu0
    %v6225 = vadd.f32 0.0, %v6224
    %6226 = vmatmul.f32.gmra.mxu0 %v6019
    %v6227 = vpop.f32.mrf.mxu0
    %v6228 = vadd.f32 0.0, %v6227
    %6229 = vmatmul.f32.gmra.mxu0 %v6022
    %v6230 = vpop.f32.mrf.mxu0
    %v6231 = vadd.f32 0.0, %v6230
    %6232 = vmatmul.f32.gmra.mxu0 %v6025
    %v6233 = vpop.f32.mrf.mxu0
    %v6234 = vadd.f32 0.0, %v6233
    %6235 = vmatmul.f32.gmra.mxu0 %v6028
    %v6236 = vpop.f32.mrf.mxu0
    %v6237 = vadd.f32 0.0, %v6236
    %6238 = vmatmul.f32.gmra.mxu0 %v6031
    %v6239 = vpop.f32.mrf.mxu0
    %v6240 = vadd.f32 0.0, %v6239
    %6241 = vmatmul.f32.gmra.mxu0 %v6034
    %v6242 = vpop.f32.mrf.mxu0
    %v6243 = vadd.f32 0.0, %v6242
    %6244 = vmatmul.f32.gmra.mxu0 %v6037
    %v6245 = vpop.f32.mrf.mxu0
    %v6246 = vadd.f32 0.0, %v6245
    %6247 = vmatmul.f32.gmra.mxu0 %v6040
    %v6248 = vpop.f32.mrf.mxu0
    %v6249 = vadd.f32 0.0, %v6248
    %6250 = vmatmul.f32.gmra.mxu0 %v6043
    %v6251 = vpop.f32.mrf.mxu0
    %v6252 = vadd.f32 0.0, %v6251
    %6253 = vmatmul.f32.gmra.mxu0 %v6046
    %v6254 = vpop.f32.mrf.mxu0
    %v6255 = vadd.f32 0.0, %v6254
    %6256 = vmatmul.f32.gmra.mxu0 %v6049
    %v6257 = vpop.f32.mrf.mxu0
    %v6258 = vadd.f32 0.0, %v6257
    %6259 = vmatmul.f32.gmra.mxu0 %v6052
    %v6260 = vpop.f32.mrf.mxu0
    %v6261 = vadd.f32 0.0, %v6260
    %6262 = vdwg.mxu0
    %v6264 = vsel %vm36, %v5729, 0
    %v6267 = vsel %vm36, %v5730, 0
    %v6270 = vsel %vm36, %v5731, 0
    %v6273 = vsel %vm36, %v5732, 0
    %v6276 = vsel %vm36, %v5733, 0
    %v6279 = vsel %vm36, %v5734, 0
    %v6282 = vsel %vm36, %v5735, 0
    %v6285 = vsel %vm36, %v5736, 0
    %v6288 = vsel %vm36, %v5737, 0
    %v6291 = vsel %vm36, %v5738, 0
    %v6294 = vsel %vm36, %v5739, 0
    %v6297 = vsel %vm36, %v5740, 0
    %v6300 = vsel %vm36, %v5741, 0
    %v6303 = vsel %vm36, %v5742, 0
    %v6306 = vsel %vm36, %v5743, 0
    %v6309 = vsel %vm36, %v5744, 0
    %v6312 = vsel %vm36, %v5745, 0
    %v6315 = vsel %vm36, %v5746, 0
    %v6318 = vsel %vm36, %v5747, 0
    %v6321 = vsel %vm36, %v5748, 0
    %v6324 = vsel %vm36, %v5749, 0
    %v6327 = vsel %vm36, %v5750, 0
    %v6330 = vsel %vm36, %v5751, 0
    %v6333 = vsel %vm36, %v5752, 0
    %v6336 = vsel %vm36, %v5753, 0
    %v6339 = vsel %vm36, %v5754, 0
    %v6342 = vsel %vm36, %v5755, 0
    %v6345 = vsel %vm36, %v5756, 0
    %v6348 = vsel %vm36, %v5757, 0
    %v6351 = vsel %vm36, %v5758, 0
    %v6354 = vsel %vm36, %v5759, 0
    %v6357 = vsel %vm36, %v5760, 0
    %v6360 = vsel %vm36, %v5761, 0
    %v6363 = vsel %vm36, %v5762, 0
    %v6366 = vsel %vm36, %v5763, 0
    %v6369 = vsel %vm36, %v5764, 0
    %v6372 = vsel %vm36, %v5765, 0
    %v6375 = vsel %vm36, %v5766, 0
    %v6378 = vsel %vm36, %v5767, 0
    %v6381 = vsel %vm36, %v5768, 0
    %v6384 = vsel %vm36, %v5769, 0
    %v6387 = vsel %vm36, %v5770, 0
    %v6390 = vsel %vm36, %v5771, 0
    %v6393 = vsel %vm36, %v5772, 0
    %v6396 = vsel %vm36, %v5773, 0
    %v6399 = vsel %vm36, %v5774, 0
    %v6402 = vsel %vm36, %v5775, 0
    %v6405 = vsel %vm36, %v5776, 0
    %v6408 = vsel %vm36, %v5777, 0
    %v6411 = vsel %vm36, %v5778, 0
    %v6414 = vsel %vm36, %v5779, 0
    %v6417 = vsel %vm36, %v5780, 0
    %v6420 = vsel %vm36, %v5781, 0
    %v6423 = vsel %vm36, %v5782, 0
    %v6426 = vsel %vm36, %v5783, 0
    %v6429 = vsel %vm36, %v5784, 0
    %v6432 = vsel %vm36, %v5785, 0
    %v6435 = vsel %vm36, %v5786, 0
    %v6438 = vsel %vm36, %v5787, 0
    %v6441 = vsel %vm36, %v5788, 0
    %v6444 = vsel %vm36, %v5789, 0
    %v6447 = vsel %vm36, %v5790, 0
    %v6450 = vsel %vm36, %v5791, 0
    %v6453 = vsel %vm36, %v5792, 0
    %6455 = vmatpush.msra.mxu0 0.0
    %6456 = vmatpush.msra.mxu0 0.0
    %6457 = vmatpush.msra.mxu0 0.0
    %6458 = vmatpush.msra.mxu0 0.0
    %6459 = vmatpush.msra.mxu0 0.0
    %6460 = vmatpush.msra.mxu0 0.0
    %6461 = vmatpush.msra.mxu0 0.0
    %6462 = vmatpush.msra.mxu0 0.0
    %6463 = vmatpush.msra.mxu0 0.0
    %6464 = vmatpush.msra.mxu0 0.0
    %6465 = vmatpush.msra.mxu0 0.0
    %6466 = vmatpush.msra.mxu0 0.0
    %6467 = vmatpush.msra.mxu0 0.0
    %6468 = vmatpush.msra.mxu0 0.0
    %6469 = vmatpush.msra.mxu0 %v5794
    %6470 = vmatpush.msra.mxu0 %v5793
    %6471 = vmatmul.f32.gmra.mxu0 %v6264
    %v6472 = vpop.f32.mrf.mxu0
    %v6473 = vadd.f32 %v6072, %v6472
    %6474 = vmatmul.f32.gmra.mxu0 %v6267
    %v6475 = vpop.f32.mrf.mxu0
    %v6476 = vadd.f32 %v6075, %v6475
    %6477 = vmatmul.f32.gmra.mxu0 %v6270
    %v6478 = vpop.f32.mrf.mxu0
    %v6479 = vadd.f32 %v6078, %v6478
    %6480 = vmatmul.f32.gmra.mxu0 %v6273
    %v6481 = vpop.f32.mrf.mxu0
    %v6482 = vadd.f32 %v6081, %v6481
    %6483 = vmatmul.f32.gmra.mxu0 %v6276
    %v6484 = vpop.f32.mrf.mxu0
    %v6485 = vadd.f32 %v6084, %v6484
    %6486 = vmatmul.f32.gmra.mxu0 %v6279
    %v6487 = vpop.f32.mrf.mxu0
    %v6488 = vadd.f32 %v6087, %v6487
    %6489 = vmatmul.f32.gmra.mxu0 %v6282
    %v6490 = vpop.f32.mrf.mxu0
    %v6491 = vadd.f32 %v6090, %v6490
    %6492 = vmatmul.f32.gmra.mxu0 %v6285
    %v6493 = vpop.f32.mrf.mxu0
    %v6494 = vadd.f32 %v6093, %v6493
    %6495 = vmatmul.f32.gmra.mxu0 %v6288
    %v6496 = vpop.f32.mrf.mxu0
    %v6497 = vadd.f32 %v6096, %v6496
    %6498 = vmatmul.f32.gmra.mxu0 %v6291
    %v6499 = vpop.f32.mrf.mxu0
    %v6500 = vadd.f32 %v6099, %v6499
    %6501 = vmatmul.f32.gmra.mxu0 %v6294
    %v6502 = vpop.f32.mrf.mxu0
    %v6503 = vadd.f32 %v6102, %v6502
    %6504 = vmatmul.f32.gmra.mxu0 %v6297
    %v6505 = vpop.f32.mrf.mxu0
    %v6506 = vadd.f32 %v6105, %v6505
    %6507 = vmatmul.f32.gmra.mxu0 %v6300
    %v6508 = vpop.f32.mrf.mxu0
    %v6509 = vadd.f32 %v6108, %v6508
    %6510 = vmatmul.f32.gmra.mxu0 %v6303
    %v6511 = vpop.f32.mrf.mxu0
    %v6512 = vadd.f32 %v6111, %v6511
    %6513 = vmatmul.f32.gmra.mxu0 %v6306
    %v6514 = vpop.f32.mrf.mxu0
    %v6515 = vadd.f32 %v6114, %v6514
    %6516 = vmatmul.f32.gmra.mxu0 %v6309
    %v6517 = vpop.f32.mrf.mxu0
    %v6518 = vadd.f32 %v6117, %v6517
    %6519 = vmatmul.f32.gmra.mxu0 %v6312
    %v6520 = vpop.f32.mrf.mxu0
    %v6521 = vadd.f32 %v6120, %v6520
    %6522 = vmatmul.f32.gmra.mxu0 %v6315
    %v6523 = vpop.f32.mrf.mxu0
    %v6524 = vadd.f32 %v6123, %v6523
    %6525 = vmatmul.f32.gmra.mxu0 %v6318
    %v6526 = vpop.f32.mrf.mxu0
    %v6527 = vadd.f32 %v6126, %v6526
    %6528 = vmatmul.f32.gmra.mxu0 %v6321
    %v6529 = vpop.f32.mrf.mxu0
    %v6530 = vadd.f32 %v6129, %v6529
    %6531 = vmatmul.f32.gmra.mxu0 %v6324
    %v6532 = vpop.f32.mrf.mxu0
    %v6533 = vadd.f32 %v6132, %v6532
    %6534 = vmatmul.f32.gmra.mxu0 %v6327
    %v6535 = vpop.f32.mrf.mxu0
    %v6536 = vadd.f32 %v6135, %v6535
    %6537 = vmatmul.f32.gmra.mxu0 %v6330
    %v6538 = vpop.f32.mrf.mxu0
    %v6539 = vadd.f32 %v6138, %v6538
    %6540 = vmatmul.f32.gmra.mxu0 %v6333
    %v6541 = vpop.f32.mrf.mxu0
    %v6542 = vadd.f32 %v6141, %v6541
    %6543 = vmatmul.f32.gmra.mxu0 %v6336
    %v6544 = vpop.f32.mrf.mxu0
    %v6545 = vadd.f32 %v6144, %v6544
    %6546 = vmatmul.f32.gmra.mxu0 %v6339
    %v6547 = vpop.f32.mrf.mxu0
    %v6548 = vadd.f32 %v6147, %v6547
    %6549 = vmatmul.f32.gmra.mxu0 %v6342
    %v6550 = vpop.f32.mrf.mxu0
    %v6551 = vadd.f32 %v6150, %v6550
    %6552 = vmatmul.f32.gmra.mxu0 %v6345
    %v6553 = vpop.f32.mrf.mxu0
    %v6554 = vadd.f32 %v6153, %v6553
    %6555 = vmatmul.f32.gmra.mxu0 %v6348
    %v6556 = vpop.f32.mrf.mxu0
    %v6557 = vadd.f32 %v6156, %v6556
    %6558 = vmatmul.f32.gmra.mxu0 %v6351
    %v6559 = vpop.f32.mrf.mxu0
    %v6560 = vadd.f32 %v6159, %v6559
    %6561 = vmatmul.f32.gmra.mxu0 %v6354
    %v6562 = vpop.f32.mrf.mxu0
    %v6563 = vadd.f32 %v6162, %v6562
    %6564 = vmatmul.f32.gmra.mxu0 %v6357
    %v6565 = vpop.f32.mrf.mxu0
    %v6566 = vadd.f32 %v6165, %v6565
    %6567 = vmatmul.f32.gmra.mxu0 %v6360
    %v6568 = vpop.f32.mrf.mxu0
    %v6569 = vadd.f32 %v6168, %v6568
    %6570 = vmatmul.f32.gmra.mxu0 %v6363
    %v6571 = vpop.f32.mrf.mxu0
    %v6572 = vadd.f32 %v6171, %v6571
    %6573 = vmatmul.f32.gmra.mxu0 %v6366
    %v6574 = vpop.f32.mrf.mxu0
    %v6575 = vadd.f32 %v6174, %v6574
    %6576 = vmatmul.f32.gmra.mxu0 %v6369
    %v6577 = vpop.f32.mrf.mxu0
    %v6578 = vadd.f32 %v6177, %v6577
    %6579 = vmatmul.f32.gmra.mxu0 %v6372
    %v6580 = vpop.f32.mrf.mxu0
    %v6581 = vadd.f32 %v6180, %v6580
    %6582 = vmatmul.f32.gmra.mxu0 %v6375
    %v6583 = vpop.f32.mrf.mxu0
    %v6584 = vadd.f32 %v6183, %v6583
    %6585 = vmatmul.f32.gmra.mxu0 %v6378
    %v6586 = vpop.f32.mrf.mxu0
    %v6587 = vadd.f32 %v6186, %v6586
    %6588 = vmatmul.f32.gmra.mxu0 %v6381
    %v6589 = vpop.f32.mrf.mxu0
    %v6590 = vadd.f32 %v6189, %v6589
    %6591 = vmatmul.f32.gmra.mxu0 %v6384
    %v6592 = vpop.f32.mrf.mxu0
    %v6593 = vadd.f32 %v6192, %v6592
    %6594 = vmatmul.f32.gmra.mxu0 %v6387
    %v6595 = vpop.f32.mrf.mxu0
    %v6596 = vadd.f32 %v6195, %v6595
    %6597 = vmatmul.f32.gmra.mxu0 %v6390
    %v6598 = vpop.f32.mrf.mxu0
    %v6599 = vadd.f32 %v6198, %v6598
    %6600 = vmatmul.f32.gmra.mxu0 %v6393
    %v6601 = vpop.f32.mrf.mxu0
    %v6602 = vadd.f32 %v6201, %v6601
    %6603 = vmatmul.f32.gmra.mxu0 %v6396
    %v6604 = vpop.f32.mrf.mxu0
    %v6605 = vadd.f32 %v6204, %v6604
    %6606 = vmatmul.f32.gmra.mxu0 %v6399
    %v6607 = vpop.f32.mrf.mxu0
    %v6608 = vadd.f32 %v6207, %v6607
    %6609 = vmatmul.f32.gmra.mxu0 %v6402
    %v6610 = vpop.f32.mrf.mxu0
    %v6611 = vadd.f32 %v6210, %v6610
    %6612 = vmatmul.f32.gmra.mxu0 %v6405
    %v6613 = vpop.f32.mrf.mxu0
    %v6614 = vadd.f32 %v6213, %v6613
    %6615 = vmatmul.f32.gmra.mxu0 %v6408
    %v6616 = vpop.f32.mrf.mxu0
    %v6617 = vadd.f32 %v6216, %v6616
    %6618 = vmatmul.f32.gmra.mxu0 %v6411
    %v6619 = vpop.f32.mrf.mxu0
    %v6620 = vadd.f32 %v6219, %v6619
    %6621 = vmatmul.f32.gmra.mxu0 %v6414
    %v6622 = vpop.f32.mrf.mxu0
    %v6623 = vadd.f32 %v6222, %v6622
    %6624 = vmatmul.f32.gmra.mxu0 %v6417
    %v6625 = vpop.f32.mrf.mxu0
    %v6626 = vadd.f32 %v6225, %v6625
    %6627 = vmatmul.f32.gmra.mxu0 %v6420
    %v6628 = vpop.f32.mrf.mxu0
    %v6629 = vadd.f32 %v6228, %v6628
    %6630 = vmatmul.f32.gmra.mxu0 %v6423
    %v6631 = vpop.f32.mrf.mxu0
    %v6632 = vadd.f32 %v6231, %v6631
    %6633 = vmatmul.f32.gmra.mxu0 %v6426
    %v6634 = vpop.f32.mrf.mxu0
    %v6635 = vadd.f32 %v6234, %v6634
    %6636 = vmatmul.f32.gmra.mxu0 %v6429
    %v6637 = vpop.f32.mrf.mxu0
    %v6638 = vadd.f32 %v6237, %v6637
    %6639 = vmatmul.f32.gmra.mxu0 %v6432
    %v6640 = vpop.f32.mrf.mxu0
    %v6641 = vadd.f32 %v6240, %v6640
    %6642 = vmatmul.f32.gmra.mxu0 %v6435
    %v6643 = vpop.f32.mrf.mxu0
    %v6644 = vadd.f32 %v6243, %v6643
    %6645 = vmatmul.f32.gmra.mxu0 %v6438
    %v6646 = vpop.f32.mrf.mxu0
    %v6647 = vadd.f32 %v6246, %v6646
    %6648 = vmatmul.f32.gmra.mxu0 %v6441
    %v6649 = vpop.f32.mrf.mxu0
    %v6650 = vadd.f32 %v6249, %v6649
    %6651 = vmatmul.f32.gmra.mxu0 %v6444
    %v6652 = vpop.f32.mrf.mxu0
    %v6653 = vadd.f32 %v6252, %v6652
    %6654 = vmatmul.f32.gmra.mxu0 %v6447
    %v6655 = vpop.f32.mrf.mxu0
    %v6656 = vadd.f32 %v6255, %v6655
    %6657 = vmatmul.f32.gmra.mxu0 %v6450
    %v6658 = vpop.f32.mrf.mxu0
    %v6659 = vadd.f32 %v6258, %v6658
    %6660 = vmatmul.f32.gmra.mxu0 %v6453
    %v6661 = vpop.f32.mrf.mxu0
    %v6662 = vadd.f32 %v6261, %v6661
    %6663 = vdwg.mxu0
    %v6664 = vld [vmem:[#allocation2 + $0x2] sm:$0xff]
    %v6665 = vld [vmem:[#allocation2 + $0xa] sm:$0xff]
    %v6666 = vld [vmem:[#allocation2 + $0x1a] sm:$0xff]
    %v6667 = vld [vmem:[#allocation2 + $0x22] sm:$0xff]
    %v6668 = vld [vmem:[#allocation2 + $0x32] sm:$0xff]
    %v6669 = vld [vmem:[#allocation2 + $0x3a] sm:$0xff]
    %v6670 = vld [vmem:[#allocation2 + $0x4a] sm:$0xff]
    %v6671 = vld [vmem:[#allocation2 + $0x52] sm:$0xff]
    %v6672 = vld [vmem:[#allocation2 + $0x62] sm:$0xff]
    %v6673 = vld [vmem:[#allocation2 + $0x6a] sm:$0xff]
    %v6674 = vld [vmem:[#allocation2 + $0x7a] sm:$0xff]
    %v6675 = vld [vmem:[#allocation2 + $0x82] sm:$0xff]
    %v6676 = vld [vmem:[#allocation2 + $0x92] sm:$0xff]
    %v6677 = vld [vmem:[#allocation2 + $0x9a] sm:$0xff]
    %v6678 = vld [vmem:[#allocation2 + $0xaa] sm:$0xff]
    %v6679 = vld [vmem:[#allocation2 + $0xb2] sm:$0xff]
    %v6680 = vld [vmem:[#allocation2 + $0xc2] sm:$0xff]
    %v6681 = vld [vmem:[#allocation2 + $0xca] sm:$0xff]
    %v6682 = vld [vmem:[#allocation2 + $0xda] sm:$0xff]
    %v6683 = vld [vmem:[#allocation2 + $0xe2] sm:$0xff]
    %v6684 = vld [vmem:[#allocation2 + $0xf2] sm:$0xff]
    %v6685 = vld [vmem:[#allocation2 + $0xfa] sm:$0xff]
    %v6686 = vld [vmem:[#allocation2 + $0x10a] sm:$0xff]
    %v6687 = vld [vmem:[#allocation2 + $0x112] sm:$0xff]
    %v6688 = vld [vmem:[#allocation2 + $0x122] sm:$0xff]
    %v6689 = vld [vmem:[#allocation2 + $0x12a] sm:$0xff]
    %v6690 = vld [vmem:[#allocation2 + $0x13a] sm:$0xff]
    %v6691 = vld [vmem:[#allocation2 + $0x142] sm:$0xff]
    %v6692 = vld [vmem:[#allocation2 + $0x152] sm:$0xff]
    %v6693 = vld [vmem:[#allocation2 + $0x15a] sm:$0xff]
    %v6694 = vld [vmem:[#allocation2 + $0x16a] sm:$0xff]
    %v6695 = vld [vmem:[#allocation2 + $0x172] sm:$0xff]
    %v6696 = vld [vmem:[#allocation2 + $0x1b2] sm:$0xff]
    %v6697 = vld [vmem:[#allocation2 + $0x1ba] sm:$0xff]
    %v6698 = vld [vmem:[#allocation2 + $0x1ca] sm:$0xff]
    %v6699 = vld [vmem:[#allocation2 + $0x1d2] sm:$0xff]
    %v6700 = vld [vmem:[#allocation2 + $0x1e2] sm:$0xff]
    %v6701 = vld [vmem:[#allocation2 + $0x1ea] sm:$0xff]
    %v6702 = vld [vmem:[#allocation2 + $0x1fa] sm:$0xff]
    %v6703 = vld [vmem:[#allocation2 + $0x202] sm:$0xff]
    %v6704 = vld [vmem:[#allocation2 + $0x212] sm:$0xff]
    %v6705 = vld [vmem:[#allocation2 + $0x21a] sm:$0xff]
    %v6706 = vld [vmem:[#allocation2 + $0x22a] sm:$0xff]
    %v6707 = vld [vmem:[#allocation2 + $0x232] sm:$0xff]
    %v6708 = vld [vmem:[#allocation2 + $0x242] sm:$0xff]
    %v6709 = vld [vmem:[#allocation2 + $0x24a] sm:$0xff]
    %v6710 = vld [vmem:[#allocation2 + $0x25a] sm:$0xff]
    %v6711 = vld [vmem:[#allocation2 + $0x262] sm:$0xff]
    %v6712 = vld [vmem:[#allocation2 + $0x272] sm:$0xff]
    %v6713 = vld [vmem:[#allocation2 + $0x27a] sm:$0xff]
    %v6714 = vld [vmem:[#allocation2 + $0x28a] sm:$0xff]
    %v6715 = vld [vmem:[#allocation2 + $0x292] sm:$0xff]
    %v6716 = vld [vmem:[#allocation2 + $0x2a2] sm:$0xff]
    %v6717 = vld [vmem:[#allocation2 + $0x2aa] sm:$0xff]
    %v6718 = vld [vmem:[#allocation2 + $0x2ba] sm:$0xff]
    %v6719 = vld [vmem:[#allocation2 + $0x2c2] sm:$0xff]
    %v6720 = vld [vmem:[#allocation2 + $0x2d2] sm:$0xff]
    %v6721 = vld [vmem:[#allocation2 + $0x2da] sm:$0xff]
    %v6722 = vld [vmem:[#allocation2 + $0x2ea] sm:$0xff]
    %v6723 = vld [vmem:[#allocation2 + $0x2f2] sm:$0xff]
    %v6724 = vld [vmem:[#allocation2 + $0x302] sm:$0xff]
    %v6725 = vld [vmem:[#allocation2 + $0x30a] sm:$0xff]
    %v6726 = vld [vmem:[#allocation2 + $0x31a] sm:$0xff]
    %v6727 = vld [vmem:[#allocation2 + $0x322] sm:$0xff]
    %s6728 = scalar_lea.vmem %s4, 32
    %v6729 = vld [vmem:[%s6728] sm:$0xff]
    %v6730 = vld [vmem:[%s6728 + $0x8] sm:$0xff]
    %v6732 = vsel %vm36, %v6664, 0
    %v6735 = vsel %vm36, %v6665, 0
    %v6738 = vsel %vm36, %v6666, 0
    %v6741 = vsel %vm36, %v6667, 0
    %v6744 = vsel %vm36, %v6668, 0
    %v6747 = vsel %vm36, %v6669, 0
    %v6750 = vsel %vm36, %v6670, 0
    %v6753 = vsel %vm36, %v6671, 0
    %v6756 = vsel %vm36, %v6672, 0
    %v6759 = vsel %vm36, %v6673, 0
    %v6762 = vsel %vm36, %v6674, 0
    %v6765 = vsel %vm36, %v6675, 0
    %v6768 = vsel %vm36, %v6676, 0
    %v6771 = vsel %vm36, %v6677, 0
    %v6774 = vsel %vm36, %v6678, 0
    %v6777 = vsel %vm36, %v6679, 0
    %v6780 = vsel %vm36, %v6680, 0
    %v6783 = vsel %vm36, %v6681, 0
    %v6786 = vsel %vm36, %v6682, 0
    %v6789 = vsel %vm36, %v6683, 0
    %v6792 = vsel %vm36, %v6684, 0
    %v6795 = vsel %vm36, %v6685, 0
    %v6798 = vsel %vm36, %v6686, 0
    %v6801 = vsel %vm36, %v6687, 0
    %v6804 = vsel %vm36, %v6688, 0
    %v6807 = vsel %vm36, %v6689, 0
    %v6810 = vsel %vm36, %v6690, 0
    %v6813 = vsel %vm36, %v6691, 0
    %v6816 = vsel %vm36, %v6692, 0
    %v6819 = vsel %vm36, %v6693, 0
    %v6822 = vsel %vm36, %v6694, 0
    %v6825 = vsel %vm36, %v6695, 0
    %v6828 = vsel %vm36, %v6696, 0
    %v6831 = vsel %vm36, %v6697, 0
    %v6834 = vsel %vm36, %v6698, 0
    %v6837 = vsel %vm36, %v6699, 0
    %v6840 = vsel %vm36, %v6700, 0
    %v6843 = vsel %vm36, %v6701, 0
    %v6846 = vsel %vm36, %v6702, 0
    %v6849 = vsel %vm36, %v6703, 0
    %v6852 = vsel %vm36, %v6704, 0
    %v6855 = vsel %vm36, %v6705, 0
    %v6858 = vsel %vm36, %v6706, 0
    %v6861 = vsel %vm36, %v6707, 0
    %v6864 = vsel %vm36, %v6708, 0
    %v6867 = vsel %vm36, %v6709, 0
    %v6870 = vsel %vm36, %v6710, 0
    %v6873 = vsel %vm36, %v6711, 0
    %v6876 = vsel %vm36, %v6712, 0
    %v6879 = vsel %vm36, %v6713, 0
    %v6882 = vsel %vm36, %v6714, 0
    %v6885 = vsel %vm36, %v6715, 0
    %v6888 = vsel %vm36, %v6716, 0
    %v6891 = vsel %vm36, %v6717, 0
    %v6894 = vsel %vm36, %v6718, 0
    %v6897 = vsel %vm36, %v6719, 0
    %v6900 = vsel %vm36, %v6720, 0
    %v6903 = vsel %vm36, %v6721, 0
    %v6906 = vsel %vm36, %v6722, 0
    %v6909 = vsel %vm36, %v6723, 0
    %v6912 = vsel %vm36, %v6724, 0
    %v6915 = vsel %vm36, %v6725, 0
    %v6918 = vsel %vm36, %v6726, 0
    %v6921 = vsel %vm36, %v6727, 0
    %6923 = vmatpush.msra.mxu0 0.0
    %6924 = vmatpush.msra.mxu0 0.0
    %6925 = vmatpush.msra.mxu0 0.0
    %6926 = vmatpush.msra.mxu0 0.0
    %6927 = vmatpush.msra.mxu0 0.0
    %6928 = vmatpush.msra.mxu0 0.0
    %6929 = vmatpush.msra.mxu0 0.0
    %6930 = vmatpush.msra.mxu0 0.0
    %6931 = vmatpush.msra.mxu0 0.0
    %6932 = vmatpush.msra.mxu0 0.0
    %6933 = vmatpush.msra.mxu0 0.0
    %6934 = vmatpush.msra.mxu0 0.0
    %6935 = vmatpush.msra.mxu0 0.0
    %6936 = vmatpush.msra.mxu0 0.0
    %6937 = vmatpush.msra.mxu0 %v6730
    %6938 = vmatpush.msra.mxu0 %v6729
    %6939 = vmatmul.f32.gmra.mxu0 %v6732
    %v6940 = vpop.f32.mrf.mxu0
    %v6941 = vadd.f32 0.0, %v6940
    %6942 = vmatmul.f32.gmra.mxu0 %v6735
    %v6943 = vpop.f32.mrf.mxu0
    %v6944 = vadd.f32 0.0, %v6943
    %6945 = vmatmul.f32.gmra.mxu0 %v6738
    %v6946 = vpop.f32.mrf.mxu0
    %v6947 = vadd.f32 0.0, %v6946
    %6948 = vmatmul.f32.gmra.mxu0 %v6741
    %v6949 = vpop.f32.mrf.mxu0
    %v6950 = vadd.f32 0.0, %v6949
    %6951 = vmatmul.f32.gmra.mxu0 %v6744
    %v6952 = vpop.f32.mrf.mxu0
    %v6953 = vadd.f32 0.0, %v6952
    %6954 = vmatmul.f32.gmra.mxu0 %v6747
    %v6955 = vpop.f32.mrf.mxu0
    %v6956 = vadd.f32 0.0, %v6955
    %6957 = vmatmul.f32.gmra.mxu0 %v6750
    %v6958 = vpop.f32.mrf.mxu0
    %v6959 = vadd.f32 0.0, %v6958
    %6960 = vmatmul.f32.gmra.mxu0 %v6753
    %v6961 = vpop.f32.mrf.mxu0
    %v6962 = vadd.f32 0.0, %v6961
    %6963 = vmatmul.f32.gmra.mxu0 %v6756
    %v6964 = vpop.f32.mrf.mxu0
    %v6965 = vadd.f32 0.0, %v6964
    %6966 = vmatmul.f32.gmra.mxu0 %v6759
    %v6967 = vpop.f32.mrf.mxu0
    %v6968 = vadd.f32 0.0, %v6967
    %6969 = vmatmul.f32.gmra.mxu0 %v6762
    %v6970 = vpop.f32.mrf.mxu0
    %v6971 = vadd.f32 0.0, %v6970
    %6972 = vmatmul.f32.gmra.mxu0 %v6765
    %v6973 = vpop.f32.mrf.mxu0
    %v6974 = vadd.f32 0.0, %v6973
    %6975 = vmatmul.f32.gmra.mxu0 %v6768
    %v6976 = vpop.f32.mrf.mxu0
    %v6977 = vadd.f32 0.0, %v6976
    %6978 = vmatmul.f32.gmra.mxu0 %v6771
    %v6979 = vpop.f32.mrf.mxu0
    %v6980 = vadd.f32 0.0, %v6979
    %6981 = vmatmul.f32.gmra.mxu0 %v6774
    %v6982 = vpop.f32.mrf.mxu0
    %v6983 = vadd.f32 0.0, %v6982
    %6984 = vmatmul.f32.gmra.mxu0 %v6777
    %v6985 = vpop.f32.mrf.mxu0
    %v6986 = vadd.f32 0.0, %v6985
    %6987 = vmatmul.f32.gmra.mxu0 %v6780
    %v6988 = vpop.f32.mrf.mxu0
    %v6989 = vadd.f32 0.0, %v6988
    %6990 = vmatmul.f32.gmra.mxu0 %v6783
    %v6991 = vpop.f32.mrf.mxu0
    %v6992 = vadd.f32 0.0, %v6991
    %6993 = vmatmul.f32.gmra.mxu0 %v6786
    %v6994 = vpop.f32.mrf.mxu0
    %v6995 = vadd.f32 0.0, %v6994
    %6996 = vmatmul.f32.gmra.mxu0 %v6789
    %v6997 = vpop.f32.mrf.mxu0
    %v6998 = vadd.f32 0.0, %v6997
    %6999 = vmatmul.f32.gmra.mxu0 %v6792
    %v7000 = vpop.f32.mrf.mxu0
    %v7001 = vadd.f32 0.0, %v7000
    %7002 = vmatmul.f32.gmra.mxu0 %v6795
    %v7003 = vpop.f32.mrf.mxu0
    %v7004 = vadd.f32 0.0, %v7003
    %7005 = vmatmul.f32.gmra.mxu0 %v6798
    %v7006 = vpop.f32.mrf.mxu0
    %v7007 = vadd.f32 0.0, %v7006
    %7008 = vmatmul.f32.gmra.mxu0 %v6801
    %v7009 = vpop.f32.mrf.mxu0
    %v7010 = vadd.f32 0.0, %v7009
    %7011 = vmatmul.f32.gmra.mxu0 %v6804
    %v7012 = vpop.f32.mrf.mxu0
    %v7013 = vadd.f32 0.0, %v7012
    %7014 = vmatmul.f32.gmra.mxu0 %v6807
    %v7015 = vpop.f32.mrf.mxu0
    %v7016 = vadd.f32 0.0, %v7015
    %7017 = vmatmul.f32.gmra.mxu0 %v6810
    %v7018 = vpop.f32.mrf.mxu0
    %v7019 = vadd.f32 0.0, %v7018
    %7020 = vmatmul.f32.gmra.mxu0 %v6813
    %v7021 = vpop.f32.mrf.mxu0
    %v7022 = vadd.f32 0.0, %v7021
    %7023 = vmatmul.f32.gmra.mxu0 %v6816
    %v7024 = vpop.f32.mrf.mxu0
    %v7025 = vadd.f32 0.0, %v7024
    %7026 = vmatmul.f32.gmra.mxu0 %v6819
    %v7027 = vpop.f32.mrf.mxu0
    %v7028 = vadd.f32 0.0, %v7027
    %7029 = vmatmul.f32.gmra.mxu0 %v6822
    %v7030 = vpop.f32.mrf.mxu0
    %v7031 = vadd.f32 0.0, %v7030
    %7032 = vmatmul.f32.gmra.mxu0 %v6825
    %v7033 = vpop.f32.mrf.mxu0
    %v7034 = vadd.f32 0.0, %v7033
    %7035 = vmatmul.f32.gmra.mxu0 %v6828
    %v7036 = vpop.f32.mrf.mxu0
    %v7037 = vadd.f32 0.0, %v7036
    %7038 = vmatmul.f32.gmra.mxu0 %v6831
    %v7039 = vpop.f32.mrf.mxu0
    %v7040 = vadd.f32 0.0, %v7039
    %7041 = vmatmul.f32.gmra.mxu0 %v6834
    %v7042 = vpop.f32.mrf.mxu0
    %v7043 = vadd.f32 0.0, %v7042
    %7044 = vmatmul.f32.gmra.mxu0 %v6837
    %v7045 = vpop.f32.mrf.mxu0
    %v7046 = vadd.f32 0.0, %v7045
    %7047 = vmatmul.f32.gmra.mxu0 %v6840
    %v7048 = vpop.f32.mrf.mxu0
    %v7049 = vadd.f32 0.0, %v7048
    %7050 = vmatmul.f32.gmra.mxu0 %v6843
    %v7051 = vpop.f32.mrf.mxu0
    %v7052 = vadd.f32 0.0, %v7051
    %7053 = vmatmul.f32.gmra.mxu0 %v6846
    %v7054 = vpop.f32.mrf.mxu0
    %v7055 = vadd.f32 0.0, %v7054
    %7056 = vmatmul.f32.gmra.mxu0 %v6849
    %v7057 = vpop.f32.mrf.mxu0
    %v7058 = vadd.f32 0.0, %v7057
    %7059 = vmatmul.f32.gmra.mxu0 %v6852
    %v7060 = vpop.f32.mrf.mxu0
    %v7061 = vadd.f32 0.0, %v7060
    %7062 = vmatmul.f32.gmra.mxu0 %v6855
    %v7063 = vpop.f32.mrf.mxu0
    %v7064 = vadd.f32 0.0, %v7063
    %7065 = vmatmul.f32.gmra.mxu0 %v6858
    %v7066 = vpop.f32.mrf.mxu0
    %v7067 = vadd.f32 0.0, %v7066
    %7068 = vmatmul.f32.gmra.mxu0 %v6861
    %v7069 = vpop.f32.mrf.mxu0
    %v7070 = vadd.f32 0.0, %v7069
    %7071 = vmatmul.f32.gmra.mxu0 %v6864
    %v7072 = vpop.f32.mrf.mxu0
    %v7073 = vadd.f32 0.0, %v7072
    %7074 = vmatmul.f32.gmra.mxu0 %v6867
    %v7075 = vpop.f32.mrf.mxu0
    %v7076 = vadd.f32 0.0, %v7075
    %7077 = vmatmul.f32.gmra.mxu0 %v6870
    %v7078 = vpop.f32.mrf.mxu0
    %v7079 = vadd.f32 0.0, %v7078
    %7080 = vmatmul.f32.gmra.mxu0 %v6873
    %v7081 = vpop.f32.mrf.mxu0
    %v7082 = vadd.f32 0.0, %v7081
    %7083 = vmatmul.f32.gmra.mxu0 %v6876
    %v7084 = vpop.f32.mrf.mxu0
    %v7085 = vadd.f32 0.0, %v7084
    %7086 = vmatmul.f32.gmra.mxu0 %v6879
    %v7087 = vpop.f32.mrf.mxu0
    %v7088 = vadd.f32 0.0, %v7087
    %7089 = vmatmul.f32.gmra.mxu0 %v6882
    %v7090 = vpop.f32.mrf.mxu0
    %v7091 = vadd.f32 0.0, %v7090
    %7092 = vmatmul.f32.gmra.mxu0 %v6885
    %v7093 = vpop.f32.mrf.mxu0
    %v7094 = vadd.f32 0.0, %v7093
    %7095 = vmatmul.f32.gmra.mxu0 %v6888
    %v7096 = vpop.f32.mrf.mxu0
    %v7097 = vadd.f32 0.0, %v7096
    %7098 = vmatmul.f32.gmra.mxu0 %v6891
    %v7099 = vpop.f32.mrf.mxu0
    %v7100 = vadd.f32 0.0, %v7099
    %7101 = vmatmul.f32.gmra.mxu0 %v6894
    %v7102 = vpop.f32.mrf.mxu0
    %v7103 = vadd.f32 0.0, %v7102
    %7104 = vmatmul.f32.gmra.mxu0 %v6897
    %v7105 = vpop.f32.mrf.mxu0
    %v7106 = vadd.f32 0.0, %v7105
    %7107 = vmatmul.f32.gmra.mxu0 %v6900
    %v7108 = vpop.f32.mrf.mxu0
    %v7109 = vadd.f32 0.0, %v7108
    %7110 = vmatmul.f32.gmra.mxu0 %v6903
    %v7111 = vpop.f32.mrf.mxu0
    %v7112 = vadd.f32 0.0, %v7111
    %7113 = vmatmul.f32.gmra.mxu0 %v6906
    %v7114 = vpop.f32.mrf.mxu0
    %v7115 = vadd.f32 0.0, %v7114
    %7116 = vmatmul.f32.gmra.mxu0 %v6909
    %v7117 = vpop.f32.mrf.mxu0
    %v7118 = vadd.f32 0.0, %v7117
    %7119 = vmatmul.f32.gmra.mxu0 %v6912
    %v7120 = vpop.f32.mrf.mxu0
    %v7121 = vadd.f32 0.0, %v7120
    %7122 = vmatmul.f32.gmra.mxu0 %v6915
    %v7123 = vpop.f32.mrf.mxu0
    %v7124 = vadd.f32 0.0, %v7123
    %7125 = vmatmul.f32.gmra.mxu0 %v6918
    %v7126 = vpop.f32.mrf.mxu0
    %v7127 = vadd.f32 0.0, %v7126
    %7128 = vmatmul.f32.gmra.mxu0 %v6921
    %v7129 = vpop.f32.mrf.mxu0
    %v7130 = vadd.f32 0.0, %v7129
    %7131 = vdwg.mxu0
    %v7132 = vadd.f32 %v6473, %v6941
    %v7133 = vadd.f32 %v6476, %v6944
    %v7134 = vadd.f32 %v6479, %v6947
    %v7135 = vadd.f32 %v6482, %v6950
    %v7136 = vadd.f32 %v6485, %v6953
    %v7137 = vadd.f32 %v6488, %v6956
    %v7138 = vadd.f32 %v6491, %v6959
    %v7139 = vadd.f32 %v6494, %v6962
    %v7140 = vadd.f32 %v6497, %v6965
    %v7141 = vadd.f32 %v6500, %v6968
    %v7142 = vadd.f32 %v6503, %v6971
    %v7143 = vadd.f32 %v6506, %v6974
    %v7144 = vadd.f32 %v6509, %v6977
    %v7145 = vadd.f32 %v6512, %v6980
    %v7146 = vadd.f32 %v6515, %v6983
    %v7147 = vadd.f32 %v6518, %v6986
    %v7148 = vadd.f32 %v6521, %v6989
    %v7149 = vadd.f32 %v6524, %v6992
    %v7150 = vadd.f32 %v6527, %v6995
    %v7151 = vadd.f32 %v6530, %v6998
    %v7152 = vadd.f32 %v6533, %v7001
    %v7153 = vadd.f32 %v6536, %v7004
    %v7154 = vadd.f32 %v6539, %v7007
    %v7155 = vadd.f32 %v6542, %v7010
    %v7156 = vadd.f32 %v6545, %v7013
    %v7157 = vadd.f32 %v6548, %v7016
    %v7158 = vadd.f32 %v6551, %v7019
    %v7159 = vadd.f32 %v6554, %v7022
    %v7160 = vadd.f32 %v6557, %v7025
    %v7161 = vadd.f32 %v6560, %v7028
    %v7162 = vadd.f32 %v6563, %v7031
    %v7163 = vadd.f32 %v6566, %v7034
    %v7164 = vadd.f32 %v6569, %v7037
    %v7165 = vadd.f32 %v6572, %v7040
    %v7166 = vadd.f32 %v6575, %v7043
    %v7167 = vadd.f32 %v6578, %v7046
    %v7168 = vadd.f32 %v6581, %v7049
    %v7169 = vadd.f32 %v6584, %v7052
    %v7170 = vadd.f32 %v6587, %v7055
    %v7171 = vadd.f32 %v6590, %v7058
    %v7172 = vadd.f32 %v6593, %v7061
    %v7173 = vadd.f32 %v6596, %v7064
    %v7174 = vadd.f32 %v6599, %v7067
    %v7175 = vadd.f32 %v6602, %v7070
    %v7176 = vadd.f32 %v6605, %v7073
    %v7177 = vadd.f32 %v6608, %v7076
    %v7178 = vadd.f32 %v6611, %v7079
    %v7179 = vadd.f32 %v6614, %v7082
    %v7180 = vadd.f32 %v6617, %v7085
    %v7181 = vadd.f32 %v6620, %v7088
    %v7182 = vadd.f32 %v6623, %v7091
    %v7183 = vadd.f32 %v6626, %v7094
    %v7184 = vadd.f32 %v6629, %v7097
    %v7185 = vadd.f32 %v6632, %v7100
    %v7186 = vadd.f32 %v6635, %v7103
    %v7187 = vadd.f32 %v6638, %v7106
    %v7188 = vadd.f32 %v6641, %v7109
    %v7189 = vadd.f32 %v6644, %v7112
    %v7190 = vadd.f32 %v6647, %v7115
    %v7191 = vadd.f32 %v6650, %v7118
    %v7192 = vadd.f32 %v6653, %v7121
    %v7193 = vadd.f32 %v6656, %v7124
    %v7194 = vadd.f32 %v6659, %v7127
    %v7195 = vadd.f32 %v6662, %v7130
    %v7196 = vld [vmem:[%s274] sm:$0xff]
    %v7197 = vld [vmem:[%s274 + $0x8] sm:$0xff]
    %v7198 = vld [vmem:[%s274 + $0x18] sm:$0xff]
    %v7199 = vld [vmem:[%s274 + $0x20] sm:$0xff]
    %v7200 = vld [vmem:[%s274 + $0x30] sm:$0xff]
    %v7201 = vld [vmem:[%s274 + $0x38] sm:$0xff]
    %v7202 = vld [vmem:[%s274 + $0x48] sm:$0xff]
    %v7203 = vld [vmem:[%s274 + $0x50] sm:$0xff]
    %v7204 = vld [vmem:[%s274 + $0x60] sm:$0xff]
    %v7205 = vld [vmem:[%s274 + $0x68] sm:$0xff]
    %v7206 = vld [vmem:[%s274 + $0x78] sm:$0xff]
    %v7207 = vld [vmem:[%s274 + $0x80] sm:$0xff]
    %v7208 = vld [vmem:[%s274 + $0x90] sm:$0xff]
    %v7209 = vld [vmem:[%s274 + $0x98] sm:$0xff]
    %v7210 = vld [vmem:[%s274 + $0xa8] sm:$0xff]
    %v7211 = vld [vmem:[%s274 + $0xb0] sm:$0xff]
    %v7212 = vld [vmem:[%s274 + $0xc0] sm:$0xff]
    %v7213 = vld [vmem:[%s274 + $0xc8] sm:$0xff]
    %v7214 = vld [vmem:[%s274 + $0xd8] sm:$0xff]
    %v7215 = vld [vmem:[%s274 + $0xe0] sm:$0xff]
    %v7216 = vld [vmem:[%s274 + $0xf0] sm:$0xff]
    %v7217 = vld [vmem:[%s274 + $0xf8] sm:$0xff]
    %v7218 = vld [vmem:[%s274 + $0x108] sm:$0xff]
    %v7219 = vld [vmem:[%s274 + $0x110] sm:$0xff]
    %v7220 = vld [vmem:[%s274 + $0x120] sm:$0xff]
    %v7221 = vld [vmem:[%s274 + $0x128] sm:$0xff]
    %v7222 = vld [vmem:[%s274 + $0x138] sm:$0xff]
    %v7223 = vld [vmem:[%s274 + $0x140] sm:$0xff]
    %v7224 = vld [vmem:[%s274 + $0x150] sm:$0xff]
    %v7225 = vld [vmem:[%s274 + $0x158] sm:$0xff]
    %v7226 = vld [vmem:[%s274 + $0x168] sm:$0xff]
    %v7227 = vld [vmem:[%s274 + $0x170] sm:$0xff]
    %v7228 = vld [vmem:[%s274 + $0x1b0] sm:$0xff]
    %v7229 = vld [vmem:[%s274 + $0x1b8] sm:$0xff]
    %v7230 = vld [vmem:[%s274 + $0x1c8] sm:$0xff]
    %v7231 = vld [vmem:[%s274 + $0x1d0] sm:$0xff]
    %v7232 = vld [vmem:[%s274 + $0x1e0] sm:$0xff]
    %v7233 = vld [vmem:[%s274 + $0x1e8] sm:$0xff]
    %v7234 = vld [vmem:[%s274 + $0x1f8] sm:$0xff]
    %v7235 = vld [vmem:[%s274 + $0x200] sm:$0xff]
    %v7236 = vld [vmem:[%s274 + $0x210] sm:$0xff]
    %v7237 = vld [vmem:[%s274 + $0x218] sm:$0xff]
    %v7238 = vld [vmem:[%s274 + $0x228] sm:$0xff]
    %v7239 = vld [vmem:[%s274 + $0x230] sm:$0xff]
    %v7240 = vld [vmem:[%s274 + $0x240] sm:$0xff]
    %v7241 = vld [vmem:[%s274 + $0x248] sm:$0xff]
    %v7242 = vld [vmem:[%s274 + $0x258] sm:$0xff]
    %v7243 = vld [vmem:[%s274 + $0x260] sm:$0xff]
    %v7244 = vld [vmem:[%s274 + $0x270] sm:$0xff]
    %v7245 = vld [vmem:[%s274 + $0x278] sm:$0xff]
    %v7246 = vld [vmem:[%s274 + $0x288] sm:$0xff]
    %v7247 = vld [vmem:[%s274 + $0x290] sm:$0xff]
    %v7248 = vld [vmem:[%s274 + $0x2a0] sm:$0xff]
    %v7249 = vld [vmem:[%s274 + $0x2a8] sm:$0xff]
    %v7250 = vld [vmem:[%s274 + $0x2b8] sm:$0xff]
    %v7251 = vld [vmem:[%s274 + $0x2c0] sm:$0xff]
    %v7252 = vld [vmem:[%s274 + $0x2d0] sm:$0xff]
    %v7253 = vld [vmem:[%s274 + $0x2d8] sm:$0xff]
    %v7254 = vld [vmem:[%s274 + $0x2e8] sm:$0xff]
    %v7255 = vld [vmem:[%s274 + $0x2f0] sm:$0xff]
    %v7256 = vld [vmem:[%s274 + $0x300] sm:$0xff]
    %v7257 = vld [vmem:[%s274 + $0x308] sm:$0xff]
    %v7258 = vld [vmem:[%s274 + $0x318] sm:$0xff]
    %v7259 = vld [vmem:[%s274 + $0x320] sm:$0xff]
    %s7260 = scalar_lea.vmem %s4, 48
    %v7261 = vld [vmem:[%s7260] sm:$0xff]
    %v7262 = vld [vmem:[%s7260 + $0x8] sm:$0xff]
    %v7264 = vsel %vm36, %v7196, 0
    %v7267 = vsel %vm36, %v7197, 0
    %v7270 = vsel %vm36, %v7198, 0
    %v7273 = vsel %vm36, %v7199, 0
    %v7276 = vsel %vm36, %v7200, 0
    %v7279 = vsel %vm36, %v7201, 0
    %v7282 = vsel %vm36, %v7202, 0
    %v7285 = vsel %vm36, %v7203, 0
    %v7288 = vsel %vm36, %v7204, 0
    %v7291 = vsel %vm36, %v7205, 0
    %v7294 = vsel %vm36, %v7206, 0
    %v7297 = vsel %vm36, %v7207, 0
    %v7300 = vsel %vm36, %v7208, 0
    %v7303 = vsel %vm36, %v7209, 0
    %v7306 = vsel %vm36, %v7210, 0
    %v7309 = vsel %vm36, %v7211, 0
    %v7312 = vsel %vm36, %v7212, 0
    %v7315 = vsel %vm36, %v7213, 0
    %v7318 = vsel %vm36, %v7214, 0
    %v7321 = vsel %vm36, %v7215, 0
    %v7324 = vsel %vm36, %v7216, 0
    %v7327 = vsel %vm36, %v7217, 0
    %v7330 = vsel %vm36, %v7218, 0
    %v7333 = vsel %vm36, %v7219, 0
    %v7336 = vsel %vm36, %v7220, 0
    %v7339 = vsel %vm36, %v7221, 0
    %v7342 = vsel %vm36, %v7222, 0
    %v7345 = vsel %vm36, %v7223, 0
    %v7348 = vsel %vm36, %v7224, 0
    %v7351 = vsel %vm36, %v7225, 0
    %v7354 = vsel %vm36, %v7226, 0
    %v7357 = vsel %vm36, %v7227, 0
    %v7360 = vsel %vm36, %v7228, 0
    %v7363 = vsel %vm36, %v7229, 0
    %v7366 = vsel %vm36, %v7230, 0
    %v7369 = vsel %vm36, %v7231, 0
    %v7372 = vsel %vm36, %v7232, 0
    %v7375 = vsel %vm36, %v7233, 0
    %v7378 = vsel %vm36, %v7234, 0
    %v7381 = vsel %vm36, %v7235, 0
    %v7384 = vsel %vm36, %v7236, 0
    %v7387 = vsel %vm36, %v7237, 0
    %v7390 = vsel %vm36, %v7238, 0
    %v7393 = vsel %vm36, %v7239, 0
    %v7396 = vsel %vm36, %v7240, 0
    %v7399 = vsel %vm36, %v7241, 0
    %v7402 = vsel %vm36, %v7242, 0
    %v7405 = vsel %vm36, %v7243, 0
    %v7408 = vsel %vm36, %v7244, 0
    %v7411 = vsel %vm36, %v7245, 0
    %v7414 = vsel %vm36, %v7246, 0
    %v7417 = vsel %vm36, %v7247, 0
    %v7420 = vsel %vm36, %v7248, 0
    %v7423 = vsel %vm36, %v7249, 0
    %v7426 = vsel %vm36, %v7250, 0
    %v7429 = vsel %vm36, %v7251, 0
    %v7432 = vsel %vm36, %v7252, 0
    %v7435 = vsel %vm36, %v7253, 0
    %v7438 = vsel %vm36, %v7254, 0
    %v7441 = vsel %vm36, %v7255, 0
    %v7444 = vsel %vm36, %v7256, 0
    %v7447 = vsel %vm36, %v7257, 0
    %v7450 = vsel %vm36, %v7258, 0
    %v7453 = vsel %vm36, %v7259, 0
    %7455 = vmatpush.msra.mxu0 0.0
    %7456 = vmatpush.msra.mxu0 0.0
    %7457 = vmatpush.msra.mxu0 0.0
    %7458 = vmatpush.msra.mxu0 0.0
    %7459 = vmatpush.msra.mxu0 0.0
    %7460 = vmatpush.msra.mxu0 0.0
    %7461 = vmatpush.msra.mxu0 0.0
    %7462 = vmatpush.msra.mxu0 0.0
    %7463 = vmatpush.msra.mxu0 0.0
    %7464 = vmatpush.msra.mxu0 0.0
    %7465 = vmatpush.msra.mxu0 0.0
    %7466 = vmatpush.msra.mxu0 0.0
    %7467 = vmatpush.msra.mxu0 0.0
    %7468 = vmatpush.msra.mxu0 0.0
    %7469 = vmatpush.msra.mxu0 %v7262
    %7470 = vmatpush.msra.mxu0 %v7261
    %7471 = vmatmul.f32.gmra.mxu0 %v7264
    %v7472 = vpop.f32.mrf.mxu0
    %v7473 = vadd.f32 0.0, %v7472
    %7474 = vmatmul.f32.gmra.mxu0 %v7267
    %v7475 = vpop.f32.mrf.mxu0
    %v7476 = vadd.f32 0.0, %v7475
    %7477 = vmatmul.f32.gmra.mxu0 %v7270
    %v7478 = vpop.f32.mrf.mxu0
    %v7479 = vadd.f32 0.0, %v7478
    %7480 = vmatmul.f32.gmra.mxu0 %v7273
    %v7481 = vpop.f32.mrf.mxu0
    %v7482 = vadd.f32 0.0, %v7481
    %7483 = vmatmul.f32.gmra.mxu0 %v7276
    %v7484 = vpop.f32.mrf.mxu0
    %v7485 = vadd.f32 0.0, %v7484
    %7486 = vmatmul.f32.gmra.mxu0 %v7279
    %v7487 = vpop.f32.mrf.mxu0
    %v7488 = vadd.f32 0.0, %v7487
    %7489 = vmatmul.f32.gmra.mxu0 %v7282
    %v7490 = vpop.f32.mrf.mxu0
    %v7491 = vadd.f32 0.0, %v7490
    %7492 = vmatmul.f32.gmra.mxu0 %v7285
    %v7493 = vpop.f32.mrf.mxu0
    %v7494 = vadd.f32 0.0, %v7493
    %7495 = vmatmul.f32.gmra.mxu0 %v7288
    %v7496 = vpop.f32.mrf.mxu0
    %v7497 = vadd.f32 0.0, %v7496
    %7498 = vmatmul.f32.gmra.mxu0 %v7291
    %v7499 = vpop.f32.mrf.mxu0
    %v7500 = vadd.f32 0.0, %v7499
    %7501 = vmatmul.f32.gmra.mxu0 %v7294
    %v7502 = vpop.f32.mrf.mxu0
    %v7503 = vadd.f32 0.0, %v7502
    %7504 = vmatmul.f32.gmra.mxu0 %v7297
    %v7505 = vpop.f32.mrf.mxu0
    %v7506 = vadd.f32 0.0, %v7505
    %7507 = vmatmul.f32.gmra.mxu0 %v7300
    %v7508 = vpop.f32.mrf.mxu0
    %v7509 = vadd.f32 0.0, %v7508
    %7510 = vmatmul.f32.gmra.mxu0 %v7303
    %v7511 = vpop.f32.mrf.mxu0
    %v7512 = vadd.f32 0.0, %v7511
    %7513 = vmatmul.f32.gmra.mxu0 %v7306
    %v7514 = vpop.f32.mrf.mxu0
    %v7515 = vadd.f32 0.0, %v7514
    %7516 = vmatmul.f32.gmra.mxu0 %v7309
    %v7517 = vpop.f32.mrf.mxu0
    %v7518 = vadd.f32 0.0, %v7517
    %7519 = vmatmul.f32.gmra.mxu0 %v7312
    %v7520 = vpop.f32.mrf.mxu0
    %v7521 = vadd.f32 0.0, %v7520
    %7522 = vmatmul.f32.gmra.mxu0 %v7315
    %v7523 = vpop.f32.mrf.mxu0
    %v7524 = vadd.f32 0.0, %v7523
    %7525 = vmatmul.f32.gmra.mxu0 %v7318
    %v7526 = vpop.f32.mrf.mxu0
    %v7527 = vadd.f32 0.0, %v7526
    %7528 = vmatmul.f32.gmra.mxu0 %v7321
    %v7529 = vpop.f32.mrf.mxu0
    %v7530 = vadd.f32 0.0, %v7529
    %7531 = vmatmul.f32.gmra.mxu0 %v7324
    %v7532 = vpop.f32.mrf.mxu0
    %v7533 = vadd.f32 0.0, %v7532
    %7534 = vmatmul.f32.gmra.mxu0 %v7327
    %v7535 = vpop.f32.mrf.mxu0
    %v7536 = vadd.f32 0.0, %v7535
    %7537 = vmatmul.f32.gmra.mxu0 %v7330
    %v7538 = vpop.f32.mrf.mxu0
    %v7539 = vadd.f32 0.0, %v7538
    %7540 = vmatmul.f32.gmra.mxu0 %v7333
    %v7541 = vpop.f32.mrf.mxu0
    %v7542 = vadd.f32 0.0, %v7541
    %7543 = vmatmul.f32.gmra.mxu0 %v7336
    %v7544 = vpop.f32.mrf.mxu0
    %v7545 = vadd.f32 0.0, %v7544
    %7546 = vmatmul.f32.gmra.mxu0 %v7339
    %v7547 = vpop.f32.mrf.mxu0
    %v7548 = vadd.f32 0.0, %v7547
    %7549 = vmatmul.f32.gmra.mxu0 %v7342
    %v7550 = vpop.f32.mrf.mxu0
    %v7551 = vadd.f32 0.0, %v7550
    %7552 = vmatmul.f32.gmra.mxu0 %v7345
    %v7553 = vpop.f32.mrf.mxu0
    %v7554 = vadd.f32 0.0, %v7553
    %7555 = vmatmul.f32.gmra.mxu0 %v7348
    %v7556 = vpop.f32.mrf.mxu0
    %v7557 = vadd.f32 0.0, %v7556
    %7558 = vmatmul.f32.gmra.mxu0 %v7351
    %v7559 = vpop.f32.mrf.mxu0
    %v7560 = vadd.f32 0.0, %v7559
    %7561 = vmatmul.f32.gmra.mxu0 %v7354
    %v7562 = vpop.f32.mrf.mxu0
    %v7563 = vadd.f32 0.0, %v7562
    %7564 = vmatmul.f32.gmra.mxu0 %v7357
    %v7565 = vpop.f32.mrf.mxu0
    %v7566 = vadd.f32 0.0, %v7565
    %7567 = vmatmul.f32.gmra.mxu0 %v7360
    %v7568 = vpop.f32.mrf.mxu0
    %v7569 = vadd.f32 0.0, %v7568
    %7570 = vmatmul.f32.gmra.mxu0 %v7363
    %v7571 = vpop.f32.mrf.mxu0
    %v7572 = vadd.f32 0.0, %v7571
    %7573 = vmatmul.f32.gmra.mxu0 %v7366
    %v7574 = vpop.f32.mrf.mxu0
    %v7575 = vadd.f32 0.0, %v7574
    %7576 = vmatmul.f32.gmra.mxu0 %v7369
    %v7577 = vpop.f32.mrf.mxu0
    %v7578 = vadd.f32 0.0, %v7577
    %7579 = vmatmul.f32.gmra.mxu0 %v7372
    %v7580 = vpop.f32.mrf.mxu0
    %v7581 = vadd.f32 0.0, %v7580
    %7582 = vmatmul.f32.gmra.mxu0 %v7375
    %v7583 = vpop.f32.mrf.mxu0
    %v7584 = vadd.f32 0.0, %v7583
    %7585 = vmatmul.f32.gmra.mxu0 %v7378
    %v7586 = vpop.f32.mrf.mxu0
    %v7587 = vadd.f32 0.0, %v7586
    %7588 = vmatmul.f32.gmra.mxu0 %v7381
    %v7589 = vpop.f32.mrf.mxu0
    %v7590 = vadd.f32 0.0, %v7589
    %7591 = vmatmul.f32.gmra.mxu0 %v7384
    %v7592 = vpop.f32.mrf.mxu0
    %v7593 = vadd.f32 0.0, %v7592
    %7594 = vmatmul.f32.gmra.mxu0 %v7387
    %v7595 = vpop.f32.mrf.mxu0
    %v7596 = vadd.f32 0.0, %v7595
    %7597 = vmatmul.f32.gmra.mxu0 %v7390
    %v7598 = vpop.f32.mrf.mxu0
    %v7599 = vadd.f32 0.0, %v7598
    %7600 = vmatmul.f32.gmra.mxu0 %v7393
    %v7601 = vpop.f32.mrf.mxu0
    %v7602 = vadd.f32 0.0, %v7601
    %7603 = vmatmul.f32.gmra.mxu0 %v7396
    %v7604 = vpop.f32.mrf.mxu0
    %v7605 = vadd.f32 0.0, %v7604
    %7606 = vmatmul.f32.gmra.mxu0 %v7399
    %v7607 = vpop.f32.mrf.mxu0
    %v7608 = vadd.f32 0.0, %v7607
    %7609 = vmatmul.f32.gmra.mxu0 %v7402
    %v7610 = vpop.f32.mrf.mxu0
    %v7611 = vadd.f32 0.0, %v7610
    %7612 = vmatmul.f32.gmra.mxu0 %v7405
    %v7613 = vpop.f32.mrf.mxu0
    %v7614 = vadd.f32 0.0, %v7613
    %7615 = vmatmul.f32.gmra.mxu0 %v7408
    %v7616 = vpop.f32.mrf.mxu0
    %v7617 = vadd.f32 0.0, %v7616
    %7618 = vmatmul.f32.gmra.mxu0 %v7411
    %v7619 = vpop.f32.mrf.mxu0
    %v7620 = vadd.f32 0.0, %v7619
    %7621 = vmatmul.f32.gmra.mxu0 %v7414
    %v7622 = vpop.f32.mrf.mxu0
    %v7623 = vadd.f32 0.0, %v7622
    %7624 = vmatmul.f32.gmra.mxu0 %v7417
    %v7625 = vpop.f32.mrf.mxu0
    %v7626 = vadd.f32 0.0, %v7625
    %7627 = vmatmul.f32.gmra.mxu0 %v7420
    %v7628 = vpop.f32.mrf.mxu0
    %v7629 = vadd.f32 0.0, %v7628
    %7630 = vmatmul.f32.gmra.mxu0 %v7423
    %v7631 = vpop.f32.mrf.mxu0
    %v7632 = vadd.f32 0.0, %v7631
    %7633 = vmatmul.f32.gmra.mxu0 %v7426
    %v7634 = vpop.f32.mrf.mxu0
    %v7635 = vadd.f32 0.0, %v7634
    %7636 = vmatmul.f32.gmra.mxu0 %v7429
    %v7637 = vpop.f32.mrf.mxu0
    %v7638 = vadd.f32 0.0, %v7637
    %7639 = vmatmul.f32.gmra.mxu0 %v7432
    %v7640 = vpop.f32.mrf.mxu0
    %v7641 = vadd.f32 0.0, %v7640
    %7642 = vmatmul.f32.gmra.mxu0 %v7435
    %v7643 = vpop.f32.mrf.mxu0
    %v7644 = vadd.f32 0.0, %v7643
    %7645 = vmatmul.f32.gmra.mxu0 %v7438
    %v7646 = vpop.f32.mrf.mxu0
    %v7647 = vadd.f32 0.0, %v7646
    %7648 = vmatmul.f32.gmra.mxu0 %v7441
    %v7649 = vpop.f32.mrf.mxu0
    %v7650 = vadd.f32 0.0, %v7649
    %7651 = vmatmul.f32.gmra.mxu0 %v7444
    %v7652 = vpop.f32.mrf.mxu0
    %v7653 = vadd.f32 0.0, %v7652
    %7654 = vmatmul.f32.gmra.mxu0 %v7447
    %v7655 = vpop.f32.mrf.mxu0
    %v7656 = vadd.f32 0.0, %v7655
    %7657 = vmatmul.f32.gmra.mxu0 %v7450
    %v7658 = vpop.f32.mrf.mxu0
    %v7659 = vadd.f32 0.0, %v7658
    %7660 = vmatmul.f32.gmra.mxu0 %v7453
    %v7661 = vpop.f32.mrf.mxu0
    %v7662 = vadd.f32 0.0, %v7661
    %7663 = vdwg.mxu0
    %v7664 = vadd.f32 %v7132, %v7473
    %v7665 = vadd.f32 %v7133, %v7476
    %v7666 = vadd.f32 %v7134, %v7479
    %v7667 = vadd.f32 %v7135, %v7482
    %v7668 = vadd.f32 %v7136, %v7485
    %v7669 = vadd.f32 %v7137, %v7488
    %v7670 = vadd.f32 %v7138, %v7491
    %v7671 = vadd.f32 %v7139, %v7494
    %v7672 = vadd.f32 %v7140, %v7497
    %v7673 = vadd.f32 %v7141, %v7500
    %v7674 = vadd.f32 %v7142, %v7503
    %v7675 = vadd.f32 %v7143, %v7506
    %v7676 = vadd.f32 %v7144, %v7509
    %v7677 = vadd.f32 %v7145, %v7512
    %v7678 = vadd.f32 %v7146, %v7515
    %v7679 = vadd.f32 %v7147, %v7518
    %v7680 = vadd.f32 %v7148, %v7521
    %v7681 = vadd.f32 %v7149, %v7524
    %v7682 = vadd.f32 %v7150, %v7527
    %v7683 = vadd.f32 %v7151, %v7530
    %v7684 = vadd.f32 %v7152, %v7533
    %v7685 = vadd.f32 %v7153, %v7536
    %v7686 = vadd.f32 %v7154, %v7539
    %v7687 = vadd.f32 %v7155, %v7542
    %v7688 = vadd.f32 %v7156, %v7545
    %v7689 = vadd.f32 %v7157, %v7548
    %v7690 = vadd.f32 %v7158, %v7551
    %v7691 = vadd.f32 %v7159, %v7554
    %v7692 = vadd.f32 %v7160, %v7557
    %v7693 = vadd.f32 %v7161, %v7560
    %v7694 = vadd.f32 %v7162, %v7563
    %v7695 = vadd.f32 %v7163, %v7566
    %v7696 = vadd.f32 %v7164, %v7569
    %v7697 = vadd.f32 %v7165, %v7572
    %v7698 = vadd.f32 %v7166, %v7575
    %v7699 = vadd.f32 %v7167, %v7578
    %v7700 = vadd.f32 %v7168, %v7581
    %v7701 = vadd.f32 %v7169, %v7584
    %v7702 = vadd.f32 %v7170, %v7587
    %v7703 = vadd.f32 %v7171, %v7590
    %v7704 = vadd.f32 %v7172, %v7593
    %v7705 = vadd.f32 %v7173, %v7596
    %v7706 = vadd.f32 %v7174, %v7599
    %v7707 = vadd.f32 %v7175, %v7602
    %v7708 = vadd.f32 %v7176, %v7605
    %v7709 = vadd.f32 %v7177, %v7608
    %v7710 = vadd.f32 %v7178, %v7611
    %v7711 = vadd.f32 %v7179, %v7614
    %v7712 = vadd.f32 %v7180, %v7617
    %v7713 = vadd.f32 %v7181, %v7620
    %v7714 = vadd.f32 %v7182, %v7623
    %v7715 = vadd.f32 %v7183, %v7626
    %v7716 = vadd.f32 %v7184, %v7629
    %v7717 = vadd.f32 %v7185, %v7632
    %v7718 = vadd.f32 %v7186, %v7635
    %v7719 = vadd.f32 %v7187, %v7638
    %v7720 = vadd.f32 %v7188, %v7641
    %v7721 = vadd.f32 %v7189, %v7644
    %v7722 = vadd.f32 %v7190, %v7647
    %v7723 = vadd.f32 %v7191, %v7650
    %v7724 = vadd.f32 %v7192, %v7653
    %v7725 = vadd.f32 %v7193, %v7656
    %v7726 = vadd.f32 %v7194, %v7659
    %v7727 = vadd.f32 %v7195, %v7662
    %v7728 = vld [vmem:[%s274 + $0x1] sm:$0xff]
    %v7729 = vld [vmem:[%s274 + $0x9] sm:$0xff]
    %v7730 = vld [vmem:[%s274 + $0x19] sm:$0xff]
    %v7731 = vld [vmem:[%s274 + $0x21] sm:$0xff]
    %v7732 = vld [vmem:[%s274 + $0x31] sm:$0xff]
    %v7733 = vld [vmem:[%s274 + $0x39] sm:$0xff]
    %v7734 = vld [vmem:[%s274 + $0x49] sm:$0xff]
    %v7735 = vld [vmem:[%s274 + $0x51] sm:$0xff]
    %v7736 = vld [vmem:[%s274 + $0x61] sm:$0xff]
    %v7737 = vld [vmem:[%s274 + $0x69] sm:$0xff]
    %v7738 = vld [vmem:[%s274 + $0x79] sm:$0xff]
    %v7739 = vld [vmem:[%s274 + $0x81] sm:$0xff]
    %v7740 = vld [vmem:[%s274 + $0x91] sm:$0xff]
    %v7741 = vld [vmem:[%s274 + $0x99] sm:$0xff]
    %v7742 = vld [vmem:[%s274 + $0xa9] sm:$0xff]
    %v7743 = vld [vmem:[%s274 + $0xb1] sm:$0xff]
    %v7744 = vld [vmem:[%s274 + $0xc1] sm:$0xff]
    %v7745 = vld [vmem:[%s274 + $0xc9] sm:$0xff]
    %v7746 = vld [vmem:[%s274 + $0xd9] sm:$0xff]
    %v7747 = vld [vmem:[%s274 + $0xe1] sm:$0xff]
    %v7748 = vld [vmem:[%s274 + $0xf1] sm:$0xff]
    %v7749 = vld [vmem:[%s274 + $0xf9] sm:$0xff]
    %v7750 = vld [vmem:[%s274 + $0x109] sm:$0xff]
    %v7751 = vld [vmem:[%s274 + $0x111] sm:$0xff]
    %v7752 = vld [vmem:[%s274 + $0x121] sm:$0xff]
    %v7753 = vld [vmem:[%s274 + $0x129] sm:$0xff]
    %v7754 = vld [vmem:[%s274 + $0x139] sm:$0xff]
    %v7755 = vld [vmem:[%s274 + $0x141] sm:$0xff]
    %v7756 = vld [vmem:[%s274 + $0x151] sm:$0xff]
    %v7757 = vld [vmem:[%s274 + $0x159] sm:$0xff]
    %v7758 = vld [vmem:[%s274 + $0x169] sm:$0xff]
    %v7759 = vld [vmem:[%s274 + $0x171] sm:$0xff]
    %v7760 = vld [vmem:[%s274 + $0x1b1] sm:$0xff]
    %v7761 = vld [vmem:[%s274 + $0x1b9] sm:$0xff]
    %v7762 = vld [vmem:[%s274 + $0x1c9] sm:$0xff]
    %v7763 = vld [vmem:[%s274 + $0x1d1] sm:$0xff]
    %v7764 = vld [vmem:[%s274 + $0x1e1] sm:$0xff]
    %v7765 = vld [vmem:[%s274 + $0x1e9] sm:$0xff]
    %v7766 = vld [vmem:[%s274 + $0x1f9] sm:$0xff]
    %v7767 = vld [vmem:[%s274 + $0x201] sm:$0xff]
    %v7768 = vld [vmem:[%s274 + $0x211] sm:$0xff]
    %v7769 = vld [vmem:[%s274 + $0x219] sm:$0xff]
    %v7770 = vld [vmem:[%s274 + $0x229] sm:$0xff]
    %v7771 = vld [vmem:[%s274 + $0x231] sm:$0xff]
    %v7772 = vld [vmem:[%s274 + $0x241] sm:$0xff]
    %v7773 = vld [vmem:[%s274 + $0x249] sm:$0xff]
    %v7774 = vld [vmem:[%s274 + $0x259] sm:$0xff]
    %v7775 = vld [vmem:[%s274 + $0x261] sm:$0xff]
    %v7776 = vld [vmem:[%s274 + $0x271] sm:$0xff]
    %v7777 = vld [vmem:[%s274 + $0x279] sm:$0xff]
    %v7778 = vld [vmem:[%s274 + $0x289] sm:$0xff]
    %v7779 = vld [vmem:[%s274 + $0x291] sm:$0xff]
    %v7780 = vld [vmem:[%s274 + $0x2a1] sm:$0xff]
    %v7781 = vld [vmem:[%s274 + $0x2a9] sm:$0xff]
    %v7782 = vld [vmem:[%s274 + $0x2b9] sm:$0xff]
    %v7783 = vld [vmem:[%s274 + $0x2c1] sm:$0xff]
    %v7784 = vld [vmem:[%s274 + $0x2d1] sm:$0xff]
    %v7785 = vld [vmem:[%s274 + $0x2d9] sm:$0xff]
    %v7786 = vld [vmem:[%s274 + $0x2e9] sm:$0xff]
    %v7787 = vld [vmem:[%s274 + $0x2f1] sm:$0xff]
    %v7788 = vld [vmem:[%s274 + $0x301] sm:$0xff]
    %v7789 = vld [vmem:[%s274 + $0x309] sm:$0xff]
    %v7790 = vld [vmem:[%s274 + $0x319] sm:$0xff]
    %v7791 = vld [vmem:[%s274 + $0x321] sm:$0xff]
    %s7792 = scalar_lea.vmem %s4, 64
    %v7793 = vld [vmem:[%s7792] sm:$0xff]
    %v7794 = vld [vmem:[%s7792 + $0x8] sm:$0xff]
    %v7796 = vsel %vm36, %v7728, 0
    %v7799 = vsel %vm36, %v7729, 0
    %v7802 = vsel %vm36, %v7730, 0
    %v7805 = vsel %vm36, %v7731, 0
    %v7808 = vsel %vm36, %v7732, 0
    %v7811 = vsel %vm36, %v7733, 0
    %v7814 = vsel %vm36, %v7734, 0
    %v7817 = vsel %vm36, %v7735, 0
    %v7820 = vsel %vm36, %v7736, 0
    %v7823 = vsel %vm36, %v7737, 0
    %v7826 = vsel %vm36, %v7738, 0
    %v7829 = vsel %vm36, %v7739, 0
    %v7832 = vsel %vm36, %v7740, 0
    %v7835 = vsel %vm36, %v7741, 0
    %v7838 = vsel %vm36, %v7742, 0
    %v7841 = vsel %vm36, %v7743, 0
    %v7844 = vsel %vm36, %v7744, 0
    %v7847 = vsel %vm36, %v7745, 0
    %v7850 = vsel %vm36, %v7746, 0
    %v7853 = vsel %vm36, %v7747, 0
    %v7856 = vsel %vm36, %v7748, 0
    %v7859 = vsel %vm36, %v7749, 0
    %v7862 = vsel %vm36, %v7750, 0
    %v7865 = vsel %vm36, %v7751, 0
    %v7868 = vsel %vm36, %v7752, 0
    %v7871 = vsel %vm36, %v7753, 0
    %v7874 = vsel %vm36, %v7754, 0
    %v7877 = vsel %vm36, %v7755, 0
    %v7880 = vsel %vm36, %v7756, 0
    %v7883 = vsel %vm36, %v7757, 0
    %v7886 = vsel %vm36, %v7758, 0
    %v7889 = vsel %vm36, %v7759, 0
    %v7892 = vsel %vm36, %v7760, 0
    %v7895 = vsel %vm36, %v7761, 0
    %v7898 = vsel %vm36, %v7762, 0
    %v7901 = vsel %vm36, %v7763, 0
    %v7904 = vsel %vm36, %v7764, 0
    %v7907 = vsel %vm36, %v7765, 0
    %v7910 = vsel %vm36, %v7766, 0
    %v7913 = vsel %vm36, %v7767, 0
    %v7916 = vsel %vm36, %v7768, 0
    %v7919 = vsel %vm36, %v7769, 0
    %v7922 = vsel %vm36, %v7770, 0
    %v7925 = vsel %vm36, %v7771, 0
    %v7928 = vsel %vm36, %v7772, 0
    %v7931 = vsel %vm36, %v7773, 0
    %v7934 = vsel %vm36, %v7774, 0
    %v7937 = vsel %vm36, %v7775, 0
    %v7940 = vsel %vm36, %v7776, 0
    %v7943 = vsel %vm36, %v7777, 0
    %v7946 = vsel %vm36, %v7778, 0
    %v7949 = vsel %vm36, %v7779, 0
    %v7952 = vsel %vm36, %v7780, 0
    %v7955 = vsel %vm36, %v7781, 0
    %v7958 = vsel %vm36, %v7782, 0
    %v7961 = vsel %vm36, %v7783, 0
    %v7964 = vsel %vm36, %v7784, 0
    %v7967 = vsel %vm36, %v7785, 0
    %v7970 = vsel %vm36, %v7786, 0
    %v7973 = vsel %vm36, %v7787, 0
    %v7976 = vsel %vm36, %v7788, 0
    %v7979 = vsel %vm36, %v7789, 0
    %v7982 = vsel %vm36, %v7790, 0
    %v7985 = vsel %vm36, %v7791, 0
    %7987 = vmatpush.msra.mxu0 0.0
    %7988 = vmatpush.msra.mxu0 0.0
    %7989 = vmatpush.msra.mxu0 0.0
    %7990 = vmatpush.msra.mxu0 0.0
    %7991 = vmatpush.msra.mxu0 0.0
    %7992 = vmatpush.msra.mxu0 0.0
    %7993 = vmatpush.msra.mxu0 0.0
    %7994 = vmatpush.msra.mxu0 0.0
    %7995 = vmatpush.msra.mxu0 0.0
    %7996 = vmatpush.msra.mxu0 0.0
    %7997 = vmatpush.msra.mxu0 0.0
    %7998 = vmatpush.msra.mxu0 0.0
    %7999 = vmatpush.msra.mxu0 0.0
    %8000 = vmatpush.msra.mxu0 0.0
    %8001 = vmatpush.msra.mxu0 %v7794
    %8002 = vmatpush.msra.mxu0 %v7793
    %8003 = vmatmul.f32.gmra.mxu0 %v7796
    %v8004 = vpop.f32.mrf.mxu0
    %v8005 = vadd.f32 0.0, %v8004
    %8006 = vmatmul.f32.gmra.mxu0 %v7799
    %v8007 = vpop.f32.mrf.mxu0
    %v8008 = vadd.f32 0.0, %v8007
    %8009 = vmatmul.f32.gmra.mxu0 %v7802
    %v8010 = vpop.f32.mrf.mxu0
    %v8011 = vadd.f32 0.0, %v8010
    %8012 = vmatmul.f32.gmra.mxu0 %v7805
    %v8013 = vpop.f32.mrf.mxu0
    %v8014 = vadd.f32 0.0, %v8013
    %8015 = vmatmul.f32.gmra.mxu0 %v7808
    %v8016 = vpop.f32.mrf.mxu0
    %v8017 = vadd.f32 0.0, %v8016
    %8018 = vmatmul.f32.gmra.mxu0 %v7811
    %v8019 = vpop.f32.mrf.mxu0
    %v8020 = vadd.f32 0.0, %v8019
    %8021 = vmatmul.f32.gmra.mxu0 %v7814
    %v8022 = vpop.f32.mrf.mxu0
    %v8023 = vadd.f32 0.0, %v8022
    %8024 = vmatmul.f32.gmra.mxu0 %v7817
    %v8025 = vpop.f32.mrf.mxu0
    %v8026 = vadd.f32 0.0, %v8025
    %8027 = vmatmul.f32.gmra.mxu0 %v7820
    %v8028 = vpop.f32.mrf.mxu0
    %v8029 = vadd.f32 0.0, %v8028
    %8030 = vmatmul.f32.gmra.mxu0 %v7823
    %v8031 = vpop.f32.mrf.mxu0
    %v8032 = vadd.f32 0.0, %v8031
    %8033 = vmatmul.f32.gmra.mxu0 %v7826
    %v8034 = vpop.f32.mrf.mxu0
    %v8035 = vadd.f32 0.0, %v8034
    %8036 = vmatmul.f32.gmra.mxu0 %v7829
    %v8037 = vpop.f32.mrf.mxu0
    %v8038 = vadd.f32 0.0, %v8037
    %8039 = vmatmul.f32.gmra.mxu0 %v7832
    %v8040 = vpop.f32.mrf.mxu0
    %v8041 = vadd.f32 0.0, %v8040
    %8042 = vmatmul.f32.gmra.mxu0 %v7835
    %v8043 = vpop.f32.mrf.mxu0
    %v8044 = vadd.f32 0.0, %v8043
    %8045 = vmatmul.f32.gmra.mxu0 %v7838
    %v8046 = vpop.f32.mrf.mxu0
    %v8047 = vadd.f32 0.0, %v8046
    %8048 = vmatmul.f32.gmra.mxu0 %v7841
    %v8049 = vpop.f32.mrf.mxu0
    %v8050 = vadd.f32 0.0, %v8049
    %8051 = vmatmul.f32.gmra.mxu0 %v7844
    %v8052 = vpop.f32.mrf.mxu0
    %v8053 = vadd.f32 0.0, %v8052
    %8054 = vmatmul.f32.gmra.mxu0 %v7847
    %v8055 = vpop.f32.mrf.mxu0
    %v8056 = vadd.f32 0.0, %v8055
    %8057 = vmatmul.f32.gmra.mxu0 %v7850
    %v8058 = vpop.f32.mrf.mxu0
    %v8059 = vadd.f32 0.0, %v8058
    %8060 = vmatmul.f32.gmra.mxu0 %v7853
    %v8061 = vpop.f32.mrf.mxu0
    %v8062 = vadd.f32 0.0, %v8061
    %8063 = vmatmul.f32.gmra.mxu0 %v7856
    %v8064 = vpop.f32.mrf.mxu0
    %v8065 = vadd.f32 0.0, %v8064
    %8066 = vmatmul.f32.gmra.mxu0 %v7859
    %v8067 = vpop.f32.mrf.mxu0
    %v8068 = vadd.f32 0.0, %v8067
    %8069 = vmatmul.f32.gmra.mxu0 %v7862
    %v8070 = vpop.f32.mrf.mxu0
    %v8071 = vadd.f32 0.0, %v8070
    %8072 = vmatmul.f32.gmra.mxu0 %v7865
    %v8073 = vpop.f32.mrf.mxu0
    %v8074 = vadd.f32 0.0, %v8073
    %8075 = vmatmul.f32.gmra.mxu0 %v7868
    %v8076 = vpop.f32.mrf.mxu0
    %v8077 = vadd.f32 0.0, %v8076
    %8078 = vmatmul.f32.gmra.mxu0 %v7871
    %v8079 = vpop.f32.mrf.mxu0
    %v8080 = vadd.f32 0.0, %v8079
    %8081 = vmatmul.f32.gmra.mxu0 %v7874
    %v8082 = vpop.f32.mrf.mxu0
    %v8083 = vadd.f32 0.0, %v8082
    %8084 = vmatmul.f32.gmra.mxu0 %v7877
    %v8085 = vpop.f32.mrf.mxu0
    %v8086 = vadd.f32 0.0, %v8085
    %8087 = vmatmul.f32.gmra.mxu0 %v7880
    %v8088 = vpop.f32.mrf.mxu0
    %v8089 = vadd.f32 0.0, %v8088
    %8090 = vmatmul.f32.gmra.mxu0 %v7883
    %v8091 = vpop.f32.mrf.mxu0
    %v8092 = vadd.f32 0.0, %v8091
    %8093 = vmatmul.f32.gmra.mxu0 %v7886
    %v8094 = vpop.f32.mrf.mxu0
    %v8095 = vadd.f32 0.0, %v8094
    %8096 = vmatmul.f32.gmra.mxu0 %v7889
    %v8097 = vpop.f32.mrf.mxu0
    %v8098 = vadd.f32 0.0, %v8097
    %8099 = vmatmul.f32.gmra.mxu0 %v7892
    %v8100 = vpop.f32.mrf.mxu0
    %v8101 = vadd.f32 0.0, %v8100
    %8102 = vmatmul.f32.gmra.mxu0 %v7895
    %v8103 = vpop.f32.mrf.mxu0
    %v8104 = vadd.f32 0.0, %v8103
    %8105 = vmatmul.f32.gmra.mxu0 %v7898
    %v8106 = vpop.f32.mrf.mxu0
    %v8107 = vadd.f32 0.0, %v8106
    %8108 = vmatmul.f32.gmra.mxu0 %v7901
    %v8109 = vpop.f32.mrf.mxu0
    %v8110 = vadd.f32 0.0, %v8109
    %8111 = vmatmul.f32.gmra.mxu0 %v7904
    %v8112 = vpop.f32.mrf.mxu0
    %v8113 = vadd.f32 0.0, %v8112
    %8114 = vmatmul.f32.gmra.mxu0 %v7907
    %v8115 = vpop.f32.mrf.mxu0
    %v8116 = vadd.f32 0.0, %v8115
    %8117 = vmatmul.f32.gmra.mxu0 %v7910
    %v8118 = vpop.f32.mrf.mxu0
    %v8119 = vadd.f32 0.0, %v8118
    %8120 = vmatmul.f32.gmra.mxu0 %v7913
    %v8121 = vpop.f32.mrf.mxu0
    %v8122 = vadd.f32 0.0, %v8121
    %8123 = vmatmul.f32.gmra.mxu0 %v7916
    %v8124 = vpop.f32.mrf.mxu0
    %v8125 = vadd.f32 0.0, %v8124
    %8126 = vmatmul.f32.gmra.mxu0 %v7919
    %v8127 = vpop.f32.mrf.mxu0
    %v8128 = vadd.f32 0.0, %v8127
    %8129 = vmatmul.f32.gmra.mxu0 %v7922
    %v8130 = vpop.f32.mrf.mxu0
    %v8131 = vadd.f32 0.0, %v8130
    %8132 = vmatmul.f32.gmra.mxu0 %v7925
    %v8133 = vpop.f32.mrf.mxu0
    %v8134 = vadd.f32 0.0, %v8133
    %8135 = vmatmul.f32.gmra.mxu0 %v7928
    %v8136 = vpop.f32.mrf.mxu0
    %v8137 = vadd.f32 0.0, %v8136
    %8138 = vmatmul.f32.gmra.mxu0 %v7931
    %v8139 = vpop.f32.mrf.mxu0
    %v8140 = vadd.f32 0.0, %v8139
    %8141 = vmatmul.f32.gmra.mxu0 %v7934
    %v8142 = vpop.f32.mrf.mxu0
    %v8143 = vadd.f32 0.0, %v8142
    %8144 = vmatmul.f32.gmra.mxu0 %v7937
    %v8145 = vpop.f32.mrf.mxu0
    %v8146 = vadd.f32 0.0, %v8145
    %8147 = vmatmul.f32.gmra.mxu0 %v7940
    %v8148 = vpop.f32.mrf.mxu0
    %v8149 = vadd.f32 0.0, %v8148
    %8150 = vmatmul.f32.gmra.mxu0 %v7943
    %v8151 = vpop.f32.mrf.mxu0
    %v8152 = vadd.f32 0.0, %v8151
    %8153 = vmatmul.f32.gmra.mxu0 %v7946
    %v8154 = vpop.f32.mrf.mxu0
    %v8155 = vadd.f32 0.0, %v8154
    %8156 = vmatmul.f32.gmra.mxu0 %v7949
    %v8157 = vpop.f32.mrf.mxu0
    %v8158 = vadd.f32 0.0, %v8157
    %8159 = vmatmul.f32.gmra.mxu0 %v7952
    %v8160 = vpop.f32.mrf.mxu0
    %v8161 = vadd.f32 0.0, %v8160
    %8162 = vmatmul.f32.gmra.mxu0 %v7955
    %v8163 = vpop.f32.mrf.mxu0
    %v8164 = vadd.f32 0.0, %v8163
    %8165 = vmatmul.f32.gmra.mxu0 %v7958
    %v8166 = vpop.f32.mrf.mxu0
    %v8167 = vadd.f32 0.0, %v8166
    %8168 = vmatmul.f32.gmra.mxu0 %v7961
    %v8169 = vpop.f32.mrf.mxu0
    %v8170 = vadd.f32 0.0, %v8169
    %8171 = vmatmul.f32.gmra.mxu0 %v7964
    %v8172 = vpop.f32.mrf.mxu0
    %v8173 = vadd.f32 0.0, %v8172
    %8174 = vmatmul.f32.gmra.mxu0 %v7967
    %v8175 = vpop.f32.mrf.mxu0
    %v8176 = vadd.f32 0.0, %v8175
    %8177 = vmatmul.f32.gmra.mxu0 %v7970
    %v8178 = vpop.f32.mrf.mxu0
    %v8179 = vadd.f32 0.0, %v8178
    %8180 = vmatmul.f32.gmra.mxu0 %v7973
    %v8181 = vpop.f32.mrf.mxu0
    %v8182 = vadd.f32 0.0, %v8181
    %8183 = vmatmul.f32.gmra.mxu0 %v7976
    %v8184 = vpop.f32.mrf.mxu0
    %v8185 = vadd.f32 0.0, %v8184
    %8186 = vmatmul.f32.gmra.mxu0 %v7979
    %v8187 = vpop.f32.mrf.mxu0
    %v8188 = vadd.f32 0.0, %v8187
    %8189 = vmatmul.f32.gmra.mxu0 %v7982
    %v8190 = vpop.f32.mrf.mxu0
    %v8191 = vadd.f32 0.0, %v8190
    %8192 = vmatmul.f32.gmra.mxu0 %v7985
    %v8193 = vpop.f32.mrf.mxu0
    %v8194 = vadd.f32 0.0, %v8193
    %8195 = vdwg.mxu0
    %v8196 = vadd.f32 %v7664, %v8005
    %v8197 = vadd.f32 %v7665, %v8008
    %v8198 = vadd.f32 %v7666, %v8011
    %v8199 = vadd.f32 %v7667, %v8014
    %v8200 = vadd.f32 %v7668, %v8017
    %v8201 = vadd.f32 %v7669, %v8020
    %v8202 = vadd.f32 %v7670, %v8023
    %v8203 = vadd.f32 %v7671, %v8026
    %v8204 = vadd.f32 %v7672, %v8029
    %v8205 = vadd.f32 %v7673, %v8032
    %v8206 = vadd.f32 %v7674, %v8035
    %v8207 = vadd.f32 %v7675, %v8038
    %v8208 = vadd.f32 %v7676, %v8041
    %v8209 = vadd.f32 %v7677, %v8044
    %v8210 = vadd.f32 %v7678, %v8047
    %v8211 = vadd.f32 %v7679, %v8050
    %v8212 = vadd.f32 %v7680, %v8053
    %v8213 = vadd.f32 %v7681, %v8056
    %v8214 = vadd.f32 %v7682, %v8059
    %v8215 = vadd.f32 %v7683, %v8062
    %v8216 = vadd.f32 %v7684, %v8065
    %v8217 = vadd.f32 %v7685, %v8068
    %v8218 = vadd.f32 %v7686, %v8071
    %v8219 = vadd.f32 %v7687, %v8074
    %v8220 = vadd.f32 %v7688, %v8077
    %v8221 = vadd.f32 %v7689, %v8080
    %v8222 = vadd.f32 %v7690, %v8083
    %v8223 = vadd.f32 %v7691, %v8086
    %v8224 = vadd.f32 %v7692, %v8089
    %v8225 = vadd.f32 %v7693, %v8092
    %v8226 = vadd.f32 %v7694, %v8095
    %v8227 = vadd.f32 %v7695, %v8098
    %v8228 = vadd.f32 %v7696, %v8101
    %v8229 = vadd.f32 %v7697, %v8104
    %v8230 = vadd.f32 %v7698, %v8107
    %v8231 = vadd.f32 %v7699, %v8110
    %v8232 = vadd.f32 %v7700, %v8113
    %v8233 = vadd.f32 %v7701, %v8116
    %v8234 = vadd.f32 %v7702, %v8119
    %v8235 = vadd.f32 %v7703, %v8122
    %v8236 = vadd.f32 %v7704, %v8125
    %v8237 = vadd.f32 %v7705, %v8128
    %v8238 = vadd.f32 %v7706, %v8131
    %v8239 = vadd.f32 %v7707, %v8134
    %v8240 = vadd.f32 %v7708, %v8137
    %v8241 = vadd.f32 %v7709, %v8140
    %v8242 = vadd.f32 %v7710, %v8143
    %v8243 = vadd.f32 %v7711, %v8146
    %v8244 = vadd.f32 %v7712, %v8149
    %v8245 = vadd.f32 %v7713, %v8152
    %v8246 = vadd.f32 %v7714, %v8155
    %v8247 = vadd.f32 %v7715, %v8158
    %v8248 = vadd.f32 %v7716, %v8161
    %v8249 = vadd.f32 %v7717, %v8164
    %v8250 = vadd.f32 %v7718, %v8167
    %v8251 = vadd.f32 %v7719, %v8170
    %v8252 = vadd.f32 %v7720, %v8173
    %v8253 = vadd.f32 %v7721, %v8176
    %v8254 = vadd.f32 %v7722, %v8179
    %v8255 = vadd.f32 %v7723, %v8182
    %v8256 = vadd.f32 %v7724, %v8185
    %v8257 = vadd.f32 %v7725, %v8188
    %v8258 = vadd.f32 %v7726, %v8191
    %v8259 = vadd.f32 %v7727, %v8194
    %v8260 = vld [vmem:[%s274 + $0x2] sm:$0xff]
    %v8261 = vld [vmem:[%s274 + $0xa] sm:$0xff]
    %v8262 = vld [vmem:[%s274 + $0x1a] sm:$0xff]
    %v8263 = vld [vmem:[%s274 + $0x22] sm:$0xff]
    %v8264 = vld [vmem:[%s274 + $0x32] sm:$0xff]
    %v8265 = vld [vmem:[%s274 + $0x3a] sm:$0xff]
    %v8266 = vld [vmem:[%s274 + $0x4a] sm:$0xff]
    %v8267 = vld [vmem:[%s274 + $0x52] sm:$0xff]
    %v8268 = vld [vmem:[%s274 + $0x62] sm:$0xff]
    %v8269 = vld [vmem:[%s274 + $0x6a] sm:$0xff]
    %v8270 = vld [vmem:[%s274 + $0x7a] sm:$0xff]
    %v8271 = vld [vmem:[%s274 + $0x82] sm:$0xff]
    %v8272 = vld [vmem:[%s274 + $0x92] sm:$0xff]
    %v8273 = vld [vmem:[%s274 + $0x9a] sm:$0xff]
    %v8274 = vld [vmem:[%s274 + $0xaa] sm:$0xff]
    %v8275 = vld [vmem:[%s274 + $0xb2] sm:$0xff]
    %v8276 = vld [vmem:[%s274 + $0xc2] sm:$0xff]
    %v8277 = vld [vmem:[%s274 + $0xca] sm:$0xff]
    %v8278 = vld [vmem:[%s274 + $0xda] sm:$0xff]
    %v8279 = vld [vmem:[%s274 + $0xe2] sm:$0xff]
    %v8280 = vld [vmem:[%s274 + $0xf2] sm:$0xff]
    %v8281 = vld [vmem:[%s274 + $0xfa] sm:$0xff]
    %v8282 = vld [vmem:[%s274 + $0x10a] sm:$0xff]
    %v8283 = vld [vmem:[%s274 + $0x112] sm:$0xff]
    %v8284 = vld [vmem:[%s274 + $0x122] sm:$0xff]
    %v8285 = vld [vmem:[%s274 + $0x12a] sm:$0xff]
    %v8286 = vld [vmem:[%s274 + $0x13a] sm:$0xff]
    %v8287 = vld [vmem:[%s274 + $0x142] sm:$0xff]
    %v8288 = vld [vmem:[%s274 + $0x152] sm:$0xff]
    %v8289 = vld [vmem:[%s274 + $0x15a] sm:$0xff]
    %v8290 = vld [vmem:[%s274 + $0x16a] sm:$0xff]
    %v8291 = vld [vmem:[%s274 + $0x172] sm:$0xff]
    %v8292 = vld [vmem:[%s274 + $0x1b2] sm:$0xff]
    %v8293 = vld [vmem:[%s274 + $0x1ba] sm:$0xff]
    %v8294 = vld [vmem:[%s274 + $0x1ca] sm:$0xff]
    %v8295 = vld [vmem:[%s274 + $0x1d2] sm:$0xff]
    %v8296 = vld [vmem:[%s274 + $0x1e2] sm:$0xff]
    %v8297 = vld [vmem:[%s274 + $0x1ea] sm:$0xff]
    %v8298 = vld [vmem:[%s274 + $0x1fa] sm:$0xff]
    %v8299 = vld [vmem:[%s274 + $0x202] sm:$0xff]
    %v8300 = vld [vmem:[%s274 + $0x212] sm:$0xff]
    %v8301 = vld [vmem:[%s274 + $0x21a] sm:$0xff]
    %v8302 = vld [vmem:[%s274 + $0x22a] sm:$0xff]
    %v8303 = vld [vmem:[%s274 + $0x232] sm:$0xff]
    %v8304 = vld [vmem:[%s274 + $0x242] sm:$0xff]
    %v8305 = vld [vmem:[%s274 + $0x24a] sm:$0xff]
    %v8306 = vld [vmem:[%s274 + $0x25a] sm:$0xff]
    %v8307 = vld [vmem:[%s274 + $0x262] sm:$0xff]
    %v8308 = vld [vmem:[%s274 + $0x272] sm:$0xff]
    %v8309 = vld [vmem:[%s274 + $0x27a] sm:$0xff]
    %v8310 = vld [vmem:[%s274 + $0x28a] sm:$0xff]
    %v8311 = vld [vmem:[%s274 + $0x292] sm:$0xff]
    %v8312 = vld [vmem:[%s274 + $0x2a2] sm:$0xff]
    %v8313 = vld [vmem:[%s274 + $0x2aa] sm:$0xff]
    %v8314 = vld [vmem:[%s274 + $0x2ba] sm:$0xff]
    %v8315 = vld [vmem:[%s274 + $0x2c2] sm:$0xff]
    %v8316 = vld [vmem:[%s274 + $0x2d2] sm:$0xff]
    %v8317 = vld [vmem:[%s274 + $0x2da] sm:$0xff]
    %v8318 = vld [vmem:[%s274 + $0x2ea] sm:$0xff]
    %v8319 = vld [vmem:[%s274 + $0x2f2] sm:$0xff]
    %v8320 = vld [vmem:[%s274 + $0x302] sm:$0xff]
    %v8321 = vld [vmem:[%s274 + $0x30a] sm:$0xff]
    %v8322 = vld [vmem:[%s274 + $0x31a] sm:$0xff]
    %v8323 = vld [vmem:[%s274 + $0x322] sm:$0xff]
    %s8324 = scalar_lea.vmem %s4, 80
    %v8325 = vld [vmem:[%s8324] sm:$0xff]
    %v8326 = vld [vmem:[%s8324 + $0x8] sm:$0xff]
    %v8328 = vsel %vm36, %v8260, 0
    %v8331 = vsel %vm36, %v8261, 0
    %v8334 = vsel %vm36, %v8262, 0
    %v8337 = vsel %vm36, %v8263, 0
    %v8340 = vsel %vm36, %v8264, 0
    %v8343 = vsel %vm36, %v8265, 0
    %v8346 = vsel %vm36, %v8266, 0
    %v8349 = vsel %vm36, %v8267, 0
    %v8352 = vsel %vm36, %v8268, 0
    %v8355 = vsel %vm36, %v8269, 0
    %v8358 = vsel %vm36, %v8270, 0
    %v8361 = vsel %vm36, %v8271, 0
    %v8364 = vsel %vm36, %v8272, 0
    %v8367 = vsel %vm36, %v8273, 0
    %v8370 = vsel %vm36, %v8274, 0
    %v8373 = vsel %vm36, %v8275, 0
    %v8376 = vsel %vm36, %v8276, 0
    %v8379 = vsel %vm36, %v8277, 0
    %v8382 = vsel %vm36, %v8278, 0
    %v8385 = vsel %vm36, %v8279, 0
    %v8388 = vsel %vm36, %v8280, 0
    %v8391 = vsel %vm36, %v8281, 0
    %v8394 = vsel %vm36, %v8282, 0
    %v8397 = vsel %vm36, %v8283, 0
    %v8400 = vsel %vm36, %v8284, 0
    %v8403 = vsel %vm36, %v8285, 0
    %v8406 = vsel %vm36, %v8286, 0
    %v8409 = vsel %vm36, %v8287, 0
    %v8412 = vsel %vm36, %v8288, 0
    %v8415 = vsel %vm36, %v8289, 0
    %v8418 = vsel %vm36, %v8290, 0
    %v8421 = vsel %vm36, %v8291, 0
    %v8424 = vsel %vm36, %v8292, 0
    %v8427 = vsel %vm36, %v8293, 0
    %v8430 = vsel %vm36, %v8294, 0
    %v8433 = vsel %vm36, %v8295, 0
    %v8436 = vsel %vm36, %v8296, 0
    %v8439 = vsel %vm36, %v8297, 0
    %v8442 = vsel %vm36, %v8298, 0
    %v8445 = vsel %vm36, %v8299, 0
    %v8448 = vsel %vm36, %v8300, 0
    %v8451 = vsel %vm36, %v8301, 0
    %v8454 = vsel %vm36, %v8302, 0
    %v8457 = vsel %vm36, %v8303, 0
    %v8460 = vsel %vm36, %v8304, 0
    %v8463 = vsel %vm36, %v8305, 0
    %v8466 = vsel %vm36, %v8306, 0
    %v8469 = vsel %vm36, %v8307, 0
    %v8472 = vsel %vm36, %v8308, 0
    %v8475 = vsel %vm36, %v8309, 0
    %v8478 = vsel %vm36, %v8310, 0
    %v8481 = vsel %vm36, %v8311, 0
    %v8484 = vsel %vm36, %v8312, 0
    %v8487 = vsel %vm36, %v8313, 0
    %v8490 = vsel %vm36, %v8314, 0
    %v8493 = vsel %vm36, %v8315, 0
    %v8496 = vsel %vm36, %v8316, 0
    %v8499 = vsel %vm36, %v8317, 0
    %v8502 = vsel %vm36, %v8318, 0
    %v8505 = vsel %vm36, %v8319, 0
    %v8508 = vsel %vm36, %v8320, 0
    %v8511 = vsel %vm36, %v8321, 0
    %v8514 = vsel %vm36, %v8322, 0
    %v8517 = vsel %vm36, %v8323, 0
    %8519 = vmatpush.msra.mxu0 0.0
    %8520 = vmatpush.msra.mxu0 0.0
    %8521 = vmatpush.msra.mxu0 0.0
    %8522 = vmatpush.msra.mxu0 0.0
    %8523 = vmatpush.msra.mxu0 0.0
    %8524 = vmatpush.msra.mxu0 0.0
    %8525 = vmatpush.msra.mxu0 0.0
    %8526 = vmatpush.msra.mxu0 0.0
    %8527 = vmatpush.msra.mxu0 0.0
    %8528 = vmatpush.msra.mxu0 0.0
    %8529 = vmatpush.msra.mxu0 0.0
    %8530 = vmatpush.msra.mxu0 0.0
    %8531 = vmatpush.msra.mxu0 0.0
    %8532 = vmatpush.msra.mxu0 0.0
    %8533 = vmatpush.msra.mxu0 %v8326
    %8534 = vmatpush.msra.mxu0 %v8325
    %8535 = vmatmul.f32.gmra.mxu0 %v8328
    %v8536 = vpop.f32.mrf.mxu0
    %v8537 = vadd.f32 0.0, %v8536
    %8538 = vmatmul.f32.gmra.mxu0 %v8331
    %v8539 = vpop.f32.mrf.mxu0
    %v8540 = vadd.f32 0.0, %v8539
    %8541 = vmatmul.f32.gmra.mxu0 %v8334
    %v8542 = vpop.f32.mrf.mxu0
    %v8543 = vadd.f32 0.0, %v8542
    %8544 = vmatmul.f32.gmra.mxu0 %v8337
    %v8545 = vpop.f32.mrf.mxu0
    %v8546 = vadd.f32 0.0, %v8545
    %8547 = vmatmul.f32.gmra.mxu0 %v8340
    %v8548 = vpop.f32.mrf.mxu0
    %v8549 = vadd.f32 0.0, %v8548
    %8550 = vmatmul.f32.gmra.mxu0 %v8343
    %v8551 = vpop.f32.mrf.mxu0
    %v8552 = vadd.f32 0.0, %v8551
    %8553 = vmatmul.f32.gmra.mxu0 %v8346
    %v8554 = vpop.f32.mrf.mxu0
    %v8555 = vadd.f32 0.0, %v8554
    %8556 = vmatmul.f32.gmra.mxu0 %v8349
    %v8557 = vpop.f32.mrf.mxu0
    %v8558 = vadd.f32 0.0, %v8557
    %8559 = vmatmul.f32.gmra.mxu0 %v8352
    %v8560 = vpop.f32.mrf.mxu0
    %v8561 = vadd.f32 0.0, %v8560
    %8562 = vmatmul.f32.gmra.mxu0 %v8355
    %v8563 = vpop.f32.mrf.mxu0
    %v8564 = vadd.f32 0.0, %v8563
    %8565 = vmatmul.f32.gmra.mxu0 %v8358
    %v8566 = vpop.f32.mrf.mxu0
    %v8567 = vadd.f32 0.0, %v8566
    %8568 = vmatmul.f32.gmra.mxu0 %v8361
    %v8569 = vpop.f32.mrf.mxu0
    %v8570 = vadd.f32 0.0, %v8569
    %8571 = vmatmul.f32.gmra.mxu0 %v8364
    %v8572 = vpop.f32.mrf.mxu0
    %v8573 = vadd.f32 0.0, %v8572
    %8574 = vmatmul.f32.gmra.mxu0 %v8367
    %v8575 = vpop.f32.mrf.mxu0
    %v8576 = vadd.f32 0.0, %v8575
    %8577 = vmatmul.f32.gmra.mxu0 %v8370
    %v8578 = vpop.f32.mrf.mxu0
    %v8579 = vadd.f32 0.0, %v8578
    %8580 = vmatmul.f32.gmra.mxu0 %v8373
    %v8581 = vpop.f32.mrf.mxu0
    %v8582 = vadd.f32 0.0, %v8581
    %8583 = vmatmul.f32.gmra.mxu0 %v8376
    %v8584 = vpop.f32.mrf.mxu0
    %v8585 = vadd.f32 0.0, %v8584
    %8586 = vmatmul.f32.gmra.mxu0 %v8379
    %v8587 = vpop.f32.mrf.mxu0
    %v8588 = vadd.f32 0.0, %v8587
    %8589 = vmatmul.f32.gmra.mxu0 %v8382
    %v8590 = vpop.f32.mrf.mxu0
    %v8591 = vadd.f32 0.0, %v8590
    %8592 = vmatmul.f32.gmra.mxu0 %v8385
    %v8593 = vpop.f32.mrf.mxu0
    %v8594 = vadd.f32 0.0, %v8593
    %8595 = vmatmul.f32.gmra.mxu0 %v8388
    %v8596 = vpop.f32.mrf.mxu0
    %v8597 = vadd.f32 0.0, %v8596
    %8598 = vmatmul.f32.gmra.mxu0 %v8391
    %v8599 = vpop.f32.mrf.mxu0
    %v8600 = vadd.f32 0.0, %v8599
    %8601 = vmatmul.f32.gmra.mxu0 %v8394
    %v8602 = vpop.f32.mrf.mxu0
    %v8603 = vadd.f32 0.0, %v8602
    %8604 = vmatmul.f32.gmra.mxu0 %v8397
    %v8605 = vpop.f32.mrf.mxu0
    %v8606 = vadd.f32 0.0, %v8605
    %8607 = vmatmul.f32.gmra.mxu0 %v8400
    %v8608 = vpop.f32.mrf.mxu0
    %v8609 = vadd.f32 0.0, %v8608
    %8610 = vmatmul.f32.gmra.mxu0 %v8403
    %v8611 = vpop.f32.mrf.mxu0
    %v8612 = vadd.f32 0.0, %v8611
    %8613 = vmatmul.f32.gmra.mxu0 %v8406
    %v8614 = vpop.f32.mrf.mxu0
    %v8615 = vadd.f32 0.0, %v8614
    %8616 = vmatmul.f32.gmra.mxu0 %v8409
    %v8617 = vpop.f32.mrf.mxu0
    %v8618 = vadd.f32 0.0, %v8617
    %8619 = vmatmul.f32.gmra.mxu0 %v8412
    %v8620 = vpop.f32.mrf.mxu0
    %v8621 = vadd.f32 0.0, %v8620
    %8622 = vmatmul.f32.gmra.mxu0 %v8415
    %v8623 = vpop.f32.mrf.mxu0
    %v8624 = vadd.f32 0.0, %v8623
    %8625 = vmatmul.f32.gmra.mxu0 %v8418
    %v8626 = vpop.f32.mrf.mxu0
    %v8627 = vadd.f32 0.0, %v8626
    %8628 = vmatmul.f32.gmra.mxu0 %v8421
    %v8629 = vpop.f32.mrf.mxu0
    %v8630 = vadd.f32 0.0, %v8629
    %8631 = vmatmul.f32.gmra.mxu0 %v8424
    %v8632 = vpop.f32.mrf.mxu0
    %v8633 = vadd.f32 0.0, %v8632
    %8634 = vmatmul.f32.gmra.mxu0 %v8427
    %v8635 = vpop.f32.mrf.mxu0
    %v8636 = vadd.f32 0.0, %v8635
    %8637 = vmatmul.f32.gmra.mxu0 %v8430
    %v8638 = vpop.f32.mrf.mxu0
    %v8639 = vadd.f32 0.0, %v8638
    %8640 = vmatmul.f32.gmra.mxu0 %v8433
    %v8641 = vpop.f32.mrf.mxu0
    %v8642 = vadd.f32 0.0, %v8641
    %8643 = vmatmul.f32.gmra.mxu0 %v8436
    %v8644 = vpop.f32.mrf.mxu0
    %v8645 = vadd.f32 0.0, %v8644
    %8646 = vmatmul.f32.gmra.mxu0 %v8439
    %v8647 = vpop.f32.mrf.mxu0
    %v8648 = vadd.f32 0.0, %v8647
    %8649 = vmatmul.f32.gmra.mxu0 %v8442
    %v8650 = vpop.f32.mrf.mxu0
    %v8651 = vadd.f32 0.0, %v8650
    %8652 = vmatmul.f32.gmra.mxu0 %v8445
    %v8653 = vpop.f32.mrf.mxu0
    %v8654 = vadd.f32 0.0, %v8653
    %8655 = vmatmul.f32.gmra.mxu0 %v8448
    %v8656 = vpop.f32.mrf.mxu0
    %v8657 = vadd.f32 0.0, %v8656
    %8658 = vmatmul.f32.gmra.mxu0 %v8451
    %v8659 = vpop.f32.mrf.mxu0
    %v8660 = vadd.f32 0.0, %v8659
    %8661 = vmatmul.f32.gmra.mxu0 %v8454
    %v8662 = vpop.f32.mrf.mxu0
    %v8663 = vadd.f32 0.0, %v8662
    %8664 = vmatmul.f32.gmra.mxu0 %v8457
    %v8665 = vpop.f32.mrf.mxu0
    %v8666 = vadd.f32 0.0, %v8665
    %8667 = vmatmul.f32.gmra.mxu0 %v8460
    %v8668 = vpop.f32.mrf.mxu0
    %v8669 = vadd.f32 0.0, %v8668
    %8670 = vmatmul.f32.gmra.mxu0 %v8463
    %v8671 = vpop.f32.mrf.mxu0
    %v8672 = vadd.f32 0.0, %v8671
    %8673 = vmatmul.f32.gmra.mxu0 %v8466
    %v8674 = vpop.f32.mrf.mxu0
    %v8675 = vadd.f32 0.0, %v8674
    %8676 = vmatmul.f32.gmra.mxu0 %v8469
    %v8677 = vpop.f32.mrf.mxu0
    %v8678 = vadd.f32 0.0, %v8677
    %8679 = vmatmul.f32.gmra.mxu0 %v8472
    %v8680 = vpop.f32.mrf.mxu0
    %v8681 = vadd.f32 0.0, %v8680
    %8682 = vmatmul.f32.gmra.mxu0 %v8475
    %v8683 = vpop.f32.mrf.mxu0
    %v8684 = vadd.f32 0.0, %v8683
    %8685 = vmatmul.f32.gmra.mxu0 %v8478
    %v8686 = vpop.f32.mrf.mxu0
    %v8687 = vadd.f32 0.0, %v8686
    %8688 = vmatmul.f32.gmra.mxu0 %v8481
    %v8689 = vpop.f32.mrf.mxu0
    %v8690 = vadd.f32 0.0, %v8689
    %8691 = vmatmul.f32.gmra.mxu0 %v8484
    %v8692 = vpop.f32.mrf.mxu0
    %v8693 = vadd.f32 0.0, %v8692
    %8694 = vmatmul.f32.gmra.mxu0 %v8487
    %v8695 = vpop.f32.mrf.mxu0
    %v8696 = vadd.f32 0.0, %v8695
    %8697 = vmatmul.f32.gmra.mxu0 %v8490
    %v8698 = vpop.f32.mrf.mxu0
    %v8699 = vadd.f32 0.0, %v8698
    %8700 = vmatmul.f32.gmra.mxu0 %v8493
    %v8701 = vpop.f32.mrf.mxu0
    %v8702 = vadd.f32 0.0, %v8701
    %8703 = vmatmul.f32.gmra.mxu0 %v8496
    %v8704 = vpop.f32.mrf.mxu0
    %v8705 = vadd.f32 0.0, %v8704
    %8706 = vmatmul.f32.gmra.mxu0 %v8499
    %v8707 = vpop.f32.mrf.mxu0
    %v8708 = vadd.f32 0.0, %v8707
    %8709 = vmatmul.f32.gmra.mxu0 %v8502
    %v8710 = vpop.f32.mrf.mxu0
    %v8711 = vadd.f32 0.0, %v8710
    %8712 = vmatmul.f32.gmra.mxu0 %v8505
    %v8713 = vpop.f32.mrf.mxu0
    %v8714 = vadd.f32 0.0, %v8713
    %8715 = vmatmul.f32.gmra.mxu0 %v8508
    %v8716 = vpop.f32.mrf.mxu0
    %v8717 = vadd.f32 0.0, %v8716
    %8718 = vmatmul.f32.gmra.mxu0 %v8511
    %v8719 = vpop.f32.mrf.mxu0
    %v8720 = vadd.f32 0.0, %v8719
    %8721 = vmatmul.f32.gmra.mxu0 %v8514
    %v8722 = vpop.f32.mrf.mxu0
    %v8723 = vadd.f32 0.0, %v8722
    %8724 = vmatmul.f32.gmra.mxu0 %v8517
    %v8725 = vpop.f32.mrf.mxu0
    %v8726 = vadd.f32 0.0, %v8725
    %8727 = vdwg.mxu0
    %v8728 = vadd.f32 %v8196, %v8537
    %v8729 = vadd.f32 %v8197, %v8540
    %v8730 = vadd.f32 %v8198, %v8543
    %v8731 = vadd.f32 %v8199, %v8546
    %v8732 = vadd.f32 %v8200, %v8549
    %v8733 = vadd.f32 %v8201, %v8552
    %v8734 = vadd.f32 %v8202, %v8555
    %v8735 = vadd.f32 %v8203, %v8558
    %v8736 = vadd.f32 %v8204, %v8561
    %v8737 = vadd.f32 %v8205, %v8564
    %v8738 = vadd.f32 %v8206, %v8567
    %v8739 = vadd.f32 %v8207, %v8570
    %v8740 = vadd.f32 %v8208, %v8573
    %v8741 = vadd.f32 %v8209, %v8576
    %v8742 = vadd.f32 %v8210, %v8579
    %v8743 = vadd.f32 %v8211, %v8582
    %v8744 = vadd.f32 %v8212, %v8585
    %v8745 = vadd.f32 %v8213, %v8588
    %v8746 = vadd.f32 %v8214, %v8591
    %v8747 = vadd.f32 %v8215, %v8594
    %v8748 = vadd.f32 %v8216, %v8597
    %v8749 = vadd.f32 %v8217, %v8600
    %v8750 = vadd.f32 %v8218, %v8603
    %v8751 = vadd.f32 %v8219, %v8606
    %v8752 = vadd.f32 %v8220, %v8609
    %v8753 = vadd.f32 %v8221, %v8612
    %v8754 = vadd.f32 %v8222, %v8615
    %v8755 = vadd.f32 %v8223, %v8618
    %v8756 = vadd.f32 %v8224, %v8621
    %v8757 = vadd.f32 %v8225, %v8624
    %v8758 = vadd.f32 %v8226, %v8627
    %v8759 = vadd.f32 %v8227, %v8630
    %v8760 = vadd.f32 %v8228, %v8633
    %v8761 = vadd.f32 %v8229, %v8636
    %v8762 = vadd.f32 %v8230, %v8639
    %v8763 = vadd.f32 %v8231, %v8642
    %v8764 = vadd.f32 %v8232, %v8645
    %v8765 = vadd.f32 %v8233, %v8648
    %v8766 = vadd.f32 %v8234, %v8651
    %v8767 = vadd.f32 %v8235, %v8654
    %v8768 = vadd.f32 %v8236, %v8657
    %v8769 = vadd.f32 %v8237, %v8660
    %v8770 = vadd.f32 %v8238, %v8663
    %v8771 = vadd.f32 %v8239, %v8666
    %v8772 = vadd.f32 %v8240, %v8669
    %v8773 = vadd.f32 %v8241, %v8672
    %v8774 = vadd.f32 %v8242, %v8675
    %v8775 = vadd.f32 %v8243, %v8678
    %v8776 = vadd.f32 %v8244, %v8681
    %v8777 = vadd.f32 %v8245, %v8684
    %v8778 = vadd.f32 %v8246, %v8687
    %v8779 = vadd.f32 %v8247, %v8690
    %v8780 = vadd.f32 %v8248, %v8693
    %v8781 = vadd.f32 %v8249, %v8696
    %v8782 = vadd.f32 %v8250, %v8699
    %v8783 = vadd.f32 %v8251, %v8702
    %v8784 = vadd.f32 %v8252, %v8705
    %v8785 = vadd.f32 %v8253, %v8708
    %v8786 = vadd.f32 %v8254, %v8711
    %v8787 = vadd.f32 %v8255, %v8714
    %v8788 = vadd.f32 %v8256, %v8717
    %v8789 = vadd.f32 %v8257, %v8720
    %v8790 = vadd.f32 %v8258, %v8723
    %v8791 = vadd.f32 %v8259, %v8726
    %v8792 = vld [vmem:[%s3397] sm:$0xff]
    %v8793 = vld [vmem:[%s3397 + $0x8] sm:$0xff]
    %v8794 = vld [vmem:[%s3397 + $0x18] sm:$0xff]
    %v8795 = vld [vmem:[%s3397 + $0x20] sm:$0xff]
    %v8796 = vld [vmem:[%s3397 + $0x30] sm:$0xff]
    %v8797 = vld [vmem:[%s3397 + $0x38] sm:$0xff]
    %v8798 = vld [vmem:[%s3397 + $0x48] sm:$0xff]
    %v8799 = vld [vmem:[%s3397 + $0x50] sm:$0xff]
    %v8800 = vld [vmem:[%s3397 + $0x60] sm:$0xff]
    %v8801 = vld [vmem:[%s3397 + $0x68] sm:$0xff]
    %v8802 = vld [vmem:[%s3397 + $0x78] sm:$0xff]
    %v8803 = vld [vmem:[%s3397 + $0x80] sm:$0xff]
    %v8804 = vld [vmem:[%s3397 + $0x90] sm:$0xff]
    %v8805 = vld [vmem:[%s3397 + $0x98] sm:$0xff]
    %v8806 = vld [vmem:[%s3397 + $0xa8] sm:$0xff]
    %v8807 = vld [vmem:[%s3397 + $0xb0] sm:$0xff]
    %v8808 = vld [vmem:[%s3397 + $0xc0] sm:$0xff]
    %v8809 = vld [vmem:[%s3397 + $0xc8] sm:$0xff]
    %v8810 = vld [vmem:[%s3397 + $0xd8] sm:$0xff]
    %v8811 = vld [vmem:[%s3397 + $0xe0] sm:$0xff]
    %v8812 = vld [vmem:[%s3397 + $0xf0] sm:$0xff]
    %v8813 = vld [vmem:[%s3397 + $0xf8] sm:$0xff]
    %v8814 = vld [vmem:[%s3397 + $0x108] sm:$0xff]
    %v8815 = vld [vmem:[%s3397 + $0x110] sm:$0xff]
    %v8816 = vld [vmem:[%s3397 + $0x120] sm:$0xff]
    %v8817 = vld [vmem:[%s3397 + $0x128] sm:$0xff]
    %v8818 = vld [vmem:[%s3397 + $0x138] sm:$0xff]
    %v8819 = vld [vmem:[%s3397 + $0x140] sm:$0xff]
    %v8820 = vld [vmem:[%s3397 + $0x150] sm:$0xff]
    %v8821 = vld [vmem:[%s3397 + $0x158] sm:$0xff]
    %v8822 = vld [vmem:[%s3397 + $0x168] sm:$0xff]
    %v8823 = vld [vmem:[%s3397 + $0x170] sm:$0xff]
    %v8824 = vld [vmem:[%s3397 + $0x1b0] sm:$0xff]
    %v8825 = vld [vmem:[%s3397 + $0x1b8] sm:$0xff]
    %v8826 = vld [vmem:[%s3397 + $0x1c8] sm:$0xff]
    %v8827 = vld [vmem:[%s3397 + $0x1d0] sm:$0xff]
    %v8828 = vld [vmem:[%s3397 + $0x1e0] sm:$0xff]
    %v8829 = vld [vmem:[%s3397 + $0x1e8] sm:$0xff]
    %v8830 = vld [vmem:[%s3397 + $0x1f8] sm:$0xff]
    %v8831 = vld [vmem:[%s3397 + $0x200] sm:$0xff]
    %v8832 = vld [vmem:[%s3397 + $0x210] sm:$0xff]
    %v8833 = vld [vmem:[%s3397 + $0x218] sm:$0xff]
    %v8834 = vld [vmem:[%s3397 + $0x228] sm:$0xff]
    %v8835 = vld [vmem:[%s3397 + $0x230] sm:$0xff]
    %v8836 = vld [vmem:[%s3397 + $0x240] sm:$0xff]
    %v8837 = vld [vmem:[%s3397 + $0x248] sm:$0xff]
    %v8838 = vld [vmem:[%s3397 + $0x258] sm:$0xff]
    %v8839 = vld [vmem:[%s3397 + $0x260] sm:$0xff]
    %v8840 = vld [vmem:[%s3397 + $0x270] sm:$0xff]
    %v8841 = vld [vmem:[%s3397 + $0x278] sm:$0xff]
    %v8842 = vld [vmem:[%s3397 + $0x288] sm:$0xff]
    %v8843 = vld [vmem:[%s3397 + $0x290] sm:$0xff]
    %v8844 = vld [vmem:[%s3397 + $0x2a0] sm:$0xff]
    %v8845 = vld [vmem:[%s3397 + $0x2a8] sm:$0xff]
    %v8846 = vld [vmem:[%s3397 + $0x2b8] sm:$0xff]
    %v8847 = vld [vmem:[%s3397 + $0x2c0] sm:$0xff]
    %v8848 = vld [vmem:[%s3397 + $0x2d0] sm:$0xff]
    %v8849 = vld [vmem:[%s3397 + $0x2d8] sm:$0xff]
    %v8850 = vld [vmem:[%s3397 + $0x2e8] sm:$0xff]
    %v8851 = vld [vmem:[%s3397 + $0x2f0] sm:$0xff]
    %v8852 = vld [vmem:[%s3397 + $0x300] sm:$0xff]
    %v8853 = vld [vmem:[%s3397 + $0x308] sm:$0xff]
    %v8854 = vld [vmem:[%s3397 + $0x318] sm:$0xff]
    %v8855 = vld [vmem:[%s3397 + $0x320] sm:$0xff]
    %s8856 = scalar_lea.vmem %s4, 96
    %v8857 = vld [vmem:[%s8856] sm:$0xff]
    %v8858 = vld [vmem:[%s8856 + $0x8] sm:$0xff]
    %v8860 = vsel %vm36, %v8792, 0
    %v8863 = vsel %vm36, %v8793, 0
    %v8866 = vsel %vm36, %v8794, 0
    %v8869 = vsel %vm36, %v8795, 0
    %v8872 = vsel %vm36, %v8796, 0
    %v8875 = vsel %vm36, %v8797, 0
    %v8878 = vsel %vm36, %v8798, 0
    %v8881 = vsel %vm36, %v8799, 0
    %v8884 = vsel %vm36, %v8800, 0
    %v8887 = vsel %vm36, %v8801, 0
    %v8890 = vsel %vm36, %v8802, 0
    %v8893 = vsel %vm36, %v8803, 0
    %v8896 = vsel %vm36, %v8804, 0
    %v8899 = vsel %vm36, %v8805, 0
    %v8902 = vsel %vm36, %v8806, 0
    %v8905 = vsel %vm36, %v8807, 0
    %v8908 = vsel %vm36, %v8808, 0
    %v8911 = vsel %vm36, %v8809, 0
    %v8914 = vsel %vm36, %v8810, 0
    %v8917 = vsel %vm36, %v8811, 0
    %v8920 = vsel %vm36, %v8812, 0
    %v8923 = vsel %vm36, %v8813, 0
    %v8926 = vsel %vm36, %v8814, 0
    %v8929 = vsel %vm36, %v8815, 0
    %v8932 = vsel %vm36, %v8816, 0
    %v8935 = vsel %vm36, %v8817, 0
    %v8938 = vsel %vm36, %v8818, 0
    %v8941 = vsel %vm36, %v8819, 0
    %v8944 = vsel %vm36, %v8820, 0
    %v8947 = vsel %vm36, %v8821, 0
    %v8950 = vsel %vm36, %v8822, 0
    %v8953 = vsel %vm36, %v8823, 0
    %v8956 = vsel %vm36, %v8824, 0
    %v8959 = vsel %vm36, %v8825, 0
    %v8962 = vsel %vm36, %v8826, 0
    %v8965 = vsel %vm36, %v8827, 0
    %v8968 = vsel %vm36, %v8828, 0
    %v8971 = vsel %vm36, %v8829, 0
    %v8974 = vsel %vm36, %v8830, 0
    %v8977 = vsel %vm36, %v8831, 0
    %v8980 = vsel %vm36, %v8832, 0
    %v8983 = vsel %vm36, %v8833, 0
    %v8986 = vsel %vm36, %v8834, 0
    %v8989 = vsel %vm36, %v8835, 0
    %v8992 = vsel %vm36, %v8836, 0
    %v8995 = vsel %vm36, %v8837, 0
    %v8998 = vsel %vm36, %v8838, 0
    %v9001 = vsel %vm36, %v8839, 0
    %v9004 = vsel %vm36, %v8840, 0
    %v9007 = vsel %vm36, %v8841, 0
    %v9010 = vsel %vm36, %v8842, 0
    %v9013 = vsel %vm36, %v8843, 0
    %v9016 = vsel %vm36, %v8844, 0
    %v9019 = vsel %vm36, %v8845, 0
    %v9022 = vsel %vm36, %v8846, 0
    %v9025 = vsel %vm36, %v8847, 0
    %v9028 = vsel %vm36, %v8848, 0
    %v9031 = vsel %vm36, %v8849, 0
    %v9034 = vsel %vm36, %v8850, 0
    %v9037 = vsel %vm36, %v8851, 0
    %v9040 = vsel %vm36, %v8852, 0
    %v9043 = vsel %vm36, %v8853, 0
    %v9046 = vsel %vm36, %v8854, 0
    %v9049 = vsel %vm36, %v8855, 0
    %9051 = vmatpush.msra.mxu0 0.0
    %9052 = vmatpush.msra.mxu0 0.0
    %9053 = vmatpush.msra.mxu0 0.0
    %9054 = vmatpush.msra.mxu0 0.0
    %9055 = vmatpush.msra.mxu0 0.0
    %9056 = vmatpush.msra.mxu0 0.0
    %9057 = vmatpush.msra.mxu0 0.0
    %9058 = vmatpush.msra.mxu0 0.0
    %9059 = vmatpush.msra.mxu0 0.0
    %9060 = vmatpush.msra.mxu0 0.0
    %9061 = vmatpush.msra.mxu0 0.0
    %9062 = vmatpush.msra.mxu0 0.0
    %9063 = vmatpush.msra.mxu0 0.0
    %9064 = vmatpush.msra.mxu0 0.0
    %9065 = vmatpush.msra.mxu0 %v8858
    %9066 = vmatpush.msra.mxu0 %v8857
    %9067 = vmatmul.f32.gmra.mxu0 %v8860
    %v9068 = vpop.f32.mrf.mxu0
    %v9069 = vadd.f32 0.0, %v9068
    %9070 = vmatmul.f32.gmra.mxu0 %v8863
    %v9071 = vpop.f32.mrf.mxu0
    %v9072 = vadd.f32 0.0, %v9071
    %9073 = vmatmul.f32.gmra.mxu0 %v8866
    %v9074 = vpop.f32.mrf.mxu0
    %v9075 = vadd.f32 0.0, %v9074
    %9076 = vmatmul.f32.gmra.mxu0 %v8869
    %v9077 = vpop.f32.mrf.mxu0
    %v9078 = vadd.f32 0.0, %v9077
    %9079 = vmatmul.f32.gmra.mxu0 %v8872
    %v9080 = vpop.f32.mrf.mxu0
    %v9081 = vadd.f32 0.0, %v9080
    %9082 = vmatmul.f32.gmra.mxu0 %v8875
    %v9083 = vpop.f32.mrf.mxu0
    %v9084 = vadd.f32 0.0, %v9083
    %9085 = vmatmul.f32.gmra.mxu0 %v8878
    %v9086 = vpop.f32.mrf.mxu0
    %v9087 = vadd.f32 0.0, %v9086
    %9088 = vmatmul.f32.gmra.mxu0 %v8881
    %v9089 = vpop.f32.mrf.mxu0
    %v9090 = vadd.f32 0.0, %v9089
    %9091 = vmatmul.f32.gmra.mxu0 %v8884
    %v9092 = vpop.f32.mrf.mxu0
    %v9093 = vadd.f32 0.0, %v9092
    %9094 = vmatmul.f32.gmra.mxu0 %v8887
    %v9095 = vpop.f32.mrf.mxu0
    %v9096 = vadd.f32 0.0, %v9095
    %9097 = vmatmul.f32.gmra.mxu0 %v8890
    %v9098 = vpop.f32.mrf.mxu0
    %v9099 = vadd.f32 0.0, %v9098
    %9100 = vmatmul.f32.gmra.mxu0 %v8893
    %v9101 = vpop.f32.mrf.mxu0
    %v9102 = vadd.f32 0.0, %v9101
    %9103 = vmatmul.f32.gmra.mxu0 %v8896
    %v9104 = vpop.f32.mrf.mxu0
    %v9105 = vadd.f32 0.0, %v9104
    %9106 = vmatmul.f32.gmra.mxu0 %v8899
    %v9107 = vpop.f32.mrf.mxu0
    %v9108 = vadd.f32 0.0, %v9107
    %9109 = vmatmul.f32.gmra.mxu0 %v8902
    %v9110 = vpop.f32.mrf.mxu0
    %v9111 = vadd.f32 0.0, %v9110
    %9112 = vmatmul.f32.gmra.mxu0 %v8905
    %v9113 = vpop.f32.mrf.mxu0
    %v9114 = vadd.f32 0.0, %v9113
    %9115 = vmatmul.f32.gmra.mxu0 %v8908
    %v9116 = vpop.f32.mrf.mxu0
    %v9117 = vadd.f32 0.0, %v9116
    %9118 = vmatmul.f32.gmra.mxu0 %v8911
    %v9119 = vpop.f32.mrf.mxu0
    %v9120 = vadd.f32 0.0, %v9119
    %9121 = vmatmul.f32.gmra.mxu0 %v8914
    %v9122 = vpop.f32.mrf.mxu0
    %v9123 = vadd.f32 0.0, %v9122
    %9124 = vmatmul.f32.gmra.mxu0 %v8917
    %v9125 = vpop.f32.mrf.mxu0
    %v9126 = vadd.f32 0.0, %v9125
    %9127 = vmatmul.f32.gmra.mxu0 %v8920
    %v9128 = vpop.f32.mrf.mxu0
    %v9129 = vadd.f32 0.0, %v9128
    %9130 = vmatmul.f32.gmra.mxu0 %v8923
    %v9131 = vpop.f32.mrf.mxu0
    %v9132 = vadd.f32 0.0, %v9131
    %9133 = vmatmul.f32.gmra.mxu0 %v8926
    %v9134 = vpop.f32.mrf.mxu0
    %v9135 = vadd.f32 0.0, %v9134
    %9136 = vmatmul.f32.gmra.mxu0 %v8929
    %v9137 = vpop.f32.mrf.mxu0
    %v9138 = vadd.f32 0.0, %v9137
    %9139 = vmatmul.f32.gmra.mxu0 %v8932
    %v9140 = vpop.f32.mrf.mxu0
    %v9141 = vadd.f32 0.0, %v9140
    %9142 = vmatmul.f32.gmra.mxu0 %v8935
    %v9143 = vpop.f32.mrf.mxu0
    %v9144 = vadd.f32 0.0, %v9143
    %9145 = vmatmul.f32.gmra.mxu0 %v8938
    %v9146 = vpop.f32.mrf.mxu0
    %v9147 = vadd.f32 0.0, %v9146
    %9148 = vmatmul.f32.gmra.mxu0 %v8941
    %v9149 = vpop.f32.mrf.mxu0
    %v9150 = vadd.f32 0.0, %v9149
    %9151 = vmatmul.f32.gmra.mxu0 %v8944
    %v9152 = vpop.f32.mrf.mxu0
    %v9153 = vadd.f32 0.0, %v9152
    %9154 = vmatmul.f32.gmra.mxu0 %v8947
    %v9155 = vpop.f32.mrf.mxu0
    %v9156 = vadd.f32 0.0, %v9155
    %9157 = vmatmul.f32.gmra.mxu0 %v8950
    %v9158 = vpop.f32.mrf.mxu0
    %v9159 = vadd.f32 0.0, %v9158
    %9160 = vmatmul.f32.gmra.mxu0 %v8953
    %v9161 = vpop.f32.mrf.mxu0
    %v9162 = vadd.f32 0.0, %v9161
    %9163 = vmatmul.f32.gmra.mxu0 %v8956
    %v9164 = vpop.f32.mrf.mxu0
    %v9165 = vadd.f32 0.0, %v9164
    %9166 = vmatmul.f32.gmra.mxu0 %v8959
    %v9167 = vpop.f32.mrf.mxu0
    %v9168 = vadd.f32 0.0, %v9167
    %9169 = vmatmul.f32.gmra.mxu0 %v8962
    %v9170 = vpop.f32.mrf.mxu0
    %v9171 = vadd.f32 0.0, %v9170
    %9172 = vmatmul.f32.gmra.mxu0 %v8965
    %v9173 = vpop.f32.mrf.mxu0
    %v9174 = vadd.f32 0.0, %v9173
    %9175 = vmatmul.f32.gmra.mxu0 %v8968
    %v9176 = vpop.f32.mrf.mxu0
    %v9177 = vadd.f32 0.0, %v9176
    %9178 = vmatmul.f32.gmra.mxu0 %v8971
    %v9179 = vpop.f32.mrf.mxu0
    %v9180 = vadd.f32 0.0, %v9179
    %9181 = vmatmul.f32.gmra.mxu0 %v8974
    %v9182 = vpop.f32.mrf.mxu0
    %v9183 = vadd.f32 0.0, %v9182
    %9184 = vmatmul.f32.gmra.mxu0 %v8977
    %v9185 = vpop.f32.mrf.mxu0
    %v9186 = vadd.f32 0.0, %v9185
    %9187 = vmatmul.f32.gmra.mxu0 %v8980
    %v9188 = vpop.f32.mrf.mxu0
    %v9189 = vadd.f32 0.0, %v9188
    %9190 = vmatmul.f32.gmra.mxu0 %v8983
    %v9191 = vpop.f32.mrf.mxu0
    %v9192 = vadd.f32 0.0, %v9191
    %9193 = vmatmul.f32.gmra.mxu0 %v8986
    %v9194 = vpop.f32.mrf.mxu0
    %v9195 = vadd.f32 0.0, %v9194
    %9196 = vmatmul.f32.gmra.mxu0 %v8989
    %v9197 = vpop.f32.mrf.mxu0
    %v9198 = vadd.f32 0.0, %v9197
    %9199 = vmatmul.f32.gmra.mxu0 %v8992
    %v9200 = vpop.f32.mrf.mxu0
    %v9201 = vadd.f32 0.0, %v9200
    %9202 = vmatmul.f32.gmra.mxu0 %v8995
    %v9203 = vpop.f32.mrf.mxu0
    %v9204 = vadd.f32 0.0, %v9203
    %9205 = vmatmul.f32.gmra.mxu0 %v8998
    %v9206 = vpop.f32.mrf.mxu0
    %v9207 = vadd.f32 0.0, %v9206
    %9208 = vmatmul.f32.gmra.mxu0 %v9001
    %v9209 = vpop.f32.mrf.mxu0
    %v9210 = vadd.f32 0.0, %v9209
    %9211 = vmatmul.f32.gmra.mxu0 %v9004
    %v9212 = vpop.f32.mrf.mxu0
    %v9213 = vadd.f32 0.0, %v9212
    %9214 = vmatmul.f32.gmra.mxu0 %v9007
    %v9215 = vpop.f32.mrf.mxu0
    %v9216 = vadd.f32 0.0, %v9215
    %9217 = vmatmul.f32.gmra.mxu0 %v9010
    %v9218 = vpop.f32.mrf.mxu0
    %v9219 = vadd.f32 0.0, %v9218
    %9220 = vmatmul.f32.gmra.mxu0 %v9013
    %v9221 = vpop.f32.mrf.mxu0
    %v9222 = vadd.f32 0.0, %v9221
    %9223 = vmatmul.f32.gmra.mxu0 %v9016
    %v9224 = vpop.f32.mrf.mxu0
    %v9225 = vadd.f32 0.0, %v9224
    %9226 = vmatmul.f32.gmra.mxu0 %v9019
    %v9227 = vpop.f32.mrf.mxu0
    %v9228 = vadd.f32 0.0, %v9227
    %9229 = vmatmul.f32.gmra.mxu0 %v9022
    %v9230 = vpop.f32.mrf.mxu0
    %v9231 = vadd.f32 0.0, %v9230
    %9232 = vmatmul.f32.gmra.mxu0 %v9025
    %v9233 = vpop.f32.mrf.mxu0
    %v9234 = vadd.f32 0.0, %v9233
    %9235 = vmatmul.f32.gmra.mxu0 %v9028
    %v9236 = vpop.f32.mrf.mxu0
    %v9237 = vadd.f32 0.0, %v9236
    %9238 = vmatmul.f32.gmra.mxu0 %v9031
    %v9239 = vpop.f32.mrf.mxu0
    %v9240 = vadd.f32 0.0, %v9239
    %9241 = vmatmul.f32.gmra.mxu0 %v9034
    %v9242 = vpop.f32.mrf.mxu0
    %v9243 = vadd.f32 0.0, %v9242
    %9244 = vmatmul.f32.gmra.mxu0 %v9037
    %v9245 = vpop.f32.mrf.mxu0
    %v9246 = vadd.f32 0.0, %v9245
    %9247 = vmatmul.f32.gmra.mxu0 %v9040
    %v9248 = vpop.f32.mrf.mxu0
    %v9249 = vadd.f32 0.0, %v9248
    %9250 = vmatmul.f32.gmra.mxu0 %v9043
    %v9251 = vpop.f32.mrf.mxu0
    %v9252 = vadd.f32 0.0, %v9251
    %9253 = vmatmul.f32.gmra.mxu0 %v9046
    %v9254 = vpop.f32.mrf.mxu0
    %v9255 = vadd.f32 0.0, %v9254
    %9256 = vmatmul.f32.gmra.mxu0 %v9049
    %v9257 = vpop.f32.mrf.mxu0
    %v9258 = vadd.f32 0.0, %v9257
    %9259 = vdwg.mxu0
    %v9260 = vadd.f32 %v8728, %v9069
    %v9261 = vadd.f32 %v8729, %v9072
    %v9262 = vadd.f32 %v8730, %v9075
    %v9263 = vadd.f32 %v8731, %v9078
    %v9264 = vadd.f32 %v8732, %v9081
    %v9265 = vadd.f32 %v8733, %v9084
    %v9266 = vadd.f32 %v8734, %v9087
    %v9267 = vadd.f32 %v8735, %v9090
    %v9268 = vadd.f32 %v8736, %v9093
    %v9269 = vadd.f32 %v8737, %v9096
    %v9270 = vadd.f32 %v8738, %v9099
    %v9271 = vadd.f32 %v8739, %v9102
    %v9272 = vadd.f32 %v8740, %v9105
    %v9273 = vadd.f32 %v8741, %v9108
    %v9274 = vadd.f32 %v8742, %v9111
    %v9275 = vadd.f32 %v8743, %v9114
    %v9276 = vadd.f32 %v8744, %v9117
    %v9277 = vadd.f32 %v8745, %v9120
    %v9278 = vadd.f32 %v8746, %v9123
    %v9279 = vadd.f32 %v8747, %v9126
    %v9280 = vadd.f32 %v8748, %v9129
    %v9281 = vadd.f32 %v8749, %v9132
    %v9282 = vadd.f32 %v8750, %v9135
    %v9283 = vadd.f32 %v8751, %v9138
    %v9284 = vadd.f32 %v8752, %v9141
    %v9285 = vadd.f32 %v8753, %v9144
    %v9286 = vadd.f32 %v8754, %v9147
    %v9287 = vadd.f32 %v8755, %v9150
    %v9288 = vadd.f32 %v8756, %v9153
    %v9289 = vadd.f32 %v8757, %v9156
    %v9290 = vadd.f32 %v8758, %v9159
    %v9291 = vadd.f32 %v8759, %v9162
    %v9292 = vadd.f32 %v8760, %v9165
    %v9293 = vadd.f32 %v8761, %v9168
    %v9294 = vadd.f32 %v8762, %v9171
    %v9295 = vadd.f32 %v8763, %v9174
    %v9296 = vadd.f32 %v8764, %v9177
    %v9297 = vadd.f32 %v8765, %v9180
    %v9298 = vadd.f32 %v8766, %v9183
    %v9299 = vadd.f32 %v8767, %v9186
    %v9300 = vadd.f32 %v8768, %v9189
    %v9301 = vadd.f32 %v8769, %v9192
    %v9302 = vadd.f32 %v8770, %v9195
    %v9303 = vadd.f32 %v8771, %v9198
    %v9304 = vadd.f32 %v8772, %v9201
    %v9305 = vadd.f32 %v8773, %v9204
    %v9306 = vadd.f32 %v8774, %v9207
    %v9307 = vadd.f32 %v8775, %v9210
    %v9308 = vadd.f32 %v8776, %v9213
    %v9309 = vadd.f32 %v8777, %v9216
    %v9310 = vadd.f32 %v8778, %v9219
    %v9311 = vadd.f32 %v8779, %v9222
    %v9312 = vadd.f32 %v8780, %v9225
    %v9313 = vadd.f32 %v8781, %v9228
    %v9314 = vadd.f32 %v8782, %v9231
    %v9315 = vadd.f32 %v8783, %v9234
    %v9316 = vadd.f32 %v8784, %v9237
    %v9317 = vadd.f32 %v8785, %v9240
    %v9318 = vadd.f32 %v8786, %v9243
    %v9319 = vadd.f32 %v8787, %v9246
    %v9320 = vadd.f32 %v8788, %v9249
    %v9321 = vadd.f32 %v8789, %v9252
    %v9322 = vadd.f32 %v8790, %v9255
    %v9323 = vadd.f32 %v8791, %v9258
    %v9324 = vld [vmem:[%s3397 + $0x1] sm:$0xff]
    %v9325 = vld [vmem:[%s3397 + $0x9] sm:$0xff]
    %v9326 = vld [vmem:[%s3397 + $0x19] sm:$0xff]
    %v9327 = vld [vmem:[%s3397 + $0x21] sm:$0xff]
    %v9328 = vld [vmem:[%s3397 + $0x31] sm:$0xff]
    %v9329 = vld [vmem:[%s3397 + $0x39] sm:$0xff]
    %v9330 = vld [vmem:[%s3397 + $0x49] sm:$0xff]
    %v9331 = vld [vmem:[%s3397 + $0x51] sm:$0xff]
    %v9332 = vld [vmem:[%s3397 + $0x61] sm:$0xff]
    %v9333 = vld [vmem:[%s3397 + $0x69] sm:$0xff]
    %v9334 = vld [vmem:[%s3397 + $0x79] sm:$0xff]
    %v9335 = vld [vmem:[%s3397 + $0x81] sm:$0xff]
    %v9336 = vld [vmem:[%s3397 + $0x91] sm:$0xff]
    %v9337 = vld [vmem:[%s3397 + $0x99] sm:$0xff]
    %v9338 = vld [vmem:[%s3397 + $0xa9] sm:$0xff]
    %v9339 = vld [vmem:[%s3397 + $0xb1] sm:$0xff]
    %v9340 = vld [vmem:[%s3397 + $0xc1] sm:$0xff]
    %v9341 = vld [vmem:[%s3397 + $0xc9] sm:$0xff]
    %v9342 = vld [vmem:[%s3397 + $0xd9] sm:$0xff]
    %v9343 = vld [vmem:[%s3397 + $0xe1] sm:$0xff]
    %v9344 = vld [vmem:[%s3397 + $0xf1] sm:$0xff]
    %v9345 = vld [vmem:[%s3397 + $0xf9] sm:$0xff]
    %v9346 = vld [vmem:[%s3397 + $0x109] sm:$0xff]
    %v9347 = vld [vmem:[%s3397 + $0x111] sm:$0xff]
    %v9348 = vld [vmem:[%s3397 + $0x121] sm:$0xff]
    %v9349 = vld [vmem:[%s3397 + $0x129] sm:$0xff]
    %v9350 = vld [vmem:[%s3397 + $0x139] sm:$0xff]
    %v9351 = vld [vmem:[%s3397 + $0x141] sm:$0xff]
    %v9352 = vld [vmem:[%s3397 + $0x151] sm:$0xff]
    %v9353 = vld [vmem:[%s3397 + $0x159] sm:$0xff]
    %v9354 = vld [vmem:[%s3397 + $0x169] sm:$0xff]
    %v9355 = vld [vmem:[%s3397 + $0x171] sm:$0xff]
    %v9356 = vld [vmem:[%s3397 + $0x1b1] sm:$0xff]
    %v9357 = vld [vmem:[%s3397 + $0x1b9] sm:$0xff]
    %v9358 = vld [vmem:[%s3397 + $0x1c9] sm:$0xff]
    %v9359 = vld [vmem:[%s3397 + $0x1d1] sm:$0xff]
    %v9360 = vld [vmem:[%s3397 + $0x1e1] sm:$0xff]
    %v9361 = vld [vmem:[%s3397 + $0x1e9] sm:$0xff]
    %v9362 = vld [vmem:[%s3397 + $0x1f9] sm:$0xff]
    %v9363 = vld [vmem:[%s3397 + $0x201] sm:$0xff]
    %v9364 = vld [vmem:[%s3397 + $0x211] sm:$0xff]
    %v9365 = vld [vmem:[%s3397 + $0x219] sm:$0xff]
    %v9366 = vld [vmem:[%s3397 + $0x229] sm:$0xff]
    %v9367 = vld [vmem:[%s3397 + $0x231] sm:$0xff]
    %v9368 = vld [vmem:[%s3397 + $0x241] sm:$0xff]
    %v9369 = vld [vmem:[%s3397 + $0x249] sm:$0xff]
    %v9370 = vld [vmem:[%s3397 + $0x259] sm:$0xff]
    %v9371 = vld [vmem:[%s3397 + $0x261] sm:$0xff]
    %v9372 = vld [vmem:[%s3397 + $0x271] sm:$0xff]
    %v9373 = vld [vmem:[%s3397 + $0x279] sm:$0xff]
    %v9374 = vld [vmem:[%s3397 + $0x289] sm:$0xff]
    %v9375 = vld [vmem:[%s3397 + $0x291] sm:$0xff]
    %v9376 = vld [vmem:[%s3397 + $0x2a1] sm:$0xff]
    %v9377 = vld [vmem:[%s3397 + $0x2a9] sm:$0xff]
    %v9378 = vld [vmem:[%s3397 + $0x2b9] sm:$0xff]
    %v9379 = vld [vmem:[%s3397 + $0x2c1] sm:$0xff]
    %v9380 = vld [vmem:[%s3397 + $0x2d1] sm:$0xff]
    %v9381 = vld [vmem:[%s3397 + $0x2d9] sm:$0xff]
    %v9382 = vld [vmem:[%s3397 + $0x2e9] sm:$0xff]
    %v9383 = vld [vmem:[%s3397 + $0x2f1] sm:$0xff]
    %v9384 = vld [vmem:[%s3397 + $0x301] sm:$0xff]
    %v9385 = vld [vmem:[%s3397 + $0x309] sm:$0xff]
    %v9386 = vld [vmem:[%s3397 + $0x319] sm:$0xff]
    %v9387 = vld [vmem:[%s3397 + $0x321] sm:$0xff]
    %s9388 = scalar_lea.vmem %s4, 112
    %v9389 = vld [vmem:[%s9388] sm:$0xff]
    %v9390 = vld [vmem:[%s9388 + $0x8] sm:$0xff]
    %v9392 = vsel %vm36, %v9324, 0
    %v9395 = vsel %vm36, %v9325, 0
    %v9398 = vsel %vm36, %v9326, 0
    %v9401 = vsel %vm36, %v9327, 0
    %v9404 = vsel %vm36, %v9328, 0
    %v9407 = vsel %vm36, %v9329, 0
    %v9410 = vsel %vm36, %v9330, 0
    %v9413 = vsel %vm36, %v9331, 0
    %v9416 = vsel %vm36, %v9332, 0
    %v9419 = vsel %vm36, %v9333, 0
    %v9422 = vsel %vm36, %v9334, 0
    %v9425 = vsel %vm36, %v9335, 0
    %v9428 = vsel %vm36, %v9336, 0
    %v9431 = vsel %vm36, %v9337, 0
    %v9434 = vsel %vm36, %v9338, 0
    %v9437 = vsel %vm36, %v9339, 0
    %v9440 = vsel %vm36, %v9340, 0
    %v9443 = vsel %vm36, %v9341, 0
    %v9446 = vsel %vm36, %v9342, 0
    %v9449 = vsel %vm36, %v9343, 0
    %v9452 = vsel %vm36, %v9344, 0
    %v9455 = vsel %vm36, %v9345, 0
    %v9458 = vsel %vm36, %v9346, 0
    %v9461 = vsel %vm36, %v9347, 0
    %v9464 = vsel %vm36, %v9348, 0
    %v9467 = vsel %vm36, %v9349, 0
    %v9470 = vsel %vm36, %v9350, 0
    %v9473 = vsel %vm36, %v9351, 0
    %v9476 = vsel %vm36, %v9352, 0
    %v9479 = vsel %vm36, %v9353, 0
    %v9482 = vsel %vm36, %v9354, 0
    %v9485 = vsel %vm36, %v9355, 0
    %v9488 = vsel %vm36, %v9356, 0
    %v9491 = vsel %vm36, %v9357, 0
    %v9494 = vsel %vm36, %v9358, 0
    %v9497 = vsel %vm36, %v9359, 0
    %v9500 = vsel %vm36, %v9360, 0
    %v9503 = vsel %vm36, %v9361, 0
    %v9506 = vsel %vm36, %v9362, 0
    %v9509 = vsel %vm36, %v9363, 0
    %v9512 = vsel %vm36, %v9364, 0
    %v9515 = vsel %vm36, %v9365, 0
    %v9518 = vsel %vm36, %v9366, 0
    %v9521 = vsel %vm36, %v9367, 0
    %v9524 = vsel %vm36, %v9368, 0
    %v9527 = vsel %vm36, %v9369, 0
    %v9530 = vsel %vm36, %v9370, 0
    %v9533 = vsel %vm36, %v9371, 0
    %v9536 = vsel %vm36, %v9372, 0
    %v9539 = vsel %vm36, %v9373, 0
    %v9542 = vsel %vm36, %v9374, 0
    %v9545 = vsel %vm36, %v9375, 0
    %v9548 = vsel %vm36, %v9376, 0
    %v9551 = vsel %vm36, %v9377, 0
    %v9554 = vsel %vm36, %v9378, 0
    %v9557 = vsel %vm36, %v9379, 0
    %v9560 = vsel %vm36, %v9380, 0
    %v9563 = vsel %vm36, %v9381, 0
    %v9566 = vsel %vm36, %v9382, 0
    %v9569 = vsel %vm36, %v9383, 0
    %v9572 = vsel %vm36, %v9384, 0
    %v9575 = vsel %vm36, %v9385, 0
    %v9578 = vsel %vm36, %v9386, 0
    %v9581 = vsel %vm36, %v9387, 0
    %9583 = vmatpush.msra.mxu0 0.0
    %9584 = vmatpush.msra.mxu0 0.0
    %9585 = vmatpush.msra.mxu0 0.0
    %9586 = vmatpush.msra.mxu0 0.0
    %9587 = vmatpush.msra.mxu0 0.0
    %9588 = vmatpush.msra.mxu0 0.0
    %9589 = vmatpush.msra.mxu0 0.0
    %9590 = vmatpush.msra.mxu0 0.0
    %9591 = vmatpush.msra.mxu0 0.0
    %9592 = vmatpush.msra.mxu0 0.0
    %9593 = vmatpush.msra.mxu0 0.0
    %9594 = vmatpush.msra.mxu0 0.0
    %9595 = vmatpush.msra.mxu0 0.0
    %9596 = vmatpush.msra.mxu0 0.0
    %9597 = vmatpush.msra.mxu0 %v9390
    %9598 = vmatpush.msra.mxu0 %v9389
    %9599 = vmatmul.f32.gmra.mxu0 %v9392
    %v9600 = vpop.f32.mrf.mxu0
    %v9601 = vadd.f32 0.0, %v9600
    %9602 = vmatmul.f32.gmra.mxu0 %v9395
    %v9603 = vpop.f32.mrf.mxu0
    %v9604 = vadd.f32 0.0, %v9603
    %9605 = vmatmul.f32.gmra.mxu0 %v9398
    %v9606 = vpop.f32.mrf.mxu0
    %v9607 = vadd.f32 0.0, %v9606
    %9608 = vmatmul.f32.gmra.mxu0 %v9401
    %v9609 = vpop.f32.mrf.mxu0
    %v9610 = vadd.f32 0.0, %v9609
    %9611 = vmatmul.f32.gmra.mxu0 %v9404
    %v9612 = vpop.f32.mrf.mxu0
    %v9613 = vadd.f32 0.0, %v9612
    %9614 = vmatmul.f32.gmra.mxu0 %v9407
    %v9615 = vpop.f32.mrf.mxu0
    %v9616 = vadd.f32 0.0, %v9615
    %9617 = vmatmul.f32.gmra.mxu0 %v9410
    %v9618 = vpop.f32.mrf.mxu0
    %v9619 = vadd.f32 0.0, %v9618
    %9620 = vmatmul.f32.gmra.mxu0 %v9413
    %v9621 = vpop.f32.mrf.mxu0
    %v9622 = vadd.f32 0.0, %v9621
    %9623 = vmatmul.f32.gmra.mxu0 %v9416
    %v9624 = vpop.f32.mrf.mxu0
    %v9625 = vadd.f32 0.0, %v9624
    %9626 = vmatmul.f32.gmra.mxu0 %v9419
    %v9627 = vpop.f32.mrf.mxu0
    %v9628 = vadd.f32 0.0, %v9627
    %9629 = vmatmul.f32.gmra.mxu0 %v9422
    %v9630 = vpop.f32.mrf.mxu0
    %v9631 = vadd.f32 0.0, %v9630
    %9632 = vmatmul.f32.gmra.mxu0 %v9425
    %v9633 = vpop.f32.mrf.mxu0
    %v9634 = vadd.f32 0.0, %v9633
    %9635 = vmatmul.f32.gmra.mxu0 %v9428
    %v9636 = vpop.f32.mrf.mxu0
    %v9637 = vadd.f32 0.0, %v9636
    %9638 = vmatmul.f32.gmra.mxu0 %v9431
    %v9639 = vpop.f32.mrf.mxu0
    %v9640 = vadd.f32 0.0, %v9639
    %9641 = vmatmul.f32.gmra.mxu0 %v9434
    %v9642 = vpop.f32.mrf.mxu0
    %v9643 = vadd.f32 0.0, %v9642
    %9644 = vmatmul.f32.gmra.mxu0 %v9437
    %v9645 = vpop.f32.mrf.mxu0
    %v9646 = vadd.f32 0.0, %v9645
    %9647 = vmatmul.f32.gmra.mxu0 %v9440
    %v9648 = vpop.f32.mrf.mxu0
    %v9649 = vadd.f32 0.0, %v9648
    %9650 = vmatmul.f32.gmra.mxu0 %v9443
    %v9651 = vpop.f32.mrf.mxu0
    %v9652 = vadd.f32 0.0, %v9651
    %9653 = vmatmul.f32.gmra.mxu0 %v9446
    %v9654 = vpop.f32.mrf.mxu0
    %v9655 = vadd.f32 0.0, %v9654
    %9656 = vmatmul.f32.gmra.mxu0 %v9449
    %v9657 = vpop.f32.mrf.mxu0
    %v9658 = vadd.f32 0.0, %v9657
    %9659 = vmatmul.f32.gmra.mxu0 %v9452
    %v9660 = vpop.f32.mrf.mxu0
    %v9661 = vadd.f32 0.0, %v9660
    %9662 = vmatmul.f32.gmra.mxu0 %v9455
    %v9663 = vpop.f32.mrf.mxu0
    %v9664 = vadd.f32 0.0, %v9663
    %9665 = vmatmul.f32.gmra.mxu0 %v9458
    %v9666 = vpop.f32.mrf.mxu0
    %v9667 = vadd.f32 0.0, %v9666
    %9668 = vmatmul.f32.gmra.mxu0 %v9461
    %v9669 = vpop.f32.mrf.mxu0
    %v9670 = vadd.f32 0.0, %v9669
    %9671 = vmatmul.f32.gmra.mxu0 %v9464
    %v9672 = vpop.f32.mrf.mxu0
    %v9673 = vadd.f32 0.0, %v9672
    %9674 = vmatmul.f32.gmra.mxu0 %v9467
    %v9675 = vpop.f32.mrf.mxu0
    %v9676 = vadd.f32 0.0, %v9675
    %9677 = vmatmul.f32.gmra.mxu0 %v9470
    %v9678 = vpop.f32.mrf.mxu0
    %v9679 = vadd.f32 0.0, %v9678
    %9680 = vmatmul.f32.gmra.mxu0 %v9473
    %v9681 = vpop.f32.mrf.mxu0
    %v9682 = vadd.f32 0.0, %v9681
    %9683 = vmatmul.f32.gmra.mxu0 %v9476
    %v9684 = vpop.f32.mrf.mxu0
    %v9685 = vadd.f32 0.0, %v9684
    %9686 = vmatmul.f32.gmra.mxu0 %v9479
    %v9687 = vpop.f32.mrf.mxu0
    %v9688 = vadd.f32 0.0, %v9687
    %9689 = vmatmul.f32.gmra.mxu0 %v9482
    %v9690 = vpop.f32.mrf.mxu0
    %v9691 = vadd.f32 0.0, %v9690
    %9692 = vmatmul.f32.gmra.mxu0 %v9485
    %v9693 = vpop.f32.mrf.mxu0
    %v9694 = vadd.f32 0.0, %v9693
    %9695 = vmatmul.f32.gmra.mxu0 %v9488
    %v9696 = vpop.f32.mrf.mxu0
    %v9697 = vadd.f32 0.0, %v9696
    %9698 = vmatmul.f32.gmra.mxu0 %v9491
    %v9699 = vpop.f32.mrf.mxu0
    %v9700 = vadd.f32 0.0, %v9699
    %9701 = vmatmul.f32.gmra.mxu0 %v9494
    %v9702 = vpop.f32.mrf.mxu0
    %v9703 = vadd.f32 0.0, %v9702
    %9704 = vmatmul.f32.gmra.mxu0 %v9497
    %v9705 = vpop.f32.mrf.mxu0
    %v9706 = vadd.f32 0.0, %v9705
    %9707 = vmatmul.f32.gmra.mxu0 %v9500
    %v9708 = vpop.f32.mrf.mxu0
    %v9709 = vadd.f32 0.0, %v9708
    %9710 = vmatmul.f32.gmra.mxu0 %v9503
    %v9711 = vpop.f32.mrf.mxu0
    %v9712 = vadd.f32 0.0, %v9711
    %9713 = vmatmul.f32.gmra.mxu0 %v9506
    %v9714 = vpop.f32.mrf.mxu0
    %v9715 = vadd.f32 0.0, %v9714
    %9716 = vmatmul.f32.gmra.mxu0 %v9509
    %v9717 = vpop.f32.mrf.mxu0
    %v9718 = vadd.f32 0.0, %v9717
    %9719 = vmatmul.f32.gmra.mxu0 %v9512
    %v9720 = vpop.f32.mrf.mxu0
    %v9721 = vadd.f32 0.0, %v9720
    %9722 = vmatmul.f32.gmra.mxu0 %v9515
    %v9723 = vpop.f32.mrf.mxu0
    %v9724 = vadd.f32 0.0, %v9723
    %9725 = vmatmul.f32.gmra.mxu0 %v9518
    %v9726 = vpop.f32.mrf.mxu0
    %v9727 = vadd.f32 0.0, %v9726
    %9728 = vmatmul.f32.gmra.mxu0 %v9521
    %v9729 = vpop.f32.mrf.mxu0
    %v9730 = vadd.f32 0.0, %v9729
    %9731 = vmatmul.f32.gmra.mxu0 %v9524
    %v9732 = vpop.f32.mrf.mxu0
    %v9733 = vadd.f32 0.0, %v9732
    %9734 = vmatmul.f32.gmra.mxu0 %v9527
    %v9735 = vpop.f32.mrf.mxu0
    %v9736 = vadd.f32 0.0, %v9735
    %9737 = vmatmul.f32.gmra.mxu0 %v9530
    %v9738 = vpop.f32.mrf.mxu0
    %v9739 = vadd.f32 0.0, %v9738
    %9740 = vmatmul.f32.gmra.mxu0 %v9533
    %v9741 = vpop.f32.mrf.mxu0
    %v9742 = vadd.f32 0.0, %v9741
    %9743 = vmatmul.f32.gmra.mxu0 %v9536
    %v9744 = vpop.f32.mrf.mxu0
    %v9745 = vadd.f32 0.0, %v9744
    %9746 = vmatmul.f32.gmra.mxu0 %v9539
    %v9747 = vpop.f32.mrf.mxu0
    %v9748 = vadd.f32 0.0, %v9747
    %9749 = vmatmul.f32.gmra.mxu0 %v9542
    %v9750 = vpop.f32.mrf.mxu0
    %v9751 = vadd.f32 0.0, %v9750
    %9752 = vmatmul.f32.gmra.mxu0 %v9545
    %v9753 = vpop.f32.mrf.mxu0
    %v9754 = vadd.f32 0.0, %v9753
    %9755 = vmatmul.f32.gmra.mxu0 %v9548
    %v9756 = vpop.f32.mrf.mxu0
    %v9757 = vadd.f32 0.0, %v9756
    %9758 = vmatmul.f32.gmra.mxu0 %v9551
    %v9759 = vpop.f32.mrf.mxu0
    %v9760 = vadd.f32 0.0, %v9759
    %9761 = vmatmul.f32.gmra.mxu0 %v9554
    %v9762 = vpop.f32.mrf.mxu0
    %v9763 = vadd.f32 0.0, %v9762
    %9764 = vmatmul.f32.gmra.mxu0 %v9557
    %v9765 = vpop.f32.mrf.mxu0
    %v9766 = vadd.f32 0.0, %v9765
    %9767 = vmatmul.f32.gmra.mxu0 %v9560
    %v9768 = vpop.f32.mrf.mxu0
    %v9769 = vadd.f32 0.0, %v9768
    %9770 = vmatmul.f32.gmra.mxu0 %v9563
    %v9771 = vpop.f32.mrf.mxu0
    %v9772 = vadd.f32 0.0, %v9771
    %9773 = vmatmul.f32.gmra.mxu0 %v9566
    %v9774 = vpop.f32.mrf.mxu0
    %v9775 = vadd.f32 0.0, %v9774
    %9776 = vmatmul.f32.gmra.mxu0 %v9569
    %v9777 = vpop.f32.mrf.mxu0
    %v9778 = vadd.f32 0.0, %v9777
    %9779 = vmatmul.f32.gmra.mxu0 %v9572
    %v9780 = vpop.f32.mrf.mxu0
    %v9781 = vadd.f32 0.0, %v9780
    %9782 = vmatmul.f32.gmra.mxu0 %v9575
    %v9783 = vpop.f32.mrf.mxu0
    %v9784 = vadd.f32 0.0, %v9783
    %9785 = vmatmul.f32.gmra.mxu0 %v9578
    %v9786 = vpop.f32.mrf.mxu0
    %v9787 = vadd.f32 0.0, %v9786
    %9788 = vmatmul.f32.gmra.mxu0 %v9581
    %v9789 = vpop.f32.mrf.mxu0
    %v9790 = vadd.f32 0.0, %v9789
    %9791 = vdwg.mxu0
    %v9792 = vadd.f32 %v9260, %v9601
    %v9793 = vadd.f32 %v9261, %v9604
    %v9794 = vadd.f32 %v9262, %v9607
    %v9795 = vadd.f32 %v9263, %v9610
    %v9796 = vadd.f32 %v9264, %v9613
    %v9797 = vadd.f32 %v9265, %v9616
    %v9798 = vadd.f32 %v9266, %v9619
    %v9799 = vadd.f32 %v9267, %v9622
    %v9800 = vadd.f32 %v9268, %v9625
    %v9801 = vadd.f32 %v9269, %v9628
    %v9802 = vadd.f32 %v9270, %v9631
    %v9803 = vadd.f32 %v9271, %v9634
    %v9804 = vadd.f32 %v9272, %v9637
    %v9805 = vadd.f32 %v9273, %v9640
    %v9806 = vadd.f32 %v9274, %v9643
    %v9807 = vadd.f32 %v9275, %v9646
    %v9808 = vadd.f32 %v9276, %v9649
    %v9809 = vadd.f32 %v9277, %v9652
    %v9810 = vadd.f32 %v9278, %v9655
    %v9811 = vadd.f32 %v9279, %v9658
    %v9812 = vadd.f32 %v9280, %v9661
    %v9813 = vadd.f32 %v9281, %v9664
    %v9814 = vadd.f32 %v9282, %v9667
    %v9815 = vadd.f32 %v9283, %v9670
    %v9816 = vadd.f32 %v9284, %v9673
    %v9817 = vadd.f32 %v9285, %v9676
    %v9818 = vadd.f32 %v9286, %v9679
    %v9819 = vadd.f32 %v9287, %v9682
    %v9820 = vadd.f32 %v9288, %v9685
    %v9821 = vadd.f32 %v9289, %v9688
    %v9822 = vadd.f32 %v9290, %v9691
    %v9823 = vadd.f32 %v9291, %v9694
    %v9824 = vadd.f32 %v9292, %v9697
    %v9825 = vadd.f32 %v9293, %v9700
    %v9826 = vadd.f32 %v9294, %v9703
    %v9827 = vadd.f32 %v9295, %v9706
    %v9828 = vadd.f32 %v9296, %v9709
    %v9829 = vadd.f32 %v9297, %v9712
    %v9830 = vadd.f32 %v9298, %v9715
    %v9831 = vadd.f32 %v9299, %v9718
    %v9832 = vadd.f32 %v9300, %v9721
    %v9833 = vadd.f32 %v9301, %v9724
    %v9834 = vadd.f32 %v9302, %v9727
    %v9835 = vadd.f32 %v9303, %v9730
    %v9836 = vadd.f32 %v9304, %v9733
    %v9837 = vadd.f32 %v9305, %v9736
    %v9838 = vadd.f32 %v9306, %v9739
    %v9839 = vadd.f32 %v9307, %v9742
    %v9840 = vadd.f32 %v9308, %v9745
    %v9841 = vadd.f32 %v9309, %v9748
    %v9842 = vadd.f32 %v9310, %v9751
    %v9843 = vadd.f32 %v9311, %v9754
    %v9844 = vadd.f32 %v9312, %v9757
    %v9845 = vadd.f32 %v9313, %v9760
    %v9846 = vadd.f32 %v9314, %v9763
    %v9847 = vadd.f32 %v9315, %v9766
    %v9848 = vadd.f32 %v9316, %v9769
    %v9849 = vadd.f32 %v9317, %v9772
    %v9850 = vadd.f32 %v9318, %v9775
    %v9851 = vadd.f32 %v9319, %v9778
    %v9852 = vadd.f32 %v9320, %v9781
    %v9853 = vadd.f32 %v9321, %v9784
    %v9854 = vadd.f32 %v9322, %v9787
    %v9855 = vadd.f32 %v9323, %v9790
    %v9856 = vld [vmem:[%s3397 + $0x2] sm:$0xff]
    %v9857 = vld [vmem:[%s3397 + $0xa] sm:$0xff]
    %v9858 = vld [vmem:[%s3397 + $0x1a] sm:$0xff]
    %v9859 = vld [vmem:[%s3397 + $0x22] sm:$0xff]
    %v9860 = vld [vmem:[%s3397 + $0x32] sm:$0xff]
    %v9861 = vld [vmem:[%s3397 + $0x3a] sm:$0xff]
    %v9862 = vld [vmem:[%s3397 + $0x4a] sm:$0xff]
    %v9863 = vld [vmem:[%s3397 + $0x52] sm:$0xff]
    %v9864 = vld [vmem:[%s3397 + $0x62] sm:$0xff]
    %v9865 = vld [vmem:[%s3397 + $0x6a] sm:$0xff]
    %v9866 = vld [vmem:[%s3397 + $0x7a] sm:$0xff]
    %v9867 = vld [vmem:[%s3397 + $0x82] sm:$0xff]
    %v9868 = vld [vmem:[%s3397 + $0x92] sm:$0xff]
    %v9869 = vld [vmem:[%s3397 + $0x9a] sm:$0xff]
    %v9870 = vld [vmem:[%s3397 + $0xaa] sm:$0xff]
    %v9871 = vld [vmem:[%s3397 + $0xb2] sm:$0xff]
    %v9872 = vld [vmem:[%s3397 + $0xc2] sm:$0xff]
    %v9873 = vld [vmem:[%s3397 + $0xca] sm:$0xff]
    %v9874 = vld [vmem:[%s3397 + $0xda] sm:$0xff]
    %v9875 = vld [vmem:[%s3397 + $0xe2] sm:$0xff]
    %v9876 = vld [vmem:[%s3397 + $0xf2] sm:$0xff]
    %v9877 = vld [vmem:[%s3397 + $0xfa] sm:$0xff]
    %v9878 = vld [vmem:[%s3397 + $0x10a] sm:$0xff]
    %v9879 = vld [vmem:[%s3397 + $0x112] sm:$0xff]
    %v9880 = vld [vmem:[%s3397 + $0x122] sm:$0xff]
    %v9881 = vld [vmem:[%s3397 + $0x12a] sm:$0xff]
    %v9882 = vld [vmem:[%s3397 + $0x13a] sm:$0xff]
    %v9883 = vld [vmem:[%s3397 + $0x142] sm:$0xff]
    %v9884 = vld [vmem:[%s3397 + $0x152] sm:$0xff]
    %v9885 = vld [vmem:[%s3397 + $0x15a] sm:$0xff]
    %v9886 = vld [vmem:[%s3397 + $0x16a] sm:$0xff]
    %v9887 = vld [vmem:[%s3397 + $0x172] sm:$0xff]
    %v9888 = vld [vmem:[%s3397 + $0x1b2] sm:$0xff]
    %v9889 = vld [vmem:[%s3397 + $0x1ba] sm:$0xff]
    %v9890 = vld [vmem:[%s3397 + $0x1ca] sm:$0xff]
    %v9891 = vld [vmem:[%s3397 + $0x1d2] sm:$0xff]
    %v9892 = vld [vmem:[%s3397 + $0x1e2] sm:$0xff]
    %v9893 = vld [vmem:[%s3397 + $0x1ea] sm:$0xff]
    %v9894 = vld [vmem:[%s3397 + $0x1fa] sm:$0xff]
    %v9895 = vld [vmem:[%s3397 + $0x202] sm:$0xff]
    %v9896 = vld [vmem:[%s3397 + $0x212] sm:$0xff]
    %v9897 = vld [vmem:[%s3397 + $0x21a] sm:$0xff]
    %v9898 = vld [vmem:[%s3397 + $0x22a] sm:$0xff]
    %v9899 = vld [vmem:[%s3397 + $0x232] sm:$0xff]
    %v9900 = vld [vmem:[%s3397 + $0x242] sm:$0xff]
    %v9901 = vld [vmem:[%s3397 + $0x24a] sm:$0xff]
    %v9902 = vld [vmem:[%s3397 + $0x25a] sm:$0xff]
    %v9903 = vld [vmem:[%s3397 + $0x262] sm:$0xff]
    %v9904 = vld [vmem:[%s3397 + $0x272] sm:$0xff]
    %v9905 = vld [vmem:[%s3397 + $0x27a] sm:$0xff]
    %v9906 = vld [vmem:[%s3397 + $0x28a] sm:$0xff]
    %v9907 = vld [vmem:[%s3397 + $0x292] sm:$0xff]
    %v9908 = vld [vmem:[%s3397 + $0x2a2] sm:$0xff]
    %v9909 = vld [vmem:[%s3397 + $0x2aa] sm:$0xff]
    %v9910 = vld [vmem:[%s3397 + $0x2ba] sm:$0xff]
    %v9911 = vld [vmem:[%s3397 + $0x2c2] sm:$0xff]
    %v9912 = vld [vmem:[%s3397 + $0x2d2] sm:$0xff]
    %v9913 = vld [vmem:[%s3397 + $0x2da] sm:$0xff]
    %v9914 = vld [vmem:[%s3397 + $0x2ea] sm:$0xff]
    %v9915 = vld [vmem:[%s3397 + $0x2f2] sm:$0xff]
    %v9916 = vld [vmem:[%s3397 + $0x302] sm:$0xff]
    %v9917 = vld [vmem:[%s3397 + $0x30a] sm:$0xff]
    %v9918 = vld [vmem:[%s3397 + $0x31a] sm:$0xff]
    %v9919 = vld [vmem:[%s3397 + $0x322] sm:$0xff]
    %s9920 = scalar_lea.vmem %s4, 128
    %v9921 = vld [vmem:[%s9920] sm:$0xff]
    %v9922 = vld [vmem:[%s9920 + $0x8] sm:$0xff]
    %v9924 = vsel %vm36, %v9856, 0
    %v9927 = vsel %vm36, %v9857, 0
    %v9930 = vsel %vm36, %v9858, 0
    %v9933 = vsel %vm36, %v9859, 0
    %v9936 = vsel %vm36, %v9860, 0
    %v9939 = vsel %vm36, %v9861, 0
    %v9942 = vsel %vm36, %v9862, 0
    %v9945 = vsel %vm36, %v9863, 0
    %v9948 = vsel %vm36, %v9864, 0
    %v9951 = vsel %vm36, %v9865, 0
    %v9954 = vsel %vm36, %v9866, 0
    %v9957 = vsel %vm36, %v9867, 0
    %v9960 = vsel %vm36, %v9868, 0
    %v9963 = vsel %vm36, %v9869, 0
    %v9966 = vsel %vm36, %v9870, 0
    %v9969 = vsel %vm36, %v9871, 0
    %v9972 = vsel %vm36, %v9872, 0
    %v9975 = vsel %vm36, %v9873, 0
    %v9978 = vsel %vm36, %v9874, 0
    %v9981 = vsel %vm36, %v9875, 0
    %v9984 = vsel %vm36, %v9876, 0
    %v9987 = vsel %vm36, %v9877, 0
    %v9990 = vsel %vm36, %v9878, 0
    %v9993 = vsel %vm36, %v9879, 0
    %v9996 = vsel %vm36, %v9880, 0
    %v9999 = vsel %vm36, %v9881, 0
    %v10002 = vsel %vm36, %v9882, 0
    %v10005 = vsel %vm36, %v9883, 0
    %v10008 = vsel %vm36, %v9884, 0
    %v10011 = vsel %vm36, %v9885, 0
    %v10014 = vsel %vm36, %v9886, 0
    %v10017 = vsel %vm36, %v9887, 0
    %v10020 = vsel %vm36, %v9888, 0
    %v10023 = vsel %vm36, %v9889, 0
    %v10026 = vsel %vm36, %v9890, 0
    %v10029 = vsel %vm36, %v9891, 0
    %v10032 = vsel %vm36, %v9892, 0
    %v10035 = vsel %vm36, %v9893, 0
    %v10038 = vsel %vm36, %v9894, 0
    %v10041 = vsel %vm36, %v9895, 0
    %v10044 = vsel %vm36, %v9896, 0
    %v10047 = vsel %vm36, %v9897, 0
    %v10050 = vsel %vm36, %v9898, 0
    %v10053 = vsel %vm36, %v9899, 0
    %v10056 = vsel %vm36, %v9900, 0
    %v10059 = vsel %vm36, %v9901, 0
    %v10062 = vsel %vm36, %v9902, 0
    %v10065 = vsel %vm36, %v9903, 0
    %v10068 = vsel %vm36, %v9904, 0
    %v10071 = vsel %vm36, %v9905, 0
    %v10074 = vsel %vm36, %v9906, 0
    %v10077 = vsel %vm36, %v9907, 0
    %v10080 = vsel %vm36, %v9908, 0
    %v10083 = vsel %vm36, %v9909, 0
    %v10086 = vsel %vm36, %v9910, 0
    %v10089 = vsel %vm36, %v9911, 0
    %v10092 = vsel %vm36, %v9912, 0
    %v10095 = vsel %vm36, %v9913, 0
    %v10098 = vsel %vm36, %v9914, 0
    %v10101 = vsel %vm36, %v9915, 0
    %v10104 = vsel %vm36, %v9916, 0
    %v10107 = vsel %vm36, %v9917, 0
    %v10110 = vsel %vm36, %v9918, 0
    %v10113 = vsel %vm36, %v9919, 0
    %10115 = vmatpush.msra.mxu0 0.0
    %10116 = vmatpush.msra.mxu0 0.0
    %10117 = vmatpush.msra.mxu0 0.0
    %10118 = vmatpush.msra.mxu0 0.0
    %10119 = vmatpush.msra.mxu0 0.0
    %10120 = vmatpush.msra.mxu0 0.0
    %10121 = vmatpush.msra.mxu0 0.0
    %10122 = vmatpush.msra.mxu0 0.0
    %10123 = vmatpush.msra.mxu0 0.0
    %10124 = vmatpush.msra.mxu0 0.0
    %10125 = vmatpush.msra.mxu0 0.0
    %10126 = vmatpush.msra.mxu0 0.0
    %10127 = vmatpush.msra.mxu0 0.0
    %10128 = vmatpush.msra.mxu0 0.0
    %10129 = vmatpush.msra.mxu0 %v9922
    %10130 = vmatpush.msra.mxu0 %v9921
    %10131 = vmatmul.f32.gmra.mxu0 %v9924
    %v10132 = vpop.f32.mrf.mxu0
    %v10133 = vadd.f32 0.0, %v10132
    %10134 = vmatmul.f32.gmra.mxu0 %v9927
    %v10135 = vpop.f32.mrf.mxu0
    %v10136 = vadd.f32 0.0, %v10135
    %10137 = vmatmul.f32.gmra.mxu0 %v9930
    %v10138 = vpop.f32.mrf.mxu0
    %v10139 = vadd.f32 0.0, %v10138
    %10140 = vmatmul.f32.gmra.mxu0 %v9933
    %v10141 = vpop.f32.mrf.mxu0
    %v10142 = vadd.f32 0.0, %v10141
    %10143 = vmatmul.f32.gmra.mxu0 %v9936
    %v10144 = vpop.f32.mrf.mxu0
    %v10145 = vadd.f32 0.0, %v10144
    %10146 = vmatmul.f32.gmra.mxu0 %v9939
    %v10147 = vpop.f32.mrf.mxu0
    %v10148 = vadd.f32 0.0, %v10147
    %10149 = vmatmul.f32.gmra.mxu0 %v9942
    %v10150 = vpop.f32.mrf.mxu0
    %v10151 = vadd.f32 0.0, %v10150
    %10152 = vmatmul.f32.gmra.mxu0 %v9945
    %v10153 = vpop.f32.mrf.mxu0
    %v10154 = vadd.f32 0.0, %v10153
    %10155 = vmatmul.f32.gmra.mxu0 %v9948
    %v10156 = vpop.f32.mrf.mxu0
    %v10157 = vadd.f32 0.0, %v10156
    %10158 = vmatmul.f32.gmra.mxu0 %v9951
    %v10159 = vpop.f32.mrf.mxu0
    %v10160 = vadd.f32 0.0, %v10159
    %10161 = vmatmul.f32.gmra.mxu0 %v9954
    %v10162 = vpop.f32.mrf.mxu0
    %v10163 = vadd.f32 0.0, %v10162
    %10164 = vmatmul.f32.gmra.mxu0 %v9957
    %v10165 = vpop.f32.mrf.mxu0
    %v10166 = vadd.f32 0.0, %v10165
    %10167 = vmatmul.f32.gmra.mxu0 %v9960
    %v10168 = vpop.f32.mrf.mxu0
    %v10169 = vadd.f32 0.0, %v10168
    %10170 = vmatmul.f32.gmra.mxu0 %v9963
    %v10171 = vpop.f32.mrf.mxu0
    %v10172 = vadd.f32 0.0, %v10171
    %10173 = vmatmul.f32.gmra.mxu0 %v9966
    %v10174 = vpop.f32.mrf.mxu0
    %v10175 = vadd.f32 0.0, %v10174
    %10176 = vmatmul.f32.gmra.mxu0 %v9969
    %v10177 = vpop.f32.mrf.mxu0
    %v10178 = vadd.f32 0.0, %v10177
    %10179 = vmatmul.f32.gmra.mxu0 %v9972
    %v10180 = vpop.f32.mrf.mxu0
    %v10181 = vadd.f32 0.0, %v10180
    %10182 = vmatmul.f32.gmra.mxu0 %v9975
    %v10183 = vpop.f32.mrf.mxu0
    %v10184 = vadd.f32 0.0, %v10183
    %10185 = vmatmul.f32.gmra.mxu0 %v9978
    %v10186 = vpop.f32.mrf.mxu0
    %v10187 = vadd.f32 0.0, %v10186
    %10188 = vmatmul.f32.gmra.mxu0 %v9981
    %v10189 = vpop.f32.mrf.mxu0
    %v10190 = vadd.f32 0.0, %v10189
    %10191 = vmatmul.f32.gmra.mxu0 %v9984
    %v10192 = vpop.f32.mrf.mxu0
    %v10193 = vadd.f32 0.0, %v10192
    %10194 = vmatmul.f32.gmra.mxu0 %v9987
    %v10195 = vpop.f32.mrf.mxu0
    %v10196 = vadd.f32 0.0, %v10195
    %10197 = vmatmul.f32.gmra.mxu0 %v9990
    %v10198 = vpop.f32.mrf.mxu0
    %v10199 = vadd.f32 0.0, %v10198
    %10200 = vmatmul.f32.gmra.mxu0 %v9993
    %v10201 = vpop.f32.mrf.mxu0
    %v10202 = vadd.f32 0.0, %v10201
    %10203 = vmatmul.f32.gmra.mxu0 %v9996
    %v10204 = vpop.f32.mrf.mxu0
    %v10205 = vadd.f32 0.0, %v10204
    %10206 = vmatmul.f32.gmra.mxu0 %v9999
    %v10207 = vpop.f32.mrf.mxu0
    %v10208 = vadd.f32 0.0, %v10207
    %10209 = vmatmul.f32.gmra.mxu0 %v10002
    %v10210 = vpop.f32.mrf.mxu0
    %v10211 = vadd.f32 0.0, %v10210
    %10212 = vmatmul.f32.gmra.mxu0 %v10005
    %v10213 = vpop.f32.mrf.mxu0
    %v10214 = vadd.f32 0.0, %v10213
    %10215 = vmatmul.f32.gmra.mxu0 %v10008
    %v10216 = vpop.f32.mrf.mxu0
    %v10217 = vadd.f32 0.0, %v10216
    %10218 = vmatmul.f32.gmra.mxu0 %v10011
    %v10219 = vpop.f32.mrf.mxu0
    %v10220 = vadd.f32 0.0, %v10219
    %10221 = vmatmul.f32.gmra.mxu0 %v10014
    %v10222 = vpop.f32.mrf.mxu0
    %v10223 = vadd.f32 0.0, %v10222
    %10224 = vmatmul.f32.gmra.mxu0 %v10017
    %v10225 = vpop.f32.mrf.mxu0
    %v10226 = vadd.f32 0.0, %v10225
    %10227 = vmatmul.f32.gmra.mxu0 %v10020
    %v10228 = vpop.f32.mrf.mxu0
    %v10229 = vadd.f32 0.0, %v10228
    %10230 = vmatmul.f32.gmra.mxu0 %v10023
    %v10231 = vpop.f32.mrf.mxu0
    %v10232 = vadd.f32 0.0, %v10231
    %10233 = vmatmul.f32.gmra.mxu0 %v10026
    %v10234 = vpop.f32.mrf.mxu0
    %v10235 = vadd.f32 0.0, %v10234
    %10236 = vmatmul.f32.gmra.mxu0 %v10029
    %v10237 = vpop.f32.mrf.mxu0
    %v10238 = vadd.f32 0.0, %v10237
    %10239 = vmatmul.f32.gmra.mxu0 %v10032
    %v10240 = vpop.f32.mrf.mxu0
    %v10241 = vadd.f32 0.0, %v10240
    %10242 = vmatmul.f32.gmra.mxu0 %v10035
    %v10243 = vpop.f32.mrf.mxu0
    %v10244 = vadd.f32 0.0, %v10243
    %10245 = vmatmul.f32.gmra.mxu0 %v10038
    %v10246 = vpop.f32.mrf.mxu0
    %v10247 = vadd.f32 0.0, %v10246
    %10248 = vmatmul.f32.gmra.mxu0 %v10041
    %v10249 = vpop.f32.mrf.mxu0
    %v10250 = vadd.f32 0.0, %v10249
    %10251 = vmatmul.f32.gmra.mxu0 %v10044
    %v10252 = vpop.f32.mrf.mxu0
    %v10253 = vadd.f32 0.0, %v10252
    %10254 = vmatmul.f32.gmra.mxu0 %v10047
    %v10255 = vpop.f32.mrf.mxu0
    %v10256 = vadd.f32 0.0, %v10255
    %10257 = vmatmul.f32.gmra.mxu0 %v10050
    %v10258 = vpop.f32.mrf.mxu0
    %v10259 = vadd.f32 0.0, %v10258
    %10260 = vmatmul.f32.gmra.mxu0 %v10053
    %v10261 = vpop.f32.mrf.mxu0
    %v10262 = vadd.f32 0.0, %v10261
    %10263 = vmatmul.f32.gmra.mxu0 %v10056
    %v10264 = vpop.f32.mrf.mxu0
    %v10265 = vadd.f32 0.0, %v10264
    %10266 = vmatmul.f32.gmra.mxu0 %v10059
    %v10267 = vpop.f32.mrf.mxu0
    %v10268 = vadd.f32 0.0, %v10267
    %10269 = vmatmul.f32.gmra.mxu0 %v10062
    %v10270 = vpop.f32.mrf.mxu0
    %v10271 = vadd.f32 0.0, %v10270
    %10272 = vmatmul.f32.gmra.mxu0 %v10065
    %v10273 = vpop.f32.mrf.mxu0
    %v10274 = vadd.f32 0.0, %v10273
    %10275 = vmatmul.f32.gmra.mxu0 %v10068
    %v10276 = vpop.f32.mrf.mxu0
    %v10277 = vadd.f32 0.0, %v10276
    %10278 = vmatmul.f32.gmra.mxu0 %v10071
    %v10279 = vpop.f32.mrf.mxu0
    %v10280 = vadd.f32 0.0, %v10279
    %10281 = vmatmul.f32.gmra.mxu0 %v10074
    %v10282 = vpop.f32.mrf.mxu0
    %v10283 = vadd.f32 0.0, %v10282
    %10284 = vmatmul.f32.gmra.mxu0 %v10077
    %v10285 = vpop.f32.mrf.mxu0
    %v10286 = vadd.f32 0.0, %v10285
    %10287 = vmatmul.f32.gmra.mxu0 %v10080
    %v10288 = vpop.f32.mrf.mxu0
    %v10289 = vadd.f32 0.0, %v10288
    %10290 = vmatmul.f32.gmra.mxu0 %v10083
    %v10291 = vpop.f32.mrf.mxu0
    %v10292 = vadd.f32 0.0, %v10291
    %10293 = vmatmul.f32.gmra.mxu0 %v10086
    %v10294 = vpop.f32.mrf.mxu0
    %v10295 = vadd.f32 0.0, %v10294
    %10296 = vmatmul.f32.gmra.mxu0 %v10089
    %v10297 = vpop.f32.mrf.mxu0
    %v10298 = vadd.f32 0.0, %v10297
    %10299 = vmatmul.f32.gmra.mxu0 %v10092
    %v10300 = vpop.f32.mrf.mxu0
    %v10301 = vadd.f32 0.0, %v10300
    %10302 = vmatmul.f32.gmra.mxu0 %v10095
    %v10303 = vpop.f32.mrf.mxu0
    %v10304 = vadd.f32 0.0, %v10303
    %10305 = vmatmul.f32.gmra.mxu0 %v10098
    %v10306 = vpop.f32.mrf.mxu0
    %v10307 = vadd.f32 0.0, %v10306
    %10308 = vmatmul.f32.gmra.mxu0 %v10101
    %v10309 = vpop.f32.mrf.mxu0
    %v10310 = vadd.f32 0.0, %v10309
    %10311 = vmatmul.f32.gmra.mxu0 %v10104
    %v10312 = vpop.f32.mrf.mxu0
    %v10313 = vadd.f32 0.0, %v10312
    %10314 = vmatmul.f32.gmra.mxu0 %v10107
    %v10315 = vpop.f32.mrf.mxu0
    %v10316 = vadd.f32 0.0, %v10315
    %10317 = vmatmul.f32.gmra.mxu0 %v10110
    %v10318 = vpop.f32.mrf.mxu0
    %v10319 = vadd.f32 0.0, %v10318
    %10320 = vmatmul.f32.gmra.mxu0 %v10113
    %v10321 = vpop.f32.mrf.mxu0
    %v10322 = vadd.f32 0.0, %v10321
    %10323 = vdwg.mxu0
    %v10324 = vadd.f32 %v9792, %v10133
    %v10325 = vadd.f32 %v9793, %v10136
    %v10326 = vadd.f32 %v9794, %v10139
    %v10327 = vadd.f32 %v9795, %v10142
    %v10328 = vadd.f32 %v9796, %v10145
    %v10329 = vadd.f32 %v9797, %v10148
    %v10330 = vadd.f32 %v9798, %v10151
    %v10331 = vadd.f32 %v9799, %v10154
    %v10332 = vadd.f32 %v9800, %v10157
    %v10333 = vadd.f32 %v9801, %v10160
    %v10334 = vadd.f32 %v9802, %v10163
    %v10335 = vadd.f32 %v9803, %v10166
    %v10336 = vadd.f32 %v9804, %v10169
    %v10337 = vadd.f32 %v9805, %v10172
    %v10338 = vadd.f32 %v9806, %v10175
    %v10339 = vadd.f32 %v9807, %v10178
    %v10340 = vadd.f32 %v9808, %v10181
    %v10341 = vadd.f32 %v9809, %v10184
    %v10342 = vadd.f32 %v9810, %v10187
    %v10343 = vadd.f32 %v9811, %v10190
    %v10344 = vadd.f32 %v9812, %v10193
    %v10345 = vadd.f32 %v9813, %v10196
    %v10346 = vadd.f32 %v9814, %v10199
    %v10347 = vadd.f32 %v9815, %v10202
    %v10348 = vadd.f32 %v9816, %v10205
    %v10349 = vadd.f32 %v9817, %v10208
    %v10350 = vadd.f32 %v9818, %v10211
    %v10351 = vadd.f32 %v9819, %v10214
    %v10352 = vadd.f32 %v9820, %v10217
    %v10353 = vadd.f32 %v9821, %v10220
    %v10354 = vadd.f32 %v9822, %v10223
    %v10355 = vadd.f32 %v9823, %v10226
    %v10356 = vadd.f32 %v9824, %v10229
    %v10357 = vadd.f32 %v9825, %v10232
    %v10358 = vadd.f32 %v9826, %v10235
    %v10359 = vadd.f32 %v9827, %v10238
    %v10360 = vadd.f32 %v9828, %v10241
    %v10361 = vadd.f32 %v9829, %v10244
    %v10362 = vadd.f32 %v9830, %v10247
    %v10363 = vadd.f32 %v9831, %v10250
    %v10364 = vadd.f32 %v9832, %v10253
    %v10365 = vadd.f32 %v9833, %v10256
    %v10366 = vadd.f32 %v9834, %v10259
    %v10367 = vadd.f32 %v9835, %v10262
    %v10368 = vadd.f32 %v9836, %v10265
    %v10369 = vadd.f32 %v9837, %v10268
    %v10370 = vadd.f32 %v9838, %v10271
    %v10371 = vadd.f32 %v9839, %v10274
    %v10372 = vadd.f32 %v9840, %v10277
    %v10373 = vadd.f32 %v9841, %v10280
    %v10374 = vadd.f32 %v9842, %v10283
    %v10375 = vadd.f32 %v9843, %v10286
    %v10376 = vadd.f32 %v9844, %v10289
    %v10377 = vadd.f32 %v9845, %v10292
    %v10378 = vadd.f32 %v9846, %v10295
    %v10379 = vadd.f32 %v9847, %v10298
    %v10380 = vadd.f32 %v9848, %v10301
    %v10381 = vadd.f32 %v9849, %v10304
    %v10382 = vadd.f32 %v9850, %v10307
    %v10383 = vadd.f32 %v9851, %v10310
    %v10384 = vadd.f32 %v9852, %v10313
    %v10385 = vadd.f32 %v9853, %v10316
    %v10386 = vadd.f32 %v9854, %v10319
    %v10387 = vadd.f32 %v9855, %v10322
    %v10388 = vld [vmem:[%s5] sm:$0x1]
    %v10389 = vld [vmem:[%s6] sm:$0x1]
    %v10390 = vsel %vm36, %v10324, 0.0
    %v10391 = vsel %vm36, %v10325, 0.0
    %v10392 = vadd.f32 %v10390, %v10391
    %v10393 = vsel %vm36, %v10326, 0.0
    %v10394 = vadd.f32 %v10392, %v10393
    %v10395 = vsel %vm36, %v10327, 0.0
    %v10396 = vadd.f32 %v10394, %v10395
    %v10397 = vsel %vm36, %v10328, 0.0
    %v10398 = vadd.f32 %v10396, %v10397
    %v10399 = vsel %vm36, %v10329, 0.0
    %v10400 = vadd.f32 %v10398, %v10399
    %v10401 = vsel %vm36, %v10330, 0.0
    %v10402 = vadd.f32 %v10400, %v10401
    %v10403 = vsel %vm36, %v10331, 0.0
    %v10404 = vadd.f32 %v10402, %v10403
    %v10405 = vsel %vm36, %v10332, 0.0
    %v10406 = vadd.f32 %v10404, %v10405
    %v10407 = vsel %vm36, %v10333, 0.0
    %v10408 = vadd.f32 %v10406, %v10407
    %v10409 = vsel %vm36, %v10334, 0.0
    %v10410 = vadd.f32 %v10408, %v10409
    %v10411 = vsel %vm36, %v10335, 0.0
    %v10412 = vadd.f32 %v10410, %v10411
    %v10413 = vsel %vm36, %v10336, 0.0
    %v10414 = vadd.f32 %v10412, %v10413
    %v10415 = vsel %vm36, %v10337, 0.0
    %v10416 = vadd.f32 %v10414, %v10415
    %v10417 = vsel %vm36, %v10338, 0.0
    %v10418 = vadd.f32 %v10416, %v10417
    %v10419 = vsel %vm36, %v10339, 0.0
    %v10420 = vadd.f32 %v10418, %v10419
    %v10421 = vsel %vm36, %v10340, 0.0
    %v10422 = vadd.f32 %v10420, %v10421
    %v10423 = vsel %vm36, %v10341, 0.0
    %v10424 = vadd.f32 %v10422, %v10423
    %v10425 = vsel %vm36, %v10342, 0.0
    %v10426 = vadd.f32 %v10424, %v10425
    %v10427 = vsel %vm36, %v10343, 0.0
    %v10428 = vadd.f32 %v10426, %v10427
    %v10429 = vsel %vm36, %v10344, 0.0
    %v10430 = vadd.f32 %v10428, %v10429
    %v10431 = vsel %vm36, %v10345, 0.0
    %v10432 = vadd.f32 %v10430, %v10431
    %v10433 = vsel %vm36, %v10346, 0.0
    %v10434 = vadd.f32 %v10432, %v10433
    %v10435 = vsel %vm36, %v10347, 0.0
    %v10436 = vadd.f32 %v10434, %v10435
    %v10437 = vsel %vm36, %v10348, 0.0
    %v10438 = vadd.f32 %v10436, %v10437
    %v10439 = vsel %vm36, %v10349, 0.0
    %v10440 = vadd.f32 %v10438, %v10439
    %v10441 = vsel %vm36, %v10350, 0.0
    %v10442 = vadd.f32 %v10440, %v10441
    %v10443 = vsel %vm36, %v10351, 0.0
    %v10444 = vadd.f32 %v10442, %v10443
    %v10445 = vsel %vm36, %v10352, 0.0
    %v10446 = vadd.f32 %v10444, %v10445
    %v10447 = vsel %vm36, %v10353, 0.0
    %v10448 = vadd.f32 %v10446, %v10447
    %v10449 = vsel %vm36, %v10354, 0.0
    %v10450 = vadd.f32 %v10448, %v10449
    %v10451 = vsel %vm36, %v10355, 0.0
    %v10452 = vadd.f32 %v10450, %v10451
    %v10453 = vsel %vm36, %v10356, 0.0
    %v10454 = vadd.f32 %v10452, %v10453
    %v10455 = vsel %vm36, %v10357, 0.0
    %v10456 = vadd.f32 %v10454, %v10455
    %v10457 = vsel %vm36, %v10358, 0.0
    %v10458 = vadd.f32 %v10456, %v10457
    %v10459 = vsel %vm36, %v10359, 0.0
    %v10460 = vadd.f32 %v10458, %v10459
    %v10461 = vsel %vm36, %v10360, 0.0
    %v10462 = vadd.f32 %v10460, %v10461
    %v10463 = vsel %vm36, %v10361, 0.0
    %v10464 = vadd.f32 %v10462, %v10463
    %v10465 = vsel %vm36, %v10362, 0.0
    %v10466 = vadd.f32 %v10464, %v10465
    %v10467 = vsel %vm36, %v10363, 0.0
    %v10468 = vadd.f32 %v10466, %v10467
    %v10469 = vsel %vm36, %v10364, 0.0
    %v10470 = vadd.f32 %v10468, %v10469
    %v10471 = vsel %vm36, %v10365, 0.0
    %v10472 = vadd.f32 %v10470, %v10471
    %v10473 = vsel %vm36, %v10366, 0.0
    %v10474 = vadd.f32 %v10472, %v10473
    %v10475 = vsel %vm36, %v10367, 0.0
    %v10476 = vadd.f32 %v10474, %v10475
    %v10477 = vsel %vm36, %v10368, 0.0
    %v10478 = vadd.f32 %v10476, %v10477
    %v10479 = vsel %vm36, %v10369, 0.0
    %v10480 = vadd.f32 %v10478, %v10479
    %v10481 = vsel %vm36, %v10370, 0.0
    %v10482 = vadd.f32 %v10480, %v10481
    %v10483 = vsel %vm36, %v10371, 0.0
    %v10484 = vadd.f32 %v10482, %v10483
    %v10485 = vsel %vm36, %v10372, 0.0
    %v10486 = vadd.f32 %v10484, %v10485
    %v10487 = vsel %vm36, %v10373, 0.0
    %v10488 = vadd.f32 %v10486, %v10487
    %v10489 = vsel %vm36, %v10374, 0.0
    %v10490 = vadd.f32 %v10488, %v10489
    %v10491 = vsel %vm36, %v10375, 0.0
    %v10492 = vadd.f32 %v10490, %v10491
    %v10493 = vsel %vm36, %v10376, 0.0
    %v10494 = vadd.f32 %v10492, %v10493
    %v10495 = vsel %vm36, %v10377, 0.0
    %v10496 = vadd.f32 %v10494, %v10495
    %v10497 = vsel %vm36, %v10378, 0.0
    %v10498 = vadd.f32 %v10496, %v10497
    %v10499 = vsel %vm36, %v10379, 0.0
    %v10500 = vadd.f32 %v10498, %v10499
    %v10501 = vsel %vm36, %v10380, 0.0
    %v10502 = vadd.f32 %v10500, %v10501
    %v10503 = vsel %vm36, %v10381, 0.0
    %v10504 = vadd.f32 %v10502, %v10503
    %v10505 = vsel %vm36, %v10382, 0.0
    %v10506 = vadd.f32 %v10504, %v10505
    %v10507 = vsel %vm36, %v10383, 0.0
    %v10508 = vadd.f32 %v10506, %v10507
    %v10509 = vsel %vm36, %v10384, 0.0
    %v10510 = vadd.f32 %v10508, %v10509
    %v10511 = vsel %vm36, %v10385, 0.0
    %v10512 = vadd.f32 %v10510, %v10511
    %v10513 = vsel %vm36, %v10386, 0.0
    %v10514 = vadd.f32 %v10512, %v10513
    %v10515 = vsel %vm36, %v10387, 0.0
    %v10516 = vadd.f32 %v10514, %v10515
    %v10517 = vrot.slane %v10516, 4
    %v10518 = vadd.f32 %v10516, %v10517
    %v10519 = vrot.slane %v10518, 2
    %v10520 = vadd.f32 %v10518, %v10519
    %v10521 = vrot.slane %v10520, 1
    %v10522 = vadd.f32 %v10520, %v10521
    %v10523 = vmul.f32 %v10324, %v10324
    %v10524 = vmul.f32 %v10325, %v10325
    %v10525 = vmul.f32 %v10326, %v10326
    %v10526 = vmul.f32 %v10327, %v10327
    %v10527 = vmul.f32 %v10328, %v10328
    %v10528 = vmul.f32 %v10329, %v10329
    %v10529 = vmul.f32 %v10330, %v10330
    %v10530 = vmul.f32 %v10331, %v10331
    %v10531 = vmul.f32 %v10332, %v10332
    %v10532 = vmul.f32 %v10333, %v10333
    %v10533 = vmul.f32 %v10334, %v10334
    %v10534 = vmul.f32 %v10335, %v10335
    %v10535 = vmul.f32 %v10336, %v10336
    %v10536 = vmul.f32 %v10337, %v10337
    %v10537 = vmul.f32 %v10338, %v10338
    %v10538 = vmul.f32 %v10339, %v10339
    %v10539 = vmul.f32 %v10340, %v10340
    %v10540 = vmul.f32 %v10341, %v10341
    %v10541 = vmul.f32 %v10342, %v10342
    %v10542 = vmul.f32 %v10343, %v10343
    %v10543 = vmul.f32 %v10344, %v10344
    %v10544 = vmul.f32 %v10345, %v10345
    %v10545 = vmul.f32 %v10346, %v10346
    %v10546 = vmul.f32 %v10347, %v10347
    %v10547 = vmul.f32 %v10348, %v10348
    %v10548 = vmul.f32 %v10349, %v10349
    %v10549 = vmul.f32 %v10350, %v10350
    %v10550 = vmul.f32 %v10351, %v10351
    %v10551 = vmul.f32 %v10352, %v10352
    %v10552 = vmul.f32 %v10353, %v10353
    %v10553 = vmul.f32 %v10354, %v10354
    %v10554 = vmul.f32 %v10355, %v10355
    %v10555 = vmul.f32 %v10356, %v10356
    %v10556 = vmul.f32 %v10357, %v10357
    %v10557 = vmul.f32 %v10358, %v10358
    %v10558 = vmul.f32 %v10359, %v10359
    %v10559 = vmul.f32 %v10360, %v10360
    %v10560 = vmul.f32 %v10361, %v10361
    %v10561 = vmul.f32 %v10362, %v10362
    %v10562 = vmul.f32 %v10363, %v10363
    %v10563 = vmul.f32 %v10364, %v10364
    %v10564 = vmul.f32 %v10365, %v10365
    %v10565 = vmul.f32 %v10366, %v10366
    %v10566 = vmul.f32 %v10367, %v10367
    %v10567 = vmul.f32 %v10368, %v10368
    %v10568 = vmul.f32 %v10369, %v10369
    %v10569 = vmul.f32 %v10370, %v10370
    %v10570 = vmul.f32 %v10371, %v10371
    %v10571 = vmul.f32 %v10372, %v10372
    %v10572 = vmul.f32 %v10373, %v10373
    %v10573 = vmul.f32 %v10374, %v10374
    %v10574 = vmul.f32 %v10375, %v10375
    %v10575 = vmul.f32 %v10376, %v10376
    %v10576 = vmul.f32 %v10377, %v10377
    %v10577 = vmul.f32 %v10378, %v10378
    %v10578 = vmul.f32 %v10379, %v10379
    %v10579 = vmul.f32 %v10380, %v10380
    %v10580 = vmul.f32 %v10381, %v10381
    %v10581 = vmul.f32 %v10382, %v10382
    %v10582 = vmul.f32 %v10383, %v10383
    %v10583 = vmul.f32 %v10384, %v10384
    %v10584 = vmul.f32 %v10385, %v10385
    %v10585 = vmul.f32 %v10386, %v10386
    %v10586 = vmul.f32 %v10387, %v10387
    %v10587 = vsel %vm36, %v10523, 0.0
    %v10588 = vsel %vm36, %v10524, 0.0
    %v10589 = vadd.f32 %v10587, %v10588
    %v10590 = vsel %vm36, %v10525, 0.0
    %v10591 = vadd.f32 %v10589, %v10590
    %v10592 = vsel %vm36, %v10526, 0.0
    %v10593 = vadd.f32 %v10591, %v10592
    %v10594 = vsel %vm36, %v10527, 0.0
    %v10595 = vadd.f32 %v10593, %v10594
    %v10596 = vsel %vm36, %v10528, 0.0
    %v10597 = vadd.f32 %v10595, %v10596
    %v10598 = vsel %vm36, %v10529, 0.0
    %v10599 = vadd.f32 %v10597, %v10598
    %v10600 = vsel %vm36, %v10530, 0.0
    %v10601 = vadd.f32 %v10599, %v10600
    %v10602 = vsel %vm36, %v10531, 0.0
    %v10603 = vadd.f32 %v10601, %v10602
    %v10604 = vsel %vm36, %v10532, 0.0
    %v10605 = vadd.f32 %v10603, %v10604
    %v10606 = vsel %vm36, %v10533, 0.0
    %v10607 = vadd.f32 %v10605, %v10606
    %v10608 = vsel %vm36, %v10534, 0.0
    %v10609 = vadd.f32 %v10607, %v10608
    %v10610 = vsel %vm36, %v10535, 0.0
    %v10611 = vadd.f32 %v10609, %v10610
    %v10612 = vsel %vm36, %v10536, 0.0
    %v10613 = vadd.f32 %v10611, %v10612
    %v10614 = vsel %vm36, %v10537, 0.0
    %v10615 = vadd.f32 %v10613, %v10614
    %v10616 = vsel %vm36, %v10538, 0.0
    %v10617 = vadd.f32 %v10615, %v10616
    %v10618 = vsel %vm36, %v10539, 0.0
    %v10619 = vadd.f32 %v10617, %v10618
    %v10620 = vsel %vm36, %v10540, 0.0
    %v10621 = vadd.f32 %v10619, %v10620
    %v10622 = vsel %vm36, %v10541, 0.0
    %v10623 = vadd.f32 %v10621, %v10622
    %v10624 = vsel %vm36, %v10542, 0.0
    %v10625 = vadd.f32 %v10623, %v10624
    %v10626 = vsel %vm36, %v10543, 0.0
    %v10627 = vadd.f32 %v10625, %v10626
    %v10628 = vsel %vm36, %v10544, 0.0
    %v10629 = vadd.f32 %v10627, %v10628
    %v10630 = vsel %vm36, %v10545, 0.0
    %v10631 = vadd.f32 %v10629, %v10630
    %v10632 = vsel %vm36, %v10546, 0.0
    %v10633 = vadd.f32 %v10631, %v10632
    %v10634 = vsel %vm36, %v10547, 0.0
    %v10635 = vadd.f32 %v10633, %v10634
    %v10636 = vsel %vm36, %v10548, 0.0
    %v10637 = vadd.f32 %v10635, %v10636
    %v10638 = vsel %vm36, %v10549, 0.0
    %v10639 = vadd.f32 %v10637, %v10638
    %v10640 = vsel %vm36, %v10550, 0.0
    %v10641 = vadd.f32 %v10639, %v10640
    %v10642 = vsel %vm36, %v10551, 0.0
    %v10643 = vadd.f32 %v10641, %v10642
    %v10644 = vsel %vm36, %v10552, 0.0
    %v10645 = vadd.f32 %v10643, %v10644
    %v10646 = vsel %vm36, %v10553, 0.0
    %v10647 = vadd.f32 %v10645, %v10646
    %v10648 = vsel %vm36, %v10554, 0.0
    %v10649 = vadd.f32 %v10647, %v10648
    %v10650 = vsel %vm36, %v10555, 0.0
    %v10651 = vadd.f32 %v10649, %v10650
    %v10652 = vsel %vm36, %v10556, 0.0
    %v10653 = vadd.f32 %v10651, %v10652
    %v10654 = vsel %vm36, %v10557, 0.0
    %v10655 = vadd.f32 %v10653, %v10654
    %v10656 = vsel %vm36, %v10558, 0.0
    %v10657 = vadd.f32 %v10655, %v10656
    %v10658 = vsel %vm36, %v10559, 0.0
    %v10659 = vadd.f32 %v10657, %v10658
    %v10660 = vsel %vm36, %v10560, 0.0
    %v10661 = vadd.f32 %v10659, %v10660
    %v10662 = vsel %vm36, %v10561, 0.0
    %v10663 = vadd.f32 %v10661, %v10662
    %v10664 = vsel %vm36, %v10562, 0.0
    %v10665 = vadd.f32 %v10663, %v10664
    %v10666 = vsel %vm36, %v10563, 0.0
    %v10667 = vadd.f32 %v10665, %v10666
    %v10668 = vsel %vm36, %v10564, 0.0
    %v10669 = vadd.f32 %v10667, %v10668
    %v10670 = vsel %vm36, %v10565, 0.0
    %v10671 = vadd.f32 %v10669, %v10670
    %v10672 = vsel %vm36, %v10566, 0.0
    %v10673 = vadd.f32 %v10671, %v10672
    %v10674 = vsel %vm36, %v10567, 0.0
    %v10675 = vadd.f32 %v10673, %v10674
    %v10676 = vsel %vm36, %v10568, 0.0
    %v10677 = vadd.f32 %v10675, %v10676
    %v10678 = vsel %vm36, %v10569, 0.0
    %v10679 = vadd.f32 %v10677, %v10678
    %v10680 = vsel %vm36, %v10570, 0.0
    %v10681 = vadd.f32 %v10679, %v10680
    %v10682 = vsel %vm36, %v10571, 0.0
    %v10683 = vadd.f32 %v10681, %v10682
    %v10684 = vsel %vm36, %v10572, 0.0
    %v10685 = vadd.f32 %v10683, %v10684
    %v10686 = vsel %vm36, %v10573, 0.0
    %v10687 = vadd.f32 %v10685, %v10686
    %v10688 = vsel %vm36, %v10574, 0.0
    %v10689 = vadd.f32 %v10687, %v10688
    %v10690 = vsel %vm36, %v10575, 0.0
    %v10691 = vadd.f32 %v10689, %v10690
    %v10692 = vsel %vm36, %v10576, 0.0
    %v10693 = vadd.f32 %v10691, %v10692
    %v10694 = vsel %vm36, %v10577, 0.0
    %v10695 = vadd.f32 %v10693, %v10694
    %v10696 = vsel %vm36, %v10578, 0.0
    %v10697 = vadd.f32 %v10695, %v10696
    %v10698 = vsel %vm36, %v10579, 0.0
    %v10699 = vadd.f32 %v10697, %v10698
    %v10700 = vsel %vm36, %v10580, 0.0
    %v10701 = vadd.f32 %v10699, %v10700
    %v10702 = vsel %vm36, %v10581, 0.0
    %v10703 = vadd.f32 %v10701, %v10702
    %v10704 = vsel %vm36, %v10582, 0.0
    %v10705 = vadd.f32 %v10703, %v10704
    %v10706 = vsel %vm36, %v10583, 0.0
    %v10707 = vadd.f32 %v10705, %v10706
    %v10708 = vsel %vm36, %v10584, 0.0
    %v10709 = vadd.f32 %v10707, %v10708
    %v10710 = vsel %vm36, %v10585, 0.0
    %v10711 = vadd.f32 %v10709, %v10710
    %v10712 = vsel %vm36, %v10586, 0.0
    %v10713 = vadd.f32 %v10711, %v10712
    %v10714 = vrot.slane %v10713, 4
    %v10715 = vadd.f32 %v10713, %v10714
    %v10716 = vrot.slane %v10715, 2
    %v10717 = vadd.f32 %v10715, %v10716
    %v10718 = vrot.slane %v10717, 1
    %v10719 = vadd.f32 %v10717, %v10718
    %v10720 = vmul.f32 %v10522, 0.001953125
    %v10721 = vmul.f32 %v10719, 0.001953125
    %v10722 = vmul.f32 %v10720, %v10720
    %v10723 = vsub.f32 %v10721, %v10722
    %v10724 = vmax.f32 %v10723, 0.0
    %v10725 = vsub.f32 %v10324, %v10720
    %v10726 = vsub.f32 %v10325, %v10720
    %v10727 = vsub.f32 %v10326, %v10720
    %v10728 = vsub.f32 %v10327, %v10720
    %v10729 = vsub.f32 %v10328, %v10720
    %v10730 = vsub.f32 %v10329, %v10720
    %v10731 = vsub.f32 %v10330, %v10720
    %v10732 = vsub.f32 %v10331, %v10720
    %v10733 = vsub.f32 %v10332, %v10720
    %v10734 = vsub.f32 %v10333, %v10720
    %v10735 = vsub.f32 %v10334, %v10720
    %v10736 = vsub.f32 %v10335, %v10720
    %v10737 = vsub.f32 %v10336, %v10720
    %v10738 = vsub.f32 %v10337, %v10720
    %v10739 = vsub.f32 %v10338, %v10720
    %v10740 = vsub.f32 %v10339, %v10720
    %v10741 = vsub.f32 %v10340, %v10720
    %v10742 = vsub.f32 %v10341, %v10720
    %v10743 = vsub.f32 %v10342, %v10720
    %v10744 = vsub.f32 %v10343, %v10720
    %v10745 = vsub.f32 %v10344, %v10720
    %v10746 = vsub.f32 %v10345, %v10720
    %v10747 = vsub.f32 %v10346, %v10720
    %v10748 = vsub.f32 %v10347, %v10720
    %v10749 = vsub.f32 %v10348, %v10720
    %v10750 = vsub.f32 %v10349, %v10720
    %v10751 = vsub.f32 %v10350, %v10720
    %v10752 = vsub.f32 %v10351, %v10720
    %v10753 = vsub.f32 %v10352, %v10720
    %v10754 = vsub.f32 %v10353, %v10720
    %v10755 = vsub.f32 %v10354, %v10720
    %v10756 = vsub.f32 %v10355, %v10720
    %v10757 = vsub.f32 %v10356, %v10720
    %v10758 = vsub.f32 %v10357, %v10720
    %v10759 = vsub.f32 %v10358, %v10720
    %v10760 = vsub.f32 %v10359, %v10720
    %v10761 = vsub.f32 %v10360, %v10720
    %v10762 = vsub.f32 %v10361, %v10720
    %v10763 = vsub.f32 %v10362, %v10720
    %v10764 = vsub.f32 %v10363, %v10720
    %v10765 = vsub.f32 %v10364, %v10720
    %v10766 = vsub.f32 %v10365, %v10720
    %v10767 = vsub.f32 %v10366, %v10720
    %v10768 = vsub.f32 %v10367, %v10720
    %v10769 = vsub.f32 %v10368, %v10720
    %v10770 = vsub.f32 %v10369, %v10720
    %v10771 = vsub.f32 %v10370, %v10720
    %v10772 = vsub.f32 %v10371, %v10720
    %v10773 = vsub.f32 %v10372, %v10720
    %v10774 = vsub.f32 %v10373, %v10720
    %v10775 = vsub.f32 %v10374, %v10720
    %v10776 = vsub.f32 %v10375, %v10720
    %v10777 = vsub.f32 %v10376, %v10720
    %v10778 = vsub.f32 %v10377, %v10720
    %v10779 = vsub.f32 %v10378, %v10720
    %v10780 = vsub.f32 %v10379, %v10720
    %v10781 = vsub.f32 %v10380, %v10720
    %v10782 = vsub.f32 %v10381, %v10720
    %v10783 = vsub.f32 %v10382, %v10720
    %v10784 = vsub.f32 %v10383, %v10720
    %v10785 = vsub.f32 %v10384, %v10720
    %v10786 = vsub.f32 %v10385, %v10720
    %v10787 = vsub.f32 %v10386, %v10720
    %v10788 = vsub.f32 %v10387, %v10720
    %v10789 = vadd.f32 %v10724, 1e-05
    %v10790 = vrsqrt.pop %v10789
    %v10791 = vmul.f32 %v10790, %v10789
    %v10792 = vmul.f32 %v10791, %v10790
    %v10793 = vmul.f32 0.5, %v10792
    %v10794 = vsub.f32 1.5, %v10793
    %v10795 = vmul.f32 %v10790, %v10794
    %vm10796 = vweird.f32 %v10789
    %vm10797 = vweird.f32 %v10790
    %vm10798 = vmor %vm10796, %vm10797
    %v10799 = vsel %vm10798, %v10790, %v10795
    %v10800 = vmul.f32 %v10725, %v10799
    %v10801 = vmul.f32 %v10726, %v10799
    %v10802 = vmul.f32 %v10727, %v10799
    %v10803 = vmul.f32 %v10728, %v10799
    %v10804 = vmul.f32 %v10729, %v10799
    %v10805 = vmul.f32 %v10730, %v10799
    %v10806 = vmul.f32 %v10731, %v10799
    %v10807 = vmul.f32 %v10732, %v10799
    %v10808 = vmul.f32 %v10733, %v10799
    %v10809 = vmul.f32 %v10734, %v10799
    %v10810 = vmul.f32 %v10735, %v10799
    %v10811 = vmul.f32 %v10736, %v10799
    %v10812 = vmul.f32 %v10737, %v10799
    %v10813 = vmul.f32 %v10738, %v10799
    %v10814 = vmul.f32 %v10739, %v10799
    %v10815 = vmul.f32 %v10740, %v10799
    %v10816 = vmul.f32 %v10741, %v10799
    %v10817 = vmul.f32 %v10742, %v10799
    %v10818 = vmul.f32 %v10743, %v10799
    %v10819 = vmul.f32 %v10744, %v10799
    %v10820 = vmul.f32 %v10745, %v10799
    %v10821 = vmul.f32 %v10746, %v10799
    %v10822 = vmul.f32 %v10747, %v10799
    %v10823 = vmul.f32 %v10748, %v10799
    %v10824 = vmul.f32 %v10749, %v10799
    %v10825 = vmul.f32 %v10750, %v10799
    %v10826 = vmul.f32 %v10751, %v10799
    %v10827 = vmul.f32 %v10752, %v10799
    %v10828 = vmul.f32 %v10753, %v10799
    %v10829 = vmul.f32 %v10754, %v10799
    %v10830 = vmul.f32 %v10755, %v10799
    %v10831 = vmul.f32 %v10756, %v10799
    %v10832 = vmul.f32 %v10757, %v10799
    %v10833 = vmul.f32 %v10758, %v10799
    %v10834 = vmul.f32 %v10759, %v10799
    %v10835 = vmul.f32 %v10760, %v10799
    %v10836 = vmul.f32 %v10761, %v10799
    %v10837 = vmul.f32 %v10762, %v10799
    %v10838 = vmul.f32 %v10763, %v10799
    %v10839 = vmul.f32 %v10764, %v10799
    %v10840 = vmul.f32 %v10765, %v10799
    %v10841 = vmul.f32 %v10766, %v10799
    %v10842 = vmul.f32 %v10767, %v10799
    %v10843 = vmul.f32 %v10768, %v10799
    %v10844 = vmul.f32 %v10769, %v10799
    %v10845 = vmul.f32 %v10770, %v10799
    %v10846 = vmul.f32 %v10771, %v10799
    %v10847 = vmul.f32 %v10772, %v10799
    %v10848 = vmul.f32 %v10773, %v10799
    %v10849 = vmul.f32 %v10774, %v10799
    %v10850 = vmul.f32 %v10775, %v10799
    %v10851 = vmul.f32 %v10776, %v10799
    %v10852 = vmul.f32 %v10777, %v10799
    %v10853 = vmul.f32 %v10778, %v10799
    %v10854 = vmul.f32 %v10779, %v10799
    %v10855 = vmul.f32 %v10780, %v10799
    %v10856 = vmul.f32 %v10781, %v10799
    %v10857 = vmul.f32 %v10782, %v10799
    %v10858 = vmul.f32 %v10783, %v10799
    %v10859 = vmul.f32 %v10784, %v10799
    %v10860 = vmul.f32 %v10785, %v10799
    %v10861 = vmul.f32 %v10786, %v10799
    %v10862 = vmul.f32 %v10787, %v10799
    %v10863 = vmul.f32 %v10788, %v10799
    %v10865 = vperm.slane %v10388, 0
    %v10867 = vmul.f32 %v10800, %v10865
    %v10868 = vmul.f32 %v10801, %v10865
    %v10869 = vmul.f32 %v10802, %v10865
    %v10870 = vmul.f32 %v10803, %v10865
    %v10871 = vmul.f32 %v10804, %v10865
    %v10872 = vmul.f32 %v10805, %v10865
    %v10873 = vmul.f32 %v10806, %v10865
    %v10874 = vmul.f32 %v10807, %v10865
    %v10875 = vmul.f32 %v10808, %v10865
    %v10876 = vmul.f32 %v10809, %v10865
    %v10877 = vmul.f32 %v10810, %v10865
    %v10878 = vmul.f32 %v10811, %v10865
    %v10879 = vmul.f32 %v10812, %v10865
    %v10880 = vmul.f32 %v10813, %v10865
    %v10881 = vmul.f32 %v10814, %v10865
    %v10882 = vmul.f32 %v10815, %v10865
    %v10883 = vmul.f32 %v10816, %v10865
    %v10884 = vmul.f32 %v10817, %v10865
    %v10885 = vmul.f32 %v10818, %v10865
    %v10886 = vmul.f32 %v10819, %v10865
    %v10887 = vmul.f32 %v10820, %v10865
    %v10888 = vmul.f32 %v10821, %v10865
    %v10889 = vmul.f32 %v10822, %v10865
    %v10890 = vmul.f32 %v10823, %v10865
    %v10891 = vmul.f32 %v10824, %v10865
    %v10892 = vmul.f32 %v10825, %v10865
    %v10893 = vmul.f32 %v10826, %v10865
    %v10894 = vmul.f32 %v10827, %v10865
    %v10895 = vmul.f32 %v10828, %v10865
    %v10896 = vmul.f32 %v10829, %v10865
    %v10897 = vmul.f32 %v10830, %v10865
    %v10898 = vmul.f32 %v10831, %v10865
    %v10899 = vmul.f32 %v10832, %v10865
    %v10900 = vmul.f32 %v10833, %v10865
    %v10901 = vmul.f32 %v10834, %v10865
    %v10902 = vmul.f32 %v10835, %v10865
    %v10903 = vmul.f32 %v10836, %v10865
    %v10904 = vmul.f32 %v10837, %v10865
    %v10905 = vmul.f32 %v10838, %v10865
    %v10906 = vmul.f32 %v10839, %v10865
    %v10907 = vmul.f32 %v10840, %v10865
    %v10908 = vmul.f32 %v10841, %v10865
    %v10909 = vmul.f32 %v10842, %v10865
    %v10910 = vmul.f32 %v10843, %v10865
    %v10911 = vmul.f32 %v10844, %v10865
    %v10912 = vmul.f32 %v10845, %v10865
    %v10913 = vmul.f32 %v10846, %v10865
    %v10914 = vmul.f32 %v10847, %v10865
    %v10915 = vmul.f32 %v10848, %v10865
    %v10916 = vmul.f32 %v10849, %v10865
    %v10917 = vmul.f32 %v10850, %v10865
    %v10918 = vmul.f32 %v10851, %v10865
    %v10919 = vmul.f32 %v10852, %v10865
    %v10920 = vmul.f32 %v10853, %v10865
    %v10921 = vmul.f32 %v10854, %v10865
    %v10922 = vmul.f32 %v10855, %v10865
    %v10923 = vmul.f32 %v10856, %v10865
    %v10924 = vmul.f32 %v10857, %v10865
    %v10925 = vmul.f32 %v10858, %v10865
    %v10926 = vmul.f32 %v10859, %v10865
    %v10927 = vmul.f32 %v10860, %v10865
    %v10928 = vmul.f32 %v10861, %v10865
    %v10929 = vmul.f32 %v10862, %v10865
    %v10930 = vmul.f32 %v10863, %v10865
    %v10932 = vperm.slane %v10389, 0
    %v10934 = vadd.f32 %v10867, %v10932
    %v10935 = vadd.f32 %v10868, %v10932
    %v10936 = vadd.f32 %v10869, %v10932
    %v10937 = vadd.f32 %v10870, %v10932
    %v10938 = vadd.f32 %v10871, %v10932
    %v10939 = vadd.f32 %v10872, %v10932
    %v10940 = vadd.f32 %v10873, %v10932
    %v10941 = vadd.f32 %v10874, %v10932
    %v10942 = vadd.f32 %v10875, %v10932
    %v10943 = vadd.f32 %v10876, %v10932
    %v10944 = vadd.f32 %v10877, %v10932
    %v10945 = vadd.f32 %v10878, %v10932
    %v10946 = vadd.f32 %v10879, %v10932
    %v10947 = vadd.f32 %v10880, %v10932
    %v10948 = vadd.f32 %v10881, %v10932
    %v10949 = vadd.f32 %v10882, %v10932
    %v10950 = vadd.f32 %v10883, %v10932
    %v10951 = vadd.f32 %v10884, %v10932
    %v10952 = vadd.f32 %v10885, %v10932
    %v10953 = vadd.f32 %v10886, %v10932
    %v10954 = vadd.f32 %v10887, %v10932
    %v10955 = vadd.f32 %v10888, %v10932
    %v10956 = vadd.f32 %v10889, %v10932
    %v10957 = vadd.f32 %v10890, %v10932
    %v10958 = vadd.f32 %v10891, %v10932
    %v10959 = vadd.f32 %v10892, %v10932
    %v10960 = vadd.f32 %v10893, %v10932
    %v10961 = vadd.f32 %v10894, %v10932
    %v10962 = vadd.f32 %v10895, %v10932
    %v10963 = vadd.f32 %v10896, %v10932
    %v10964 = vadd.f32 %v10897, %v10932
    %v10965 = vadd.f32 %v10898, %v10932
    %v10966 = vadd.f32 %v10899, %v10932
    %v10967 = vadd.f32 %v10900, %v10932
    %v10968 = vadd.f32 %v10901, %v10932
    %v10969 = vadd.f32 %v10902, %v10932
    %v10970 = vadd.f32 %v10903, %v10932
    %v10971 = vadd.f32 %v10904, %v10932
    %v10972 = vadd.f32 %v10905, %v10932
    %v10973 = vadd.f32 %v10906, %v10932
    %v10974 = vadd.f32 %v10907, %v10932
    %v10975 = vadd.f32 %v10908, %v10932
    %v10976 = vadd.f32 %v10909, %v10932
    %v10977 = vadd.f32 %v10910, %v10932
    %v10978 = vadd.f32 %v10911, %v10932
    %v10979 = vadd.f32 %v10912, %v10932
    %v10980 = vadd.f32 %v10913, %v10932
    %v10981 = vadd.f32 %v10914, %v10932
    %v10982 = vadd.f32 %v10915, %v10932
    %v10983 = vadd.f32 %v10916, %v10932
    %v10984 = vadd.f32 %v10917, %v10932
    %v10985 = vadd.f32 %v10918, %v10932
    %v10986 = vadd.f32 %v10919, %v10932
    %v10987 = vadd.f32 %v10920, %v10932
    %v10988 = vadd.f32 %v10921, %v10932
    %v10989 = vadd.f32 %v10922, %v10932
    %v10990 = vadd.f32 %v10923, %v10932
    %v10991 = vadd.f32 %v10924, %v10932
    %v10992 = vadd.f32 %v10925, %v10932
    %v10993 = vadd.f32 %v10926, %v10932
    %v10994 = vadd.f32 %v10927, %v10932
    %v10995 = vadd.f32 %v10928, %v10932
    %v10996 = vadd.f32 %v10929, %v10932
    %v10997 = vadd.f32 %v10930, %v10932
    %10998 = vst.msk [vmem:[#allocation2] sm:$0xff] %vm36, -1e+30
    %10999 = vst.msk [vmem:[#allocation2 + $0x8] sm:$0xff] %vm36, -1e+30
    %11000 = vst.msk [vmem:[#allocation2 + $0x10] sm:$0x3] %vm39, -1e+30
    %11001 = vst.msk [vmem:[#allocation2 + $0x18] sm:$0xff] %vm36, -1e+30
    %11002 = vst.msk [vmem:[#allocation2 + $0x20] sm:$0xff] %vm36, -1e+30
    %11003 = vst.msk [vmem:[#allocation2 + $0x28] sm:$0x3] %vm39, -1e+30
    %11004 = vst.msk [vmem:[#allocation2 + $0x30] sm:$0xff] %vm36, -1e+30
    %11005 = vst.msk [vmem:[#allocation2 + $0x38] sm:$0xff] %vm36, -1e+30
    %11006 = vst.msk [vmem:[#allocation2 + $0x40] sm:$0x3] %vm39, -1e+30
    %11007 = vst.msk [vmem:[#allocation2 + $0x48] sm:$0xff] %vm36, -1e+30
    %11008 = vst.msk [vmem:[#allocation2 + $0x50] sm:$0xff] %vm36, -1e+30
    %11009 = vst.msk [vmem:[#allocation2 + $0x58] sm:$0x3] %vm39, -1e+30
    %11010 = vst.msk [vmem:[#allocation2 + $0x60] sm:$0xff] %vm36, -1e+30
    %11011 = vst.msk [vmem:[#allocation2 + $0x68] sm:$0xff] %vm36, -1e+30
    %11012 = vst.msk [vmem:[#allocation2 + $0x70] sm:$0x3] %vm39, -1e+30
    %11013 = vst.msk [vmem:[#allocation2 + $0x78] sm:$0xff] %vm36, -1e+30
    %11014 = vst.msk [vmem:[#allocation2 + $0x80] sm:$0xff] %vm36, -1e+30
    %11015 = vst.msk [vmem:[#allocation2 + $0x88] sm:$0x3] %vm39, -1e+30
    %11016 = vst.msk [vmem:[#allocation2 + $0x90] sm:$0xff] %vm36, -1e+30
    %11017 = vst.msk [vmem:[#allocation2 + $0x98] sm:$0xff] %vm36, -1e+30
    %11018 = vst.msk [vmem:[#allocation2 + $0xa0] sm:$0x3] %vm39, -1e+30
    %11019 = vst.msk [vmem:[#allocation2 + $0xa8] sm:$0xff] %vm36, -1e+30
    %11020 = vst.msk [vmem:[#allocation2 + $0xb0] sm:$0xff] %vm36, -1e+30
    %11021 = vst.msk [vmem:[#allocation2 + $0xb8] sm:$0x3] %vm39, -1e+30
    %11022 = vst.msk [vmem:[#allocation2 + $0xc0] sm:$0xff] %vm36, -1e+30
    %11023 = vst.msk [vmem:[#allocation2 + $0xc8] sm:$0xff] %vm36, -1e+30
    %11024 = vst.msk [vmem:[#allocation2 + $0xd0] sm:$0x3] %vm39, -1e+30
    %11025 = vst.msk [vmem:[#allocation2 + $0xd8] sm:$0xff] %vm36, -1e+30
    %11026 = vst.msk [vmem:[#allocation2 + $0xe0] sm:$0xff] %vm36, -1e+30
    %11027 = vst.msk [vmem:[#allocation2 + $0xe8] sm:$0x3] %vm39, -1e+30
    %11028 = vst.msk [vmem:[#allocation2 + $0xf0] sm:$0xff] %vm36, -1e+30
    %11029 = vst.msk [vmem:[#allocation2 + $0xf8] sm:$0xff] %vm36, -1e+30
    %11030 = vst.msk [vmem:[#allocation2 + $0x100] sm:$0x3] %vm39, -1e+30
    %11031 = vst.msk [vmem:[#allocation2 + $0x108] sm:$0xff] %vm36, -1e+30
    %11032 = vst.msk [vmem:[#allocation2 + $0x110] sm:$0xff] %vm36, -1e+30
    %11033 = vst.msk [vmem:[#allocation2 + $0x118] sm:$0x3] %vm39, -1e+30
    %11034 = vst.msk [vmem:[#allocation2 + $0x120] sm:$0xff] %vm36, -1e+30
    %11035 = vst.msk [vmem:[#allocation2 + $0x128] sm:$0xff] %vm36, -1e+30
    %11036 = vst.msk [vmem:[#allocation2 + $0x130] sm:$0x3] %vm39, -1e+30
    %11037 = vst.msk [vmem:[#allocation2 + $0x138] sm:$0xff] %vm36, -1e+30
    %11038 = vst.msk [vmem:[#allocation2 + $0x140] sm:$0xff] %vm36, -1e+30
    %11039 = vst.msk [vmem:[#allocation2 + $0x148] sm:$0x3] %vm39, -1e+30
    %11040 = vst.msk [vmem:[#allocation2 + $0x150] sm:$0xff] %vm36, -1e+30
    %11041 = vst.msk [vmem:[#allocation2 + $0x158] sm:$0xff] %vm36, -1e+30
    %11042 = vst.msk [vmem:[#allocation2 + $0x160] sm:$0x3] %vm39, -1e+30
    %11043 = vst.msk [vmem:[#allocation2 + $0x168] sm:$0xff] %vm36, -1e+30
    %11044 = vst.msk [vmem:[#allocation2 + $0x170] sm:$0xff] %vm36, -1e+30
    %11045 = vst.msk [vmem:[#allocation2 + $0x178] sm:$0x3] %vm39, -1e+30
    %11046 = vst.msk [vmem:[#allocation2 + $0x180] sm:$0xff] %vm36, -1e+30
    %11047 = vst.msk [vmem:[#allocation2 + $0x188] sm:$0xff] %vm36, -1e+30
    %11048 = vst.msk [vmem:[#allocation2 + $0x190] sm:$0x3] %vm39, -1e+30
    %11049 = vst.msk [vmem:[#allocation2 + $0x198] sm:$0xff] %vm36, -1e+30
    %11050 = vst.msk [vmem:[#allocation2 + $0x1a0] sm:$0xff] %vm36, -1e+30
    %11051 = vst.msk [vmem:[#allocation2 + $0x1a8] sm:$0x3] %vm39, -1e+30
    %11052 = vst.msk [vmem:[#allocation2 + $0x1b0] sm:$0xff] %vm36, -1e+30
    %11053 = vst.msk [vmem:[#allocation2 + $0x1b8] sm:$0xff] %vm36, -1e+30
    %11054 = vst.msk [vmem:[#allocation2 + $0x1c0] sm:$0x3] %vm39, -1e+30
    %11055 = vst.msk [vmem:[#allocation2 + $0x1c8] sm:$0xff] %vm36, -1e+30
    %11056 = vst.msk [vmem:[#allocation2 + $0x1d0] sm:$0xff] %vm36, -1e+30
    %11057 = vst.msk [vmem:[#allocation2 + $0x1d8] sm:$0x3] %vm39, -1e+30
    %11058 = vst.msk [vmem:[#allocation2 + $0x1e0] sm:$0xff] %vm36, -1e+30
    %11059 = vst.msk [vmem:[#allocation2 + $0x1e8] sm:$0xff] %vm36, -1e+30
    %11060 = vst.msk [vmem:[#allocation2 + $0x1f0] sm:$0x3] %vm39, -1e+30
    %11061 = vst.msk [vmem:[#allocation2 + $0x1f8] sm:$0xff] %vm36, -1e+30
    %11062 = vst.msk [vmem:[#allocation2 + $0x200] sm:$0xff] %vm36, -1e+30
    %11063 = vst.msk [vmem:[#allocation2 + $0x208] sm:$0x3] %vm39, -1e+30
    %11064 = vst.msk [vmem:[#allocation2 + $0x210] sm:$0xff] %vm36, -1e+30
    %11065 = vst.msk [vmem:[#allocation2 + $0x218] sm:$0xff] %vm36, -1e+30
    %11066 = vst.msk [vmem:[#allocation2 + $0x220] sm:$0x3] %vm39, -1e+30
    %11067 = vst.msk [vmem:[#allocation2 + $0x228] sm:$0xff] %vm36, -1e+30
    %11068 = vst.msk [vmem:[#allocation2 + $0x230] sm:$0xff] %vm36, -1e+30
    %11069 = vst.msk [vmem:[#allocation2 + $0x238] sm:$0x3] %vm39, -1e+30
    %11070 = vst.msk [vmem:[#allocation2 + $0x240] sm:$0xff] %vm36, -1e+30
    %11071 = vst.msk [vmem:[#allocation2 + $0x248] sm:$0xff] %vm36, -1e+30
    %11072 = vst.msk [vmem:[#allocation2 + $0x250] sm:$0x3] %vm39, -1e+30
    %11073 = vst.msk [vmem:[#allocation2 + $0x258] sm:$0xff] %vm36, -1e+30
    %11074 = vst.msk [vmem:[#allocation2 + $0x260] sm:$0xff] %vm36, -1e+30
    %11075 = vst.msk [vmem:[#allocation2 + $0x268] sm:$0x3] %vm39, -1e+30
    %11076 = vst.msk [vmem:[#allocation2 + $0x270] sm:$0xff] %vm36, -1e+30
    %11077 = vst.msk [vmem:[#allocation2 + $0x278] sm:$0xff] %vm36, -1e+30
    %11078 = vst.msk [vmem:[#allocation2 + $0x280] sm:$0x3] %vm39, -1e+30
    %11079 = vst.msk [vmem:[#allocation2 + $0x288] sm:$0xff] %vm36, -1e+30
    %11080 = vst.msk [vmem:[#allocation2 + $0x290] sm:$0xff] %vm36, -1e+30
    %11081 = vst.msk [vmem:[#allocation2 + $0x298] sm:$0x3] %vm39, -1e+30
    %11082 = vst.msk [vmem:[#allocation2 + $0x2a0] sm:$0xff] %vm36, -1e+30
    %11083 = vst.msk [vmem:[#allocation2 + $0x2a8] sm:$0xff] %vm36, -1e+30
    %11084 = vst.msk [vmem:[#allocation2 + $0x2b0] sm:$0x3] %vm39, -1e+30
    %11085 = vst.msk [vmem:[#allocation2 + $0x2b8] sm:$0xff] %vm36, -1e+30
    %11086 = vst.msk [vmem:[#allocation2 + $0x2c0] sm:$0xff] %vm36, -1e+30
    %11087 = vst.msk [vmem:[#allocation2 + $0x2c8] sm:$0x3] %vm39, -1e+30
    %11088 = vst.msk [vmem:[#allocation2 + $0x2d0] sm:$0xff] %vm36, -1e+30
    %11089 = vst.msk [vmem:[#allocation2 + $0x2d8] sm:$0xff] %vm36, -1e+30
    %11090 = vst.msk [vmem:[#allocation2 + $0x2e0] sm:$0x3] %vm39, -1e+30
    %11091 = vst.msk [vmem:[#allocation2 + $0x2e8] sm:$0xff] %vm36, -1e+30
    %11092 = vst.msk [vmem:[#allocation2 + $0x2f0] sm:$0xff] %vm36, -1e+30
    %11093 = vst.msk [vmem:[#allocation2 + $0x2f8] sm:$0x3] %vm39, -1e+30
    %11094 = vst.msk [vmem:[#allocation2 + $0x300] sm:$0xff] %vm36, -1e+30
    %11095 = vst.msk [vmem:[#allocation2 + $0x308] sm:$0xff] %vm36, -1e+30
    %11096 = vst.msk [vmem:[#allocation2 + $0x310] sm:$0x3] %vm39, -1e+30
    %11097 = vst.msk [vmem:[#allocation2 + $0x318] sm:$0xff] %vm36, -1e+30
    %11098 = vst.msk [vmem:[#allocation2 + $0x320] sm:$0xff] %vm36, -1e+30
    %11099 = vst.msk [vmem:[#allocation2 + $0x328] sm:$0x3] %vm39, -1e+30
    %11100 = vst.msk [vmem:[#allocation2 + $0x330] sm:$0xff] %vm36, -1e+30
    %11101 = vst.msk [vmem:[#allocation2 + $0x338] sm:$0xff] %vm36, -1e+30
    %11102 = vst.msk [vmem:[#allocation2 + $0x340] sm:$0x3] %vm39, -1e+30
    %11103 = vst.msk [vmem:[#allocation2 + $0x348] sm:$0xff] %vm36, -1e+30
    %11104 = vst.msk [vmem:[#allocation2 + $0x350] sm:$0xff] %vm36, -1e+30
    %11105 = vst.msk [vmem:[#allocation2 + $0x358] sm:$0x3] %vm39, -1e+30
    %11106 = vst.msk [vmem:[%s274 + $0x1] sm:$0xff] %vm36, %v10934
    %11107 = vst.msk [vmem:[%s274 + $0x9] sm:$0xff] %vm36, %v10935
    %11108 = vst.msk [vmem:[%s274 + $0x19] sm:$0xff] %vm36, %v10936
    %11109 = vst.msk [vmem:[%s274 + $0x21] sm:$0xff] %vm36, %v10937
    %11110 = vst.msk [vmem:[%s274 + $0x31] sm:$0xff] %vm36, %v10938
    %11111 = vst.msk [vmem:[%s274 + $0x39] sm:$0xff] %vm36, %v10939
    %11112 = vst.msk [vmem:[%s274 + $0x49] sm:$0xff] %vm36, %v10940
    %11113 = vst.msk [vmem:[%s274 + $0x51] sm:$0xff] %vm36, %v10941
    %11114 = vst.msk [vmem:[%s274 + $0x61] sm:$0xff] %vm36, %v10942
    %11115 = vst.msk [vmem:[%s274 + $0x69] sm:$0xff] %vm36, %v10943
    %11116 = vst.msk [vmem:[%s274 + $0x79] sm:$0xff] %vm36, %v10944
    %11117 = vst.msk [vmem:[%s274 + $0x81] sm:$0xff] %vm36, %v10945
    %11118 = vst.msk [vmem:[%s274 + $0x91] sm:$0xff] %vm36, %v10946
    %11119 = vst.msk [vmem:[%s274 + $0x99] sm:$0xff] %vm36, %v10947
    %11120 = vst.msk [vmem:[%s274 + $0xa9] sm:$0xff] %vm36, %v10948
    %11121 = vst.msk [vmem:[%s274 + $0xb1] sm:$0xff] %vm36, %v10949
    %11122 = vst.msk [vmem:[%s274 + $0xc1] sm:$0xff] %vm36, %v10950
    %11123 = vst.msk [vmem:[%s274 + $0xc9] sm:$0xff] %vm36, %v10951
    %11124 = vst.msk [vmem:[%s274 + $0xd9] sm:$0xff] %vm36, %v10952
    %11125 = vst.msk [vmem:[%s274 + $0xe1] sm:$0xff] %vm36, %v10953
    %11126 = vst.msk [vmem:[%s274 + $0xf1] sm:$0xff] %vm36, %v10954
    %11127 = vst.msk [vmem:[%s274 + $0xf9] sm:$0xff] %vm36, %v10955
    %11128 = vst.msk [vmem:[%s274 + $0x109] sm:$0xff] %vm36, %v10956
    %11129 = vst.msk [vmem:[%s274 + $0x111] sm:$0xff] %vm36, %v10957
    %11130 = vst.msk [vmem:[%s274 + $0x121] sm:$0xff] %vm36, %v10958
    %11131 = vst.msk [vmem:[%s274 + $0x129] sm:$0xff] %vm36, %v10959
    %11132 = vst.msk [vmem:[%s274 + $0x139] sm:$0xff] %vm36, %v10960
    %11133 = vst.msk [vmem:[%s274 + $0x141] sm:$0xff] %vm36, %v10961
    %11134 = vst.msk [vmem:[%s274 + $0x151] sm:$0xff] %vm36, %v10962
    %11135 = vst.msk [vmem:[%s274 + $0x159] sm:$0xff] %vm36, %v10963
    %11136 = vst.msk [vmem:[%s274 + $0x169] sm:$0xff] %vm36, %v10964
    %11137 = vst.msk [vmem:[%s274 + $0x171] sm:$0xff] %vm36, %v10965
    %11138 = vst.msk [vmem:[%s274 + $0x1b1] sm:$0xff] %vm36, %v10966
    %11139 = vst.msk [vmem:[%s274 + $0x1b9] sm:$0xff] %vm36, %v10967
    %11140 = vst.msk [vmem:[%s274 + $0x1c9] sm:$0xff] %vm36, %v10968
    %11141 = vst.msk [vmem:[%s274 + $0x1d1] sm:$0xff] %vm36, %v10969
    %11142 = vst.msk [vmem:[%s274 + $0x1e1] sm:$0xff] %vm36, %v10970
    %11143 = vst.msk [vmem:[%s274 + $0x1e9] sm:$0xff] %vm36, %v10971
    %11144 = vst.msk [vmem:[%s274 + $0x1f9] sm:$0xff] %vm36, %v10972
    %11145 = vst.msk [vmem:[%s274 + $0x201] sm:$0xff] %vm36, %v10973
    %11146 = vst.msk [vmem:[%s274 + $0x211] sm:$0xff] %vm36, %v10974
    %11147 = vst.msk [vmem:[%s274 + $0x219] sm:$0xff] %vm36, %v10975
    %11148 = vst.msk [vmem:[%s274 + $0x229] sm:$0xff] %vm36, %v10976
    %11149 = vst.msk [vmem:[%s274 + $0x231] sm:$0xff] %vm36, %v10977
    %11150 = vst.msk [vmem:[%s274 + $0x241] sm:$0xff] %vm36, %v10978
    %11151 = vst.msk [vmem:[%s274 + $0x249] sm:$0xff] %vm36, %v10979
    %11152 = vst.msk [vmem:[%s274 + $0x259] sm:$0xff] %vm36, %v10980
    %11153 = vst.msk [vmem:[%s274 + $0x261] sm:$0xff] %vm36, %v10981
    %11154 = vst.msk [vmem:[%s274 + $0x271] sm:$0xff] %vm36, %v10982
    %11155 = vst.msk [vmem:[%s274 + $0x279] sm:$0xff] %vm36, %v10983
    %11156 = vst.msk [vmem:[%s274 + $0x289] sm:$0xff] %vm36, %v10984
    %11157 = vst.msk [vmem:[%s274 + $0x291] sm:$0xff] %vm36, %v10985
    %11158 = vst.msk [vmem:[%s274 + $0x2a1] sm:$0xff] %vm36, %v10986
    %11159 = vst.msk [vmem:[%s274 + $0x2a9] sm:$0xff] %vm36, %v10987
    %11160 = vst.msk [vmem:[%s274 + $0x2b9] sm:$0xff] %vm36, %v10988
    %11161 = vst.msk [vmem:[%s274 + $0x2c1] sm:$0xff] %vm36, %v10989
    %11162 = vst.msk [vmem:[%s274 + $0x2d1] sm:$0xff] %vm36, %v10990
    %11163 = vst.msk [vmem:[%s274 + $0x2d9] sm:$0xff] %vm36, %v10991
    %11164 = vst.msk [vmem:[%s274 + $0x2e9] sm:$0xff] %vm36, %v10992
    %11165 = vst.msk [vmem:[%s274 + $0x2f1] sm:$0xff] %vm36, %v10993
    %11166 = vst.msk [vmem:[%s274 + $0x301] sm:$0xff] %vm36, %v10994
    %11167 = vst.msk [vmem:[%s274 + $0x309] sm:$0xff] %vm36, %v10995
    %11168 = vst.msk [vmem:[%s274 + $0x319] sm:$0xff] %vm36, %v10996
    %11169 = vst.msk [vmem:[%s274 + $0x321] sm:$0xff] %vm36, %v10997
    %v11170 = vld [vmem:[#allocation2] sm:$0xff]
    %v11171 = vld [vmem:[#allocation2 + $0x8] sm:$0xff]
    %v11172 = vld [vmem:[#allocation2 + $0x10] sm:$0x3]
    %v11173 = vld [vmem:[#allocation2 + $0x18] sm:$0xff]
    %v11174 = vld [vmem:[#allocation2 + $0x20] sm:$0xff]
    %v11175 = vld [vmem:[#allocation2 + $0x28] sm:$0x3]
    %v11176 = vld [vmem:[#allocation2 + $0x30] sm:$0xff]
    %v11177 = vld [vmem:[#allocation2 + $0x38] sm:$0xff]
    %v11178 = vld [vmem:[#allocation2 + $0x40] sm:$0x3]
    %v11179 = vld [vmem:[#allocation2 + $0x48] sm:$0xff]
    %v11180 = vld [vmem:[#allocation2 + $0x50] sm:$0xff]
    %v11181 = vld [vmem:[#allocation2 + $0x58] sm:$0x3]
    %v11182 = vld [vmem:[#allocation2 + $0x60] sm:$0xff]
    %v11183 = vld [vmem:[#allocation2 + $0x68] sm:$0xff]
    %v11184 = vld [vmem:[#allocation2 + $0x70] sm:$0x3]
    %v11185 = vld [vmem:[#allocation2 + $0x78] sm:$0xff]
    %v11186 = vld [vmem:[#allocation2 + $0x80] sm:$0xff]
    %v11187 = vld [vmem:[#allocation2 + $0x88] sm:$0x3]
    %v11188 = vld [vmem:[#allocation2 + $0x90] sm:$0xff]
    %v11189 = vld [vmem:[#allocation2 + $0x98] sm:$0xff]
    %v11190 = vld [vmem:[#allocation2 + $0xa0] sm:$0x3]
    %v11191 = vld [vmem:[#allocation2 + $0xa8] sm:$0xff]
    %v11192 = vld [vmem:[#allocation2 + $0xb0] sm:$0xff]
    %v11193 = vld [vmem:[#allocation2 + $0xb8] sm:$0x3]
    %v11194 = vld [vmem:[#allocation2 + $0xc0] sm:$0xff]
    %v11195 = vld [vmem:[#allocation2 + $0xc8] sm:$0xff]
    %v11196 = vld [vmem:[#allocation2 + $0xd0] sm:$0x3]
    %v11197 = vld [vmem:[#allocation2 + $0xd8] sm:$0xff]
    %v11198 = vld [vmem:[#allocation2 + $0xe0] sm:$0xff]
    %v11199 = vld [vmem:[#allocation2 + $0xe8] sm:$0x3]
    %v11200 = vld [vmem:[#allocation2 + $0xf0] sm:$0xff]
    %v11201 = vld [vmem:[#allocation2 + $0xf8] sm:$0xff]
    %v11202 = vld [vmem:[#allocation2 + $0x100] sm:$0x3]
    %v11203 = vld [vmem:[#allocation2 + $0x108] sm:$0xff]
    %v11204 = vld [vmem:[#allocation2 + $0x110] sm:$0xff]
    %v11205 = vld [vmem:[#allocation2 + $0x118] sm:$0x3]
    %v11206 = vld [vmem:[#allocation2 + $0x120] sm:$0xff]
    %v11207 = vld [vmem:[#allocation2 + $0x128] sm:$0xff]
    %v11208 = vld [vmem:[#allocation2 + $0x130] sm:$0x3]
    %v11209 = vld [vmem:[#allocation2 + $0x138] sm:$0xff]
    %v11210 = vld [vmem:[#allocation2 + $0x140] sm:$0xff]
    %v11211 = vld [vmem:[#allocation2 + $0x148] sm:$0x3]
    %v11212 = vld [vmem:[#allocation2 + $0x150] sm:$0xff]
    %v11213 = vld [vmem:[#allocation2 + $0x158] sm:$0xff]
    %v11214 = vld [vmem:[#allocation2 + $0x160] sm:$0x3]
    %v11215 = vld [vmem:[#allocation2 + $0x168] sm:$0xff]
    %v11216 = vld [vmem:[#allocation2 + $0x170] sm:$0xff]
    %v11217 = vld [vmem:[#allocation2 + $0x178] sm:$0x3]
    %v11218 = vld [vmem:[#allocation2 + $0x180] sm:$0xff]
    %v11219 = vld [vmem:[#allocation2 + $0x188] sm:$0xff]
    %v11220 = vld [vmem:[#allocation2 + $0x190] sm:$0x3]
    %v11221 = vld [vmem:[#allocation2 + $0x1b0] sm:$0xff]
    %v11222 = vld [vmem:[#allocation2 + $0x1b8] sm:$0xff]
    %v11223 = vld [vmem:[#allocation2 + $0x1c0] sm:$0x3]
    %v11224 = vld [vmem:[#allocation2 + $0x1c8] sm:$0xff]
    %v11225 = vld [vmem:[#allocation2 + $0x1d0] sm:$0xff]
    %v11226 = vld [vmem:[#allocation2 + $0x1d8] sm:$0x3]
    %v11227 = vld [vmem:[#allocation2 + $0x1e0] sm:$0xff]
    %v11228 = vld [vmem:[#allocation2 + $0x1e8] sm:$0xff]
    %v11229 = vld [vmem:[#allocation2 + $0x1f0] sm:$0x3]
    %v11230 = vld [vmem:[#allocation2 + $0x1f8] sm:$0xff]
    %v11231 = vld [vmem:[#allocation2 + $0x200] sm:$0xff]
    %v11232 = vld [vmem:[#allocation2 + $0x208] sm:$0x3]
    %v11233 = vld [vmem:[#allocation2 + $0x210] sm:$0xff]
    %v11234 = vld [vmem:[#allocation2 + $0x218] sm:$0xff]
    %v11235 = vld [vmem:[#allocation2 + $0x220] sm:$0x3]
    %v11236 = vld [vmem:[#allocation2 + $0x228] sm:$0xff]
    %v11237 = vld [vmem:[#allocation2 + $0x230] sm:$0xff]
    %v11238 = vld [vmem:[#allocation2 + $0x238] sm:$0x3]
    %v11239 = vld [vmem:[#allocation2 + $0x240] sm:$0xff]
    %v11240 = vld [vmem:[#allocation2 + $0x248] sm:$0xff]
    %v11241 = vld [vmem:[#allocation2 + $0x250] sm:$0x3]
    %v11242 = vld [vmem:[#allocation2 + $0x258] sm:$0xff]
    %v11243 = vld [vmem:[#allocation2 + $0x260] sm:$0xff]
    %v11244 = vld [vmem:[#allocation2 + $0x268] sm:$0x3]
    %v11245 = vld [vmem:[#allocation2 + $0x270] sm:$0xff]
    %v11246 = vld [vmem:[#allocation2 + $0x278] sm:$0xff]
    %v11247 = vld [vmem:[#allocation2 + $0x280] sm:$0x3]
    %v11248 = vld [vmem:[#allocation2 + $0x288] sm:$0xff]
    %v11249 = vld [vmem:[#allocation2 + $0x290] sm:$0xff]
    %v11250 = vld [vmem:[#allocation2 + $0x298] sm:$0x3]
    %v11251 = vld [vmem:[#allocation2 + $0x2a0] sm:$0xff]
    %v11252 = vld [vmem:[#allocation2 + $0x2a8] sm:$0xff]
    %v11253 = vld [vmem:[#allocation2 + $0x2b0] sm:$0x3]
    %v11254 = vld [vmem:[#allocation2 + $0x2b8] sm:$0xff]
    %v11255 = vld [vmem:[#allocation2 + $0x2c0] sm:$0xff]
    %v11256 = vld [vmem:[#allocation2 + $0x2c8] sm:$0x3]
    %v11257 = vld [vmem:[#allocation2 + $0x2d0] sm:$0xff]
    %v11258 = vld [vmem:[#allocation2 + $0x2d8] sm:$0xff]
    %v11259 = vld [vmem:[#allocation2 + $0x2e0] sm:$0x3]
    %v11260 = vld [vmem:[#allocation2 + $0x2e8] sm:$0xff]
    %v11261 = vld [vmem:[#allocation2 + $0x2f0] sm:$0xff]
    %v11262 = vld [vmem:[#allocation2 + $0x2f8] sm:$0x3]
    %v11263 = vld [vmem:[#allocation2 + $0x300] sm:$0xff]
    %v11264 = vld [vmem:[#allocation2 + $0x308] sm:$0xff]
    %v11265 = vld [vmem:[#allocation2 + $0x310] sm:$0x3]
    %v11266 = vld [vmem:[#allocation2 + $0x318] sm:$0xff]
    %v11267 = vld [vmem:[#allocation2 + $0x320] sm:$0xff]
    %v11268 = vld [vmem:[#allocation2 + $0x328] sm:$0x3]
    %v11269 = vld [vmem:[#allocation2 + $0x330] sm:$0xff]
    %v11270 = vld [vmem:[#allocation2 + $0x338] sm:$0xff]
    %v11271 = vld [vmem:[#allocation2 + $0x340] sm:$0x3]
    %v11272 = vmax.f32 %v11170, %v11173
    %v11273 = vmax.f32 %v11171, %v11174
    %v11274 = vmax.f32 %v11172, %v11175
    %v11275 = vmax.f32 %v11221, %v11224
    %v11276 = vmax.f32 %v11222, %v11225
    %v11277 = vmax.f32 %v11223, %v11226
    %v11278 = vmax.f32 %v11272, %v11176
    %v11279 = vmax.f32 %v11273, %v11177
    %v11280 = vmax.f32 %v11274, %v11178
    %v11281 = vmax.f32 %v11275, %v11227
    %v11282 = vmax.f32 %v11276, %v11228
    %v11283 = vmax.f32 %v11277, %v11229
    %v11284 = vmax.f32 %v11176, %v11179
    %v11285 = vmax.f32 %v11177, %v11180
    %v11286 = vmax.f32 %v11178, %v11181
    %v11287 = vmax.f32 %v11227, %v11230
    %v11288 = vmax.f32 %v11228, %v11231
    %v11289 = vmax.f32 %v11229, %v11232
    %v11290 = vmax.f32 %v11284, %v11182
    %v11291 = vmax.f32 %v11285, %v11183
    %v11292 = vmax.f32 %v11286, %v11184
    %v11293 = vmax.f32 %v11287, %v11233
    %v11294 = vmax.f32 %v11288, %v11234
    %v11295 = vmax.f32 %v11289, %v11235
    %v11296 = vmax.f32 %v11182, %v11185
    %v11297 = vmax.f32 %v11183, %v11186
    %v11298 = vmax.f32 %v11184, %v11187
    %v11299 = vmax.f32 %v11233, %v11236
    %v11300 = vmax.f32 %v11234, %v11237
    %v11301 = vmax.f32 %v11235, %v11238
    %v11302 = vmax.f32 %v11296, %v11188
    %v11303 = vmax.f32 %v11297, %v11189
    %v11304 = vmax.f32 %v11298, %v11190
    %v11305 = vmax.f32 %v11299, %v11239
    %v11306 = vmax.f32 %v11300, %v11240
    %v11307 = vmax.f32 %v11301, %v11241
    %v11308 = vmax.f32 %v11188, %v11191
    %v11309 = vmax.f32 %v11189, %v11192
    %v11310 = vmax.f32 %v11190, %v11193
    %v11311 = vmax.f32 %v11239, %v11242
    %v11312 = vmax.f32 %v11240, %v11243
    %v11313 = vmax.f32 %v11241, %v11244
    %v11314 = vmax.f32 %v11308, %v11194
    %v11315 = vmax.f32 %v11309, %v11195
    %v11316 = vmax.f32 %v11310, %v11196
    %v11317 = vmax.f32 %v11311, %v11245
    %v11318 = vmax.f32 %v11312, %v11246
    %v11319 = vmax.f32 %v11313, %v11247
    %v11320 = vmax.f32 %v11194, %v11197
    %v11321 = vmax.f32 %v11195, %v11198
    %v11322 = vmax.f32 %v11196, %v11199
    %v11323 = vmax.f32 %v11245, %v11248
    %v11324 = vmax.f32 %v11246, %v11249
    %v11325 = vmax.f32 %v11247, %v11250
    %v11326 = vmax.f32 %v11320, %v11200
    %v11327 = vmax.f32 %v11321, %v11201
    %v11328 = vmax.f32 %v11322, %v11202
    %v11329 = vmax.f32 %v11323, %v11251
    %v11330 = vmax.f32 %v11324, %v11252
    %v11331 = vmax.f32 %v11325, %v11253
    %v11332 = vmax.f32 %v11200, %v11203
    %v11333 = vmax.f32 %v11201, %v11204
    %v11334 = vmax.f32 %v11202, %v11205
    %v11335 = vmax.f32 %v11251, %v11254
    %v11336 = vmax.f32 %v11252, %v11255
    %v11337 = vmax.f32 %v11253, %v11256
    %v11338 = vmax.f32 %v11332, %v11206
    %v11339 = vmax.f32 %v11333, %v11207
    %v11340 = vmax.f32 %v11334, %v11208
    %v11341 = vmax.f32 %v11335, %v11257
    %v11342 = vmax.f32 %v11336, %v11258
    %v11343 = vmax.f32 %v11337, %v11259
    %v11344 = vmax.f32 %v11206, %v11209
    %v11345 = vmax.f32 %v11207, %v11210
    %v11346 = vmax.f32 %v11208, %v11211
    %v11347 = vmax.f32 %v11257, %v11260
    %v11348 = vmax.f32 %v11258, %v11261
    %v11349 = vmax.f32 %v11259, %v11262
    %v11350 = vmax.f32 %v11344, %v11212
    %v11351 = vmax.f32 %v11345, %v11213
    %v11352 = vmax.f32 %v11346, %v11214
    %v11353 = vmax.f32 %v11347, %v11263
    %v11354 = vmax.f32 %v11348, %v11264
    %v11355 = vmax.f32 %v11349, %v11265
    %v11356 = vmax.f32 %v11212, %v11215
    %v11357 = vmax.f32 %v11213, %v11216
    %v11358 = vmax.f32 %v11214, %v11217
    %v11359 = vmax.f32 %v11263, %v11266
    %v11360 = vmax.f32 %v11264, %v11267
    %v11361 = vmax.f32 %v11265, %v11268
    %v11362 = vmax.f32 %v11356, %v11218
    %v11363 = vmax.f32 %v11357, %v11219
    %v11364 = vmax.f32 %v11358, %v11220
    %v11365 = vmax.f32 %v11359, %v11269
    %v11366 = vmax.f32 %v11360, %v11270
    %v11367 = vmax.f32 %v11361, %v11271
    %v11384 = vrot.slane %v11278, 1
    %v11385 = vrot.slane %v11290, 1
    %v11386 = vrot.slane %v11302, 1
    %v11387 = vrot.slane %v11314, 1
    %v11388 = vrot.slane %v11326, 1
    %v11389 = vrot.slane %v11338, 1
    %v11390 = vrot.slane %v11350, 1
    %v11391 = vrot.slane %v11362, 1
    %v11392 = vrot.slane %v11281, 1
    %v11393 = vrot.slane %v11293, 1
    %v11394 = vrot.slane %v11305, 1
    %v11395 = vrot.slane %v11317, 1
    %v11396 = vrot.slane %v11329, 1
    %v11397 = vrot.slane %v11341, 1
    %v11398 = vrot.slane %v11353, 1
    %v11399 = vrot.slane %v11365, 1
    %v11416 = vmax.f32 %v11278, %v11384
    %v11417 = vmax.f32 %v11290, %v11385
    %v11418 = vmax.f32 %v11302, %v11386
    %v11419 = vmax.f32 %v11314, %v11387
    %v11420 = vmax.f32 %v11326, %v11388
    %v11421 = vmax.f32 %v11338, %v11389
    %v11422 = vmax.f32 %v11350, %v11390
    %v11423 = vmax.f32 %v11362, %v11391
    %v11424 = vmax.f32 %v11281, %v11392
    %v11425 = vmax.f32 %v11293, %v11393
    %v11426 = vmax.f32 %v11305, %v11394
    %v11427 = vmax.f32 %v11317, %v11395
    %v11428 = vmax.f32 %v11329, %v11396
    %v11429 = vmax.f32 %v11341, %v11397
    %v11430 = vmax.f32 %v11353, %v11398
    %v11431 = vmax.f32 %v11365, %v11399
    %v11432 = vrot.slane %v11278, 2
    %v11433 = vrot.slane %v11290, 2
    %v11434 = vrot.slane %v11302, 2
    %v11435 = vrot.slane %v11314, 2
    %v11436 = vrot.slane %v11326, 2
    %v11437 = vrot.slane %v11338, 2
    %v11438 = vrot.slane %v11350, 2
    %v11439 = vrot.slane %v11362, 2
    %v11440 = vrot.slane %v11281, 2
    %v11441 = vrot.slane %v11293, 2
    %v11442 = vrot.slane %v11305, 2
    %v11443 = vrot.slane %v11317, 2
    %v11444 = vrot.slane %v11329, 2
    %v11445 = vrot.slane %v11341, 2
    %v11446 = vrot.slane %v11353, 2
    %v11447 = vrot.slane %v11365, 2
    %v11464 = vmax.f32 %v11416, %v11432
    %v11465 = vmax.f32 %v11417, %v11433
    %v11466 = vmax.f32 %v11418, %v11434
    %v11467 = vmax.f32 %v11419, %v11435
    %v11468 = vmax.f32 %v11420, %v11436
    %v11469 = vmax.f32 %v11421, %v11437
    %v11470 = vmax.f32 %v11422, %v11438
    %v11471 = vmax.f32 %v11423, %v11439
    %v11472 = vmax.f32 %v11424, %v11440
    %v11473 = vmax.f32 %v11425, %v11441
    %v11474 = vmax.f32 %v11426, %v11442
    %v11475 = vmax.f32 %v11427, %v11443
    %v11476 = vmax.f32 %v11428, %v11444
    %v11477 = vmax.f32 %v11429, %v11445
    %v11478 = vmax.f32 %v11430, %v11446
    %v11479 = vmax.f32 %v11431, %v11447
    %vm11480 = vcmask 122880
    %11481 = vst.msk [vmem:[#allocation3] sm:$0x1] %vm11480, %v11464
    %11482 = vst.msk [vmem:[#allocation3 + $0x8] sm:$0x1] %vm11480, %v11465
    %11483 = vst.msk [vmem:[#allocation3 + $0x10] sm:$0x1] %vm11480, %v11466
    %11484 = vst.msk [vmem:[#allocation3 + $0x18] sm:$0x1] %vm11480, %v11467
    %11485 = vst.msk [vmem:[#allocation3 + $0x20] sm:$0x1] %vm11480, %v11468
    %11486 = vst.msk [vmem:[#allocation3 + $0x28] sm:$0x1] %vm11480, %v11469
    %11487 = vst.msk [vmem:[#allocation3 + $0x30] sm:$0x1] %vm11480, %v11470
    %11488 = vst.msk [vmem:[#allocation3 + $0x38] sm:$0x1] %vm11480, %v11471
    %11489 = vst.msk [vmem:[#allocation3 + $0x40] sm:$0x1] %vm11480, %v11472
    %11490 = vst.msk [vmem:[#allocation3 + $0x48] sm:$0x1] %vm11480, %v11473
    %11491 = vst.msk [vmem:[#allocation3 + $0x50] sm:$0x1] %vm11480, %v11474
    %11492 = vst.msk [vmem:[#allocation3 + $0x58] sm:$0x1] %vm11480, %v11475
    %11493 = vst.msk [vmem:[#allocation3 + $0x60] sm:$0x1] %vm11480, %v11476
    %11494 = vst.msk [vmem:[#allocation3 + $0x68] sm:$0x1] %vm11480, %v11477
    %11495 = vst.msk [vmem:[#allocation3 + $0x70] sm:$0x1] %vm11480, %v11478
    %11496 = vst.msk [vmem:[#allocation3 + $0x78] sm:$0x1] %vm11480, %v11479
    %vm11497 = vcmask 124930
    %11498 = vst.msk [vmem:[#allocation3 - $0x1] sm:$0x4] %vm11497, %v11464
    %11499 = vst.msk [vmem:[#allocation3 + $0x7] sm:$0x4] %vm11497, %v11465
    %11500 = vst.msk [vmem:[#allocation3 + $0xf] sm:$0x4] %vm11497, %v11466
    %11501 = vst.msk [vmem:[#allocation3 + $0x17] sm:$0x4] %vm11497, %v11467
    %11502 = vst.msk [vmem:[#allocation3 + $0x1f] sm:$0x4] %vm11497, %v11468
    %11503 = vst.msk [vmem:[#allocation3 + $0x27] sm:$0x4] %vm11497, %v11469
    %11504 = vst.msk [vmem:[#allocation3 + $0x2f] sm:$0x4] %vm11497, %v11470
    %11505 = vst.msk [vmem:[#allocation3 + $0x37] sm:$0x4] %vm11497, %v11471
    %11506 = vst.msk [vmem:[#allocation3 + $0x3f] sm:$0x4] %vm11497, %v11472
    %11507 = vst.msk [vmem:[#allocation3 + $0x47] sm:$0x4] %vm11497, %v11473
    %11508 = vst.msk [vmem:[#allocation3 + $0x4f] sm:$0x4] %vm11497, %v11474
    %11509 = vst.msk [vmem:[#allocation3 + $0x57] sm:$0x4] %vm11497, %v11475
    %11510 = vst.msk [vmem:[#allocation3 + $0x5f] sm:$0x4] %vm11497, %v11476
    %11511 = vst.msk [vmem:[#allocation3 + $0x67] sm:$0x4] %vm11497, %v11477
    %11512 = vst.msk [vmem:[#allocation3 + $0x6f] sm:$0x4] %vm11497, %v11478
    %11513 = vst.msk [vmem:[#allocation3 + $0x77] sm:$0x4] %vm11497, %v11479
    %vm11514 = vcmask 126980
    %11515 = vst.msk [vmem:[#allocation3 - $0x2] sm:$0x10] %vm11514, %v11464
    %11516 = vst.msk [vmem:[#allocation3 + $0x6] sm:$0x10] %vm11514, %v11465
    %11517 = vst.msk [vmem:[#allocation3 + $0xe] sm:$0x10] %vm11514, %v11466
    %11518 = vst.msk [vmem:[#allocation3 + $0x16] sm:$0x10] %vm11514, %v11467
    %11519 = vst.msk [vmem:[#allocation3 + $0x1e] sm:$0x10] %vm11514, %v11468
    %11520 = vst.msk [vmem:[#allocation3 + $0x26] sm:$0x10] %vm11514, %v11469
    %11521 = vst.msk [vmem:[#allocation3 + $0x2e] sm:$0x10] %vm11514, %v11470
    %11522 = vst.msk [vmem:[#allocation3 + $0x36] sm:$0x10] %vm11514, %v11471
    %11523 = vst.msk [vmem:[#allocation3 + $0x3e] sm:$0x10] %vm11514, %v11472
    %11524 = vst.msk [vmem:[#allocation3 + $0x46] sm:$0x10] %vm11514, %v11473
    %11525 = vst.msk [vmem:[#allocation3 + $0x4e] sm:$0x10] %vm11514, %v11474
    %11526 = vst.msk [vmem:[#allocation3 + $0x56] sm:$0x10] %vm11514, %v11475
    %11527 = vst.msk [vmem:[#allocation3 + $0x5e] sm:$0x10] %vm11514, %v11476
    %11528 = vst.msk [vmem:[#allocation3 + $0x66] sm:$0x10] %vm11514, %v11477
    %11529 = vst.msk [vmem:[#allocation3 + $0x6e] sm:$0x10] %vm11514, %v11478
    %11530 = vst.msk [vmem:[#allocation3 + $0x76] sm:$0x10] %vm11514, %v11479
    %v11547 = vrot.slane %v11279, 2
    %v11548 = vrot.slane %v11291, 2
    %v11549 = vrot.slane %v11303, 2
    %v11550 = vrot.slane %v11315, 2
    %v11551 = vrot.slane %v11327, 2
    %v11552 = vrot.slane %v11339, 2
    %v11553 = vrot.slane %v11351, 2
    %v11554 = vrot.slane %v11363, 2
    %v11555 = vrot.slane %v11282, 2
    %v11556 = vrot.slane %v11294, 2
    %v11557 = vrot.slane %v11306, 2
    %v11558 = vrot.slane %v11318, 2
    %v11559 = vrot.slane %v11330, 2
    %v11560 = vrot.slane %v11342, 2
    %v11561 = vrot.slane %v11354, 2
    %v11562 = vrot.slane %v11366, 2
    %v11579 = vmax.f32 %v11416, %v11547
    %v11580 = vmax.f32 %v11417, %v11548
    %v11581 = vmax.f32 %v11418, %v11549
    %v11582 = vmax.f32 %v11419, %v11550
    %v11583 = vmax.f32 %v11420, %v11551
    %v11584 = vmax.f32 %v11421, %v11552
    %v11585 = vmax.f32 %v11422, %v11553
    %v11586 = vmax.f32 %v11423, %v11554
    %v11587 = vmax.f32 %v11424, %v11555
    %v11588 = vmax.f32 %v11425, %v11556
    %v11589 = vmax.f32 %v11426, %v11557
    %v11590 = vmax.f32 %v11427, %v11558
    %v11591 = vmax.f32 %v11428, %v11559
    %v11592 = vmax.f32 %v11429, %v11560
    %v11593 = vmax.f32 %v11430, %v11561
    %v11594 = vmax.f32 %v11431, %v11562
    %vm11595 = vcmask 129030
    %11596 = vst.msk [vmem:[#allocation3 - $0x3] sm:$0x40] %vm11595, %v11579
    %11597 = vst.msk [vmem:[#allocation3 + $0x5] sm:$0x40] %vm11595, %v11580
    %11598 = vst.msk [vmem:[#allocation3 + $0xd] sm:$0x40] %vm11595, %v11581
    %11599 = vst.msk [vmem:[#allocation3 + $0x15] sm:$0x40] %vm11595, %v11582
    %11600 = vst.msk [vmem:[#allocation3 + $0x1d] sm:$0x40] %vm11595, %v11583
    %11601 = vst.msk [vmem:[#allocation3 + $0x25] sm:$0x40] %vm11595, %v11584
    %11602 = vst.msk [vmem:[#allocation3 + $0x2d] sm:$0x40] %vm11595, %v11585
    %11603 = vst.msk [vmem:[#allocation3 + $0x35] sm:$0x40] %vm11595, %v11586
    %11604 = vst.msk [vmem:[#allocation3 + $0x3d] sm:$0x40] %vm11595, %v11587
    %11605 = vst.msk [vmem:[#allocation3 + $0x45] sm:$0x40] %vm11595, %v11588
    %11606 = vst.msk [vmem:[#allocation3 + $0x4d] sm:$0x40] %vm11595, %v11589
    %11607 = vst.msk [vmem:[#allocation3 + $0x55] sm:$0x40] %vm11595, %v11590
    %11608 = vst.msk [vmem:[#allocation3 + $0x5d] sm:$0x40] %vm11595, %v11591
    %11609 = vst.msk [vmem:[#allocation3 + $0x65] sm:$0x40] %vm11595, %v11592
    %11610 = vst.msk [vmem:[#allocation3 + $0x6d] sm:$0x40] %vm11595, %v11593
    %11611 = vst.msk [vmem:[#allocation3 + $0x75] sm:$0x40] %vm11595, %v11594
    %v11612 = vrot.slane %v11279, 1
    %v11613 = vrot.slane %v11291, 1
    %v11614 = vrot.slane %v11303, 1
    %v11615 = vrot.slane %v11315, 1
    %v11616 = vrot.slane %v11327, 1
    %v11617 = vrot.slane %v11339, 1
    %v11618 = vrot.slane %v11351, 1
    %v11619 = vrot.slane %v11363, 1
    %v11620 = vrot.slane %v11282, 1
    %v11621 = vrot.slane %v11294, 1
    %v11622 = vrot.slane %v11306, 1
    %v11623 = vrot.slane %v11318, 1
    %v11624 = vrot.slane %v11330, 1
    %v11625 = vrot.slane %v11342, 1
    %v11626 = vrot.slane %v11354, 1
    %v11627 = vrot.slane %v11366, 1
    %v11644 = vmax.f32 %v11279, %v11612
    %v11645 = vmax.f32 %v11291, %v11613
    %v11646 = vmax.f32 %v11303, %v11614
    %v11647 = vmax.f32 %v11315, %v11615
    %v11648 = vmax.f32 %v11327, %v11616
    %v11649 = vmax.f32 %v11339, %v11617
    %v11650 = vmax.f32 %v11351, %v11618
    %v11651 = vmax.f32 %v11363, %v11619
    %v11652 = vmax.f32 %v11282, %v11620
    %v11653 = vmax.f32 %v11294, %v11621
    %v11654 = vmax.f32 %v11306, %v11622
    %v11655 = vmax.f32 %v11318, %v11623
    %v11656 = vmax.f32 %v11330, %v11624
    %v11657 = vmax.f32 %v11342, %v11625
    %v11658 = vmax.f32 %v11354, %v11626
    %v11659 = vmax.f32 %v11366, %v11627
    %v11660 = vmax.f32 %v11644, %v11547
    %v11661 = vmax.f32 %v11645, %v11548
    %v11662 = vmax.f32 %v11646, %v11549
    %v11663 = vmax.f32 %v11647, %v11550
    %v11664 = vmax.f32 %v11648, %v11551
    %v11665 = vmax.f32 %v11649, %v11552
    %v11666 = vmax.f32 %v11650, %v11553
    %v11667 = vmax.f32 %v11651, %v11554
    %v11668 = vmax.f32 %v11652, %v11555
    %v11669 = vmax.f32 %v11653, %v11556
    %v11670 = vmax.f32 %v11654, %v11557
    %v11671 = vmax.f32 %v11655, %v11558
    %v11672 = vmax.f32 %v11656, %v11559
    %v11673 = vmax.f32 %v11657, %v11560
    %v11674 = vmax.f32 %v11658, %v11561
    %v11675 = vmax.f32 %v11659, %v11562
    %11676 = vst.msk [vmem:[#allocation3 + $0x4] sm:$0x1] %vm11480, %v11660
    %11677 = vst.msk [vmem:[#allocation3 + $0xc] sm:$0x1] %vm11480, %v11661
    %11678 = vst.msk [vmem:[#allocation3 + $0x14] sm:$0x1] %vm11480, %v11662
    %11679 = vst.msk [vmem:[#allocation3 + $0x1c] sm:$0x1] %vm11480, %v11663
    %11680 = vst.msk [vmem:[#allocation3 + $0x24] sm:$0x1] %vm11480, %v11664
    %11681 = vst.msk [vmem:[#allocation3 + $0x2c] sm:$0x1] %vm11480, %v11665
    %11682 = vst.msk [vmem:[#allocation3 + $0x34] sm:$0x1] %vm11480, %v11666
    %11683 = vst.msk [vmem:[#allocation3 + $0x3c] sm:$0x1] %vm11480, %v11667
    %11684 = vst.msk [vmem:[#allocation3 + $0x44] sm:$0x1] %vm11480, %v11668
    %11685 = vst.msk [vmem:[#allocation3 + $0x4c] sm:$0x1] %vm11480, %v11669
    %11686 = vst.msk [vmem:[#allocation3 + $0x54] sm:$0x1] %vm11480, %v11670
    %11687 = vst.msk [vmem:[#allocation3 + $0x5c] sm:$0x1] %vm11480, %v11671
    %11688 = vst.msk [vmem:[#allocation3 + $0x64] sm:$0x1] %vm11480, %v11672
    %11689 = vst.msk [vmem:[#allocation3 + $0x6c] sm:$0x1] %vm11480, %v11673
    %11690 = vst.msk [vmem:[#allocation3 + $0x74] sm:$0x1] %vm11480, %v11674
    %11691 = vst.msk [vmem:[#allocation3 + $0x7c] sm:$0x1] %vm11480, %v11675
    %11692 = vst.msk [vmem:[#allocation3 + $0x3] sm:$0x4] %vm11497, %v11660
    %11693 = vst.msk [vmem:[#allocation3 + $0xb] sm:$0x4] %vm11497, %v11661
    %11694 = vst.msk [vmem:[#allocation3 + $0x13] sm:$0x4] %vm11497, %v11662
    %11695 = vst.msk [vmem:[#allocation3 + $0x1b] sm:$0x4] %vm11497, %v11663
    %11696 = vst.msk [vmem:[#allocation3 + $0x23] sm:$0x4] %vm11497, %v11664
    %11697 = vst.msk [vmem:[#allocation3 + $0x2b] sm:$0x4] %vm11497, %v11665
    %11698 = vst.msk [vmem:[#allocation3 + $0x33] sm:$0x4] %vm11497, %v11666
    %11699 = vst.msk [vmem:[#allocation3 + $0x3b] sm:$0x4] %vm11497, %v11667
    %11700 = vst.msk [vmem:[#allocation3 + $0x43] sm:$0x4] %vm11497, %v11668
    %11701 = vst.msk [vmem:[#allocation3 + $0x4b] sm:$0x4] %vm11497, %v11669
    %11702 = vst.msk [vmem:[#allocation3 + $0x53] sm:$0x4] %vm11497, %v11670
    %11703 = vst.msk [vmem:[#allocation3 + $0x5b] sm:$0x4] %vm11497, %v11671
    %11704 = vst.msk [vmem:[#allocation3 + $0x63] sm:$0x4] %vm11497, %v11672
    %11705 = vst.msk [vmem:[#allocation3 + $0x6b] sm:$0x4] %vm11497, %v11673
    %11706 = vst.msk [vmem:[#allocation3 + $0x73] sm:$0x4] %vm11497, %v11674
    %11707 = vst.msk [vmem:[#allocation3 + $0x7b] sm:$0x4] %vm11497, %v11675
    %11708 = vst.msk [vmem:[#allocation3 + $0x2] sm:$0x10] %vm11514, %v11660
    %11709 = vst.msk [vmem:[#allocation3 + $0xa] sm:$0x10] %vm11514, %v11661
    %11710 = vst.msk [vmem:[#allocation3 + $0x12] sm:$0x10] %vm11514, %v11662
    %11711 = vst.msk [vmem:[#allocation3 + $0x1a] sm:$0x10] %vm11514, %v11663
    %11712 = vst.msk [vmem:[#allocation3 + $0x22] sm:$0x10] %vm11514, %v11664
    %11713 = vst.msk [vmem:[#allocation3 + $0x2a] sm:$0x10] %vm11514, %v11665
    %11714 = vst.msk [vmem:[#allocation3 + $0x32] sm:$0x10] %vm11514, %v11666
    %11715 = vst.msk [vmem:[#allocation3 + $0x3a] sm:$0x10] %vm11514, %v11667
    %11716 = vst.msk [vmem:[#allocation3 + $0x42] sm:$0x10] %vm11514, %v11668
    %11717 = vst.msk [vmem:[#allocation3 + $0x4a] sm:$0x10] %vm11514, %v11669
    %11718 = vst.msk [vmem:[#allocation3 + $0x52] sm:$0x10] %vm11514, %v11670
    %11719 = vst.msk [vmem:[#allocation3 + $0x5a] sm:$0x10] %vm11514, %v11671
    %11720 = vst.msk [vmem:[#allocation3 + $0x62] sm:$0x10] %vm11514, %v11672
    %11721 = vst.msk [vmem:[#allocation3 + $0x6a] sm:$0x10] %vm11514, %v11673
    %11722 = vst.msk [vmem:[#allocation3 + $0x72] sm:$0x10] %vm11514, %v11674
    %11723 = vst.msk [vmem:[#allocation3 + $0x7a] sm:$0x10] %vm11514, %v11675
    %v11740 = vrot.slane %v11280, 2
    %v11741 = vrot.slane %v11292, 2
    %v11742 = vrot.slane %v11304, 2
    %v11743 = vrot.slane %v11316, 2
    %v11744 = vrot.slane %v11328, 2
    %v11745 = vrot.slane %v11340, 2
    %v11746 = vrot.slane %v11352, 2
    %v11747 = vrot.slane %v11364, 2
    %v11748 = vrot.slane %v11283, 2
    %v11749 = vrot.slane %v11295, 2
    %v11750 = vrot.slane %v11307, 2
    %v11751 = vrot.slane %v11319, 2
    %v11752 = vrot.slane %v11331, 2
    %v11753 = vrot.slane %v11343, 2
    %v11754 = vrot.slane %v11355, 2
    %v11755 = vrot.slane %v11367, 2
    %v11772 = vmax.f32 %v11644, %v11740
    %v11773 = vmax.f32 %v11645, %v11741
    %v11774 = vmax.f32 %v11646, %v11742
    %v11775 = vmax.f32 %v11647, %v11743
    %v11776 = vmax.f32 %v11648, %v11744
    %v11777 = vmax.f32 %v11649, %v11745
    %v11778 = vmax.f32 %v11650, %v11746
    %v11779 = vmax.f32 %v11651, %v11747
    %v11780 = vmax.f32 %v11652, %v11748
    %v11781 = vmax.f32 %v11653, %v11749
    %v11782 = vmax.f32 %v11654, %v11750
    %v11783 = vmax.f32 %v11655, %v11751
    %v11784 = vmax.f32 %v11656, %v11752
    %v11785 = vmax.f32 %v11657, %v11753
    %v11786 = vmax.f32 %v11658, %v11754
    %v11787 = vmax.f32 %v11659, %v11755
    %11788 = vst.msk [vmem:[#allocation3 + $0x1] sm:$0x40] %vm11595, %v11772
    %11789 = vst.msk [vmem:[#allocation3 + $0x9] sm:$0x40] %vm11595, %v11773
    %11790 = vst.msk [vmem:[#allocation3 + $0x11] sm:$0x40] %vm11595, %v11774
    %11791 = vst.msk [vmem:[#allocation3 + $0x19] sm:$0x40] %vm11595, %v11775
    %11792 = vst.msk [vmem:[#allocation3 + $0x21] sm:$0x40] %vm11595, %v11776
    %11793 = vst.msk [vmem:[#allocation3 + $0x29] sm:$0x40] %vm11595, %v11777
    %11794 = vst.msk [vmem:[#allocation3 + $0x31] sm:$0x40] %vm11595, %v11778
    %11795 = vst.msk [vmem:[#allocation3 + $0x39] sm:$0x40] %vm11595, %v11779
    %11796 = vst.msk [vmem:[#allocation3 + $0x41] sm:$0x40] %vm11595, %v11780
    %11797 = vst.msk [vmem:[#allocation3 + $0x49] sm:$0x40] %vm11595, %v11781
    %11798 = vst.msk [vmem:[#allocation3 + $0x51] sm:$0x40] %vm11595, %v11782
    %11799 = vst.msk [vmem:[#allocation3 + $0x59] sm:$0x40] %vm11595, %v11783
    %11800 = vst.msk [vmem:[#allocation3 + $0x61] sm:$0x40] %vm11595, %v11784
    %11801 = vst.msk [vmem:[#allocation3 + $0x69] sm:$0x40] %vm11595, %v11785
    %11802 = vst.msk [vmem:[#allocation3 + $0x71] sm:$0x40] %vm11595, %v11786
    %11803 = vst.msk [vmem:[#allocation3 + $0x79] sm:$0x40] %vm11595, %v11787
    %v11804 = vld [vmem:[#allocation3] sm:$0xff]
    %v11805 = vld [vmem:[#allocation3 + $0x8] sm:$0xff]
    %v11806 = vld [vmem:[#allocation3 + $0x10] sm:$0xff]
    %v11807 = vld [vmem:[#allocation3 + $0x18] sm:$0xff]
    %v11808 = vld [vmem:[#allocation3 + $0x20] sm:$0xff]
    %v11809 = vld [vmem:[#allocation3 + $0x28] sm:$0xff]
    %v11810 = vld [vmem:[#allocation3 + $0x30] sm:$0xff]
    %v11811 = vld [vmem:[#allocation3 + $0x38] sm:$0xff]
    %v11812 = vld [vmem:[#allocation3 + $0x40] sm:$0xff]
    %v11813 = vld [vmem:[#allocation3 + $0x48] sm:$0xff]
    %v11814 = vld [vmem:[#allocation3 + $0x50] sm:$0xff]
    %v11815 = vld [vmem:[#allocation3 + $0x58] sm:$0xff]
    %v11816 = vld [vmem:[#allocation3 + $0x60] sm:$0xff]
    %v11817 = vld [vmem:[#allocation3 + $0x68] sm:$0xff]
    %v11818 = vld [vmem:[#allocation3 + $0x70] sm:$0xff]
    %v11819 = vld [vmem:[#allocation3 + $0x78] sm:$0xff]
    %v11820 = vld [vmem:[%s0] sm:$0xff]
    %v11821 = vld [vmem:[%s0 + $0x8] sm:$0xff]
    %v11822 = vld [vmem:[%s0 + $0x20] sm:$0xff]
    %v11823 = vld [vmem:[%s0 + $0x28] sm:$0xff]
    %v11824 = vld [vmem:[%s0 + $0x40] sm:$0xff]
    %v11825 = vld [vmem:[%s0 + $0x48] sm:$0xff]
    %v11826 = vld [vmem:[%s0 + $0x60] sm:$0xff]
    %v11827 = vld [vmem:[%s0 + $0x68] sm:$0xff]
    %v11828 = vld [vmem:[%s0 + $0x80] sm:$0xff]
    %v11829 = vld [vmem:[%s0 + $0x88] sm:$0xff]
    %v11830 = vld [vmem:[%s0 + $0xa0] sm:$0xff]
    %v11831 = vld [vmem:[%s0 + $0xa8] sm:$0xff]
    %v11832 = vld [vmem:[%s0 + $0xc0] sm:$0xff]
    %v11833 = vld [vmem:[%s0 + $0xc8] sm:$0xff]
    %v11834 = vld [vmem:[%s0 + $0xe0] sm:$0xff]
    %v11835 = vld [vmem:[%s0 + $0xe8] sm:$0xff]
    %v11836 = vld [vmem:[%s0 + $0x100] sm:$0xff]
    %v11837 = vld [vmem:[%s0 + $0x108] sm:$0xff]
    %v11838 = vld [vmem:[%s0 + $0x120] sm:$0xff]
    %v11839 = vld [vmem:[%s0 + $0x128] sm:$0xff]
    %v11840 = vld [vmem:[%s0 + $0x140] sm:$0xff]
    %v11841 = vld [vmem:[%s0 + $0x148] sm:$0xff]
    %v11842 = vld [vmem:[%s0 + $0x160] sm:$0xff]
    %v11843 = vld [vmem:[%s0 + $0x168] sm:$0xff]
    %v11844 = vld [vmem:[%s0 + $0x180] sm:$0xff]
    %v11845 = vld [vmem:[%s0 + $0x188] sm:$0xff]
    %v11846 = vld [vmem:[%s0 + $0x1a0] sm:$0xff]
    %v11847 = vld [vmem:[%s0 + $0x1a8] sm:$0xff]
    %v11848 = vld [vmem:[%s0 + $0x1c0] sm:$0xff]
    %v11849 = vld [vmem:[%s0 + $0x1c8] sm:$0xff]
    %v11850 = vld [vmem:[%s0 + $0x1e0] sm:$0xff]
    %v11851 = vld [vmem:[%s0 + $0x1e8] sm:$0xff]
    %vm11852 = vcmask 57344
    %11853 = vst.msk [vmem:[#allocation4] sm:$0x1] %vm11852, %v11820
    %11854 = vst.msk [vmem:[#allocation4 + $0x8] sm:$0x1] %vm11852, %v11822
    %11855 = vst.msk [vmem:[#allocation4 + $0x10] sm:$0x1] %vm11852, %v11824
    %11856 = vst.msk [vmem:[#allocation4 + $0x18] sm:$0x1] %vm11852, %v11826
    %11857 = vst.msk [vmem:[#allocation4 + $0x20] sm:$0x1] %vm11852, %v11828
    %11858 = vst.msk [vmem:[#allocation4 + $0x28] sm:$0x1] %vm11852, %v11830
    %11859 = vst.msk [vmem:[#allocation4 + $0x30] sm:$0x1] %vm11852, %v11832
    %11860 = vst.msk [vmem:[#allocation4 + $0x38] sm:$0x1] %vm11852, %v11834
    %11861 = vst.msk [vmem:[#allocation4 + $0x40] sm:$0x1] %vm11852, %v11836
    %11862 = vst.msk [vmem:[#allocation4 + $0x48] sm:$0x1] %vm11852, %v11838
    %11863 = vst.msk [vmem:[#allocation4 + $0x50] sm:$0x1] %vm11852, %v11840
    %11864 = vst.msk [vmem:[#allocation4 + $0x58] sm:$0x1] %vm11852, %v11842
    %11865 = vst.msk [vmem:[#allocation4 + $0x60] sm:$0x1] %vm11852, %v11844
    %11866 = vst.msk [vmem:[#allocation4 + $0x68] sm:$0x1] %vm11852, %v11846
    %11867 = vst.msk [vmem:[#allocation4 + $0x70] sm:$0x1] %vm11852, %v11848
    %11868 = vst.msk [vmem:[#allocation4 + $0x78] sm:$0x1] %vm11852, %v11850
    %vm11869 = vcmask 59394
    %11870 = vst.msk [vmem:[#allocation4 - $0x1] sm:$0x4] %vm11869, %v11820
    %11871 = vst.msk [vmem:[#allocation4 + $0x7] sm:$0x4] %vm11869, %v11822
    %11872 = vst.msk [vmem:[#allocation4 + $0xf] sm:$0x4] %vm11869, %v11824
    %11873 = vst.msk [vmem:[#allocation4 + $0x17] sm:$0x4] %vm11869, %v11826
    %11874 = vst.msk [vmem:[#allocation4 + $0x1f] sm:$0x4] %vm11869, %v11828
    %11875 = vst.msk [vmem:[#allocation4 + $0x27] sm:$0x4] %vm11869, %v11830
    %11876 = vst.msk [vmem:[#allocation4 + $0x2f] sm:$0x4] %vm11869, %v11832
    %11877 = vst.msk [vmem:[#allocation4 + $0x37] sm:$0x4] %vm11869, %v11834
    %11878 = vst.msk [vmem:[#allocation4 + $0x3f] sm:$0x4] %vm11869, %v11836
    %11879 = vst.msk [vmem:[#allocation4 + $0x47] sm:$0x4] %vm11869, %v11838
    %11880 = vst.msk [vmem:[#allocation4 + $0x4f] sm:$0x4] %vm11869, %v11840
    %11881 = vst.msk [vmem:[#allocation4 + $0x57] sm:$0x4] %vm11869, %v11842
    %11882 = vst.msk [vmem:[#allocation4 + $0x5f] sm:$0x4] %vm11869, %v11844
    %11883 = vst.msk [vmem:[#allocation4 + $0x67] sm:$0x4] %vm11869, %v11846
    %11884 = vst.msk [vmem:[#allocation4 + $0x6f] sm:$0x4] %vm11869, %v11848
    %11885 = vst.msk [vmem:[#allocation4 + $0x77] sm:$0x4] %vm11869, %v11850
    %vm11886 = vcmask 61444
    %11887 = vst.msk [vmem:[#allocation4 - $0x2] sm:$0x10] %vm11886, %v11820
    %11888 = vst.msk [vmem:[#allocation4 + $0x6] sm:$0x10] %vm11886, %v11822
    %11889 = vst.msk [vmem:[#allocation4 + $0xe] sm:$0x10] %vm11886, %v11824
    %11890 = vst.msk [vmem:[#allocation4 + $0x16] sm:$0x10] %vm11886, %v11826
    %11891 = vst.msk [vmem:[#allocation4 + $0x1e] sm:$0x10] %vm11886, %v11828
    %11892 = vst.msk [vmem:[#allocation4 + $0x26] sm:$0x10] %vm11886, %v11830
    %11893 = vst.msk [vmem:[#allocation4 + $0x2e] sm:$0x10] %vm11886, %v11832
    %11894 = vst.msk [vmem:[#allocation4 + $0x36] sm:$0x10] %vm11886, %v11834
    %11895 = vst.msk [vmem:[#allocation4 + $0x3e] sm:$0x10] %vm11886, %v11836
    %11896 = vst.msk [vmem:[#allocation4 + $0x46] sm:$0x10] %vm11886, %v11838
    %11897 = vst.msk [vmem:[#allocation4 + $0x4e] sm:$0x10] %vm11886, %v11840
    %11898 = vst.msk [vmem:[#allocation4 + $0x56] sm:$0x10] %vm11886, %v11842
    %11899 = vst.msk [vmem:[#allocation4 + $0x5e] sm:$0x10] %vm11886, %v11844
    %11900 = vst.msk [vmem:[#allocation4 + $0x66] sm:$0x10] %vm11886, %v11846
    %11901 = vst.msk [vmem:[#allocation4 + $0x6e] sm:$0x10] %vm11886, %v11848
    %11902 = vst.msk [vmem:[#allocation4 + $0x76] sm:$0x10] %vm11886, %v11850
    %vm11903 = vcmask 63494
    %11904 = vst.msk [vmem:[#allocation4 - $0x3] sm:$0x40] %vm11903, %v11820
    %11905 = vst.msk [vmem:[#allocation4 + $0x5] sm:$0x40] %vm11903, %v11822
    %11906 = vst.msk [vmem:[#allocation4 + $0xd] sm:$0x40] %vm11903, %v11824
    %11907 = vst.msk [vmem:[#allocation4 + $0x15] sm:$0x40] %vm11903, %v11826
    %11908 = vst.msk [vmem:[#allocation4 + $0x1d] sm:$0x40] %vm11903, %v11828
    %11909 = vst.msk [vmem:[#allocation4 + $0x25] sm:$0x40] %vm11903, %v11830
    %11910 = vst.msk [vmem:[#allocation4 + $0x2d] sm:$0x40] %vm11903, %v11832
    %11911 = vst.msk [vmem:[#allocation4 + $0x35] sm:$0x40] %vm11903, %v11834
    %11912 = vst.msk [vmem:[#allocation4 + $0x3d] sm:$0x40] %vm11903, %v11836
    %11913 = vst.msk [vmem:[#allocation4 + $0x45] sm:$0x40] %vm11903, %v11838
    %11914 = vst.msk [vmem:[#allocation4 + $0x4d] sm:$0x40] %vm11903, %v11840
    %11915 = vst.msk [vmem:[#allocation4 + $0x55] sm:$0x40] %vm11903, %v11842
    %11916 = vst.msk [vmem:[#allocation4 + $0x5d] sm:$0x40] %vm11903, %v11844
    %11917 = vst.msk [vmem:[#allocation4 + $0x65] sm:$0x40] %vm11903, %v11846
    %11918 = vst.msk [vmem:[#allocation4 + $0x6d] sm:$0x40] %vm11903, %v11848
    %11919 = vst.msk [vmem:[#allocation4 + $0x75] sm:$0x40] %vm11903, %v11850
    %11920 = vst.msk [vmem:[#allocation4 + $0x4] sm:$0x1] %vm11852, %v11821
    %11921 = vst.msk [vmem:[#allocation4 + $0xc] sm:$0x1] %vm11852, %v11823
    %11922 = vst.msk [vmem:[#allocation4 + $0x14] sm:$0x1] %vm11852, %v11825
    %11923 = vst.msk [vmem:[#allocation4 + $0x1c] sm:$0x1] %vm11852, %v11827
    %11924 = vst.msk [vmem:[#allocation4 + $0x24] sm:$0x1] %vm11852, %v11829
    %11925 = vst.msk [vmem:[#allocation4 + $0x2c] sm:$0x1] %vm11852, %v11831
    %11926 = vst.msk [vmem:[#allocation4 + $0x34] sm:$0x1] %vm11852, %v11833
    %11927 = vst.msk [vmem:[#allocation4 + $0x3c] sm:$0x1] %vm11852, %v11835
    %11928 = vst.msk [vmem:[#allocation4 + $0x44] sm:$0x1] %vm11852, %v11837
    %11929 = vst.msk [vmem:[#allocation4 + $0x4c] sm:$0x1] %vm11852, %v11839
    %11930 = vst.msk [vmem:[#allocation4 + $0x54] sm:$0x1] %vm11852, %v11841
    %11931 = vst.msk [vmem:[#allocation4 + $0x5c] sm:$0x1] %vm11852, %v11843
    %11932 = vst.msk [vmem:[#allocation4 + $0x64] sm:$0x1] %vm11852, %v11845
    %11933 = vst.msk [vmem:[#allocation4 + $0x6c] sm:$0x1] %vm11852, %v11847
    %11934 = vst.msk [vmem:[#allocation4 + $0x74] sm:$0x1] %vm11852, %v11849
    %11935 = vst.msk [vmem:[#allocation4 + $0x7c] sm:$0x1] %vm11852, %v11851
    %11936 = vst.msk [vmem:[#allocation4 + $0x3] sm:$0x4] %vm11869, %v11821
    %11937 = vst.msk [vmem:[#allocation4 + $0xb] sm:$0x4] %vm11869, %v11823
    %11938 = vst.msk [vmem:[#allocation4 + $0x13] sm:$0x4] %vm11869, %v11825
    %11939 = vst.msk [vmem:[#allocation4 + $0x1b] sm:$0x4] %vm11869, %v11827
    %11940 = vst.msk [vmem:[#allocation4 + $0x23] sm:$0x4] %vm11869, %v11829
    %11941 = vst.msk [vmem:[#allocation4 + $0x2b] sm:$0x4] %vm11869, %v11831
    %11942 = vst.msk [vmem:[#allocation4 + $0x33] sm:$0x4] %vm11869, %v11833
    %11943 = vst.msk [vmem:[#allocation4 + $0x3b] sm:$0x4] %vm11869, %v11835
    %11944 = vst.msk [vmem:[#allocation4 + $0x43] sm:$0x4] %vm11869, %v11837
    %11945 = vst.msk [vmem:[#allocation4 + $0x4b] sm:$0x4] %vm11869, %v11839
    %11946 = vst.msk [vmem:[#allocation4 + $0x53] sm:$0x4] %vm11869, %v11841
    %11947 = vst.msk [vmem:[#allocation4 + $0x5b] sm:$0x4] %vm11869, %v11843
    %11948 = vst.msk [vmem:[#allocation4 + $0x63] sm:$0x4] %vm11869, %v11845
    %11949 = vst.msk [vmem:[#allocation4 + $0x6b] sm:$0x4] %vm11869, %v11847
    %11950 = vst.msk [vmem:[#allocation4 + $0x73] sm:$0x4] %vm11869, %v11849
    %11951 = vst.msk [vmem:[#allocation4 + $0x7b] sm:$0x4] %vm11869, %v11851
    %11952 = vst.msk [vmem:[#allocation4 + $0x2] sm:$0x10] %vm11886, %v11821
    %11953 = vst.msk [vmem:[#allocation4 + $0xa] sm:$0x10] %vm11886, %v11823
    %11954 = vst.msk [vmem:[#allocation4 + $0x12] sm:$0x10] %vm11886, %v11825
    %11955 = vst.msk [vmem:[#allocation4 + $0x1a] sm:$0x10] %vm11886, %v11827
    %11956 = vst.msk [vmem:[#allocation4 + $0x22] sm:$0x10] %vm11886, %v11829
    %11957 = vst.msk [vmem:[#allocation4 + $0x2a] sm:$0x10] %vm11886, %v11831
    %11958 = vst.msk [vmem:[#allocation4 + $0x32] sm:$0x10] %vm11886, %v11833
    %11959 = vst.msk [vmem:[#allocation4 + $0x3a] sm:$0x10] %vm11886, %v11835
    %11960 = vst.msk [vmem:[#allocation4 + $0x42] sm:$0x10] %vm11886, %v11837
    %11961 = vst.msk [vmem:[#allocation4 + $0x4a] sm:$0x10] %vm11886, %v11839
    %11962 = vst.msk [vmem:[#allocation4 + $0x52] sm:$0x10] %vm11886, %v11841
    %11963 = vst.msk [vmem:[#allocation4 + $0x5a] sm:$0x10] %vm11886, %v11843
    %11964 = vst.msk [vmem:[#allocation4 + $0x62] sm:$0x10] %vm11886, %v11845
    %11965 = vst.msk [vmem:[#allocation4 + $0x6a] sm:$0x10] %vm11886, %v11847
    %11966 = vst.msk [vmem:[#allocation4 + $0x72] sm:$0x10] %vm11886, %v11849
    %11967 = vst.msk [vmem:[#allocation4 + $0x7a] sm:$0x10] %vm11886, %v11851
    %11968 = vst.msk [vmem:[#allocation4 + $0x1] sm:$0x40] %vm11903, %v11821
    %11969 = vst.msk [vmem:[#allocation4 + $0x9] sm:$0x40] %vm11903, %v11823
    %11970 = vst.msk [vmem:[#allocation4 + $0x11] sm:$0x40] %vm11903, %v11825
    %11971 = vst.msk [vmem:[#allocation4 + $0x19] sm:$0x40] %vm11903, %v11827
    %11972 = vst.msk [vmem:[#allocation4 + $0x21] sm:$0x40] %vm11903, %v11829
    %11973 = vst.msk [vmem:[#allocation4 + $0x29] sm:$0x40] %vm11903, %v11831
    %11974 = vst.msk [vmem:[#allocation4 + $0x31] sm:$0x40] %vm11903, %v11833
    %11975 = vst.msk [vmem:[#allocation4 + $0x39] sm:$0x40] %vm11903, %v11835
    %11976 = vst.msk [vmem:[#allocation4 + $0x41] sm:$0x40] %vm11903, %v11837
    %11977 = vst.msk [vmem:[#allocation4 + $0x49] sm:$0x40] %vm11903, %v11839
    %11978 = vst.msk [vmem:[#allocation4 + $0x51] sm:$0x40] %vm11903, %v11841
    %11979 = vst.msk [vmem:[#allocation4 + $0x59] sm:$0x40] %vm11903, %v11843
    %11980 = vst.msk [vmem:[#allocation4 + $0x61] sm:$0x40] %vm11903, %v11845
    %11981 = vst.msk [vmem:[#allocation4 + $0x69] sm:$0x40] %vm11903, %v11847
    %11982 = vst.msk [vmem:[#allocation4 + $0x71] sm:$0x40] %vm11903, %v11849
    %11983 = vst.msk [vmem:[#allocation4 + $0x79] sm:$0x40] %vm11903, %v11851
    %v11984 = vld [vmem:[#allocation4] sm:$0xff]
    %v11985 = vld [vmem:[#allocation4 + $0x8] sm:$0xff]
    %v11986 = vld [vmem:[#allocation4 + $0x10] sm:$0xff]
    %v11987 = vld [vmem:[#allocation4 + $0x18] sm:$0xff]
    %v11988 = vld [vmem:[#allocation4 + $0x20] sm:$0xff]
    %v11989 = vld [vmem:[#allocation4 + $0x28] sm:$0xff]
    %v11990 = vld [vmem:[#allocation4 + $0x30] sm:$0xff]
    %v11991 = vld [vmem:[#allocation4 + $0x38] sm:$0xff]
    %v11992 = vld [vmem:[#allocation4 + $0x40] sm:$0xff]
    %v11993 = vld [vmem:[#allocation4 + $0x48] sm:$0xff]
    %v11994 = vld [vmem:[#allocation4 + $0x50] sm:$0xff]
    %v11995 = vld [vmem:[#allocation4 + $0x58] sm:$0xff]
    %v11996 = vld [vmem:[#allocation4 + $0x60] sm:$0xff]
    %v11997 = vld [vmem:[#allocation4 + $0x68] sm:$0xff]
    %v11998 = vld [vmem:[#allocation4 + $0x70] sm:$0xff]
    %v11999 = vld [vmem:[#allocation4 + $0x78] sm:$0xff]
    %v12000 = vld [vmem:[%s7] sm:$0xff]
    %v12002 = vsel %vm275, %v11984, 0
    %v12005 = vsel %vm275, %v11985, 0
    %v12008 = vsel %vm275, %v11986, 0
    %v12011 = vsel %vm275, %v11987, 0
    %v12014 = vsel %vm275, %v11988, 0
    %v12017 = vsel %vm275, %v11989, 0
    %v12020 = vsel %vm275, %v11990, 0
    %v12023 = vsel %vm275, %v11991, 0
    %v12026 = vsel %vm275, %v11992, 0
    %v12029 = vsel %vm275, %v11993, 0
    %v12032 = vsel %vm275, %v11994, 0
    %v12035 = vsel %vm275, %v11995, 0
    %v12038 = vsel %vm275, %v11996, 0
    %v12041 = vsel %vm275, %v11997, 0
    %v12044 = vsel %vm275, %v11998, 0
    %v12047 = vsel %vm275, %v11999, 0
    %12049 = vmatpush.msra.mxu0 0.0
    %12050 = vmatpush.msra.mxu0 0.0
    %12051 = vmatpush.msra.mxu0 0.0
    %12052 = vmatpush.msra.mxu0 0.0
    %12053 = vmatpush.msra.mxu0 0.0
    %12054 = vmatpush.msra.mxu0 0.0
    %12055 = vmatpush.msra.mxu0 0.0
    %12056 = vmatpush.msra.mxu0 0.0
    %12057 = vmatpush.msra.mxu0 0.0
    %12058 = vmatpush.msra.mxu0 0.0
    %12059 = vmatpush.msra.mxu0 0.0
    %12060 = vmatpush.msra.mxu0 0.0
    %12061 = vmatpush.msra.mxu0 0.0
    %12062 = vmatpush.msra.mxu0 0.0
    %12063 = vmatpush.msra.mxu0 0.0
    %12064 = vmatpush.msra.mxu0 %v12000
    %12065 = vmatmul.f32.gmra.mxu0 %v12002
    %v12066 = vpop.f32.mrf.mxu0
    %v12067 = vadd.f32 0.0, %v12066
    %12068 = vmatmul.f32.gmra.mxu0 %v12005
    %v12069 = vpop.f32.mrf.mxu0
    %v12070 = vadd.f32 0.0, %v12069
    %12071 = vmatmul.f32.gmra.mxu0 %v12008
    %v12072 = vpop.f32.mrf.mxu0
    %v12073 = vadd.f32 0.0, %v12072
    %12074 = vmatmul.f32.gmra.mxu0 %v12011
    %v12075 = vpop.f32.mrf.mxu0
    %v12076 = vadd.f32 0.0, %v12075
    %12077 = vmatmul.f32.gmra.mxu0 %v12014
    %v12078 = vpop.f32.mrf.mxu0
    %v12079 = vadd.f32 0.0, %v12078
    %12080 = vmatmul.f32.gmra.mxu0 %v12017
    %v12081 = vpop.f32.mrf.mxu0
    %v12082 = vadd.f32 0.0, %v12081
    %12083 = vmatmul.f32.gmra.mxu0 %v12020
    %v12084 = vpop.f32.mrf.mxu0
    %v12085 = vadd.f32 0.0, %v12084
    %12086 = vmatmul.f32.gmra.mxu0 %v12023
    %v12087 = vpop.f32.mrf.mxu0
    %v12088 = vadd.f32 0.0, %v12087
    %12089 = vmatmul.f32.gmra.mxu0 %v12026
    %v12090 = vpop.f32.mrf.mxu0
    %v12091 = vadd.f32 0.0, %v12090
    %12092 = vmatmul.f32.gmra.mxu0 %v12029
    %v12093 = vpop.f32.mrf.mxu0
    %v12094 = vadd.f32 0.0, %v12093
    %12095 = vmatmul.f32.gmra.mxu0 %v12032
    %v12096 = vpop.f32.mrf.mxu0
    %v12097 = vadd.f32 0.0, %v12096
    %12098 = vmatmul.f32.gmra.mxu0 %v12035
    %v12099 = vpop.f32.mrf.mxu0
    %v12100 = vadd.f32 0.0, %v12099
    %12101 = vmatmul.f32.gmra.mxu0 %v12038
    %v12102 = vpop.f32.mrf.mxu0
    %v12103 = vadd.f32 0.0, %v12102
    %12104 = vmatmul.f32.gmra.mxu0 %v12041
    %v12105 = vpop.f32.mrf.mxu0
    %v12106 = vadd.f32 0.0, %v12105
    %12107 = vmatmul.f32.gmra.mxu0 %v12044
    %v12108 = vpop.f32.mrf.mxu0
    %v12109 = vadd.f32 0.0, %v12108
    %12110 = vmatmul.f32.gmra.mxu0 %v12047
    %v12111 = vpop.f32.mrf.mxu0
    %v12112 = vadd.f32 0.0, %v12111
    %12113 = vdwg.mxu0
    %v12114 = vld [vmem:[%s8] sm:$0x1]
    %v12115 = vld [vmem:[%s9] sm:$0x1]
    %v12116 = vsel %vm36, %v12067, 0.0
    %v12117 = vsel %vm36, %v12070, 0.0
    %v12118 = vadd.f32 %v12116, %v12117
    %v12119 = vsel %vm36, %v12073, 0.0
    %v12120 = vadd.f32 %v12118, %v12119
    %v12121 = vsel %vm36, %v12076, 0.0
    %v12122 = vadd.f32 %v12120, %v12121
    %v12123 = vsel %vm36, %v12079, 0.0
    %v12124 = vadd.f32 %v12122, %v12123
    %v12125 = vsel %vm36, %v12082, 0.0
    %v12126 = vadd.f32 %v12124, %v12125
    %v12127 = vsel %vm36, %v12085, 0.0
    %v12128 = vadd.f32 %v12126, %v12127
    %v12129 = vsel %vm36, %v12088, 0.0
    %v12130 = vadd.f32 %v12128, %v12129
    %v12131 = vsel %vm36, %v12091, 0.0
    %v12132 = vadd.f32 %v12130, %v12131
    %v12133 = vsel %vm36, %v12094, 0.0
    %v12134 = vadd.f32 %v12132, %v12133
    %v12135 = vsel %vm36, %v12097, 0.0
    %v12136 = vadd.f32 %v12134, %v12135
    %v12137 = vsel %vm36, %v12100, 0.0
    %v12138 = vadd.f32 %v12136, %v12137
    %v12139 = vsel %vm36, %v12103, 0.0
    %v12140 = vadd.f32 %v12138, %v12139
    %v12141 = vsel %vm36, %v12106, 0.0
    %v12142 = vadd.f32 %v12140, %v12141
    %v12143 = vsel %vm36, %v12109, 0.0
    %v12144 = vadd.f32 %v12142, %v12143
    %v12145 = vsel %vm36, %v12112, 0.0
    %v12146 = vadd.f32 %v12144, %v12145
    %v12147 = vrot.slane %v12146, 4
    %v12148 = vadd.f32 %v12146, %v12147
    %v12149 = vrot.slane %v12148, 2
    %v12150 = vadd.f32 %v12148, %v12149
    %v12151 = vrot.slane %v12150, 1
    %v12152 = vadd.f32 %v12150, %v12151
    %v12153 = vmul.f32 %v12067, %v12067
    %v12154 = vmul.f32 %v12070, %v12070
    %v12155 = vmul.f32 %v12073, %v12073
    %v12156 = vmul.f32 %v12076, %v12076
    %v12157 = vmul.f32 %v12079, %v12079
    %v12158 = vmul.f32 %v12082, %v12082
    %v12159 = vmul.f32 %v12085, %v12085
    %v12160 = vmul.f32 %v12088, %v12088
    %v12161 = vmul.f32 %v12091, %v12091
    %v12162 = vmul.f32 %v12094, %v12094
    %v12163 = vmul.f32 %v12097, %v12097
    %v12164 = vmul.f32 %v12100, %v12100
    %v12165 = vmul.f32 %v12103, %v12103
    %v12166 = vmul.f32 %v12106, %v12106
    %v12167 = vmul.f32 %v12109, %v12109
    %v12168 = vmul.f32 %v12112, %v12112
    %v12169 = vsel %vm36, %v12153, 0.0
    %v12170 = vsel %vm36, %v12154, 0.0
    %v12171 = vadd.f32 %v12169, %v12170
    %v12172 = vsel %vm36, %v12155, 0.0
    %v12173 = vadd.f32 %v12171, %v12172
    %v12174 = vsel %vm36, %v12156, 0.0
    %v12175 = vadd.f32 %v12173, %v12174
    %v12176 = vsel %vm36, %v12157, 0.0
    %v12177 = vadd.f32 %v12175, %v12176
    %v12178 = vsel %vm36, %v12158, 0.0
    %v12179 = vadd.f32 %v12177, %v12178
    %v12180 = vsel %vm36, %v12159, 0.0
    %v12181 = vadd.f32 %v12179, %v12180
    %v12182 = vsel %vm36, %v12160, 0.0
    %v12183 = vadd.f32 %v12181, %v12182
    %v12184 = vsel %vm36, %v12161, 0.0
    %v12185 = vadd.f32 %v12183, %v12184
    %v12186 = vsel %vm36, %v12162, 0.0
    %v12187 = vadd.f32 %v12185, %v12186
    %v12188 = vsel %vm36, %v12163, 0.0
    %v12189 = vadd.f32 %v12187, %v12188
    %v12190 = vsel %vm36, %v12164, 0.0
    %v12191 = vadd.f32 %v12189, %v12190
    %v12192 = vsel %vm36, %v12165, 0.0
    %v12193 = vadd.f32 %v12191, %v12192
    %v12194 = vsel %vm36, %v12166, 0.0
    %v12195 = vadd.f32 %v12193, %v12194
    %v12196 = vsel %vm36, %v12167, 0.0
    %v12197 = vadd.f32 %v12195, %v12196
    %v12198 = vsel %vm36, %v12168, 0.0
    %v12199 = vadd.f32 %v12197, %v12198
    %v12200 = vrot.slane %v12199, 4
    %v12201 = vadd.f32 %v12199, %v12200
    %v12202 = vrot.slane %v12201, 2
    %v12203 = vadd.f32 %v12201, %v12202
    %v12204 = vrot.slane %v12203, 1
    %v12205 = vadd.f32 %v12203, %v12204
    %v12206 = vmul.f32 %v12152, 0.0078125
    %v12207 = vmul.f32 %v12205, 0.0078125
    %v12208 = vmul.f32 %v12206, %v12206
    %v12209 = vsub.f32 %v12207, %v12208
    %v12210 = vmax.f32 %v12209, 0.0
    %v12211 = vsub.f32 %v12067, %v12206
    %v12212 = vsub.f32 %v12070, %v12206
    %v12213 = vsub.f32 %v12073, %v12206
    %v12214 = vsub.f32 %v12076, %v12206
    %v12215 = vsub.f32 %v12079, %v12206
    %v12216 = vsub.f32 %v12082, %v12206
    %v12217 = vsub.f32 %v12085, %v12206
    %v12218 = vsub.f32 %v12088, %v12206
    %v12219 = vsub.f32 %v12091, %v12206
    %v12220 = vsub.f32 %v12094, %v12206
    %v12221 = vsub.f32 %v12097, %v12206
    %v12222 = vsub.f32 %v12100, %v12206
    %v12223 = vsub.f32 %v12103, %v12206
    %v12224 = vsub.f32 %v12106, %v12206
    %v12225 = vsub.f32 %v12109, %v12206
    %v12226 = vsub.f32 %v12112, %v12206
    %v12227 = vadd.f32 %v12210, 1e-05
    %v12228 = vrsqrt.pop %v12227
    %v12229 = vmul.f32 %v12228, %v12227
    %v12230 = vmul.f32 %v12229, %v12228
    %v12231 = vmul.f32 0.5, %v12230
    %v12232 = vsub.f32 1.5, %v12231
    %v12233 = vmul.f32 %v12228, %v12232
    %vm12234 = vweird.f32 %v12227
    %vm12235 = vweird.f32 %v12228
    %vm12236 = vmor %vm12234, %vm12235
    %v12237 = vsel %vm12236, %v12228, %v12233
    %v12238 = vmul.f32 %v12211, %v12237
    %v12239 = vmul.f32 %v12212, %v12237
    %v12240 = vmul.f32 %v12213, %v12237
    %v12241 = vmul.f32 %v12214, %v12237
    %v12242 = vmul.f32 %v12215, %v12237
    %v12243 = vmul.f32 %v12216, %v12237
    %v12244 = vmul.f32 %v12217, %v12237
    %v12245 = vmul.f32 %v12218, %v12237
    %v12246 = vmul.f32 %v12219, %v12237
    %v12247 = vmul.f32 %v12220, %v12237
    %v12248 = vmul.f32 %v12221, %v12237
    %v12249 = vmul.f32 %v12222, %v12237
    %v12250 = vmul.f32 %v12223, %v12237
    %v12251 = vmul.f32 %v12224, %v12237
    %v12252 = vmul.f32 %v12225, %v12237
    %v12253 = vmul.f32 %v12226, %v12237
    %v12255 = vperm.slane %v12114, 0
    %v12257 = vmul.f32 %v12238, %v12255
    %v12258 = vmul.f32 %v12239, %v12255
    %v12259 = vmul.f32 %v12240, %v12255
    %v12260 = vmul.f32 %v12241, %v12255
    %v12261 = vmul.f32 %v12242, %v12255
    %v12262 = vmul.f32 %v12243, %v12255
    %v12263 = vmul.f32 %v12244, %v12255
    %v12264 = vmul.f32 %v12245, %v12255
    %v12265 = vmul.f32 %v12246, %v12255
    %v12266 = vmul.f32 %v12247, %v12255
    %v12267 = vmul.f32 %v12248, %v12255
    %v12268 = vmul.f32 %v12249, %v12255
    %v12269 = vmul.f32 %v12250, %v12255
    %v12270 = vmul.f32 %v12251, %v12255
    %v12271 = vmul.f32 %v12252, %v12255
    %v12272 = vmul.f32 %v12253, %v12255
    %v12274 = vperm.slane %v12115, 0
    %v12276 = vadd.f32 %v12257, %v12274
    %v12277 = vadd.f32 %v12258, %v12274
    %v12278 = vadd.f32 %v12259, %v12274
    %v12279 = vadd.f32 %v12260, %v12274
    %v12280 = vadd.f32 %v12261, %v12274
    %v12281 = vadd.f32 %v12262, %v12274
    %v12282 = vadd.f32 %v12263, %v12274
    %v12283 = vadd.f32 %v12264, %v12274
    %v12284 = vadd.f32 %v12265, %v12274
    %v12285 = vadd.f32 %v12266, %v12274
    %v12286 = vadd.f32 %v12267, %v12274
    %v12287 = vadd.f32 %v12268, %v12274
    %v12288 = vadd.f32 %v12269, %v12274
    %v12289 = vadd.f32 %v12270, %v12274
    %v12290 = vadd.f32 %v12271, %v12274
    %v12291 = vadd.f32 %v12272, %v12274
    %v12292 = vadd.f32 %v11804, %v12276
    %v12293 = vadd.f32 %v11805, %v12277
    %v12294 = vadd.f32 %v11806, %v12278
    %v12295 = vadd.f32 %v11807, %v12279
    %v12296 = vadd.f32 %v11808, %v12280
    %v12297 = vadd.f32 %v11809, %v12281
    %v12298 = vadd.f32 %v11810, %v12282
    %v12299 = vadd.f32 %v11811, %v12283
    %v12300 = vadd.f32 %v11812, %v12284
    %v12301 = vadd.f32 %v11813, %v12285
    %v12302 = vadd.f32 %v11814, %v12286
    %v12303 = vadd.f32 %v11815, %v12287
    %v12304 = vadd.f32 %v11816, %v12288
    %v12305 = vadd.f32 %v11817, %v12289
    %v12306 = vadd.f32 %v11818, %v12290
    %v12307 = vadd.f32 %v11819, %v12291
    %12308 = vst.msk [vmem:[#allocation5] sm:$0xff] %vm36, %v12292
    %12309 = vst.msk [vmem:[#allocation5 + $0x8] sm:$0xff] %vm36, %v12293
    %12310 = vst.msk [vmem:[#allocation5 + $0x10] sm:$0xff] %vm36, %v12294
    %12311 = vst.msk [vmem:[#allocation5 + $0x18] sm:$0xff] %vm36, %v12295
    %12312 = vst.msk [vmem:[#allocation5 + $0x20] sm:$0xff] %vm36, %v12296
    %12313 = vst.msk [vmem:[#allocation5 + $0x28] sm:$0xff] %vm36, %v12297
    %12314 = vst.msk [vmem:[#allocation5 + $0x30] sm:$0xff] %vm36, %v12298
    %12315 = vst.msk [vmem:[#allocation5 + $0x38] sm:$0xff] %vm36, %v12299
    %12316 = vst.msk [vmem:[#allocation5 + $0x40] sm:$0xff] %vm36, %v12300
    %12317 = vst.msk [vmem:[#allocation5 + $0x48] sm:$0xff] %vm36, %v12301
    %12318 = vst.msk [vmem:[#allocation5 + $0x50] sm:$0xff] %vm36, %v12302
    %12319 = vst.msk [vmem:[#allocation5 + $0x58] sm:$0xff] %vm36, %v12303
    %12320 = vst.msk [vmem:[#allocation5 + $0x60] sm:$0xff] %vm36, %v12304
    %12321 = vst.msk [vmem:[#allocation5 + $0x68] sm:$0xff] %vm36, %v12305
    %12322 = vst.msk [vmem:[#allocation5 + $0x70] sm:$0xff] %vm36, %v12306
    %12323 = vst.msk [vmem:[#allocation5 + $0x78] sm:$0xff] %vm36, %v12307
    // Predicated region
    $region42: #{tpu_custom_call.1} parent=1 // pred_check
      _
    $region43: #{tpu_custom_call.1} parent=1 // pred_check_branch
      %12325 = sbr.rel (0) target = $region45
    $region44: #{tpu_custom_call.1} parent=1 // pred_region
      %12327 = vsyncadd [#allocation6], 0
      %s12328 = sshll.u32 [#allocation5], 4
      %s12329 = int_to_ptr.vmem [resolvable:$true] %s12328
      %s12330 = sshll.u32 %s10, 4
      %s12331 = int_to_ptr.hbm [resolvable:$true] %s12330
      %12336 = dma.vmem_to_hbm [thread:$0]  %s12329, 2048, %s12331, [#allocation6], 128, 128, 8
    $region45: #{tpu_custom_call.1} parent=1 // pred_fallthru
      _
    // Predicated region
    $region46: #{tpu_custom_call.1} parent=1 // pred_check
      _
    $region47: #{tpu_custom_call.1} parent=1 // pred_check_branch
      %12338 = sbr.rel (0) target = $region49
    $region48: #{tpu_custom_call.1} parent=1 // pred_region
      %12340 = dma.done [#allocation6], 2048
    $region49: #{tpu_custom_call.1} parent=1 // pred_fallthru
      _
    %12341 = vsyncpa [#allocation6], 1

</llo_original>
